<compile_context>
chip_gen: v5e
topology: v5e:2x2
jax: 0.10.0
libtpu: 0.0.40
codegen_flags: <defaults>
</compile_context>

<pallas_src>
import jax
import jax.numpy as jnp
from jax.experimental import pallas as pl
from jax.experimental.pallas import tpu as pltpu


def _round_up(x, m):
    return (x + m - 1) // m * m


def _pick_block_b(batch, z_size):
    """Batch-tile size: keep the double-buffered (TB, Z, Z) r1/r2 blocks inside a
    ~4 MiB VMEM budget (counting (8,128) tile padding), so the whole kernel fits
    comfortably in the 16 MiB default scoped VMEM on v5e and smaller v7x VMEM."""
    padded_row = _round_up(z_size, 8) * _round_up(z_size, 128) * 4  # bytes/batch row
    budget = 4 * 1024 * 1024
    tb = budget // (4 * padded_row)            # 2 matrices x 2 pipeline buffers
    tb = max(8, min(256, (tb // 8) * 8))
    return min(tb, _round_up(batch, 8))


def _tri_sylvester_kernel(zk_ref, r1_ref, r2_ref, b_ref, z_ref, ldiag_ref):
    zk = zk_ref[...].astype(jnp.float32)        # (TB, 1, Z)
    r1 = r1_ref[...].astype(jnp.float32)        # (TB, Z, Z)
    r2 = r2_ref[...].astype(jnp.float32)        # (TB, Z, Z)
    b = b_ref[...].astype(jnp.float32)          # (TB, 1, Z)

    # r2qzb[n, 0, j] = sum_k zk[n, 0, k] * r2[n, j, k] + b[n, 0, j]
    r2qzb = jnp.einsum('bok,bjk->boj', zk, r2,
                       preferred_element_type=jnp.float32,
                       precision=jax.lax.Precision.HIGHEST) + b          # (TB, 1, Z)
    h = jnp.tanh(r2qzb)                                                  # (TB, 1, Z)

    # z'[n, 0, i] = zk[n, 0, i] + sum_j h[n, 0, j] * r1[n, i, j]
    delta = jnp.einsum('boj,bij->boi', h, r1,
                       preferred_element_type=jnp.float32,
                       precision=jax.lax.Precision.HIGHEST)              # (TB, 1, Z)
    z_ref[...] = (zk + delta).astype(z_ref.dtype)

    # diag(R1)*diag(R2) fused into one masked reduce:
    #   sum_i r1[n, i, k] * r2[n, i, k] * eye[i, k] = r1[n, k, k] * r2[n, k, k]
    zs = r1.shape[-1]
    row = jax.lax.broadcasted_iota(jnp.int32, (1, zs, zs), 1)
    col = jax.lax.broadcasted_iota(jnp.int32, (1, zs, zs), 2)
    eye = (row == col).astype(jnp.float32)                               # (1, Z, Z)
    diag_prod = jnp.sum(r1 * r2 * eye, axis=1, keepdims=True)            # (TB, 1, Z)

    der_h = 1.0 - h * h                                                  # tanh'(r2qzb)
    log_diag_j = jnp.log(jnp.abs(1.0 + der_h * diag_prod))               # (TB, 1, Z)
    ldiag_ref[...] = log_diag_j.astype(ldiag_ref.dtype)


def triangular_sylvester_forward(zk, r1, r2, b, permute_z=None, sum_ldj=True,
                                 block_b=None):
    """Forward pass of TriangularSylvester with Q = I.

    zk: (B, Z), r1/r2: (B, Z, Z), b: (B, 1, Z).
    Returns (z, log_det_j) with log_det_j of shape (B,) if sum_ldj else (B, Z).
    """
    if permute_z is not None:
        # TODO(synk): Q = P permutation path (permute_z) not implemented in the kernel.
        raise NotImplementedError("permute_z (Q = permutation) is not supported")

    B, Z = zk.shape
    zk3 = zk.reshape(B, 1, Z)
    b3 = b.reshape(B, 1, Z)

    if block_b is None:
        block_b = _pick_block_b(B, Z)
    Bp = _round_up(B, block_b)
    if Bp != B:
        pad = Bp - B
        zk3 = jnp.pad(zk3, ((0, pad), (0, 0), (0, 0)))
        r1 = jnp.pad(r1, ((0, pad), (0, 0), (0, 0)))
        r2 = jnp.pad(r2, ((0, pad), (0, 0), (0, 0)))
        b3 = jnp.pad(b3, ((0, pad), (0, 0), (0, 0)))

    grid = (Bp // block_b,)
    z_out, log_diag = pl.pallas_call(
        _tri_sylvester_kernel,
        out_shape=(jax.ShapeDtypeStruct((Bp, 1, Z), zk.dtype),
                   jax.ShapeDtypeStruct((Bp, 1, Z), jnp.float32)),
        grid_spec=pltpu.PrefetchScalarGridSpec(
            num_scalar_prefetch=0,
            grid=grid,
            in_specs=[
                pl.BlockSpec((block_b, 1, Z), lambda i: (i, 0, 0)),
                pl.BlockSpec((block_b, Z, Z), lambda i: (i, 0, 0)),
                pl.BlockSpec((block_b, Z, Z), lambda i: (i, 0, 0)),
                pl.BlockSpec((block_b, 1, Z), lambda i: (i, 0, 0)),
            ],
            out_specs=(
                pl.BlockSpec((block_b, 1, Z), lambda i: (i, 0, 0)),
                pl.BlockSpec((block_b, 1, Z), lambda i: (i, 0, 0)),
            ),
        ),
        compiler_params=pltpu.CompilerParams(
            dimension_semantics=("parallel",)),
    )(zk3, r1, r2, b3)

    z_out = z_out[:B, 0, :]
    log_diag = log_diag[:B, 0, :]
    if sum_ldj:
        return z_out, jnp.sum(log_diag, axis=-1)
    return z_out, log_diag


def _reference(zk, r1, r2, b):
    """Pure-JAX mirror of TriangularSylvester._forward (permute_z=None, sum_ldj=True)."""
    zk3 = zk[:, None, :]                                            # (B, 1, Z)
    r2qzb = jnp.matmul(zk3, jnp.swapaxes(r2, 1, 2),
                       precision=jax.lax.Precision.HIGHEST) + b      # (B, 1, Z)
    z = jnp.matmul(jnp.tanh(r2qzb), jnp.swapaxes(r1, 1, 2),
                   precision=jax.lax.Precision.HIGHEST) + zk3
    z = z[:, 0, :]
    diag_r1 = jnp.diagonal(r1, axis1=1, axis2=2)                    # (B, Z)
    diag_r2 = jnp.diagonal(r2, axis1=1, axis2=2)                    # (B, Z)
    diag_j = 1.0 + (1.0 - jnp.tanh(r2qzb[:, 0, :]) ** 2) * diag_r1 * diag_r2
    log_det = jnp.sum(jnp.log(jnp.abs(diag_j)), axis=-1)
    return z, log_det


if __name__ == "__main__":
    B, Z = 16, 32
    key = jax.random.PRNGKey(0)
    kz, k1, k2, kb = jax.random.split(key, 4)
    zk = jax.random.normal(kz, (B, Z), dtype=jnp.float32)
    # Amortized triangular flow parameters; scaled so 1 + h'*d1*d2 stays away
    # from zero (keeps the log-det comparison well conditioned).
    r1 = 0.2 * jnp.triu(jax.random.normal(k1, (B, Z, Z), dtype=jnp.float32))
    r2 = 0.2 * jnp.triu(jax.random.normal(k2, (B, Z, Z), dtype=jnp.float32))
    b = jax.random.normal(kb, (B, 1, Z), dtype=jnp.float32)

    z_out, log_det = triangular_sylvester_forward(zk, r1, r2, b)
    jax.block_until_ready((z_out, log_det))

    z_ref, ld_ref = _reference(zk, r1, r2, b)
    assert jnp.allclose(z_out, z_ref, atol=1e-4, rtol=1e-4), "z mismatch"
    assert jnp.allclose(log_det, ld_ref, atol=1e-4, rtol=1e-4), "log_det mismatch"

    print("KERNEL_OK")
</pallas_src>

<mosaic_0001>
module attributes {stable_mosaic.version = 11 : i64} {
  func.func @_tri_sylvester_kernel(%arg0: i32, %arg1: memref<16x1x32xf32, #tpu.memory_space<vmem>>, %arg2: memref<16x32x32xf32, #tpu.memory_space<vmem>>, %arg3: memref<16x32x32xf32, #tpu.memory_space<vmem>>, %arg4: memref<16x1x32xf32, #tpu.memory_space<vmem>>, %arg5: memref<16x1x32xf32, #tpu.memory_space<vmem>>, %arg6: memref<16x1x32xf32, #tpu.memory_space<vmem>>) attributes {dimension_semantics = [#tpu.dimension_semantics<parallel>], iteration_bounds = array<i64: 1>, scalar_prefetch = 0 : i64, scratch_operands = 0 : i64, tpu.core_type = #tpu.core_type<tc>, window_params = [{transform_indices = @transform_0, window_bounds = array<i64: 16, 1, 32>}, {transform_indices = @transform_1, window_bounds = array<i64: 16, 32, 32>}, {transform_indices = @transform_2, window_bounds = array<i64: 16, 32, 32>}, {transform_indices = @transform_3, window_bounds = array<i64: 16, 1, 32>}, {transform_indices = @transform_4, window_bounds = array<i64: 16, 1, 32>}, {transform_indices = @transform_5, window_bounds = array<i64: 16, 1, 32>}]} {
    %c0 = arith.constant 0 : index
    %c0_0 = arith.constant 0 : index
    %c0_1 = arith.constant 0 : index
    %0 = vector.load %arg1[%c0, %c0_0, %c0_1] : memref<16x1x32xf32, #tpu.memory_space<vmem>>, vector<16x1x32xf32>
    %c0_2 = arith.constant 0 : index
    %c0_3 = arith.constant 0 : index
    %c0_4 = arith.constant 0 : index
    %1 = vector.load %arg2[%c0_2, %c0_3, %c0_4] : memref<16x32x32xf32, #tpu.memory_space<vmem>>, vector<16x32x32xf32>
    %c0_5 = arith.constant 0 : index
    %c0_6 = arith.constant 0 : index
    %c0_7 = arith.constant 0 : index
    %2 = vector.load %arg3[%c0_5, %c0_6, %c0_7] : memref<16x32x32xf32, #tpu.memory_space<vmem>>, vector<16x32x32xf32>
    %c0_8 = arith.constant 0 : index
    %c0_9 = arith.constant 0 : index
    %c0_10 = arith.constant 0 : index
    %3 = vector.load %arg4[%c0_8, %c0_9, %c0_10] : memref<16x1x32xf32, #tpu.memory_space<vmem>>, vector<16x1x32xf32>
    "tpu.trace_start"() <{level = 10 : i32, message = "bok,bjk->boj"}> : () -> ()
    %cst = arith.constant dense<0.000000e+00> : vector<16x1x32xf32>
    %4 = tpu.matmul %0, %2, %cst {dimension_numbers = #tpu.dot_dimension_numbers<[2], [2], [1], [1], [0, 0, 0, 1, 1, 1], [0], [0]>, precision = #tpu.contract_precision<fp32>} : vector<16x1x32xf32>, vector<16x32x32xf32>, vector<16x1x32xf32> -> vector<16x1x32xf32>
    "tpu.trace_stop"() : () -> ()
    %5 = arith.addf %4, %3 : vector<16x1x32xf32>
    %6 = math.tanh %5 : vector<16x1x32xf32>
    "tpu.trace_start"() <{level = 10 : i32, message = "boj,bij->boi"}> : () -> ()
    %cst_11 = arith.constant dense<0.000000e+00> : vector<16x1x32xf32>
    %7 = tpu.matmul %6, %1, %cst_11 {dimension_numbers = #tpu.dot_dimension_numbers<[2], [2], [1], [1], [0, 0, 0, 1, 1, 1], [0], [0]>, precision = #tpu.contract_precision<fp32>} : vector<16x1x32xf32>, vector<16x32x32xf32>, vector<16x1x32xf32> -> vector<16x1x32xf32>
    "tpu.trace_stop"() : () -> ()
    %8 = arith.addf %0, %7 : vector<16x1x32xf32>
    %c0_12 = arith.constant 0 : index
    %c0_13 = arith.constant 0 : index
    %c0_14 = arith.constant 0 : index
    %9 = vector.load %arg5[%c0_12, %c0_13, %c0_14] : memref<16x1x32xf32, #tpu.memory_space<vmem>>, vector<16x1x32xf32>
    tpu.vector_store %arg5[%c0_12, %c0_13, %c0_14], %8 {strides = array<i32>} : memref<16x1x32xf32, #tpu.memory_space<vmem>>, vector<16x1x32xf32>,
    %10 = tpu.iota {dimensions = array<i32: 1>} : vector<1x32x32xi32>
    %11 = tpu.iota {dimensions = array<i32: 2>} : vector<1x32x32xi32>
    %12 = arith.cmpi eq, %10, %11 : vector<1x32x32xi32>
    %13 = arith.extui %12 : vector<1x32x32xi1> to vector<1x32x32xi32>
    %14 = arith.sitofp %13 : vector<1x32x32xi32> to vector<1x32x32xf32>
    %15 = arith.mulf %1, %2 : vector<16x32x32xf32>
    %16 = vector.broadcast %14 : vector<1x32x32xf32> to vector<16x32x32xf32>
    %17 = arith.mulf %15, %16 : vector<16x32x32xf32>
    %cst_15 = arith.constant dense<0.000000e+00> : vector<16x32xf32>
    %18 = vector.multi_reduction <add>, %17, %cst_15 [1] : vector<16x32x32xf32> to vector<16x32xf32>
    %19 = vector.shape_cast %18 : vector<16x32xf32> to vector<16x1x32xf32>
    %20 = arith.mulf %6, %6 : vector<16x1x32xf32>
    %cst_16 = arith.constant 1.000000e+00 : f32
    %21 = vector.broadcast %cst_16 : f32 to vector<16x1x32xf32>
    %22 = arith.subf %21, %20 : vector<16x1x32xf32>
    %23 = arith.mulf %22, %19 : vector<16x1x32xf32>
    %cst_17 = arith.constant 1.000000e+00 : f32
    %24 = vector.broadcast %cst_17 : f32 to vector<16x1x32xf32>
    %25 = arith.addf %24, %23 : vector<16x1x32xf32>
    %26 = math.absf %25 : vector<16x1x32xf32>
    %27 = math.log %26 : vector<16x1x32xf32>
    %c0_18 = arith.constant 0 : index
    %c0_19 = arith.constant 0 : index
    %c0_20 = arith.constant 0 : index
    %28 = vector.load %arg6[%c0_18, %c0_19, %c0_20] : memref<16x1x32xf32, #tpu.memory_space<vmem>>, vector<16x1x32xf32>
    tpu.vector_store %arg6[%c0_18, %c0_19, %c0_20], %27 {strides = array<i32>} : memref<16x1x32xf32, #tpu.memory_space<vmem>>, vector<16x1x32xf32>,
    return
  }
  func.func @transform_0(%arg0: i32) -> (i32, i32, i32) {
    %c0_i32 = arith.constant 0 : i32
    %c0_i32_0 = arith.constant 0 : i32
    %c0_i32_1 = arith.constant 0 : i32
    return %arg0, %c0_i32, %c0_i32_0 : i32, i32, i32
  }
  func.func @transform_1(%arg0: i32) -> (i32, i32, i32) {
    %c0_i32 = arith.constant 0 : i32
    %c0_i32_0 = arith.constant 0 : i32
    %c0_i32_1 = arith.constant 0 : i32
    return %arg0, %c0_i32, %c0_i32_0 : i32, i32, i32
  }
  func.func @transform_2(%arg0: i32) -> (i32, i32, i32) {
    %c0_i32 = arith.constant 0 : i32
    %c0_i32_0 = arith.constant 0 : i32
    %c0_i32_1 = arith.constant 0 : i32
    return %arg0, %c0_i32, %c0_i32_0 : i32, i32, i32
  }
  func.func @transform_3(%arg0: i32) -> (i32, i32, i32) {
    %c0_i32 = arith.constant 0 : i32
    %c0_i32_0 = arith.constant 0 : i32
    %c0_i32_1 = arith.constant 0 : i32
    return %arg0, %c0_i32, %c0_i32_0 : i32, i32, i32
  }
  func.func @transform_4(%arg0: i32) -> (i32, i32, i32) {
    %c0_i32 = arith.constant 0 : i32
    %c0_i32_0 = arith.constant 0 : i32
    %c0_i32_1 = arith.constant 0 : i32
    return %arg0, %c0_i32, %c0_i32_0 : i32, i32, i32
  }
  func.func @transform_5(%arg0: i32) -> (i32, i32, i32) {
    %c0_i32 = arith.constant 0 : i32
    %c0_i32_0 = arith.constant 0 : i32
    %c0_i32_1 = arith.constant 0 : i32
    return %arg0, %c0_i32, %c0_i32_0 : i32, i32, i32
  }
}

</mosaic_0001>

<llo_original>
// kernel: tpu_custom_call.1
$region0: #{tpu_custom_call.1}
  #allocation0 [shape = 'u32[]', space=smem, size = 0x4, offset = 0x4, fixed_abs, tag = 'smem constant byte address 0x4 - core index']
  #allocation1 [shape = 'u32[72,128]{1,0:T(1,128)}', space=vmem, size = 0x9000, scoped, tag = 'internal scratch']
  %s0 = inlined_call_operand.hbm [shape: f32[16,1,32], index: 0, kind: input, shape index: {}]
  %s1 = inlined_call_operand.hbm [shape: f32[16,32,32], index: 1, kind: input, shape index: {}]
  %s2 = inlined_call_operand.hbm [shape: f32[16,32,32], index: 2, kind: input, shape index: {}]
  %s3 = inlined_call_operand.hbm [shape: f32[16,1,32], index: 3, kind: input, shape index: {}]
  %s4 = inlined_call_operand.hbm [shape: f32[16,1,32], index: 4, kind: output, shape index: {0}]
  %s5 = inlined_call_operand.hbm [shape: f32[16,1,32], index: 5, kind: output, shape index: {1}]
  %6 = xla_tuple %s4, %s5
  %s7 = sld [smem:[#allocation0]]
  $region50: #{tpu_custom_call.1} parent=0
    _
  %s9 = ssub.s32 1, %s7
  %s10 = scalar_select 0, %s9, %s7
  $region1: #{tpu_custom_call.1} parent=0
    #allocation2 [shape = 'u8[8192]{0}', space=vmem, size = 0x2000, scoped, tag = 'input window, operand 0, single buffered']
    #allocation3 [shape = 's32[1]{0}', space=sflag, size = 0x4, scoped, tag = 'scoped memory for tpu_custom_call.1']
    #allocation4 [shape = 's32[1]{0}', space=sflag, size = 0x4, scoped, tag = 'scoped memory for tpu_custom_call.1']
    #allocation5 [shape = 'u8[262144]{0}', space=vmem, size = 0x40000, scoped, tag = 'input window, operand 1, single buffered']
    #allocation6 [shape = 's32[1]{0}', space=sflag, size = 0x4, scoped, tag = 'scoped memory for tpu_custom_call.1']
    #allocation7 [shape = 'u8[262144]{0}', space=vmem, size = 0x40000, scoped, tag = 'input window, operand 2, single buffered']
    #allocation8 [shape = 'u8[8192]{0}', space=vmem, size = 0x2000, scoped, tag = 'input window, operand 3, single buffered']
    #allocation9 [shape = 's32[1]{0}', space=sflag, size = 0x4, scoped, tag = 'scoped memory for tpu_custom_call.1']
    #allocation10 [shape = 'u8[8192]{0}', space=vmem, size = 0x2000, scoped, tag = 'output window, operand 0, single buffered']
    #allocation11 [shape = 'u8[8192]{0}', space=vmem, size = 0x2000, scoped, tag = 'output window, operand 1, single buffered']
    #allocation12 [shape = 's32[1]{0}', space=sflag, size = 0x4, scoped, tag = 'scoped memory for tpu_custom_call.1']
    %11 = vsyncpa [#allocation3], 0
    %12 = vsyncpa [#allocation6], 0
    %13 = vsyncpa [#allocation9], 0
    %14 = vsyncpa [#allocation4], 0
    %15 = vsyncpa [#allocation12], 0
    // Predicated region
    $region2: #{tpu_custom_call.1} parent=1 // pred_check
      _
    $region3: #{tpu_custom_call.1} parent=1 // pred_check_branch
      %17 = sbr.rel (0) target = $region5
    $region4: #{tpu_custom_call.1} parent=1 // pred_region
      %19 = vsyncadd [#allocation3], 0
      %s20 = sshll.u32 %s0, 4
      %s21 = int_to_ptr.hbm [resolvable:$true] %s20
      %s22 = sshll.u32 [#allocation2], 4
      %s23 = int_to_ptr.vmem [resolvable:$true] %s22
      %28 = dma.hbm_to_vmem [thread:$0]  %s21, 256, %s23, [#allocation3], 16, 16, 1
    $region5: #{tpu_custom_call.1} parent=1 // pred_fallthru
      _
    // Predicated region
    $region6: #{tpu_custom_call.1} parent=1 // pred_check
      _
    $region7: #{tpu_custom_call.1} parent=1 // pred_check_branch
      %30 = sbr.rel (0) target = $region9
    $region8: #{tpu_custom_call.1} parent=1 // pred_region
      %32 = vsyncadd [#allocation6], 0
      %s33 = sshll.u32 %s1, 4
      %s34 = int_to_ptr.hbm [resolvable:$true] %s33
      %s35 = sshll.u32 [#allocation5], 4
      %s36 = int_to_ptr.vmem [resolvable:$true] %s35
      %41 = dma.hbm_to_vmem [thread:$0]  %s34, 8192, %s36, [#allocation6], 128, 128, 8
    $region9: #{tpu_custom_call.1} parent=1 // pred_fallthru
      _
    // Predicated region
    $region10: #{tpu_custom_call.1} parent=1 // pred_check
      _
    $region11: #{tpu_custom_call.1} parent=1 // pred_check_branch
      %43 = sbr.rel (0) target = $region13
    $region12: #{tpu_custom_call.1} parent=1 // pred_region
      %45 = vsyncadd [#allocation6], 0
      %s46 = sshll.u32 %s2, 4
      %s47 = int_to_ptr.hbm [resolvable:$true] %s46
      %s48 = sshll.u32 [#allocation7], 4
      %s49 = int_to_ptr.vmem [resolvable:$true] %s48
      %54 = dma.hbm_to_vmem [thread:$0]  %s47, 8192, %s49, [#allocation6], 128, 128, 8
    $region13: #{tpu_custom_call.1} parent=1 // pred_fallthru
      _
    // Predicated region
    $region14: #{tpu_custom_call.1} parent=1 // pred_check
      _
    $region15: #{tpu_custom_call.1} parent=1 // pred_check_branch
      %56 = sbr.rel (0) target = $region17
    $region16: #{tpu_custom_call.1} parent=1 // pred_region
      %58 = vsyncadd [#allocation9], 0
      %s59 = sshll.u32 %s3, 4
      %s60 = int_to_ptr.hbm [resolvable:$true] %s59
      %s61 = sshll.u32 [#allocation8], 4
      %s62 = int_to_ptr.vmem [resolvable:$true] %s61
      %67 = dma.hbm_to_vmem [thread:$0]  %s60, 256, %s62, [#allocation9], 16, 16, 1
    $region17: #{tpu_custom_call.1} parent=1 // pred_fallthru
      _
    // Predicated region
    $region18: #{tpu_custom_call.1} parent=1 // pred_check
      _
    $region19: #{tpu_custom_call.1} parent=1 // pred_check_branch
      %69 = sbr.rel (0) target = $region21
    $region20: #{tpu_custom_call.1} parent=1 // pred_region
      %71 = dma.done [#allocation3], 256
    $region21: #{tpu_custom_call.1} parent=1 // pred_fallthru
      _
    // Predicated region
    $region22: #{tpu_custom_call.1} parent=1 // pred_check
      _
    $region23: #{tpu_custom_call.1} parent=1 // pred_check_branch
      %73 = sbr.rel (0) target = $region25
    $region24: #{tpu_custom_call.1} parent=1 // pred_region
      %75 = dma.done [#allocation6], 8192
    $region25: #{tpu_custom_call.1} parent=1 // pred_fallthru
      _
    // Predicated region
    $region26: #{tpu_custom_call.1} parent=1 // pred_check
      _
    $region27: #{tpu_custom_call.1} parent=1 // pred_check_branch
      %77 = sbr.rel (0) target = $region29
    $region28: #{tpu_custom_call.1} parent=1 // pred_region
      %79 = dma.done [#allocation6], 8192
    $region29: #{tpu_custom_call.1} parent=1 // pred_fallthru
      _
    // Predicated region
    $region30: #{tpu_custom_call.1} parent=1 // pred_check
      _
    $region31: #{tpu_custom_call.1} parent=1 // pred_check_branch
      %81 = sbr.rel (0) target = $region33
    $region32: #{tpu_custom_call.1} parent=1 // pred_region
      %83 = dma.done [#allocation9], 256
    $region33: #{tpu_custom_call.1} parent=1 // pred_fallthru
      _
    %v84 = vld [vmem:[#allocation2] sm:$0x1]
    %v85 = vld [vmem:[#allocation2 + $0x1] sm:$0x1]
    %v86 = vld [vmem:[#allocation2 + $0x2] sm:$0x1]
    %v87 = vld [vmem:[#allocation2 + $0x3] sm:$0x1]
    %v88 = vld [vmem:[#allocation2 + $0x4] sm:$0x1]
    %v89 = vld [vmem:[#allocation2 + $0x5] sm:$0x1]
    %v90 = vld [vmem:[#allocation2 + $0x6] sm:$0x1]
    %v91 = vld [vmem:[#allocation2 + $0x7] sm:$0x1]
    %v92 = vld [vmem:[#allocation2 + $0x8] sm:$0x1]
    %v93 = vld [vmem:[#allocation2 + $0x9] sm:$0x1]
    %v94 = vld [vmem:[#allocation2 + $0xa] sm:$0x1]
    %v95 = vld [vmem:[#allocation2 + $0xb] sm:$0x1]
    %v96 = vld [vmem:[#allocation2 + $0xc] sm:$0x1]
    %v97 = vld [vmem:[#allocation2 + $0xd] sm:$0x1]
    %v98 = vld [vmem:[#allocation2 + $0xe] sm:$0x1]
    %v99 = vld [vmem:[#allocation2 + $0xf] sm:$0x1]
    %v100 = vld [vmem:[#allocation5] sm:$0xff]
    %v101 = vld [vmem:[#allocation5 + $0x8] sm:$0xff]
    %v102 = vld [vmem:[#allocation5 + $0x10] sm:$0xff]
    %v103 = vld [vmem:[#allocation5 + $0x18] sm:$0xff]
    %v104 = vld [vmem:[#allocation5 + $0x20] sm:$0xff]
    %v105 = vld [vmem:[#allocation5 + $0x28] sm:$0xff]
    %v106 = vld [vmem:[#allocation5 + $0x30] sm:$0xff]
    %v107 = vld [vmem:[#allocation5 + $0x38] sm:$0xff]
    %v108 = vld [vmem:[#allocation5 + $0x40] sm:$0xff]
    %v109 = vld [vmem:[#allocation5 + $0x48] sm:$0xff]
    %v110 = vld [vmem:[#allocation5 + $0x50] sm:$0xff]
    %v111 = vld [vmem:[#allocation5 + $0x58] sm:$0xff]
    %v112 = vld [vmem:[#allocation5 + $0x60] sm:$0xff]
    %v113 = vld [vmem:[#allocation5 + $0x68] sm:$0xff]
    %v114 = vld [vmem:[#allocation5 + $0x70] sm:$0xff]
    %v115 = vld [vmem:[#allocation5 + $0x78] sm:$0xff]
    %v116 = vld [vmem:[#allocation5 + $0x80] sm:$0xff]
    %v117 = vld [vmem:[#allocation5 + $0x88] sm:$0xff]
    %v118 = vld [vmem:[#allocation5 + $0x90] sm:$0xff]
    %v119 = vld [vmem:[#allocation5 + $0x98] sm:$0xff]
    %v120 = vld [vmem:[#allocation5 + $0xa0] sm:$0xff]
    %v121 = vld [vmem:[#allocation5 + $0xa8] sm:$0xff]
    %v122 = vld [vmem:[#allocation5 + $0xb0] sm:$0xff]
    %v123 = vld [vmem:[#allocation5 + $0xb8] sm:$0xff]
    %v124 = vld [vmem:[#allocation5 + $0xc0] sm:$0xff]
    %v125 = vld [vmem:[#allocation5 + $0xc8] sm:$0xff]
    %v126 = vld [vmem:[#allocation5 + $0xd0] sm:$0xff]
    %v127 = vld [vmem:[#allocation5 + $0xd8] sm:$0xff]
    %v128 = vld [vmem:[#allocation5 + $0xe0] sm:$0xff]
    %v129 = vld [vmem:[#allocation5 + $0xe8] sm:$0xff]
    %v130 = vld [vmem:[#allocation5 + $0xf0] sm:$0xff]
    %v131 = vld [vmem:[#allocation5 + $0xf8] sm:$0xff]
    %v132 = vld [vmem:[#allocation5 + $0x100] sm:$0xff]
    %v133 = vld [vmem:[#allocation5 + $0x108] sm:$0xff]
    %v134 = vld [vmem:[#allocation5 + $0x110] sm:$0xff]
    %v135 = vld [vmem:[#allocation5 + $0x118] sm:$0xff]
    %v136 = vld [vmem:[#allocation5 + $0x120] sm:$0xff]
    %v137 = vld [vmem:[#allocation5 + $0x128] sm:$0xff]
    %v138 = vld [vmem:[#allocation5 + $0x130] sm:$0xff]
    %v139 = vld [vmem:[#allocation5 + $0x138] sm:$0xff]
    %v140 = vld [vmem:[#allocation5 + $0x140] sm:$0xff]
    %v141 = vld [vmem:[#allocation5 + $0x148] sm:$0xff]
    %v142 = vld [vmem:[#allocation5 + $0x150] sm:$0xff]
    %v143 = vld [vmem:[#allocation5 + $0x158] sm:$0xff]
    %v144 = vld [vmem:[#allocation5 + $0x160] sm:$0xff]
    %v145 = vld [vmem:[#allocation5 + $0x168] sm:$0xff]
    %v146 = vld [vmem:[#allocation5 + $0x170] sm:$0xff]
    %v147 = vld [vmem:[#allocation5 + $0x178] sm:$0xff]
    %v148 = vld [vmem:[#allocation5 + $0x180] sm:$0xff]
    %v149 = vld [vmem:[#allocation5 + $0x188] sm:$0xff]
    %v150 = vld [vmem:[#allocation5 + $0x190] sm:$0xff]
    %v151 = vld [vmem:[#allocation5 + $0x198] sm:$0xff]
    %v152 = vld [vmem:[#allocation5 + $0x1a0] sm:$0xff]
    %v153 = vld [vmem:[#allocation5 + $0x1a8] sm:$0xff]
    %v154 = vld [vmem:[#allocation5 + $0x1b0] sm:$0xff]
    %v155 = vld [vmem:[#allocation5 + $0x1b8] sm:$0xff]
    %v156 = vld [vmem:[#allocation5 + $0x1c0] sm:$0xff]
    %v157 = vld [vmem:[#allocation5 + $0x1c8] sm:$0xff]
    %v158 = vld [vmem:[#allocation5 + $0x1d0] sm:$0xff]
    %v159 = vld [vmem:[#allocation5 + $0x1d8] sm:$0xff]
    %v160 = vld [vmem:[#allocation5 + $0x1e0] sm:$0xff]
    %v161 = vld [vmem:[#allocation5 + $0x1e8] sm:$0xff]
    %v162 = vld [vmem:[#allocation5 + $0x1f0] sm:$0xff]
    %v163 = vld [vmem:[#allocation5 + $0x1f8] sm:$0xff]
    %v164 = vld [vmem:[#allocation7] sm:$0xff]
    %v165 = vld [vmem:[#allocation7 + $0x8] sm:$0xff]
    %v166 = vld [vmem:[#allocation7 + $0x10] sm:$0xff]
    %v167 = vld [vmem:[#allocation7 + $0x18] sm:$0xff]
    %v168 = vld [vmem:[#allocation7 + $0x20] sm:$0xff]
    %v169 = vld [vmem:[#allocation7 + $0x28] sm:$0xff]
    %v170 = vld [vmem:[#allocation7 + $0x30] sm:$0xff]
    %v171 = vld [vmem:[#allocation7 + $0x38] sm:$0xff]
    %v172 = vld [vmem:[#allocation7 + $0x40] sm:$0xff]
    %v173 = vld [vmem:[#allocation7 + $0x48] sm:$0xff]
    %v174 = vld [vmem:[#allocation7 + $0x50] sm:$0xff]
    %v175 = vld [vmem:[#allocation7 + $0x58] sm:$0xff]
    %v176 = vld [vmem:[#allocation7 + $0x60] sm:$0xff]
    %v177 = vld [vmem:[#allocation7 + $0x68] sm:$0xff]
    %v178 = vld [vmem:[#allocation7 + $0x70] sm:$0xff]
    %v179 = vld [vmem:[#allocation7 + $0x78] sm:$0xff]
    %v180 = vld [vmem:[#allocation7 + $0x80] sm:$0xff]
    %v181 = vld [vmem:[#allocation7 + $0x88] sm:$0xff]
    %v182 = vld [vmem:[#allocation7 + $0x90] sm:$0xff]
    %v183 = vld [vmem:[#allocation7 + $0x98] sm:$0xff]
    %v184 = vld [vmem:[#allocation7 + $0xa0] sm:$0xff]
    %v185 = vld [vmem:[#allocation7 + $0xa8] sm:$0xff]
    %v186 = vld [vmem:[#allocation7 + $0xb0] sm:$0xff]
    %v187 = vld [vmem:[#allocation7 + $0xb8] sm:$0xff]
    %v188 = vld [vmem:[#allocation7 + $0xc0] sm:$0xff]
    %v189 = vld [vmem:[#allocation7 + $0xc8] sm:$0xff]
    %v190 = vld [vmem:[#allocation7 + $0xd0] sm:$0xff]
    %v191 = vld [vmem:[#allocation7 + $0xd8] sm:$0xff]
    %v192 = vld [vmem:[#allocation7 + $0xe0] sm:$0xff]
    %v193 = vld [vmem:[#allocation7 + $0xe8] sm:$0xff]
    %v194 = vld [vmem:[#allocation7 + $0xf0] sm:$0xff]
    %v195 = vld [vmem:[#allocation7 + $0xf8] sm:$0xff]
    %v196 = vld [vmem:[#allocation7 + $0x100] sm:$0xff]
    %v197 = vld [vmem:[#allocation7 + $0x108] sm:$0xff]
    %v198 = vld [vmem:[#allocation7 + $0x110] sm:$0xff]
    %v199 = vld [vmem:[#allocation7 + $0x118] sm:$0xff]
    %v200 = vld [vmem:[#allocation7 + $0x120] sm:$0xff]
    %v201 = vld [vmem:[#allocation7 + $0x128] sm:$0xff]
    %v202 = vld [vmem:[#allocation7 + $0x130] sm:$0xff]
    %v203 = vld [vmem:[#allocation7 + $0x138] sm:$0xff]
    %v204 = vld [vmem:[#allocation7 + $0x140] sm:$0xff]
    %v205 = vld [vmem:[#allocation7 + $0x148] sm:$0xff]
    %v206 = vld [vmem:[#allocation7 + $0x150] sm:$0xff]
    %v207 = vld [vmem:[#allocation7 + $0x158] sm:$0xff]
    %v208 = vld [vmem:[#allocation7 + $0x160] sm:$0xff]
    %v209 = vld [vmem:[#allocation7 + $0x168] sm:$0xff]
    %v210 = vld [vmem:[#allocation7 + $0x170] sm:$0xff]
    %v211 = vld [vmem:[#allocation7 + $0x178] sm:$0xff]
    %v212 = vld [vmem:[#allocation7 + $0x180] sm:$0xff]
    %v213 = vld [vmem:[#allocation7 + $0x188] sm:$0xff]
    %v214 = vld [vmem:[#allocation7 + $0x190] sm:$0xff]
    %v215 = vld [vmem:[#allocation7 + $0x198] sm:$0xff]
    %v216 = vld [vmem:[#allocation7 + $0x1a0] sm:$0xff]
    %v217 = vld [vmem:[#allocation7 + $0x1a8] sm:$0xff]
    %v218 = vld [vmem:[#allocation7 + $0x1b0] sm:$0xff]
    %v219 = vld [vmem:[#allocation7 + $0x1b8] sm:$0xff]
    %v220 = vld [vmem:[#allocation7 + $0x1c0] sm:$0xff]
    %v221 = vld [vmem:[#allocation7 + $0x1c8] sm:$0xff]
    %v222 = vld [vmem:[#allocation7 + $0x1d0] sm:$0xff]
    %v223 = vld [vmem:[#allocation7 + $0x1d8] sm:$0xff]
    %v224 = vld [vmem:[#allocation7 + $0x1e0] sm:$0xff]
    %v225 = vld [vmem:[#allocation7 + $0x1e8] sm:$0xff]
    %v226 = vld [vmem:[#allocation7 + $0x1f0] sm:$0xff]
    %v227 = vld [vmem:[#allocation7 + $0x1f8] sm:$0xff]
    %v228 = vld [vmem:[#allocation8] sm:$0x1]
    %v229 = vld [vmem:[#allocation8 + $0x1] sm:$0x1]
    %v230 = vld [vmem:[#allocation8 + $0x2] sm:$0x1]
    %v231 = vld [vmem:[#allocation8 + $0x3] sm:$0x1]
    %v232 = vld [vmem:[#allocation8 + $0x4] sm:$0x1]
    %v233 = vld [vmem:[#allocation8 + $0x5] sm:$0x1]
    %v234 = vld [vmem:[#allocation8 + $0x6] sm:$0x1]
    %v235 = vld [vmem:[#allocation8 + $0x7] sm:$0x1]
    %v236 = vld [vmem:[#allocation8 + $0x8] sm:$0x1]
    %v237 = vld [vmem:[#allocation8 + $0x9] sm:$0x1]
    %v238 = vld [vmem:[#allocation8 + $0xa] sm:$0x1]
    %v239 = vld [vmem:[#allocation8 + $0xb] sm:$0x1]
    %v240 = vld [vmem:[#allocation8 + $0xc] sm:$0x1]
    %v241 = vld [vmem:[#allocation8 + $0xd] sm:$0x1]
    %v242 = vld [vmem:[#allocation8 + $0xe] sm:$0x1]
    %v243 = vld [vmem:[#allocation8 + $0xf] sm:$0x1]
    %vm244 = vcmask 261120
    %v246 = vsel %vm244, %v84, 0
    %v249 = vsel %vm244, %v164, 0
    %v252 = vsel %vm244, %v165, 0
    %v255 = vsel %vm244, %v166, 0
    %v258 = vsel %vm244, %v167, 0
    %260 = vmatpush.xpose.msra.mxu0 0.0
    %261 = vmatpush.xpose.msra.mxu0 0.0
    %262 = vmatpush.xpose.msra.mxu0 0.0
    %263 = vmatpush.xpose.msra.mxu0 0.0
    %264 = vmatpush.xpose.msra.mxu0 0.0
    %265 = vmatpush.xpose.msra.mxu0 0.0
    %266 = vmatpush.xpose.msra.mxu0 0.0
    %267 = vmatpush.xpose.msra.mxu0 0.0
    %268 = vmatpush.xpose.msra.mxu0 0.0
    %269 = vmatpush.xpose.msra.mxu0 0.0
    %270 = vmatpush.xpose.msra.mxu0 0.0
    %271 = vmatpush.xpose.msra.mxu0 0.0
    %v272 = vand.u32 %v258, 4294901760
    %273 = vmatpush.xpose.msra.mxu0 %v272
    %v274 = vand.u32 %v255, 4294901760
    %275 = vmatpush.xpose.msra.mxu0 %v274
    %v276 = vand.u32 %v252, 4294901760
    %277 = vmatpush.xpose.msra.mxu0 %v276
    %v278 = vand.u32 %v249, 4294901760
    %279 = vmatpush.xpose.msra.mxu0 %v278
    %v280 = vand.u32 %v246, 4294901760
    %v281 = vsub.f32 %v246, %v280
    %v282 = vand.u32 %v281, 4294901760
    %v283 = vsub.f32 %v281, %v282
    %v284 = vand.u32 %v283, 4294901760
    %285 = vmatmul.f32.gmra.mxu0 %v284
    %v286 = vpop.f32.mrf.mxu0
    %v287 = vadd.f32 %v228, %v286
    %288 = vdwg.mxu0
    %289 = vmatpush.xpose.msra.mxu0 0.0
    %290 = vmatpush.xpose.msra.mxu0 0.0
    %291 = vmatpush.xpose.msra.mxu0 0.0
    %292 = vmatpush.xpose.msra.mxu0 0.0
    %293 = vmatpush.xpose.msra.mxu0 0.0
    %294 = vmatpush.xpose.msra.mxu0 0.0
    %295 = vmatpush.xpose.msra.mxu0 0.0
    %296 = vmatpush.xpose.msra.mxu0 0.0
    %297 = vmatpush.xpose.msra.mxu0 0.0
    %298 = vmatpush.xpose.msra.mxu0 0.0
    %299 = vmatpush.xpose.msra.mxu0 0.0
    %300 = vmatpush.xpose.msra.mxu0 0.0
    %v301 = vand.u32 %v258, 4294901760
    %v302 = vsub.f32 %v258, %v301
    %v303 = vand.u32 %v302, 4294901760
    %v304 = vsub.f32 %v302, %v303
    %v305 = vand.u32 %v304, 4294901760
    %306 = vmatpush.xpose.msra.mxu0 %v305
    %v307 = vand.u32 %v255, 4294901760
    %v308 = vsub.f32 %v255, %v307
    %v309 = vand.u32 %v308, 4294901760
    %v310 = vsub.f32 %v308, %v309
    %v311 = vand.u32 %v310, 4294901760
    %312 = vmatpush.xpose.msra.mxu0 %v311
    %v313 = vand.u32 %v252, 4294901760
    %v314 = vsub.f32 %v252, %v313
    %v315 = vand.u32 %v314, 4294901760
    %v316 = vsub.f32 %v314, %v315
    %v317 = vand.u32 %v316, 4294901760
    %318 = vmatpush.xpose.msra.mxu0 %v317
    %v319 = vand.u32 %v249, 4294901760
    %v320 = vsub.f32 %v249, %v319
    %v321 = vand.u32 %v320, 4294901760
    %v322 = vsub.f32 %v320, %v321
    %v323 = vand.u32 %v322, 4294901760
    %324 = vmatpush.xpose.msra.mxu0 %v323
    %v325 = vand.u32 %v246, 4294901760
    %326 = vmatmul.f32.gmra.mxu0 %v325
    %v327 = vpop.f32.mrf.mxu0
    %v328 = vadd.f32 %v287, %v327
    %329 = vdwg.mxu0
    %330 = vmatpush.xpose.msra.mxu0 0.0
    %331 = vmatpush.xpose.msra.mxu0 0.0
    %332 = vmatpush.xpose.msra.mxu0 0.0
    %333 = vmatpush.xpose.msra.mxu0 0.0
    %334 = vmatpush.xpose.msra.mxu0 0.0
    %335 = vmatpush.xpose.msra.mxu0 0.0
    %336 = vmatpush.xpose.msra.mxu0 0.0
    %337 = vmatpush.xpose.msra.mxu0 0.0
    %338 = vmatpush.xpose.msra.mxu0 0.0
    %339 = vmatpush.xpose.msra.mxu0 0.0
    %340 = vmatpush.xpose.msra.mxu0 0.0
    %341 = vmatpush.xpose.msra.mxu0 0.0
    %v342 = vand.u32 %v258, 4294901760
    %v343 = vsub.f32 %v258, %v342
    %344 = vmatpush.xpose.msra.mxu0 %v343
    %v345 = vand.u32 %v255, 4294901760
    %v346 = vsub.f32 %v255, %v345
    %347 = vmatpush.xpose.msra.mxu0 %v346
    %v348 = vand.u32 %v252, 4294901760
    %v349 = vsub.f32 %v252, %v348
    %350 = vmatpush.xpose.msra.mxu0 %v349
    %v351 = vand.u32 %v249, 4294901760
    %v352 = vsub.f32 %v249, %v351
    %353 = vmatpush.xpose.msra.mxu0 %v352
    %v354 = vand.u32 %v246, 4294901760
    %v355 = vsub.f32 %v246, %v354
    %356 = vmatmul.f32.gmra.mxu0 %v355
    %v357 = vpop.f32.mrf.mxu0
    %v358 = vadd.f32 %v328, %v357
    %359 = vdwg.mxu0
    %360 = vmatpush.xpose.msra.mxu0 0.0
    %361 = vmatpush.xpose.msra.mxu0 0.0
    %362 = vmatpush.xpose.msra.mxu0 0.0
    %363 = vmatpush.xpose.msra.mxu0 0.0
    %364 = vmatpush.xpose.msra.mxu0 0.0
    %365 = vmatpush.xpose.msra.mxu0 0.0
    %366 = vmatpush.xpose.msra.mxu0 0.0
    %367 = vmatpush.xpose.msra.mxu0 0.0
    %368 = vmatpush.xpose.msra.mxu0 0.0
    %369 = vmatpush.xpose.msra.mxu0 0.0
    %370 = vmatpush.xpose.msra.mxu0 0.0
    %371 = vmatpush.xpose.msra.mxu0 0.0
    %v372 = vand.u32 %v258, 4294901760
    %373 = vmatpush.xpose.msra.mxu0 %v372
    %v374 = vand.u32 %v255, 4294901760
    %375 = vmatpush.xpose.msra.mxu0 %v374
    %v376 = vand.u32 %v252, 4294901760
    %377 = vmatpush.xpose.msra.mxu0 %v376
    %v378 = vand.u32 %v249, 4294901760
    %379 = vmatpush.xpose.msra.mxu0 %v378
    %v380 = vand.u32 %v246, 4294901760
    %v381 = vsub.f32 %v246, %v380
    %v382 = vand.u32 %v381, 4294901760
    %383 = vmatmul.f32.gmra.mxu0 %v382
    %v384 = vpop.f32.mrf.mxu0
    %v385 = vadd.f32 %v358, %v384
    %386 = vdwg.mxu0
    %387 = vmatpush.xpose.msra.mxu0 0.0
    %388 = vmatpush.xpose.msra.mxu0 0.0
    %389 = vmatpush.xpose.msra.mxu0 0.0
    %390 = vmatpush.xpose.msra.mxu0 0.0
    %391 = vmatpush.xpose.msra.mxu0 0.0
    %392 = vmatpush.xpose.msra.mxu0 0.0
    %393 = vmatpush.xpose.msra.mxu0 0.0
    %394 = vmatpush.xpose.msra.mxu0 0.0
    %395 = vmatpush.xpose.msra.mxu0 0.0
    %396 = vmatpush.xpose.msra.mxu0 0.0
    %397 = vmatpush.xpose.msra.mxu0 0.0
    %398 = vmatpush.xpose.msra.mxu0 0.0
    %v399 = vand.u32 %v258, 4294901760
    %v400 = vsub.f32 %v258, %v399
    %v401 = vand.u32 %v400, 4294901760
    %402 = vmatpush.xpose.msra.mxu0 %v401
    %v403 = vand.u32 %v255, 4294901760
    %v404 = vsub.f32 %v255, %v403
    %v405 = vand.u32 %v404, 4294901760
    %406 = vmatpush.xpose.msra.mxu0 %v405
    %v407 = vand.u32 %v252, 4294901760
    %v408 = vsub.f32 %v252, %v407
    %v409 = vand.u32 %v408, 4294901760
    %410 = vmatpush.xpose.msra.mxu0 %v409
    %v411 = vand.u32 %v249, 4294901760
    %v412 = vsub.f32 %v249, %v411
    %v413 = vand.u32 %v412, 4294901760
    %414 = vmatpush.xpose.msra.mxu0 %v413
    %v415 = vand.u32 %v246, 4294901760
    %416 = vmatmul.f32.gmra.mxu0 %v415
    %v417 = vpop.f32.mrf.mxu0
    %v418 = vadd.f32 %v385, %v417
    %419 = vdwg.mxu0
    %420 = vmatpush.xpose.msra.mxu0 0.0
    %421 = vmatpush.xpose.msra.mxu0 0.0
    %422 = vmatpush.xpose.msra.mxu0 0.0
    %423 = vmatpush.xpose.msra.mxu0 0.0
    %424 = vmatpush.xpose.msra.mxu0 0.0
    %425 = vmatpush.xpose.msra.mxu0 0.0
    %426 = vmatpush.xpose.msra.mxu0 0.0
    %427 = vmatpush.xpose.msra.mxu0 0.0
    %428 = vmatpush.xpose.msra.mxu0 0.0
    %429 = vmatpush.xpose.msra.mxu0 0.0
    %430 = vmatpush.xpose.msra.mxu0 0.0
    %431 = vmatpush.xpose.msra.mxu0 0.0
    %v432 = vand.u32 %v258, 4294901760
    %433 = vmatpush.xpose.msra.mxu0 %v432
    %v434 = vand.u32 %v255, 4294901760
    %435 = vmatpush.xpose.msra.mxu0 %v434
    %v436 = vand.u32 %v252, 4294901760
    %437 = vmatpush.xpose.msra.mxu0 %v436
    %v438 = vand.u32 %v249, 4294901760
    %439 = vmatpush.xpose.msra.mxu0 %v438
    %v440 = vand.u32 %v246, 4294901760
    %441 = vmatmul.f32.gmra.mxu0 %v440
    %v442 = vpop.f32.mrf.mxu0
    %v443 = vadd.f32 %v418, %v442
    %444 = vdwg.mxu0
    %v446 = vsel %vm244, %v85, 0
    %v449 = vsel %vm244, %v168, 0
    %v452 = vsel %vm244, %v169, 0
    %v455 = vsel %vm244, %v170, 0
    %v458 = vsel %vm244, %v171, 0
    %460 = vmatpush.xpose.msra.mxu0 0.0
    %461 = vmatpush.xpose.msra.mxu0 0.0
    %462 = vmatpush.xpose.msra.mxu0 0.0
    %463 = vmatpush.xpose.msra.mxu0 0.0
    %464 = vmatpush.xpose.msra.mxu0 0.0
    %465 = vmatpush.xpose.msra.mxu0 0.0
    %466 = vmatpush.xpose.msra.mxu0 0.0
    %467 = vmatpush.xpose.msra.mxu0 0.0
    %468 = vmatpush.xpose.msra.mxu0 0.0
    %469 = vmatpush.xpose.msra.mxu0 0.0
    %470 = vmatpush.xpose.msra.mxu0 0.0
    %471 = vmatpush.xpose.msra.mxu0 0.0
    %v472 = vand.u32 %v458, 4294901760
    %473 = vmatpush.xpose.msra.mxu0 %v472
    %v474 = vand.u32 %v455, 4294901760
    %475 = vmatpush.xpose.msra.mxu0 %v474
    %v476 = vand.u32 %v452, 4294901760
    %477 = vmatpush.xpose.msra.mxu0 %v476
    %v478 = vand.u32 %v449, 4294901760
    %479 = vmatpush.xpose.msra.mxu0 %v478
    %v480 = vand.u32 %v446, 4294901760
    %v481 = vsub.f32 %v446, %v480
    %v482 = vand.u32 %v481, 4294901760
    %v483 = vsub.f32 %v481, %v482
    %v484 = vand.u32 %v483, 4294901760
    %485 = vmatmul.f32.gmra.mxu0 %v484
    %v486 = vpop.f32.mrf.mxu0
    %v487 = vadd.f32 %v229, %v486
    %488 = vdwg.mxu0
    %489 = vmatpush.xpose.msra.mxu0 0.0
    %490 = vmatpush.xpose.msra.mxu0 0.0
    %491 = vmatpush.xpose.msra.mxu0 0.0
    %492 = vmatpush.xpose.msra.mxu0 0.0
    %493 = vmatpush.xpose.msra.mxu0 0.0
    %494 = vmatpush.xpose.msra.mxu0 0.0
    %495 = vmatpush.xpose.msra.mxu0 0.0
    %496 = vmatpush.xpose.msra.mxu0 0.0
    %497 = vmatpush.xpose.msra.mxu0 0.0
    %498 = vmatpush.xpose.msra.mxu0 0.0
    %499 = vmatpush.xpose.msra.mxu0 0.0
    %500 = vmatpush.xpose.msra.mxu0 0.0
    %v501 = vand.u32 %v458, 4294901760
    %v502 = vsub.f32 %v458, %v501
    %v503 = vand.u32 %v502, 4294901760
    %v504 = vsub.f32 %v502, %v503
    %v505 = vand.u32 %v504, 4294901760
    %506 = vmatpush.xpose.msra.mxu0 %v505
    %v507 = vand.u32 %v455, 4294901760
    %v508 = vsub.f32 %v455, %v507
    %v509 = vand.u32 %v508, 4294901760
    %v510 = vsub.f32 %v508, %v509
    %v511 = vand.u32 %v510, 4294901760
    %512 = vmatpush.xpose.msra.mxu0 %v511
    %v513 = vand.u32 %v452, 4294901760
    %v514 = vsub.f32 %v452, %v513
    %v515 = vand.u32 %v514, 4294901760
    %v516 = vsub.f32 %v514, %v515
    %v517 = vand.u32 %v516, 4294901760
    %518 = vmatpush.xpose.msra.mxu0 %v517
    %v519 = vand.u32 %v449, 4294901760
    %v520 = vsub.f32 %v449, %v519
    %v521 = vand.u32 %v520, 4294901760
    %v522 = vsub.f32 %v520, %v521
    %v523 = vand.u32 %v522, 4294901760
    %524 = vmatpush.xpose.msra.mxu0 %v523
    %v525 = vand.u32 %v446, 4294901760
    %526 = vmatmul.f32.gmra.mxu0 %v525
    %v527 = vpop.f32.mrf.mxu0
    %v528 = vadd.f32 %v487, %v527
    %529 = vdwg.mxu0
    %530 = vmatpush.xpose.msra.mxu0 0.0
    %531 = vmatpush.xpose.msra.mxu0 0.0
    %532 = vmatpush.xpose.msra.mxu0 0.0
    %533 = vmatpush.xpose.msra.mxu0 0.0
    %534 = vmatpush.xpose.msra.mxu0 0.0
    %535 = vmatpush.xpose.msra.mxu0 0.0
    %536 = vmatpush.xpose.msra.mxu0 0.0
    %537 = vmatpush.xpose.msra.mxu0 0.0
    %538 = vmatpush.xpose.msra.mxu0 0.0
    %539 = vmatpush.xpose.msra.mxu0 0.0
    %540 = vmatpush.xpose.msra.mxu0 0.0
    %541 = vmatpush.xpose.msra.mxu0 0.0
    %v542 = vand.u32 %v458, 4294901760
    %v543 = vsub.f32 %v458, %v542
    %544 = vmatpush.xpose.msra.mxu0 %v543
    %v545 = vand.u32 %v455, 4294901760
    %v546 = vsub.f32 %v455, %v545
    %547 = vmatpush.xpose.msra.mxu0 %v546
    %v548 = vand.u32 %v452, 4294901760
    %v549 = vsub.f32 %v452, %v548
    %550 = vmatpush.xpose.msra.mxu0 %v549
    %v551 = vand.u32 %v449, 4294901760
    %v552 = vsub.f32 %v449, %v551
    %553 = vmatpush.xpose.msra.mxu0 %v552
    %v554 = vand.u32 %v446, 4294901760
    %v555 = vsub.f32 %v446, %v554
    %556 = vmatmul.f32.gmra.mxu0 %v555
    %v557 = vpop.f32.mrf.mxu0
    %v558 = vadd.f32 %v528, %v557
    %559 = vdwg.mxu0
    %560 = vmatpush.xpose.msra.mxu0 0.0
    %561 = vmatpush.xpose.msra.mxu0 0.0
    %562 = vmatpush.xpose.msra.mxu0 0.0
    %563 = vmatpush.xpose.msra.mxu0 0.0
    %564 = vmatpush.xpose.msra.mxu0 0.0
    %565 = vmatpush.xpose.msra.mxu0 0.0
    %566 = vmatpush.xpose.msra.mxu0 0.0
    %567 = vmatpush.xpose.msra.mxu0 0.0
    %568 = vmatpush.xpose.msra.mxu0 0.0
    %569 = vmatpush.xpose.msra.mxu0 0.0
    %570 = vmatpush.xpose.msra.mxu0 0.0
    %571 = vmatpush.xpose.msra.mxu0 0.0
    %v572 = vand.u32 %v458, 4294901760
    %573 = vmatpush.xpose.msra.mxu0 %v572
    %v574 = vand.u32 %v455, 4294901760
    %575 = vmatpush.xpose.msra.mxu0 %v574
    %v576 = vand.u32 %v452, 4294901760
    %577 = vmatpush.xpose.msra.mxu0 %v576
    %v578 = vand.u32 %v449, 4294901760
    %579 = vmatpush.xpose.msra.mxu0 %v578
    %v580 = vand.u32 %v446, 4294901760
    %v581 = vsub.f32 %v446, %v580
    %v582 = vand.u32 %v581, 4294901760
    %583 = vmatmul.f32.gmra.mxu0 %v582
    %v584 = vpop.f32.mrf.mxu0
    %v585 = vadd.f32 %v558, %v584
    %586 = vdwg.mxu0
    %587 = vmatpush.xpose.msra.mxu0 0.0
    %588 = vmatpush.xpose.msra.mxu0 0.0
    %589 = vmatpush.xpose.msra.mxu0 0.0
    %590 = vmatpush.xpose.msra.mxu0 0.0
    %591 = vmatpush.xpose.msra.mxu0 0.0
    %592 = vmatpush.xpose.msra.mxu0 0.0
    %593 = vmatpush.xpose.msra.mxu0 0.0
    %594 = vmatpush.xpose.msra.mxu0 0.0
    %595 = vmatpush.xpose.msra.mxu0 0.0
    %596 = vmatpush.xpose.msra.mxu0 0.0
    %597 = vmatpush.xpose.msra.mxu0 0.0
    %598 = vmatpush.xpose.msra.mxu0 0.0
    %v599 = vand.u32 %v458, 4294901760
    %v600 = vsub.f32 %v458, %v599
    %v601 = vand.u32 %v600, 4294901760
    %602 = vmatpush.xpose.msra.mxu0 %v601
    %v603 = vand.u32 %v455, 4294901760
    %v604 = vsub.f32 %v455, %v603
    %v605 = vand.u32 %v604, 4294901760
    %606 = vmatpush.xpose.msra.mxu0 %v605
    %v607 = vand.u32 %v452, 4294901760
    %v608 = vsub.f32 %v452, %v607
    %v609 = vand.u32 %v608, 4294901760
    %610 = vmatpush.xpose.msra.mxu0 %v609
    %v611 = vand.u32 %v449, 4294901760
    %v612 = vsub.f32 %v449, %v611
    %v613 = vand.u32 %v612, 4294901760
    %614 = vmatpush.xpose.msra.mxu0 %v613
    %v615 = vand.u32 %v446, 4294901760
    %616 = vmatmul.f32.gmra.mxu0 %v615
    %v617 = vpop.f32.mrf.mxu0
    %v618 = vadd.f32 %v585, %v617
    %619 = vdwg.mxu0
    %620 = vmatpush.xpose.msra.mxu0 0.0
    %621 = vmatpush.xpose.msra.mxu0 0.0
    %622 = vmatpush.xpose.msra.mxu0 0.0
    %623 = vmatpush.xpose.msra.mxu0 0.0
    %624 = vmatpush.xpose.msra.mxu0 0.0
    %625 = vmatpush.xpose.msra.mxu0 0.0
    %626 = vmatpush.xpose.msra.mxu0 0.0
    %627 = vmatpush.xpose.msra.mxu0 0.0
    %628 = vmatpush.xpose.msra.mxu0 0.0
    %629 = vmatpush.xpose.msra.mxu0 0.0
    %630 = vmatpush.xpose.msra.mxu0 0.0
    %631 = vmatpush.xpose.msra.mxu0 0.0
    %v632 = vand.u32 %v458, 4294901760
    %633 = vmatpush.xpose.msra.mxu0 %v632
    %v634 = vand.u32 %v455, 4294901760
    %635 = vmatpush.xpose.msra.mxu0 %v634
    %v636 = vand.u32 %v452, 4294901760
    %637 = vmatpush.xpose.msra.mxu0 %v636
    %v638 = vand.u32 %v449, 4294901760
    %639 = vmatpush.xpose.msra.mxu0 %v638
    %v640 = vand.u32 %v446, 4294901760
    %641 = vmatmul.f32.gmra.mxu0 %v640
    %v642 = vpop.f32.mrf.mxu0
    %v643 = vadd.f32 %v618, %v642
    %644 = vdwg.mxu0
    %v646 = vsel %vm244, %v86, 0
    %v649 = vsel %vm244, %v172, 0
    %v652 = vsel %vm244, %v173, 0
    %v655 = vsel %vm244, %v174, 0
    %v658 = vsel %vm244, %v175, 0
    %660 = vmatpush.xpose.msra.mxu0 0.0
    %661 = vmatpush.xpose.msra.mxu0 0.0
    %662 = vmatpush.xpose.msra.mxu0 0.0
    %663 = vmatpush.xpose.msra.mxu0 0.0
    %664 = vmatpush.xpose.msra.mxu0 0.0
    %665 = vmatpush.xpose.msra.mxu0 0.0
    %666 = vmatpush.xpose.msra.mxu0 0.0
    %667 = vmatpush.xpose.msra.mxu0 0.0
    %668 = vmatpush.xpose.msra.mxu0 0.0
    %669 = vmatpush.xpose.msra.mxu0 0.0
    %670 = vmatpush.xpose.msra.mxu0 0.0
    %671 = vmatpush.xpose.msra.mxu0 0.0
    %v672 = vand.u32 %v658, 4294901760
    %673 = vmatpush.xpose.msra.mxu0 %v672
    %v674 = vand.u32 %v655, 4294901760
    %675 = vmatpush.xpose.msra.mxu0 %v674
    %v676 = vand.u32 %v652, 4294901760
    %677 = vmatpush.xpose.msra.mxu0 %v676
    %v678 = vand.u32 %v649, 4294901760
    %679 = vmatpush.xpose.msra.mxu0 %v678
    %v680 = vand.u32 %v646, 4294901760
    %v681 = vsub.f32 %v646, %v680
    %v682 = vand.u32 %v681, 4294901760
    %v683 = vsub.f32 %v681, %v682
    %v684 = vand.u32 %v683, 4294901760
    %685 = vmatmul.f32.gmra.mxu0 %v684
    %v686 = vpop.f32.mrf.mxu0
    %v687 = vadd.f32 %v230, %v686
    %688 = vdwg.mxu0
    %689 = vmatpush.xpose.msra.mxu0 0.0
    %690 = vmatpush.xpose.msra.mxu0 0.0
    %691 = vmatpush.xpose.msra.mxu0 0.0
    %692 = vmatpush.xpose.msra.mxu0 0.0
    %693 = vmatpush.xpose.msra.mxu0 0.0
    %694 = vmatpush.xpose.msra.mxu0 0.0
    %695 = vmatpush.xpose.msra.mxu0 0.0
    %696 = vmatpush.xpose.msra.mxu0 0.0
    %697 = vmatpush.xpose.msra.mxu0 0.0
    %698 = vmatpush.xpose.msra.mxu0 0.0
    %699 = vmatpush.xpose.msra.mxu0 0.0
    %700 = vmatpush.xpose.msra.mxu0 0.0
    %v701 = vand.u32 %v658, 4294901760
    %v702 = vsub.f32 %v658, %v701
    %v703 = vand.u32 %v702, 4294901760
    %v704 = vsub.f32 %v702, %v703
    %v705 = vand.u32 %v704, 4294901760
    %706 = vmatpush.xpose.msra.mxu0 %v705
    %v707 = vand.u32 %v655, 4294901760
    %v708 = vsub.f32 %v655, %v707
    %v709 = vand.u32 %v708, 4294901760
    %v710 = vsub.f32 %v708, %v709
    %v711 = vand.u32 %v710, 4294901760
    %712 = vmatpush.xpose.msra.mxu0 %v711
    %v713 = vand.u32 %v652, 4294901760
    %v714 = vsub.f32 %v652, %v713
    %v715 = vand.u32 %v714, 4294901760
    %v716 = vsub.f32 %v714, %v715
    %v717 = vand.u32 %v716, 4294901760
    %718 = vmatpush.xpose.msra.mxu0 %v717
    %v719 = vand.u32 %v649, 4294901760
    %v720 = vsub.f32 %v649, %v719
    %v721 = vand.u32 %v720, 4294901760
    %v722 = vsub.f32 %v720, %v721
    %v723 = vand.u32 %v722, 4294901760
    %724 = vmatpush.xpose.msra.mxu0 %v723
    %v725 = vand.u32 %v646, 4294901760
    %726 = vmatmul.f32.gmra.mxu0 %v725
    %v727 = vpop.f32.mrf.mxu0
    %v728 = vadd.f32 %v687, %v727
    %729 = vdwg.mxu0
    %730 = vmatpush.xpose.msra.mxu0 0.0
    %731 = vmatpush.xpose.msra.mxu0 0.0
    %732 = vmatpush.xpose.msra.mxu0 0.0
    %733 = vmatpush.xpose.msra.mxu0 0.0
    %734 = vmatpush.xpose.msra.mxu0 0.0
    %735 = vmatpush.xpose.msra.mxu0 0.0
    %736 = vmatpush.xpose.msra.mxu0 0.0
    %737 = vmatpush.xpose.msra.mxu0 0.0
    %738 = vmatpush.xpose.msra.mxu0 0.0
    %739 = vmatpush.xpose.msra.mxu0 0.0
    %740 = vmatpush.xpose.msra.mxu0 0.0
    %741 = vmatpush.xpose.msra.mxu0 0.0
    %v742 = vand.u32 %v658, 4294901760
    %v743 = vsub.f32 %v658, %v742
    %744 = vmatpush.xpose.msra.mxu0 %v743
    %v745 = vand.u32 %v655, 4294901760
    %v746 = vsub.f32 %v655, %v745
    %747 = vmatpush.xpose.msra.mxu0 %v746
    %v748 = vand.u32 %v652, 4294901760
    %v749 = vsub.f32 %v652, %v748
    %750 = vmatpush.xpose.msra.mxu0 %v749
    %v751 = vand.u32 %v649, 4294901760
    %v752 = vsub.f32 %v649, %v751
    %753 = vmatpush.xpose.msra.mxu0 %v752
    %v754 = vand.u32 %v646, 4294901760
    %v755 = vsub.f32 %v646, %v754
    %756 = vmatmul.f32.gmra.mxu0 %v755
    %v757 = vpop.f32.mrf.mxu0
    %v758 = vadd.f32 %v728, %v757
    %759 = vdwg.mxu0
    %760 = vmatpush.xpose.msra.mxu0 0.0
    %761 = vmatpush.xpose.msra.mxu0 0.0
    %762 = vmatpush.xpose.msra.mxu0 0.0
    %763 = vmatpush.xpose.msra.mxu0 0.0
    %764 = vmatpush.xpose.msra.mxu0 0.0
    %765 = vmatpush.xpose.msra.mxu0 0.0
    %766 = vmatpush.xpose.msra.mxu0 0.0
    %767 = vmatpush.xpose.msra.mxu0 0.0
    %768 = vmatpush.xpose.msra.mxu0 0.0
    %769 = vmatpush.xpose.msra.mxu0 0.0
    %770 = vmatpush.xpose.msra.mxu0 0.0
    %771 = vmatpush.xpose.msra.mxu0 0.0
    %v772 = vand.u32 %v658, 4294901760
    %773 = vmatpush.xpose.msra.mxu0 %v772
    %v774 = vand.u32 %v655, 4294901760
    %775 = vmatpush.xpose.msra.mxu0 %v774
    %v776 = vand.u32 %v652, 4294901760
    %777 = vmatpush.xpose.msra.mxu0 %v776
    %v778 = vand.u32 %v649, 4294901760
    %779 = vmatpush.xpose.msra.mxu0 %v778
    %v780 = vand.u32 %v646, 4294901760
    %v781 = vsub.f32 %v646, %v780
    %v782 = vand.u32 %v781, 4294901760
    %783 = vmatmul.f32.gmra.mxu0 %v782
    %v784 = vpop.f32.mrf.mxu0
    %v785 = vadd.f32 %v758, %v784
    %786 = vdwg.mxu0
    %787 = vmatpush.xpose.msra.mxu0 0.0
    %788 = vmatpush.xpose.msra.mxu0 0.0
    %789 = vmatpush.xpose.msra.mxu0 0.0
    %790 = vmatpush.xpose.msra.mxu0 0.0
    %791 = vmatpush.xpose.msra.mxu0 0.0
    %792 = vmatpush.xpose.msra.mxu0 0.0
    %793 = vmatpush.xpose.msra.mxu0 0.0
    %794 = vmatpush.xpose.msra.mxu0 0.0
    %795 = vmatpush.xpose.msra.mxu0 0.0
    %796 = vmatpush.xpose.msra.mxu0 0.0
    %797 = vmatpush.xpose.msra.mxu0 0.0
    %798 = vmatpush.xpose.msra.mxu0 0.0
    %v799 = vand.u32 %v658, 4294901760
    %v800 = vsub.f32 %v658, %v799
    %v801 = vand.u32 %v800, 4294901760
    %802 = vmatpush.xpose.msra.mxu0 %v801
    %v803 = vand.u32 %v655, 4294901760
    %v804 = vsub.f32 %v655, %v803
    %v805 = vand.u32 %v804, 4294901760
    %806 = vmatpush.xpose.msra.mxu0 %v805
    %v807 = vand.u32 %v652, 4294901760
    %v808 = vsub.f32 %v652, %v807
    %v809 = vand.u32 %v808, 4294901760
    %810 = vmatpush.xpose.msra.mxu0 %v809
    %v811 = vand.u32 %v649, 4294901760
    %v812 = vsub.f32 %v649, %v811
    %v813 = vand.u32 %v812, 4294901760
    %814 = vmatpush.xpose.msra.mxu0 %v813
    %v815 = vand.u32 %v646, 4294901760
    %816 = vmatmul.f32.gmra.mxu0 %v815
    %v817 = vpop.f32.mrf.mxu0
    %v818 = vadd.f32 %v785, %v817
    %819 = vdwg.mxu0
    %820 = vmatpush.xpose.msra.mxu0 0.0
    %821 = vmatpush.xpose.msra.mxu0 0.0
    %822 = vmatpush.xpose.msra.mxu0 0.0
    %823 = vmatpush.xpose.msra.mxu0 0.0
    %824 = vmatpush.xpose.msra.mxu0 0.0
    %825 = vmatpush.xpose.msra.mxu0 0.0
    %826 = vmatpush.xpose.msra.mxu0 0.0
    %827 = vmatpush.xpose.msra.mxu0 0.0
    %828 = vmatpush.xpose.msra.mxu0 0.0
    %829 = vmatpush.xpose.msra.mxu0 0.0
    %830 = vmatpush.xpose.msra.mxu0 0.0
    %831 = vmatpush.xpose.msra.mxu0 0.0
    %v832 = vand.u32 %v658, 4294901760
    %833 = vmatpush.xpose.msra.mxu0 %v832
    %v834 = vand.u32 %v655, 4294901760
    %835 = vmatpush.xpose.msra.mxu0 %v834
    %v836 = vand.u32 %v652, 4294901760
    %837 = vmatpush.xpose.msra.mxu0 %v836
    %v838 = vand.u32 %v649, 4294901760
    %839 = vmatpush.xpose.msra.mxu0 %v838
    %v840 = vand.u32 %v646, 4294901760
    %841 = vmatmul.f32.gmra.mxu0 %v840
    %v842 = vpop.f32.mrf.mxu0
    %v843 = vadd.f32 %v818, %v842
    %844 = vdwg.mxu0
    %v846 = vsel %vm244, %v87, 0
    %v849 = vsel %vm244, %v176, 0
    %v852 = vsel %vm244, %v177, 0
    %v855 = vsel %vm244, %v178, 0
    %v858 = vsel %vm244, %v179, 0
    %860 = vmatpush.xpose.msra.mxu0 0.0
    %861 = vmatpush.xpose.msra.mxu0 0.0
    %862 = vmatpush.xpose.msra.mxu0 0.0
    %863 = vmatpush.xpose.msra.mxu0 0.0
    %864 = vmatpush.xpose.msra.mxu0 0.0
    %865 = vmatpush.xpose.msra.mxu0 0.0
    %866 = vmatpush.xpose.msra.mxu0 0.0
    %867 = vmatpush.xpose.msra.mxu0 0.0
    %868 = vmatpush.xpose.msra.mxu0 0.0
    %869 = vmatpush.xpose.msra.mxu0 0.0
    %870 = vmatpush.xpose.msra.mxu0 0.0
    %871 = vmatpush.xpose.msra.mxu0 0.0
    %v872 = vand.u32 %v858, 4294901760
    %873 = vmatpush.xpose.msra.mxu0 %v872
    %v874 = vand.u32 %v855, 4294901760
    %875 = vmatpush.xpose.msra.mxu0 %v874
    %v876 = vand.u32 %v852, 4294901760
    %877 = vmatpush.xpose.msra.mxu0 %v876
    %v878 = vand.u32 %v849, 4294901760
    %879 = vmatpush.xpose.msra.mxu0 %v878
    %v880 = vand.u32 %v846, 4294901760
    %v881 = vsub.f32 %v846, %v880
    %v882 = vand.u32 %v881, 4294901760
    %v883 = vsub.f32 %v881, %v882
    %v884 = vand.u32 %v883, 4294901760
    %885 = vmatmul.f32.gmra.mxu0 %v884
    %v886 = vpop.f32.mrf.mxu0
    %v887 = vadd.f32 %v231, %v886
    %888 = vdwg.mxu0
    %889 = vmatpush.xpose.msra.mxu0 0.0
    %890 = vmatpush.xpose.msra.mxu0 0.0
    %891 = vmatpush.xpose.msra.mxu0 0.0
    %892 = vmatpush.xpose.msra.mxu0 0.0
    %893 = vmatpush.xpose.msra.mxu0 0.0
    %894 = vmatpush.xpose.msra.mxu0 0.0
    %895 = vmatpush.xpose.msra.mxu0 0.0
    %896 = vmatpush.xpose.msra.mxu0 0.0
    %897 = vmatpush.xpose.msra.mxu0 0.0
    %898 = vmatpush.xpose.msra.mxu0 0.0
    %899 = vmatpush.xpose.msra.mxu0 0.0
    %900 = vmatpush.xpose.msra.mxu0 0.0
    %v901 = vand.u32 %v858, 4294901760
    %v902 = vsub.f32 %v858, %v901
    %v903 = vand.u32 %v902, 4294901760
    %v904 = vsub.f32 %v902, %v903
    %v905 = vand.u32 %v904, 4294901760
    %906 = vmatpush.xpose.msra.mxu0 %v905
    %v907 = vand.u32 %v855, 4294901760
    %v908 = vsub.f32 %v855, %v907
    %v909 = vand.u32 %v908, 4294901760
    %v910 = vsub.f32 %v908, %v909
    %v911 = vand.u32 %v910, 4294901760
    %912 = vmatpush.xpose.msra.mxu0 %v911
    %v913 = vand.u32 %v852, 4294901760
    %v914 = vsub.f32 %v852, %v913
    %v915 = vand.u32 %v914, 4294901760
    %v916 = vsub.f32 %v914, %v915
    %v917 = vand.u32 %v916, 4294901760
    %918 = vmatpush.xpose.msra.mxu0 %v917
    %v919 = vand.u32 %v849, 4294901760
    %v920 = vsub.f32 %v849, %v919
    %v921 = vand.u32 %v920, 4294901760
    %v922 = vsub.f32 %v920, %v921
    %v923 = vand.u32 %v922, 4294901760
    %924 = vmatpush.xpose.msra.mxu0 %v923
    %v925 = vand.u32 %v846, 4294901760
    %926 = vmatmul.f32.gmra.mxu0 %v925
    %v927 = vpop.f32.mrf.mxu0
    %v928 = vadd.f32 %v887, %v927
    %929 = vdwg.mxu0
    %930 = vmatpush.xpose.msra.mxu0 0.0
    %931 = vmatpush.xpose.msra.mxu0 0.0
    %932 = vmatpush.xpose.msra.mxu0 0.0
    %933 = vmatpush.xpose.msra.mxu0 0.0
    %934 = vmatpush.xpose.msra.mxu0 0.0
    %935 = vmatpush.xpose.msra.mxu0 0.0
    %936 = vmatpush.xpose.msra.mxu0 0.0
    %937 = vmatpush.xpose.msra.mxu0 0.0
    %938 = vmatpush.xpose.msra.mxu0 0.0
    %939 = vmatpush.xpose.msra.mxu0 0.0
    %940 = vmatpush.xpose.msra.mxu0 0.0
    %941 = vmatpush.xpose.msra.mxu0 0.0
    %v942 = vand.u32 %v858, 4294901760
    %v943 = vsub.f32 %v858, %v942
    %944 = vmatpush.xpose.msra.mxu0 %v943
    %v945 = vand.u32 %v855, 4294901760
    %v946 = vsub.f32 %v855, %v945
    %947 = vmatpush.xpose.msra.mxu0 %v946
    %v948 = vand.u32 %v852, 4294901760
    %v949 = vsub.f32 %v852, %v948
    %950 = vmatpush.xpose.msra.mxu0 %v949
    %v951 = vand.u32 %v849, 4294901760
    %v952 = vsub.f32 %v849, %v951
    %953 = vmatpush.xpose.msra.mxu0 %v952
    %v954 = vand.u32 %v846, 4294901760
    %v955 = vsub.f32 %v846, %v954
    %956 = vmatmul.f32.gmra.mxu0 %v955
    %v957 = vpop.f32.mrf.mxu0
    %v958 = vadd.f32 %v928, %v957
    %959 = vdwg.mxu0
    %960 = vmatpush.xpose.msra.mxu0 0.0
    %961 = vmatpush.xpose.msra.mxu0 0.0
    %962 = vmatpush.xpose.msra.mxu0 0.0
    %963 = vmatpush.xpose.msra.mxu0 0.0
    %964 = vmatpush.xpose.msra.mxu0 0.0
    %965 = vmatpush.xpose.msra.mxu0 0.0
    %966 = vmatpush.xpose.msra.mxu0 0.0
    %967 = vmatpush.xpose.msra.mxu0 0.0
    %968 = vmatpush.xpose.msra.mxu0 0.0
    %969 = vmatpush.xpose.msra.mxu0 0.0
    %970 = vmatpush.xpose.msra.mxu0 0.0
    %971 = vmatpush.xpose.msra.mxu0 0.0
    %v972 = vand.u32 %v858, 4294901760
    %973 = vmatpush.xpose.msra.mxu0 %v972
    %v974 = vand.u32 %v855, 4294901760
    %975 = vmatpush.xpose.msra.mxu0 %v974
    %v976 = vand.u32 %v852, 4294901760
    %977 = vmatpush.xpose.msra.mxu0 %v976
    %v978 = vand.u32 %v849, 4294901760
    %979 = vmatpush.xpose.msra.mxu0 %v978
    %v980 = vand.u32 %v846, 4294901760
    %v981 = vsub.f32 %v846, %v980
    %v982 = vand.u32 %v981, 4294901760
    %983 = vmatmul.f32.gmra.mxu0 %v982
    %v984 = vpop.f32.mrf.mxu0
    %v985 = vadd.f32 %v958, %v984
    %986 = vdwg.mxu0
    %987 = vmatpush.xpose.msra.mxu0 0.0
    %988 = vmatpush.xpose.msra.mxu0 0.0
    %989 = vmatpush.xpose.msra.mxu0 0.0
    %990 = vmatpush.xpose.msra.mxu0 0.0
    %991 = vmatpush.xpose.msra.mxu0 0.0
    %992 = vmatpush.xpose.msra.mxu0 0.0
    %993 = vmatpush.xpose.msra.mxu0 0.0
    %994 = vmatpush.xpose.msra.mxu0 0.0
    %995 = vmatpush.xpose.msra.mxu0 0.0
    %996 = vmatpush.xpose.msra.mxu0 0.0
    %997 = vmatpush.xpose.msra.mxu0 0.0
    %998 = vmatpush.xpose.msra.mxu0 0.0
    %v999 = vand.u32 %v858, 4294901760
    %v1000 = vsub.f32 %v858, %v999
    %v1001 = vand.u32 %v1000, 4294901760
    %1002 = vmatpush.xpose.msra.mxu0 %v1001
    %v1003 = vand.u32 %v855, 4294901760
    %v1004 = vsub.f32 %v855, %v1003
    %v1005 = vand.u32 %v1004, 4294901760
    %1006 = vmatpush.xpose.msra.mxu0 %v1005
    %v1007 = vand.u32 %v852, 4294901760
    %v1008 = vsub.f32 %v852, %v1007
    %v1009 = vand.u32 %v1008, 4294901760
    %1010 = vmatpush.xpose.msra.mxu0 %v1009
    %v1011 = vand.u32 %v849, 4294901760
    %v1012 = vsub.f32 %v849, %v1011
    %v1013 = vand.u32 %v1012, 4294901760
    %1014 = vmatpush.xpose.msra.mxu0 %v1013
    %v1015 = vand.u32 %v846, 4294901760
    %1016 = vmatmul.f32.gmra.mxu0 %v1015
    %v1017 = vpop.f32.mrf.mxu0
    %v1018 = vadd.f32 %v985, %v1017
    %1019 = vdwg.mxu0
    %1020 = vmatpush.xpose.msra.mxu0 0.0
    %1021 = vmatpush.xpose.msra.mxu0 0.0
    %1022 = vmatpush.xpose.msra.mxu0 0.0
    %1023 = vmatpush.xpose.msra.mxu0 0.0
    %1024 = vmatpush.xpose.msra.mxu0 0.0
    %1025 = vmatpush.xpose.msra.mxu0 0.0
    %1026 = vmatpush.xpose.msra.mxu0 0.0
    %1027 = vmatpush.xpose.msra.mxu0 0.0
    %1028 = vmatpush.xpose.msra.mxu0 0.0
    %1029 = vmatpush.xpose.msra.mxu0 0.0
    %1030 = vmatpush.xpose.msra.mxu0 0.0
    %1031 = vmatpush.xpose.msra.mxu0 0.0
    %v1032 = vand.u32 %v858, 4294901760
    %1033 = vmatpush.xpose.msra.mxu0 %v1032
    %v1034 = vand.u32 %v855, 4294901760
    %1035 = vmatpush.xpose.msra.mxu0 %v1034
    %v1036 = vand.u32 %v852, 4294901760
    %1037 = vmatpush.xpose.msra.mxu0 %v1036
    %v1038 = vand.u32 %v849, 4294901760
    %1039 = vmatpush.xpose.msra.mxu0 %v1038
    %v1040 = vand.u32 %v846, 4294901760
    %1041 = vmatmul.f32.gmra.mxu0 %v1040
    %v1042 = vpop.f32.mrf.mxu0
    %v1043 = vadd.f32 %v1018, %v1042
    %1044 = vdwg.mxu0
    %v1046 = vsel %vm244, %v88, 0
    %v1049 = vsel %vm244, %v180, 0
    %v1052 = vsel %vm244, %v181, 0
    %v1055 = vsel %vm244, %v182, 0
    %v1058 = vsel %vm244, %v183, 0
    %1060 = vmatpush.xpose.msra.mxu0 0.0
    %1061 = vmatpush.xpose.msra.mxu0 0.0
    %1062 = vmatpush.xpose.msra.mxu0 0.0
    %1063 = vmatpush.xpose.msra.mxu0 0.0
    %1064 = vmatpush.xpose.msra.mxu0 0.0
    %1065 = vmatpush.xpose.msra.mxu0 0.0
    %1066 = vmatpush.xpose.msra.mxu0 0.0
    %1067 = vmatpush.xpose.msra.mxu0 0.0
    %1068 = vmatpush.xpose.msra.mxu0 0.0
    %1069 = vmatpush.xpose.msra.mxu0 0.0
    %1070 = vmatpush.xpose.msra.mxu0 0.0
    %1071 = vmatpush.xpose.msra.mxu0 0.0
    %v1072 = vand.u32 %v1058, 4294901760
    %1073 = vmatpush.xpose.msra.mxu0 %v1072
    %v1074 = vand.u32 %v1055, 4294901760
    %1075 = vmatpush.xpose.msra.mxu0 %v1074
    %v1076 = vand.u32 %v1052, 4294901760
    %1077 = vmatpush.xpose.msra.mxu0 %v1076
    %v1078 = vand.u32 %v1049, 4294901760
    %1079 = vmatpush.xpose.msra.mxu0 %v1078
    %v1080 = vand.u32 %v1046, 4294901760
    %v1081 = vsub.f32 %v1046, %v1080
    %v1082 = vand.u32 %v1081, 4294901760
    %v1083 = vsub.f32 %v1081, %v1082
    %v1084 = vand.u32 %v1083, 4294901760
    %1085 = vmatmul.f32.gmra.mxu0 %v1084
    %v1086 = vpop.f32.mrf.mxu0
    %v1087 = vadd.f32 %v232, %v1086
    %1088 = vdwg.mxu0
    %1089 = vmatpush.xpose.msra.mxu0 0.0
    %1090 = vmatpush.xpose.msra.mxu0 0.0
    %1091 = vmatpush.xpose.msra.mxu0 0.0
    %1092 = vmatpush.xpose.msra.mxu0 0.0
    %1093 = vmatpush.xpose.msra.mxu0 0.0
    %1094 = vmatpush.xpose.msra.mxu0 0.0
    %1095 = vmatpush.xpose.msra.mxu0 0.0
    %1096 = vmatpush.xpose.msra.mxu0 0.0
    %1097 = vmatpush.xpose.msra.mxu0 0.0
    %1098 = vmatpush.xpose.msra.mxu0 0.0
    %1099 = vmatpush.xpose.msra.mxu0 0.0
    %1100 = vmatpush.xpose.msra.mxu0 0.0
    %v1101 = vand.u32 %v1058, 4294901760
    %v1102 = vsub.f32 %v1058, %v1101
    %v1103 = vand.u32 %v1102, 4294901760
    %v1104 = vsub.f32 %v1102, %v1103
    %v1105 = vand.u32 %v1104, 4294901760
    %1106 = vmatpush.xpose.msra.mxu0 %v1105
    %v1107 = vand.u32 %v1055, 4294901760
    %v1108 = vsub.f32 %v1055, %v1107
    %v1109 = vand.u32 %v1108, 4294901760
    %v1110 = vsub.f32 %v1108, %v1109
    %v1111 = vand.u32 %v1110, 4294901760
    %1112 = vmatpush.xpose.msra.mxu0 %v1111
    %v1113 = vand.u32 %v1052, 4294901760
    %v1114 = vsub.f32 %v1052, %v1113
    %v1115 = vand.u32 %v1114, 4294901760
    %v1116 = vsub.f32 %v1114, %v1115
    %v1117 = vand.u32 %v1116, 4294901760
    %1118 = vmatpush.xpose.msra.mxu0 %v1117
    %v1119 = vand.u32 %v1049, 4294901760
    %v1120 = vsub.f32 %v1049, %v1119
    %v1121 = vand.u32 %v1120, 4294901760
    %v1122 = vsub.f32 %v1120, %v1121
    %v1123 = vand.u32 %v1122, 4294901760
    %1124 = vmatpush.xpose.msra.mxu0 %v1123
    %v1125 = vand.u32 %v1046, 4294901760
    %1126 = vmatmul.f32.gmra.mxu0 %v1125
    %v1127 = vpop.f32.mrf.mxu0
    %v1128 = vadd.f32 %v1087, %v1127
    %1129 = vdwg.mxu0
    %1130 = vmatpush.xpose.msra.mxu0 0.0
    %1131 = vmatpush.xpose.msra.mxu0 0.0
    %1132 = vmatpush.xpose.msra.mxu0 0.0
    %1133 = vmatpush.xpose.msra.mxu0 0.0
    %1134 = vmatpush.xpose.msra.mxu0 0.0
    %1135 = vmatpush.xpose.msra.mxu0 0.0
    %1136 = vmatpush.xpose.msra.mxu0 0.0
    %1137 = vmatpush.xpose.msra.mxu0 0.0
    %1138 = vmatpush.xpose.msra.mxu0 0.0
    %1139 = vmatpush.xpose.msra.mxu0 0.0
    %1140 = vmatpush.xpose.msra.mxu0 0.0
    %1141 = vmatpush.xpose.msra.mxu0 0.0
    %v1142 = vand.u32 %v1058, 4294901760
    %v1143 = vsub.f32 %v1058, %v1142
    %1144 = vmatpush.xpose.msra.mxu0 %v1143
    %v1145 = vand.u32 %v1055, 4294901760
    %v1146 = vsub.f32 %v1055, %v1145
    %1147 = vmatpush.xpose.msra.mxu0 %v1146
    %v1148 = vand.u32 %v1052, 4294901760
    %v1149 = vsub.f32 %v1052, %v1148
    %1150 = vmatpush.xpose.msra.mxu0 %v1149
    %v1151 = vand.u32 %v1049, 4294901760
    %v1152 = vsub.f32 %v1049, %v1151
    %1153 = vmatpush.xpose.msra.mxu0 %v1152
    %v1154 = vand.u32 %v1046, 4294901760
    %v1155 = vsub.f32 %v1046, %v1154
    %1156 = vmatmul.f32.gmra.mxu0 %v1155
    %v1157 = vpop.f32.mrf.mxu0
    %v1158 = vadd.f32 %v1128, %v1157
    %1159 = vdwg.mxu0
    %1160 = vmatpush.xpose.msra.mxu0 0.0
    %1161 = vmatpush.xpose.msra.mxu0 0.0
    %1162 = vmatpush.xpose.msra.mxu0 0.0
    %1163 = vmatpush.xpose.msra.mxu0 0.0
    %1164 = vmatpush.xpose.msra.mxu0 0.0
    %1165 = vmatpush.xpose.msra.mxu0 0.0
    %1166 = vmatpush.xpose.msra.mxu0 0.0
    %1167 = vmatpush.xpose.msra.mxu0 0.0
    %1168 = vmatpush.xpose.msra.mxu0 0.0
    %1169 = vmatpush.xpose.msra.mxu0 0.0
    %1170 = vmatpush.xpose.msra.mxu0 0.0
    %1171 = vmatpush.xpose.msra.mxu0 0.0
    %v1172 = vand.u32 %v1058, 4294901760
    %1173 = vmatpush.xpose.msra.mxu0 %v1172
    %v1174 = vand.u32 %v1055, 4294901760
    %1175 = vmatpush.xpose.msra.mxu0 %v1174
    %v1176 = vand.u32 %v1052, 4294901760
    %1177 = vmatpush.xpose.msra.mxu0 %v1176
    %v1178 = vand.u32 %v1049, 4294901760
    %1179 = vmatpush.xpose.msra.mxu0 %v1178
    %v1180 = vand.u32 %v1046, 4294901760
    %v1181 = vsub.f32 %v1046, %v1180
    %v1182 = vand.u32 %v1181, 4294901760
    %1183 = vmatmul.f32.gmra.mxu0 %v1182
    %v1184 = vpop.f32.mrf.mxu0
    %v1185 = vadd.f32 %v1158, %v1184
    %1186 = vdwg.mxu0
    %1187 = vmatpush.xpose.msra.mxu0 0.0
    %1188 = vmatpush.xpose.msra.mxu0 0.0
    %1189 = vmatpush.xpose.msra.mxu0 0.0
    %1190 = vmatpush.xpose.msra.mxu0 0.0
    %1191 = vmatpush.xpose.msra.mxu0 0.0
    %1192 = vmatpush.xpose.msra.mxu0 0.0
    %1193 = vmatpush.xpose.msra.mxu0 0.0
    %1194 = vmatpush.xpose.msra.mxu0 0.0
    %1195 = vmatpush.xpose.msra.mxu0 0.0
    %1196 = vmatpush.xpose.msra.mxu0 0.0
    %1197 = vmatpush.xpose.msra.mxu0 0.0
    %1198 = vmatpush.xpose.msra.mxu0 0.0
    %v1199 = vand.u32 %v1058, 4294901760
    %v1200 = vsub.f32 %v1058, %v1199
    %v1201 = vand.u32 %v1200, 4294901760
    %1202 = vmatpush.xpose.msra.mxu0 %v1201
    %v1203 = vand.u32 %v1055, 4294901760
    %v1204 = vsub.f32 %v1055, %v1203
    %v1205 = vand.u32 %v1204, 4294901760
    %1206 = vmatpush.xpose.msra.mxu0 %v1205
    %v1207 = vand.u32 %v1052, 4294901760
    %v1208 = vsub.f32 %v1052, %v1207
    %v1209 = vand.u32 %v1208, 4294901760
    %1210 = vmatpush.xpose.msra.mxu0 %v1209
    %v1211 = vand.u32 %v1049, 4294901760
    %v1212 = vsub.f32 %v1049, %v1211
    %v1213 = vand.u32 %v1212, 4294901760
    %1214 = vmatpush.xpose.msra.mxu0 %v1213
    %v1215 = vand.u32 %v1046, 4294901760
    %1216 = vmatmul.f32.gmra.mxu0 %v1215
    %v1217 = vpop.f32.mrf.mxu0
    %v1218 = vadd.f32 %v1185, %v1217
    %1219 = vdwg.mxu0
    %1220 = vmatpush.xpose.msra.mxu0 0.0
    %1221 = vmatpush.xpose.msra.mxu0 0.0
    %1222 = vmatpush.xpose.msra.mxu0 0.0
    %1223 = vmatpush.xpose.msra.mxu0 0.0
    %1224 = vmatpush.xpose.msra.mxu0 0.0
    %1225 = vmatpush.xpose.msra.mxu0 0.0
    %1226 = vmatpush.xpose.msra.mxu0 0.0
    %1227 = vmatpush.xpose.msra.mxu0 0.0
    %1228 = vmatpush.xpose.msra.mxu0 0.0
    %1229 = vmatpush.xpose.msra.mxu0 0.0
    %1230 = vmatpush.xpose.msra.mxu0 0.0
    %1231 = vmatpush.xpose.msra.mxu0 0.0
    %v1232 = vand.u32 %v1058, 4294901760
    %1233 = vmatpush.xpose.msra.mxu0 %v1232
    %v1234 = vand.u32 %v1055, 4294901760
    %1235 = vmatpush.xpose.msra.mxu0 %v1234
    %v1236 = vand.u32 %v1052, 4294901760
    %1237 = vmatpush.xpose.msra.mxu0 %v1236
    %v1238 = vand.u32 %v1049, 4294901760
    %1239 = vmatpush.xpose.msra.mxu0 %v1238
    %v1240 = vand.u32 %v1046, 4294901760
    %1241 = vmatmul.f32.gmra.mxu0 %v1240
    %v1242 = vpop.f32.mrf.mxu0
    %v1243 = vadd.f32 %v1218, %v1242
    %1244 = vdwg.mxu0
    %v1246 = vsel %vm244, %v89, 0
    %v1249 = vsel %vm244, %v184, 0
    %v1252 = vsel %vm244, %v185, 0
    %v1255 = vsel %vm244, %v186, 0
    %v1258 = vsel %vm244, %v187, 0
    %1260 = vmatpush.xpose.msra.mxu0 0.0
    %1261 = vmatpush.xpose.msra.mxu0 0.0
    %1262 = vmatpush.xpose.msra.mxu0 0.0
    %1263 = vmatpush.xpose.msra.mxu0 0.0
    %1264 = vmatpush.xpose.msra.mxu0 0.0
    %1265 = vmatpush.xpose.msra.mxu0 0.0
    %1266 = vmatpush.xpose.msra.mxu0 0.0
    %1267 = vmatpush.xpose.msra.mxu0 0.0
    %1268 = vmatpush.xpose.msra.mxu0 0.0
    %1269 = vmatpush.xpose.msra.mxu0 0.0
    %1270 = vmatpush.xpose.msra.mxu0 0.0
    %1271 = vmatpush.xpose.msra.mxu0 0.0
    %v1272 = vand.u32 %v1258, 4294901760
    %1273 = vmatpush.xpose.msra.mxu0 %v1272
    %v1274 = vand.u32 %v1255, 4294901760
    %1275 = vmatpush.xpose.msra.mxu0 %v1274
    %v1276 = vand.u32 %v1252, 4294901760
    %1277 = vmatpush.xpose.msra.mxu0 %v1276
    %v1278 = vand.u32 %v1249, 4294901760
    %1279 = vmatpush.xpose.msra.mxu0 %v1278
    %v1280 = vand.u32 %v1246, 4294901760
    %v1281 = vsub.f32 %v1246, %v1280
    %v1282 = vand.u32 %v1281, 4294901760
    %v1283 = vsub.f32 %v1281, %v1282
    %v1284 = vand.u32 %v1283, 4294901760
    %1285 = vmatmul.f32.gmra.mxu0 %v1284
    %v1286 = vpop.f32.mrf.mxu0
    %v1287 = vadd.f32 %v233, %v1286
    %1288 = vdwg.mxu0
    %1289 = vmatpush.xpose.msra.mxu0 0.0
    %1290 = vmatpush.xpose.msra.mxu0 0.0
    %1291 = vmatpush.xpose.msra.mxu0 0.0
    %1292 = vmatpush.xpose.msra.mxu0 0.0
    %1293 = vmatpush.xpose.msra.mxu0 0.0
    %1294 = vmatpush.xpose.msra.mxu0 0.0
    %1295 = vmatpush.xpose.msra.mxu0 0.0
    %1296 = vmatpush.xpose.msra.mxu0 0.0
    %1297 = vmatpush.xpose.msra.mxu0 0.0
    %1298 = vmatpush.xpose.msra.mxu0 0.0
    %1299 = vmatpush.xpose.msra.mxu0 0.0
    %1300 = vmatpush.xpose.msra.mxu0 0.0
    %v1301 = vand.u32 %v1258, 4294901760
    %v1302 = vsub.f32 %v1258, %v1301
    %v1303 = vand.u32 %v1302, 4294901760
    %v1304 = vsub.f32 %v1302, %v1303
    %v1305 = vand.u32 %v1304, 4294901760
    %1306 = vmatpush.xpose.msra.mxu0 %v1305
    %v1307 = vand.u32 %v1255, 4294901760
    %v1308 = vsub.f32 %v1255, %v1307
    %v1309 = vand.u32 %v1308, 4294901760
    %v1310 = vsub.f32 %v1308, %v1309
    %v1311 = vand.u32 %v1310, 4294901760
    %1312 = vmatpush.xpose.msra.mxu0 %v1311
    %v1313 = vand.u32 %v1252, 4294901760
    %v1314 = vsub.f32 %v1252, %v1313
    %v1315 = vand.u32 %v1314, 4294901760
    %v1316 = vsub.f32 %v1314, %v1315
    %v1317 = vand.u32 %v1316, 4294901760
    %1318 = vmatpush.xpose.msra.mxu0 %v1317
    %v1319 = vand.u32 %v1249, 4294901760
    %v1320 = vsub.f32 %v1249, %v1319
    %v1321 = vand.u32 %v1320, 4294901760
    %v1322 = vsub.f32 %v1320, %v1321
    %v1323 = vand.u32 %v1322, 4294901760
    %1324 = vmatpush.xpose.msra.mxu0 %v1323
    %v1325 = vand.u32 %v1246, 4294901760
    %1326 = vmatmul.f32.gmra.mxu0 %v1325
    %v1327 = vpop.f32.mrf.mxu0
    %v1328 = vadd.f32 %v1287, %v1327
    %1329 = vdwg.mxu0
    %1330 = vmatpush.xpose.msra.mxu0 0.0
    %1331 = vmatpush.xpose.msra.mxu0 0.0
    %1332 = vmatpush.xpose.msra.mxu0 0.0
    %1333 = vmatpush.xpose.msra.mxu0 0.0
    %1334 = vmatpush.xpose.msra.mxu0 0.0
    %1335 = vmatpush.xpose.msra.mxu0 0.0
    %1336 = vmatpush.xpose.msra.mxu0 0.0
    %1337 = vmatpush.xpose.msra.mxu0 0.0
    %1338 = vmatpush.xpose.msra.mxu0 0.0
    %1339 = vmatpush.xpose.msra.mxu0 0.0
    %1340 = vmatpush.xpose.msra.mxu0 0.0
    %1341 = vmatpush.xpose.msra.mxu0 0.0
    %v1342 = vand.u32 %v1258, 4294901760
    %v1343 = vsub.f32 %v1258, %v1342
    %1344 = vmatpush.xpose.msra.mxu0 %v1343
    %v1345 = vand.u32 %v1255, 4294901760
    %v1346 = vsub.f32 %v1255, %v1345
    %1347 = vmatpush.xpose.msra.mxu0 %v1346
    %v1348 = vand.u32 %v1252, 4294901760
    %v1349 = vsub.f32 %v1252, %v1348
    %1350 = vmatpush.xpose.msra.mxu0 %v1349
    %v1351 = vand.u32 %v1249, 4294901760
    %v1352 = vsub.f32 %v1249, %v1351
    %1353 = vmatpush.xpose.msra.mxu0 %v1352
    %v1354 = vand.u32 %v1246, 4294901760
    %v1355 = vsub.f32 %v1246, %v1354
    %1356 = vmatmul.f32.gmra.mxu0 %v1355
    %v1357 = vpop.f32.mrf.mxu0
    %v1358 = vadd.f32 %v1328, %v1357
    %1359 = vdwg.mxu0
    %1360 = vmatpush.xpose.msra.mxu0 0.0
    %1361 = vmatpush.xpose.msra.mxu0 0.0
    %1362 = vmatpush.xpose.msra.mxu0 0.0
    %1363 = vmatpush.xpose.msra.mxu0 0.0
    %1364 = vmatpush.xpose.msra.mxu0 0.0
    %1365 = vmatpush.xpose.msra.mxu0 0.0
    %1366 = vmatpush.xpose.msra.mxu0 0.0
    %1367 = vmatpush.xpose.msra.mxu0 0.0
    %1368 = vmatpush.xpose.msra.mxu0 0.0
    %1369 = vmatpush.xpose.msra.mxu0 0.0
    %1370 = vmatpush.xpose.msra.mxu0 0.0
    %1371 = vmatpush.xpose.msra.mxu0 0.0
    %v1372 = vand.u32 %v1258, 4294901760
    %1373 = vmatpush.xpose.msra.mxu0 %v1372
    %v1374 = vand.u32 %v1255, 4294901760
    %1375 = vmatpush.xpose.msra.mxu0 %v1374
    %v1376 = vand.u32 %v1252, 4294901760
    %1377 = vmatpush.xpose.msra.mxu0 %v1376
    %v1378 = vand.u32 %v1249, 4294901760
    %1379 = vmatpush.xpose.msra.mxu0 %v1378
    %v1380 = vand.u32 %v1246, 4294901760
    %v1381 = vsub.f32 %v1246, %v1380
    %v1382 = vand.u32 %v1381, 4294901760
    %1383 = vmatmul.f32.gmra.mxu0 %v1382
    %v1384 = vpop.f32.mrf.mxu0
    %v1385 = vadd.f32 %v1358, %v1384
    %1386 = vdwg.mxu0
    %1387 = vmatpush.xpose.msra.mxu0 0.0
    %1388 = vmatpush.xpose.msra.mxu0 0.0
    %1389 = vmatpush.xpose.msra.mxu0 0.0
    %1390 = vmatpush.xpose.msra.mxu0 0.0
    %1391 = vmatpush.xpose.msra.mxu0 0.0
    %1392 = vmatpush.xpose.msra.mxu0 0.0
    %1393 = vmatpush.xpose.msra.mxu0 0.0
    %1394 = vmatpush.xpose.msra.mxu0 0.0
    %1395 = vmatpush.xpose.msra.mxu0 0.0
    %1396 = vmatpush.xpose.msra.mxu0 0.0
    %1397 = vmatpush.xpose.msra.mxu0 0.0
    %1398 = vmatpush.xpose.msra.mxu0 0.0
    %v1399 = vand.u32 %v1258, 4294901760
    %v1400 = vsub.f32 %v1258, %v1399
    %v1401 = vand.u32 %v1400, 4294901760
    %1402 = vmatpush.xpose.msra.mxu0 %v1401
    %v1403 = vand.u32 %v1255, 4294901760
    %v1404 = vsub.f32 %v1255, %v1403
    %v1405 = vand.u32 %v1404, 4294901760
    %1406 = vmatpush.xpose.msra.mxu0 %v1405
    %v1407 = vand.u32 %v1252, 4294901760
    %v1408 = vsub.f32 %v1252, %v1407
    %v1409 = vand.u32 %v1408, 4294901760
    %1410 = vmatpush.xpose.msra.mxu0 %v1409
    %v1411 = vand.u32 %v1249, 4294901760
    %v1412 = vsub.f32 %v1249, %v1411
    %v1413 = vand.u32 %v1412, 4294901760
    %1414 = vmatpush.xpose.msra.mxu0 %v1413
    %v1415 = vand.u32 %v1246, 4294901760
    %1416 = vmatmul.f32.gmra.mxu0 %v1415
    %v1417 = vpop.f32.mrf.mxu0
    %v1418 = vadd.f32 %v1385, %v1417
    %1419 = vdwg.mxu0
    %1420 = vmatpush.xpose.msra.mxu0 0.0
    %1421 = vmatpush.xpose.msra.mxu0 0.0
    %1422 = vmatpush.xpose.msra.mxu0 0.0
    %1423 = vmatpush.xpose.msra.mxu0 0.0
    %1424 = vmatpush.xpose.msra.mxu0 0.0
    %1425 = vmatpush.xpose.msra.mxu0 0.0
    %1426 = vmatpush.xpose.msra.mxu0 0.0
    %1427 = vmatpush.xpose.msra.mxu0 0.0
    %1428 = vmatpush.xpose.msra.mxu0 0.0
    %1429 = vmatpush.xpose.msra.mxu0 0.0
    %1430 = vmatpush.xpose.msra.mxu0 0.0
    %1431 = vmatpush.xpose.msra.mxu0 0.0
    %v1432 = vand.u32 %v1258, 4294901760
    %1433 = vmatpush.xpose.msra.mxu0 %v1432
    %v1434 = vand.u32 %v1255, 4294901760
    %1435 = vmatpush.xpose.msra.mxu0 %v1434
    %v1436 = vand.u32 %v1252, 4294901760
    %1437 = vmatpush.xpose.msra.mxu0 %v1436
    %v1438 = vand.u32 %v1249, 4294901760
    %1439 = vmatpush.xpose.msra.mxu0 %v1438
    %v1440 = vand.u32 %v1246, 4294901760
    %1441 = vmatmul.f32.gmra.mxu0 %v1440
    %v1442 = vpop.f32.mrf.mxu0
    %v1443 = vadd.f32 %v1418, %v1442
    %1444 = vdwg.mxu0
    %v1446 = vsel %vm244, %v90, 0
    %v1449 = vsel %vm244, %v188, 0
    %v1452 = vsel %vm244, %v189, 0
    %v1455 = vsel %vm244, %v190, 0
    %v1458 = vsel %vm244, %v191, 0
    %1460 = vmatpush.xpose.msra.mxu0 0.0
    %1461 = vmatpush.xpose.msra.mxu0 0.0
    %1462 = vmatpush.xpose.msra.mxu0 0.0
    %1463 = vmatpush.xpose.msra.mxu0 0.0
    %1464 = vmatpush.xpose.msra.mxu0 0.0
    %1465 = vmatpush.xpose.msra.mxu0 0.0
    %1466 = vmatpush.xpose.msra.mxu0 0.0
    %1467 = vmatpush.xpose.msra.mxu0 0.0
    %1468 = vmatpush.xpose.msra.mxu0 0.0
    %1469 = vmatpush.xpose.msra.mxu0 0.0
    %1470 = vmatpush.xpose.msra.mxu0 0.0
    %1471 = vmatpush.xpose.msra.mxu0 0.0
    %v1472 = vand.u32 %v1458, 4294901760
    %1473 = vmatpush.xpose.msra.mxu0 %v1472
    %v1474 = vand.u32 %v1455, 4294901760
    %1475 = vmatpush.xpose.msra.mxu0 %v1474
    %v1476 = vand.u32 %v1452, 4294901760
    %1477 = vmatpush.xpose.msra.mxu0 %v1476
    %v1478 = vand.u32 %v1449, 4294901760
    %1479 = vmatpush.xpose.msra.mxu0 %v1478
    %v1480 = vand.u32 %v1446, 4294901760
    %v1481 = vsub.f32 %v1446, %v1480
    %v1482 = vand.u32 %v1481, 4294901760
    %v1483 = vsub.f32 %v1481, %v1482
    %v1484 = vand.u32 %v1483, 4294901760
    %1485 = vmatmul.f32.gmra.mxu0 %v1484
    %v1486 = vpop.f32.mrf.mxu0
    %v1487 = vadd.f32 %v234, %v1486
    %1488 = vdwg.mxu0
    %1489 = vmatpush.xpose.msra.mxu0 0.0
    %1490 = vmatpush.xpose.msra.mxu0 0.0
    %1491 = vmatpush.xpose.msra.mxu0 0.0
    %1492 = vmatpush.xpose.msra.mxu0 0.0
    %1493 = vmatpush.xpose.msra.mxu0 0.0
    %1494 = vmatpush.xpose.msra.mxu0 0.0
    %1495 = vmatpush.xpose.msra.mxu0 0.0
    %1496 = vmatpush.xpose.msra.mxu0 0.0
    %1497 = vmatpush.xpose.msra.mxu0 0.0
    %1498 = vmatpush.xpose.msra.mxu0 0.0
    %1499 = vmatpush.xpose.msra.mxu0 0.0
    %1500 = vmatpush.xpose.msra.mxu0 0.0
    %v1501 = vand.u32 %v1458, 4294901760
    %v1502 = vsub.f32 %v1458, %v1501
    %v1503 = vand.u32 %v1502, 4294901760
    %v1504 = vsub.f32 %v1502, %v1503
    %v1505 = vand.u32 %v1504, 4294901760
    %1506 = vmatpush.xpose.msra.mxu0 %v1505
    %v1507 = vand.u32 %v1455, 4294901760
    %v1508 = vsub.f32 %v1455, %v1507
    %v1509 = vand.u32 %v1508, 4294901760
    %v1510 = vsub.f32 %v1508, %v1509
    %v1511 = vand.u32 %v1510, 4294901760
    %1512 = vmatpush.xpose.msra.mxu0 %v1511
    %v1513 = vand.u32 %v1452, 4294901760
    %v1514 = vsub.f32 %v1452, %v1513
    %v1515 = vand.u32 %v1514, 4294901760
    %v1516 = vsub.f32 %v1514, %v1515
    %v1517 = vand.u32 %v1516, 4294901760
    %1518 = vmatpush.xpose.msra.mxu0 %v1517
    %v1519 = vand.u32 %v1449, 4294901760
    %v1520 = vsub.f32 %v1449, %v1519
    %v1521 = vand.u32 %v1520, 4294901760
    %v1522 = vsub.f32 %v1520, %v1521
    %v1523 = vand.u32 %v1522, 4294901760
    %1524 = vmatpush.xpose.msra.mxu0 %v1523
    %v1525 = vand.u32 %v1446, 4294901760
    %1526 = vmatmul.f32.gmra.mxu0 %v1525
    %v1527 = vpop.f32.mrf.mxu0
    %v1528 = vadd.f32 %v1487, %v1527
    %1529 = vdwg.mxu0
    %1530 = vmatpush.xpose.msra.mxu0 0.0
    %1531 = vmatpush.xpose.msra.mxu0 0.0
    %1532 = vmatpush.xpose.msra.mxu0 0.0
    %1533 = vmatpush.xpose.msra.mxu0 0.0
    %1534 = vmatpush.xpose.msra.mxu0 0.0
    %1535 = vmatpush.xpose.msra.mxu0 0.0
    %1536 = vmatpush.xpose.msra.mxu0 0.0
    %1537 = vmatpush.xpose.msra.mxu0 0.0
    %1538 = vmatpush.xpose.msra.mxu0 0.0
    %1539 = vmatpush.xpose.msra.mxu0 0.0
    %1540 = vmatpush.xpose.msra.mxu0 0.0
    %1541 = vmatpush.xpose.msra.mxu0 0.0
    %v1542 = vand.u32 %v1458, 4294901760
    %v1543 = vsub.f32 %v1458, %v1542
    %1544 = vmatpush.xpose.msra.mxu0 %v1543
    %v1545 = vand.u32 %v1455, 4294901760
    %v1546 = vsub.f32 %v1455, %v1545
    %1547 = vmatpush.xpose.msra.mxu0 %v1546
    %v1548 = vand.u32 %v1452, 4294901760
    %v1549 = vsub.f32 %v1452, %v1548
    %1550 = vmatpush.xpose.msra.mxu0 %v1549
    %v1551 = vand.u32 %v1449, 4294901760
    %v1552 = vsub.f32 %v1449, %v1551
    %1553 = vmatpush.xpose.msra.mxu0 %v1552
    %v1554 = vand.u32 %v1446, 4294901760
    %v1555 = vsub.f32 %v1446, %v1554
    %1556 = vmatmul.f32.gmra.mxu0 %v1555
    %v1557 = vpop.f32.mrf.mxu0
    %v1558 = vadd.f32 %v1528, %v1557
    %1559 = vdwg.mxu0
    %1560 = vmatpush.xpose.msra.mxu0 0.0
    %1561 = vmatpush.xpose.msra.mxu0 0.0
    %1562 = vmatpush.xpose.msra.mxu0 0.0
    %1563 = vmatpush.xpose.msra.mxu0 0.0
    %1564 = vmatpush.xpose.msra.mxu0 0.0
    %1565 = vmatpush.xpose.msra.mxu0 0.0
    %1566 = vmatpush.xpose.msra.mxu0 0.0
    %1567 = vmatpush.xpose.msra.mxu0 0.0
    %1568 = vmatpush.xpose.msra.mxu0 0.0
    %1569 = vmatpush.xpose.msra.mxu0 0.0
    %1570 = vmatpush.xpose.msra.mxu0 0.0
    %1571 = vmatpush.xpose.msra.mxu0 0.0
    %v1572 = vand.u32 %v1458, 4294901760
    %1573 = vmatpush.xpose.msra.mxu0 %v1572
    %v1574 = vand.u32 %v1455, 4294901760
    %1575 = vmatpush.xpose.msra.mxu0 %v1574
    %v1576 = vand.u32 %v1452, 4294901760
    %1577 = vmatpush.xpose.msra.mxu0 %v1576
    %v1578 = vand.u32 %v1449, 4294901760
    %1579 = vmatpush.xpose.msra.mxu0 %v1578
    %v1580 = vand.u32 %v1446, 4294901760
    %v1581 = vsub.f32 %v1446, %v1580
    %v1582 = vand.u32 %v1581, 4294901760
    %1583 = vmatmul.f32.gmra.mxu0 %v1582
    %v1584 = vpop.f32.mrf.mxu0
    %v1585 = vadd.f32 %v1558, %v1584
    %1586 = vdwg.mxu0
    %1587 = vmatpush.xpose.msra.mxu0 0.0
    %1588 = vmatpush.xpose.msra.mxu0 0.0
    %1589 = vmatpush.xpose.msra.mxu0 0.0
    %1590 = vmatpush.xpose.msra.mxu0 0.0
    %1591 = vmatpush.xpose.msra.mxu0 0.0
    %1592 = vmatpush.xpose.msra.mxu0 0.0
    %1593 = vmatpush.xpose.msra.mxu0 0.0
    %1594 = vmatpush.xpose.msra.mxu0 0.0
    %1595 = vmatpush.xpose.msra.mxu0 0.0
    %1596 = vmatpush.xpose.msra.mxu0 0.0
    %1597 = vmatpush.xpose.msra.mxu0 0.0
    %1598 = vmatpush.xpose.msra.mxu0 0.0
    %v1599 = vand.u32 %v1458, 4294901760
    %v1600 = vsub.f32 %v1458, %v1599
    %v1601 = vand.u32 %v1600, 4294901760
    %1602 = vmatpush.xpose.msra.mxu0 %v1601
    %v1603 = vand.u32 %v1455, 4294901760
    %v1604 = vsub.f32 %v1455, %v1603
    %v1605 = vand.u32 %v1604, 4294901760
    %1606 = vmatpush.xpose.msra.mxu0 %v1605
    %v1607 = vand.u32 %v1452, 4294901760
    %v1608 = vsub.f32 %v1452, %v1607
    %v1609 = vand.u32 %v1608, 4294901760
    %1610 = vmatpush.xpose.msra.mxu0 %v1609
    %v1611 = vand.u32 %v1449, 4294901760
    %v1612 = vsub.f32 %v1449, %v1611
    %v1613 = vand.u32 %v1612, 4294901760
    %1614 = vmatpush.xpose.msra.mxu0 %v1613
    %v1615 = vand.u32 %v1446, 4294901760
    %1616 = vmatmul.f32.gmra.mxu0 %v1615
    %v1617 = vpop.f32.mrf.mxu0
    %v1618 = vadd.f32 %v1585, %v1617
    %1619 = vdwg.mxu0
    %1620 = vmatpush.xpose.msra.mxu0 0.0
    %1621 = vmatpush.xpose.msra.mxu0 0.0
    %1622 = vmatpush.xpose.msra.mxu0 0.0
    %1623 = vmatpush.xpose.msra.mxu0 0.0
    %1624 = vmatpush.xpose.msra.mxu0 0.0
    %1625 = vmatpush.xpose.msra.mxu0 0.0
    %1626 = vmatpush.xpose.msra.mxu0 0.0
    %1627 = vmatpush.xpose.msra.mxu0 0.0
    %1628 = vmatpush.xpose.msra.mxu0 0.0
    %1629 = vmatpush.xpose.msra.mxu0 0.0
    %1630 = vmatpush.xpose.msra.mxu0 0.0
    %1631 = vmatpush.xpose.msra.mxu0 0.0
    %v1632 = vand.u32 %v1458, 4294901760
    %1633 = vmatpush.xpose.msra.mxu0 %v1632
    %v1634 = vand.u32 %v1455, 4294901760
    %1635 = vmatpush.xpose.msra.mxu0 %v1634
    %v1636 = vand.u32 %v1452, 4294901760
    %1637 = vmatpush.xpose.msra.mxu0 %v1636
    %v1638 = vand.u32 %v1449, 4294901760
    %1639 = vmatpush.xpose.msra.mxu0 %v1638
    %v1640 = vand.u32 %v1446, 4294901760
    %1641 = vmatmul.f32.gmra.mxu0 %v1640
    %v1642 = vpop.f32.mrf.mxu0
    %v1643 = vadd.f32 %v1618, %v1642
    %1644 = vdwg.mxu0
    %v1646 = vsel %vm244, %v91, 0
    %v1649 = vsel %vm244, %v192, 0
    %v1652 = vsel %vm244, %v193, 0
    %v1655 = vsel %vm244, %v194, 0
    %v1658 = vsel %vm244, %v195, 0
    %1660 = vmatpush.xpose.msra.mxu0 0.0
    %1661 = vmatpush.xpose.msra.mxu0 0.0
    %1662 = vmatpush.xpose.msra.mxu0 0.0
    %1663 = vmatpush.xpose.msra.mxu0 0.0
    %1664 = vmatpush.xpose.msra.mxu0 0.0
    %1665 = vmatpush.xpose.msra.mxu0 0.0
    %1666 = vmatpush.xpose.msra.mxu0 0.0
    %1667 = vmatpush.xpose.msra.mxu0 0.0
    %1668 = vmatpush.xpose.msra.mxu0 0.0
    %1669 = vmatpush.xpose.msra.mxu0 0.0
    %1670 = vmatpush.xpose.msra.mxu0 0.0
    %1671 = vmatpush.xpose.msra.mxu0 0.0
    %v1672 = vand.u32 %v1658, 4294901760
    %1673 = vmatpush.xpose.msra.mxu0 %v1672
    %v1674 = vand.u32 %v1655, 4294901760
    %1675 = vmatpush.xpose.msra.mxu0 %v1674
    %v1676 = vand.u32 %v1652, 4294901760
    %1677 = vmatpush.xpose.msra.mxu0 %v1676
    %v1678 = vand.u32 %v1649, 4294901760
    %1679 = vmatpush.xpose.msra.mxu0 %v1678
    %v1680 = vand.u32 %v1646, 4294901760
    %v1681 = vsub.f32 %v1646, %v1680
    %v1682 = vand.u32 %v1681, 4294901760
    %v1683 = vsub.f32 %v1681, %v1682
    %v1684 = vand.u32 %v1683, 4294901760
    %1685 = vmatmul.f32.gmra.mxu0 %v1684
    %v1686 = vpop.f32.mrf.mxu0
    %v1687 = vadd.f32 %v235, %v1686
    %1688 = vdwg.mxu0
    %1689 = vmatpush.xpose.msra.mxu0 0.0
    %1690 = vmatpush.xpose.msra.mxu0 0.0
    %1691 = vmatpush.xpose.msra.mxu0 0.0
    %1692 = vmatpush.xpose.msra.mxu0 0.0
    %1693 = vmatpush.xpose.msra.mxu0 0.0
    %1694 = vmatpush.xpose.msra.mxu0 0.0
    %1695 = vmatpush.xpose.msra.mxu0 0.0
    %1696 = vmatpush.xpose.msra.mxu0 0.0
    %1697 = vmatpush.xpose.msra.mxu0 0.0
    %1698 = vmatpush.xpose.msra.mxu0 0.0
    %1699 = vmatpush.xpose.msra.mxu0 0.0
    %1700 = vmatpush.xpose.msra.mxu0 0.0
    %v1701 = vand.u32 %v1658, 4294901760
    %v1702 = vsub.f32 %v1658, %v1701
    %v1703 = vand.u32 %v1702, 4294901760
    %v1704 = vsub.f32 %v1702, %v1703
    %v1705 = vand.u32 %v1704, 4294901760
    %1706 = vmatpush.xpose.msra.mxu0 %v1705
    %v1707 = vand.u32 %v1655, 4294901760
    %v1708 = vsub.f32 %v1655, %v1707
    %v1709 = vand.u32 %v1708, 4294901760
    %v1710 = vsub.f32 %v1708, %v1709
    %v1711 = vand.u32 %v1710, 4294901760
    %1712 = vmatpush.xpose.msra.mxu0 %v1711
    %v1713 = vand.u32 %v1652, 4294901760
    %v1714 = vsub.f32 %v1652, %v1713
    %v1715 = vand.u32 %v1714, 4294901760
    %v1716 = vsub.f32 %v1714, %v1715
    %v1717 = vand.u32 %v1716, 4294901760
    %1718 = vmatpush.xpose.msra.mxu0 %v1717
    %v1719 = vand.u32 %v1649, 4294901760
    %v1720 = vsub.f32 %v1649, %v1719
    %v1721 = vand.u32 %v1720, 4294901760
    %v1722 = vsub.f32 %v1720, %v1721
    %v1723 = vand.u32 %v1722, 4294901760
    %1724 = vmatpush.xpose.msra.mxu0 %v1723
    %v1725 = vand.u32 %v1646, 4294901760
    %1726 = vmatmul.f32.gmra.mxu0 %v1725
    %v1727 = vpop.f32.mrf.mxu0
    %v1728 = vadd.f32 %v1687, %v1727
    %1729 = vdwg.mxu0
    %1730 = vmatpush.xpose.msra.mxu0 0.0
    %1731 = vmatpush.xpose.msra.mxu0 0.0
    %1732 = vmatpush.xpose.msra.mxu0 0.0
    %1733 = vmatpush.xpose.msra.mxu0 0.0
    %1734 = vmatpush.xpose.msra.mxu0 0.0
    %1735 = vmatpush.xpose.msra.mxu0 0.0
    %1736 = vmatpush.xpose.msra.mxu0 0.0
    %1737 = vmatpush.xpose.msra.mxu0 0.0
    %1738 = vmatpush.xpose.msra.mxu0 0.0
    %1739 = vmatpush.xpose.msra.mxu0 0.0
    %1740 = vmatpush.xpose.msra.mxu0 0.0
    %1741 = vmatpush.xpose.msra.mxu0 0.0
    %v1742 = vand.u32 %v1658, 4294901760
    %v1743 = vsub.f32 %v1658, %v1742
    %1744 = vmatpush.xpose.msra.mxu0 %v1743
    %v1745 = vand.u32 %v1655, 4294901760
    %v1746 = vsub.f32 %v1655, %v1745
    %1747 = vmatpush.xpose.msra.mxu0 %v1746
    %v1748 = vand.u32 %v1652, 4294901760
    %v1749 = vsub.f32 %v1652, %v1748
    %1750 = vmatpush.xpose.msra.mxu0 %v1749
    %v1751 = vand.u32 %v1649, 4294901760
    %v1752 = vsub.f32 %v1649, %v1751
    %1753 = vmatpush.xpose.msra.mxu0 %v1752
    %v1754 = vand.u32 %v1646, 4294901760
    %v1755 = vsub.f32 %v1646, %v1754
    %1756 = vmatmul.f32.gmra.mxu0 %v1755
    %v1757 = vpop.f32.mrf.mxu0
    %v1758 = vadd.f32 %v1728, %v1757
    %1759 = vdwg.mxu0
    %1760 = vmatpush.xpose.msra.mxu0 0.0
    %1761 = vmatpush.xpose.msra.mxu0 0.0
    %1762 = vmatpush.xpose.msra.mxu0 0.0
    %1763 = vmatpush.xpose.msra.mxu0 0.0
    %1764 = vmatpush.xpose.msra.mxu0 0.0
    %1765 = vmatpush.xpose.msra.mxu0 0.0
    %1766 = vmatpush.xpose.msra.mxu0 0.0
    %1767 = vmatpush.xpose.msra.mxu0 0.0
    %1768 = vmatpush.xpose.msra.mxu0 0.0
    %1769 = vmatpush.xpose.msra.mxu0 0.0
    %1770 = vmatpush.xpose.msra.mxu0 0.0
    %1771 = vmatpush.xpose.msra.mxu0 0.0
    %v1772 = vand.u32 %v1658, 4294901760
    %1773 = vmatpush.xpose.msra.mxu0 %v1772
    %v1774 = vand.u32 %v1655, 4294901760
    %1775 = vmatpush.xpose.msra.mxu0 %v1774
    %v1776 = vand.u32 %v1652, 4294901760
    %1777 = vmatpush.xpose.msra.mxu0 %v1776
    %v1778 = vand.u32 %v1649, 4294901760
    %1779 = vmatpush.xpose.msra.mxu0 %v1778
    %v1780 = vand.u32 %v1646, 4294901760
    %v1781 = vsub.f32 %v1646, %v1780
    %v1782 = vand.u32 %v1781, 4294901760
    %1783 = vmatmul.f32.gmra.mxu0 %v1782
    %v1784 = vpop.f32.mrf.mxu0
    %v1785 = vadd.f32 %v1758, %v1784
    %1786 = vdwg.mxu0
    %1787 = vmatpush.xpose.msra.mxu0 0.0
    %1788 = vmatpush.xpose.msra.mxu0 0.0
    %1789 = vmatpush.xpose.msra.mxu0 0.0
    %1790 = vmatpush.xpose.msra.mxu0 0.0
    %1791 = vmatpush.xpose.msra.mxu0 0.0
    %1792 = vmatpush.xpose.msra.mxu0 0.0
    %1793 = vmatpush.xpose.msra.mxu0 0.0
    %1794 = vmatpush.xpose.msra.mxu0 0.0
    %1795 = vmatpush.xpose.msra.mxu0 0.0
    %1796 = vmatpush.xpose.msra.mxu0 0.0
    %1797 = vmatpush.xpose.msra.mxu0 0.0
    %1798 = vmatpush.xpose.msra.mxu0 0.0
    %v1799 = vand.u32 %v1658, 4294901760
    %v1800 = vsub.f32 %v1658, %v1799
    %v1801 = vand.u32 %v1800, 4294901760
    %1802 = vmatpush.xpose.msra.mxu0 %v1801
    %v1803 = vand.u32 %v1655, 4294901760
    %v1804 = vsub.f32 %v1655, %v1803
    %v1805 = vand.u32 %v1804, 4294901760
    %1806 = vmatpush.xpose.msra.mxu0 %v1805
    %v1807 = vand.u32 %v1652, 4294901760
    %v1808 = vsub.f32 %v1652, %v1807
    %v1809 = vand.u32 %v1808, 4294901760
    %1810 = vmatpush.xpose.msra.mxu0 %v1809
    %v1811 = vand.u32 %v1649, 4294901760
    %v1812 = vsub.f32 %v1649, %v1811
    %v1813 = vand.u32 %v1812, 4294901760
    %1814 = vmatpush.xpose.msra.mxu0 %v1813
    %v1815 = vand.u32 %v1646, 4294901760
    %1816 = vmatmul.f32.gmra.mxu0 %v1815
    %v1817 = vpop.f32.mrf.mxu0
    %v1818 = vadd.f32 %v1785, %v1817
    %1819 = vdwg.mxu0
    %1820 = vmatpush.xpose.msra.mxu0 0.0
    %1821 = vmatpush.xpose.msra.mxu0 0.0
    %1822 = vmatpush.xpose.msra.mxu0 0.0
    %1823 = vmatpush.xpose.msra.mxu0 0.0
    %1824 = vmatpush.xpose.msra.mxu0 0.0
    %1825 = vmatpush.xpose.msra.mxu0 0.0
    %1826 = vmatpush.xpose.msra.mxu0 0.0
    %1827 = vmatpush.xpose.msra.mxu0 0.0
    %1828 = vmatpush.xpose.msra.mxu0 0.0
    %1829 = vmatpush.xpose.msra.mxu0 0.0
    %1830 = vmatpush.xpose.msra.mxu0 0.0
    %1831 = vmatpush.xpose.msra.mxu0 0.0
    %v1832 = vand.u32 %v1658, 4294901760
    %1833 = vmatpush.xpose.msra.mxu0 %v1832
    %v1834 = vand.u32 %v1655, 4294901760
    %1835 = vmatpush.xpose.msra.mxu0 %v1834
    %v1836 = vand.u32 %v1652, 4294901760
    %1837 = vmatpush.xpose.msra.mxu0 %v1836
    %v1838 = vand.u32 %v1649, 4294901760
    %1839 = vmatpush.xpose.msra.mxu0 %v1838
    %v1840 = vand.u32 %v1646, 4294901760
    %1841 = vmatmul.f32.gmra.mxu0 %v1840
    %v1842 = vpop.f32.mrf.mxu0
    %v1843 = vadd.f32 %v1818, %v1842
    %1844 = vdwg.mxu0
    %v1846 = vsel %vm244, %v92, 0
    %v1849 = vsel %vm244, %v196, 0
    %v1852 = vsel %vm244, %v197, 0
    %v1855 = vsel %vm244, %v198, 0
    %v1858 = vsel %vm244, %v199, 0
    %1860 = vmatpush.xpose.msra.mxu0 0.0
    %1861 = vmatpush.xpose.msra.mxu0 0.0
    %1862 = vmatpush.xpose.msra.mxu0 0.0
    %1863 = vmatpush.xpose.msra.mxu0 0.0
    %1864 = vmatpush.xpose.msra.mxu0 0.0
    %1865 = vmatpush.xpose.msra.mxu0 0.0
    %1866 = vmatpush.xpose.msra.mxu0 0.0
    %1867 = vmatpush.xpose.msra.mxu0 0.0
    %1868 = vmatpush.xpose.msra.mxu0 0.0
    %1869 = vmatpush.xpose.msra.mxu0 0.0
    %1870 = vmatpush.xpose.msra.mxu0 0.0
    %1871 = vmatpush.xpose.msra.mxu0 0.0
    %v1872 = vand.u32 %v1858, 4294901760
    %1873 = vmatpush.xpose.msra.mxu0 %v1872
    %v1874 = vand.u32 %v1855, 4294901760
    %1875 = vmatpush.xpose.msra.mxu0 %v1874
    %v1876 = vand.u32 %v1852, 4294901760
    %1877 = vmatpush.xpose.msra.mxu0 %v1876
    %v1878 = vand.u32 %v1849, 4294901760
    %1879 = vmatpush.xpose.msra.mxu0 %v1878
    %v1880 = vand.u32 %v1846, 4294901760
    %v1881 = vsub.f32 %v1846, %v1880
    %v1882 = vand.u32 %v1881, 4294901760
    %v1883 = vsub.f32 %v1881, %v1882
    %v1884 = vand.u32 %v1883, 4294901760
    %1885 = vmatmul.f32.gmra.mxu0 %v1884
    %v1886 = vpop.f32.mrf.mxu0
    %v1887 = vadd.f32 %v236, %v1886
    %1888 = vdwg.mxu0
    %1889 = vmatpush.xpose.msra.mxu0 0.0
    %1890 = vmatpush.xpose.msra.mxu0 0.0
    %1891 = vmatpush.xpose.msra.mxu0 0.0
    %1892 = vmatpush.xpose.msra.mxu0 0.0
    %1893 = vmatpush.xpose.msra.mxu0 0.0
    %1894 = vmatpush.xpose.msra.mxu0 0.0
    %1895 = vmatpush.xpose.msra.mxu0 0.0
    %1896 = vmatpush.xpose.msra.mxu0 0.0
    %1897 = vmatpush.xpose.msra.mxu0 0.0
    %1898 = vmatpush.xpose.msra.mxu0 0.0
    %1899 = vmatpush.xpose.msra.mxu0 0.0
    %1900 = vmatpush.xpose.msra.mxu0 0.0
    %v1901 = vand.u32 %v1858, 4294901760
    %v1902 = vsub.f32 %v1858, %v1901
    %v1903 = vand.u32 %v1902, 4294901760
    %v1904 = vsub.f32 %v1902, %v1903
    %v1905 = vand.u32 %v1904, 4294901760
    %1906 = vmatpush.xpose.msra.mxu0 %v1905
    %v1907 = vand.u32 %v1855, 4294901760
    %v1908 = vsub.f32 %v1855, %v1907
    %v1909 = vand.u32 %v1908, 4294901760
    %v1910 = vsub.f32 %v1908, %v1909
    %v1911 = vand.u32 %v1910, 4294901760
    %1912 = vmatpush.xpose.msra.mxu0 %v1911
    %v1913 = vand.u32 %v1852, 4294901760
    %v1914 = vsub.f32 %v1852, %v1913
    %v1915 = vand.u32 %v1914, 4294901760
    %v1916 = vsub.f32 %v1914, %v1915
    %v1917 = vand.u32 %v1916, 4294901760
    %1918 = vmatpush.xpose.msra.mxu0 %v1917
    %v1919 = vand.u32 %v1849, 4294901760
    %v1920 = vsub.f32 %v1849, %v1919
    %v1921 = vand.u32 %v1920, 4294901760
    %v1922 = vsub.f32 %v1920, %v1921
    %v1923 = vand.u32 %v1922, 4294901760
    %1924 = vmatpush.xpose.msra.mxu0 %v1923
    %v1925 = vand.u32 %v1846, 4294901760
    %1926 = vmatmul.f32.gmra.mxu0 %v1925
    %v1927 = vpop.f32.mrf.mxu0
    %v1928 = vadd.f32 %v1887, %v1927
    %1929 = vdwg.mxu0
    %1930 = vmatpush.xpose.msra.mxu0 0.0
    %1931 = vmatpush.xpose.msra.mxu0 0.0
    %1932 = vmatpush.xpose.msra.mxu0 0.0
    %1933 = vmatpush.xpose.msra.mxu0 0.0
    %1934 = vmatpush.xpose.msra.mxu0 0.0
    %1935 = vmatpush.xpose.msra.mxu0 0.0
    %1936 = vmatpush.xpose.msra.mxu0 0.0
    %1937 = vmatpush.xpose.msra.mxu0 0.0
    %1938 = vmatpush.xpose.msra.mxu0 0.0
    %1939 = vmatpush.xpose.msra.mxu0 0.0
    %1940 = vmatpush.xpose.msra.mxu0 0.0
    %1941 = vmatpush.xpose.msra.mxu0 0.0
    %v1942 = vand.u32 %v1858, 4294901760
    %v1943 = vsub.f32 %v1858, %v1942
    %1944 = vmatpush.xpose.msra.mxu0 %v1943
    %v1945 = vand.u32 %v1855, 4294901760
    %v1946 = vsub.f32 %v1855, %v1945
    %1947 = vmatpush.xpose.msra.mxu0 %v1946
    %v1948 = vand.u32 %v1852, 4294901760
    %v1949 = vsub.f32 %v1852, %v1948
    %1950 = vmatpush.xpose.msra.mxu0 %v1949
    %v1951 = vand.u32 %v1849, 4294901760
    %v1952 = vsub.f32 %v1849, %v1951
    %1953 = vmatpush.xpose.msra.mxu0 %v1952
    %v1954 = vand.u32 %v1846, 4294901760
    %v1955 = vsub.f32 %v1846, %v1954
    %1956 = vmatmul.f32.gmra.mxu0 %v1955
    %v1957 = vpop.f32.mrf.mxu0
    %v1958 = vadd.f32 %v1928, %v1957
    %1959 = vdwg.mxu0
    %1960 = vmatpush.xpose.msra.mxu0 0.0
    %1961 = vmatpush.xpose.msra.mxu0 0.0
    %1962 = vmatpush.xpose.msra.mxu0 0.0
    %1963 = vmatpush.xpose.msra.mxu0 0.0
    %1964 = vmatpush.xpose.msra.mxu0 0.0
    %1965 = vmatpush.xpose.msra.mxu0 0.0
    %1966 = vmatpush.xpose.msra.mxu0 0.0
    %1967 = vmatpush.xpose.msra.mxu0 0.0
    %1968 = vmatpush.xpose.msra.mxu0 0.0
    %1969 = vmatpush.xpose.msra.mxu0 0.0
    %1970 = vmatpush.xpose.msra.mxu0 0.0
    %1971 = vmatpush.xpose.msra.mxu0 0.0
    %v1972 = vand.u32 %v1858, 4294901760
    %1973 = vmatpush.xpose.msra.mxu0 %v1972
    %v1974 = vand.u32 %v1855, 4294901760
    %1975 = vmatpush.xpose.msra.mxu0 %v1974
    %v1976 = vand.u32 %v1852, 4294901760
    %1977 = vmatpush.xpose.msra.mxu0 %v1976
    %v1978 = vand.u32 %v1849, 4294901760
    %1979 = vmatpush.xpose.msra.mxu0 %v1978
    %v1980 = vand.u32 %v1846, 4294901760
    %v1981 = vsub.f32 %v1846, %v1980
    %v1982 = vand.u32 %v1981, 4294901760
    %1983 = vmatmul.f32.gmra.mxu0 %v1982
    %v1984 = vpop.f32.mrf.mxu0
    %v1985 = vadd.f32 %v1958, %v1984
    %1986 = vdwg.mxu0
    %1987 = vmatpush.xpose.msra.mxu0 0.0
    %1988 = vmatpush.xpose.msra.mxu0 0.0
    %1989 = vmatpush.xpose.msra.mxu0 0.0
    %1990 = vmatpush.xpose.msra.mxu0 0.0
    %1991 = vmatpush.xpose.msra.mxu0 0.0
    %1992 = vmatpush.xpose.msra.mxu0 0.0
    %1993 = vmatpush.xpose.msra.mxu0 0.0
    %1994 = vmatpush.xpose.msra.mxu0 0.0
    %1995 = vmatpush.xpose.msra.mxu0 0.0
    %1996 = vmatpush.xpose.msra.mxu0 0.0
    %1997 = vmatpush.xpose.msra.mxu0 0.0
    %1998 = vmatpush.xpose.msra.mxu0 0.0
    %v1999 = vand.u32 %v1858, 4294901760
    %v2000 = vsub.f32 %v1858, %v1999
    %v2001 = vand.u32 %v2000, 4294901760
    %2002 = vmatpush.xpose.msra.mxu0 %v2001
    %v2003 = vand.u32 %v1855, 4294901760
    %v2004 = vsub.f32 %v1855, %v2003
    %v2005 = vand.u32 %v2004, 4294901760
    %2006 = vmatpush.xpose.msra.mxu0 %v2005
    %v2007 = vand.u32 %v1852, 4294901760
    %v2008 = vsub.f32 %v1852, %v2007
    %v2009 = vand.u32 %v2008, 4294901760
    %2010 = vmatpush.xpose.msra.mxu0 %v2009
    %v2011 = vand.u32 %v1849, 4294901760
    %v2012 = vsub.f32 %v1849, %v2011
    %v2013 = vand.u32 %v2012, 4294901760
    %2014 = vmatpush.xpose.msra.mxu0 %v2013
    %v2015 = vand.u32 %v1846, 4294901760
    %2016 = vmatmul.f32.gmra.mxu0 %v2015
    %v2017 = vpop.f32.mrf.mxu0
    %v2018 = vadd.f32 %v1985, %v2017
    %2019 = vdwg.mxu0
    %2020 = vmatpush.xpose.msra.mxu0 0.0
    %2021 = vmatpush.xpose.msra.mxu0 0.0
    %2022 = vmatpush.xpose.msra.mxu0 0.0
    %2023 = vmatpush.xpose.msra.mxu0 0.0
    %2024 = vmatpush.xpose.msra.mxu0 0.0
    %2025 = vmatpush.xpose.msra.mxu0 0.0
    %2026 = vmatpush.xpose.msra.mxu0 0.0
    %2027 = vmatpush.xpose.msra.mxu0 0.0
    %2028 = vmatpush.xpose.msra.mxu0 0.0
    %2029 = vmatpush.xpose.msra.mxu0 0.0
    %2030 = vmatpush.xpose.msra.mxu0 0.0
    %2031 = vmatpush.xpose.msra.mxu0 0.0
    %v2032 = vand.u32 %v1858, 4294901760
    %2033 = vmatpush.xpose.msra.mxu0 %v2032
    %v2034 = vand.u32 %v1855, 4294901760
    %2035 = vmatpush.xpose.msra.mxu0 %v2034
    %v2036 = vand.u32 %v1852, 4294901760
    %2037 = vmatpush.xpose.msra.mxu0 %v2036
    %v2038 = vand.u32 %v1849, 4294901760
    %2039 = vmatpush.xpose.msra.mxu0 %v2038
    %v2040 = vand.u32 %v1846, 4294901760
    %2041 = vmatmul.f32.gmra.mxu0 %v2040
    %v2042 = vpop.f32.mrf.mxu0
    %v2043 = vadd.f32 %v2018, %v2042
    %2044 = vdwg.mxu0
    %v2046 = vsel %vm244, %v93, 0
    %v2049 = vsel %vm244, %v200, 0
    %v2052 = vsel %vm244, %v201, 0
    %v2055 = vsel %vm244, %v202, 0
    %v2058 = vsel %vm244, %v203, 0
    %2060 = vmatpush.xpose.msra.mxu0 0.0
    %2061 = vmatpush.xpose.msra.mxu0 0.0
    %2062 = vmatpush.xpose.msra.mxu0 0.0
    %2063 = vmatpush.xpose.msra.mxu0 0.0
    %2064 = vmatpush.xpose.msra.mxu0 0.0
    %2065 = vmatpush.xpose.msra.mxu0 0.0
    %2066 = vmatpush.xpose.msra.mxu0 0.0
    %2067 = vmatpush.xpose.msra.mxu0 0.0
    %2068 = vmatpush.xpose.msra.mxu0 0.0
    %2069 = vmatpush.xpose.msra.mxu0 0.0
    %2070 = vmatpush.xpose.msra.mxu0 0.0
    %2071 = vmatpush.xpose.msra.mxu0 0.0
    %v2072 = vand.u32 %v2058, 4294901760
    %2073 = vmatpush.xpose.msra.mxu0 %v2072
    %v2074 = vand.u32 %v2055, 4294901760
    %2075 = vmatpush.xpose.msra.mxu0 %v2074
    %v2076 = vand.u32 %v2052, 4294901760
    %2077 = vmatpush.xpose.msra.mxu0 %v2076
    %v2078 = vand.u32 %v2049, 4294901760
    %2079 = vmatpush.xpose.msra.mxu0 %v2078
    %v2080 = vand.u32 %v2046, 4294901760
    %v2081 = vsub.f32 %v2046, %v2080
    %v2082 = vand.u32 %v2081, 4294901760
    %v2083 = vsub.f32 %v2081, %v2082
    %v2084 = vand.u32 %v2083, 4294901760
    %2085 = vmatmul.f32.gmra.mxu0 %v2084
    %v2086 = vpop.f32.mrf.mxu0
    %v2087 = vadd.f32 %v237, %v2086
    %2088 = vdwg.mxu0
    %2089 = vmatpush.xpose.msra.mxu0 0.0
    %2090 = vmatpush.xpose.msra.mxu0 0.0
    %2091 = vmatpush.xpose.msra.mxu0 0.0
    %2092 = vmatpush.xpose.msra.mxu0 0.0
    %2093 = vmatpush.xpose.msra.mxu0 0.0
    %2094 = vmatpush.xpose.msra.mxu0 0.0
    %2095 = vmatpush.xpose.msra.mxu0 0.0
    %2096 = vmatpush.xpose.msra.mxu0 0.0
    %2097 = vmatpush.xpose.msra.mxu0 0.0
    %2098 = vmatpush.xpose.msra.mxu0 0.0
    %2099 = vmatpush.xpose.msra.mxu0 0.0
    %2100 = vmatpush.xpose.msra.mxu0 0.0
    %v2101 = vand.u32 %v2058, 4294901760
    %v2102 = vsub.f32 %v2058, %v2101
    %v2103 = vand.u32 %v2102, 4294901760
    %v2104 = vsub.f32 %v2102, %v2103
    %v2105 = vand.u32 %v2104, 4294901760
    %2106 = vmatpush.xpose.msra.mxu0 %v2105
    %v2107 = vand.u32 %v2055, 4294901760
    %v2108 = vsub.f32 %v2055, %v2107
    %v2109 = vand.u32 %v2108, 4294901760
    %v2110 = vsub.f32 %v2108, %v2109
    %v2111 = vand.u32 %v2110, 4294901760
    %2112 = vmatpush.xpose.msra.mxu0 %v2111
    %v2113 = vand.u32 %v2052, 4294901760
    %v2114 = vsub.f32 %v2052, %v2113
    %v2115 = vand.u32 %v2114, 4294901760
    %v2116 = vsub.f32 %v2114, %v2115
    %v2117 = vand.u32 %v2116, 4294901760
    %2118 = vmatpush.xpose.msra.mxu0 %v2117
    %v2119 = vand.u32 %v2049, 4294901760
    %v2120 = vsub.f32 %v2049, %v2119
    %v2121 = vand.u32 %v2120, 4294901760
    %v2122 = vsub.f32 %v2120, %v2121
    %v2123 = vand.u32 %v2122, 4294901760
    %2124 = vmatpush.xpose.msra.mxu0 %v2123
    %v2125 = vand.u32 %v2046, 4294901760
    %2126 = vmatmul.f32.gmra.mxu0 %v2125
    %v2127 = vpop.f32.mrf.mxu0
    %v2128 = vadd.f32 %v2087, %v2127
    %2129 = vdwg.mxu0
    %2130 = vmatpush.xpose.msra.mxu0 0.0
    %2131 = vmatpush.xpose.msra.mxu0 0.0
    %2132 = vmatpush.xpose.msra.mxu0 0.0
    %2133 = vmatpush.xpose.msra.mxu0 0.0
    %2134 = vmatpush.xpose.msra.mxu0 0.0
    %2135 = vmatpush.xpose.msra.mxu0 0.0
    %2136 = vmatpush.xpose.msra.mxu0 0.0
    %2137 = vmatpush.xpose.msra.mxu0 0.0
    %2138 = vmatpush.xpose.msra.mxu0 0.0
    %2139 = vmatpush.xpose.msra.mxu0 0.0
    %2140 = vmatpush.xpose.msra.mxu0 0.0
    %2141 = vmatpush.xpose.msra.mxu0 0.0
    %v2142 = vand.u32 %v2058, 4294901760
    %v2143 = vsub.f32 %v2058, %v2142
    %2144 = vmatpush.xpose.msra.mxu0 %v2143
    %v2145 = vand.u32 %v2055, 4294901760
    %v2146 = vsub.f32 %v2055, %v2145
    %2147 = vmatpush.xpose.msra.mxu0 %v2146
    %v2148 = vand.u32 %v2052, 4294901760
    %v2149 = vsub.f32 %v2052, %v2148
    %2150 = vmatpush.xpose.msra.mxu0 %v2149
    %v2151 = vand.u32 %v2049, 4294901760
    %v2152 = vsub.f32 %v2049, %v2151
    %2153 = vmatpush.xpose.msra.mxu0 %v2152
    %v2154 = vand.u32 %v2046, 4294901760
    %v2155 = vsub.f32 %v2046, %v2154
    %2156 = vmatmul.f32.gmra.mxu0 %v2155
    %v2157 = vpop.f32.mrf.mxu0
    %v2158 = vadd.f32 %v2128, %v2157
    %2159 = vdwg.mxu0
    %2160 = vmatpush.xpose.msra.mxu0 0.0
    %2161 = vmatpush.xpose.msra.mxu0 0.0
    %2162 = vmatpush.xpose.msra.mxu0 0.0
    %2163 = vmatpush.xpose.msra.mxu0 0.0
    %2164 = vmatpush.xpose.msra.mxu0 0.0
    %2165 = vmatpush.xpose.msra.mxu0 0.0
    %2166 = vmatpush.xpose.msra.mxu0 0.0
    %2167 = vmatpush.xpose.msra.mxu0 0.0
    %2168 = vmatpush.xpose.msra.mxu0 0.0
    %2169 = vmatpush.xpose.msra.mxu0 0.0
    %2170 = vmatpush.xpose.msra.mxu0 0.0
    %2171 = vmatpush.xpose.msra.mxu0 0.0
    %v2172 = vand.u32 %v2058, 4294901760
    %2173 = vmatpush.xpose.msra.mxu0 %v2172
    %v2174 = vand.u32 %v2055, 4294901760
    %2175 = vmatpush.xpose.msra.mxu0 %v2174
    %v2176 = vand.u32 %v2052, 4294901760
    %2177 = vmatpush.xpose.msra.mxu0 %v2176
    %v2178 = vand.u32 %v2049, 4294901760
    %2179 = vmatpush.xpose.msra.mxu0 %v2178
    %v2180 = vand.u32 %v2046, 4294901760
    %v2181 = vsub.f32 %v2046, %v2180
    %v2182 = vand.u32 %v2181, 4294901760
    %2183 = vmatmul.f32.gmra.mxu0 %v2182
    %v2184 = vpop.f32.mrf.mxu0
    %v2185 = vadd.f32 %v2158, %v2184
    %2186 = vdwg.mxu0
    %2187 = vmatpush.xpose.msra.mxu0 0.0
    %2188 = vmatpush.xpose.msra.mxu0 0.0
    %2189 = vmatpush.xpose.msra.mxu0 0.0
    %2190 = vmatpush.xpose.msra.mxu0 0.0
    %2191 = vmatpush.xpose.msra.mxu0 0.0
    %2192 = vmatpush.xpose.msra.mxu0 0.0
    %2193 = vmatpush.xpose.msra.mxu0 0.0
    %2194 = vmatpush.xpose.msra.mxu0 0.0
    %2195 = vmatpush.xpose.msra.mxu0 0.0
    %2196 = vmatpush.xpose.msra.mxu0 0.0
    %2197 = vmatpush.xpose.msra.mxu0 0.0
    %2198 = vmatpush.xpose.msra.mxu0 0.0
    %v2199 = vand.u32 %v2058, 4294901760
    %v2200 = vsub.f32 %v2058, %v2199
    %v2201 = vand.u32 %v2200, 4294901760
    %2202 = vmatpush.xpose.msra.mxu0 %v2201
    %v2203 = vand.u32 %v2055, 4294901760
    %v2204 = vsub.f32 %v2055, %v2203
    %v2205 = vand.u32 %v2204, 4294901760
    %2206 = vmatpush.xpose.msra.mxu0 %v2205
    %v2207 = vand.u32 %v2052, 4294901760
    %v2208 = vsub.f32 %v2052, %v2207
    %v2209 = vand.u32 %v2208, 4294901760
    %2210 = vmatpush.xpose.msra.mxu0 %v2209
    %v2211 = vand.u32 %v2049, 4294901760
    %v2212 = vsub.f32 %v2049, %v2211
    %v2213 = vand.u32 %v2212, 4294901760
    %2214 = vmatpush.xpose.msra.mxu0 %v2213
    %v2215 = vand.u32 %v2046, 4294901760
    %2216 = vmatmul.f32.gmra.mxu0 %v2215
    %v2217 = vpop.f32.mrf.mxu0
    %v2218 = vadd.f32 %v2185, %v2217
    %2219 = vdwg.mxu0
    %2220 = vmatpush.xpose.msra.mxu0 0.0
    %2221 = vmatpush.xpose.msra.mxu0 0.0
    %2222 = vmatpush.xpose.msra.mxu0 0.0
    %2223 = vmatpush.xpose.msra.mxu0 0.0
    %2224 = vmatpush.xpose.msra.mxu0 0.0
    %2225 = vmatpush.xpose.msra.mxu0 0.0
    %2226 = vmatpush.xpose.msra.mxu0 0.0
    %2227 = vmatpush.xpose.msra.mxu0 0.0
    %2228 = vmatpush.xpose.msra.mxu0 0.0
    %2229 = vmatpush.xpose.msra.mxu0 0.0
    %2230 = vmatpush.xpose.msra.mxu0 0.0
    %2231 = vmatpush.xpose.msra.mxu0 0.0
    %v2232 = vand.u32 %v2058, 4294901760
    %2233 = vmatpush.xpose.msra.mxu0 %v2232
    %v2234 = vand.u32 %v2055, 4294901760
    %2235 = vmatpush.xpose.msra.mxu0 %v2234
    %v2236 = vand.u32 %v2052, 4294901760
    %2237 = vmatpush.xpose.msra.mxu0 %v2236
    %v2238 = vand.u32 %v2049, 4294901760
    %2239 = vmatpush.xpose.msra.mxu0 %v2238
    %v2240 = vand.u32 %v2046, 4294901760
    %2241 = vmatmul.f32.gmra.mxu0 %v2240
    %v2242 = vpop.f32.mrf.mxu0
    %v2243 = vadd.f32 %v2218, %v2242
    %2244 = vdwg.mxu0
    %v2246 = vsel %vm244, %v94, 0
    %v2249 = vsel %vm244, %v204, 0
    %v2252 = vsel %vm244, %v205, 0
    %v2255 = vsel %vm244, %v206, 0
    %v2258 = vsel %vm244, %v207, 0
    %2260 = vmatpush.xpose.msra.mxu0 0.0
    %2261 = vmatpush.xpose.msra.mxu0 0.0
    %2262 = vmatpush.xpose.msra.mxu0 0.0
    %2263 = vmatpush.xpose.msra.mxu0 0.0
    %2264 = vmatpush.xpose.msra.mxu0 0.0
    %2265 = vmatpush.xpose.msra.mxu0 0.0
    %2266 = vmatpush.xpose.msra.mxu0 0.0
    %2267 = vmatpush.xpose.msra.mxu0 0.0
    %2268 = vmatpush.xpose.msra.mxu0 0.0
    %2269 = vmatpush.xpose.msra.mxu0 0.0
    %2270 = vmatpush.xpose.msra.mxu0 0.0
    %2271 = vmatpush.xpose.msra.mxu0 0.0
    %v2272 = vand.u32 %v2258, 4294901760
    %2273 = vmatpush.xpose.msra.mxu0 %v2272
    %v2274 = vand.u32 %v2255, 4294901760
    %2275 = vmatpush.xpose.msra.mxu0 %v2274
    %v2276 = vand.u32 %v2252, 4294901760
    %2277 = vmatpush.xpose.msra.mxu0 %v2276
    %v2278 = vand.u32 %v2249, 4294901760
    %2279 = vmatpush.xpose.msra.mxu0 %v2278
    %v2280 = vand.u32 %v2246, 4294901760
    %v2281 = vsub.f32 %v2246, %v2280
    %v2282 = vand.u32 %v2281, 4294901760
    %v2283 = vsub.f32 %v2281, %v2282
    %v2284 = vand.u32 %v2283, 4294901760
    %2285 = vmatmul.f32.gmra.mxu0 %v2284
    %v2286 = vpop.f32.mrf.mxu0
    %v2287 = vadd.f32 %v238, %v2286
    %2288 = vdwg.mxu0
    %2289 = vmatpush.xpose.msra.mxu0 0.0
    %2290 = vmatpush.xpose.msra.mxu0 0.0
    %2291 = vmatpush.xpose.msra.mxu0 0.0
    %2292 = vmatpush.xpose.msra.mxu0 0.0
    %2293 = vmatpush.xpose.msra.mxu0 0.0
    %2294 = vmatpush.xpose.msra.mxu0 0.0
    %2295 = vmatpush.xpose.msra.mxu0 0.0
    %2296 = vmatpush.xpose.msra.mxu0 0.0
    %2297 = vmatpush.xpose.msra.mxu0 0.0
    %2298 = vmatpush.xpose.msra.mxu0 0.0
    %2299 = vmatpush.xpose.msra.mxu0 0.0
    %2300 = vmatpush.xpose.msra.mxu0 0.0
    %v2301 = vand.u32 %v2258, 4294901760
    %v2302 = vsub.f32 %v2258, %v2301
    %v2303 = vand.u32 %v2302, 4294901760
    %v2304 = vsub.f32 %v2302, %v2303
    %v2305 = vand.u32 %v2304, 4294901760
    %2306 = vmatpush.xpose.msra.mxu0 %v2305
    %v2307 = vand.u32 %v2255, 4294901760
    %v2308 = vsub.f32 %v2255, %v2307
    %v2309 = vand.u32 %v2308, 4294901760
    %v2310 = vsub.f32 %v2308, %v2309
    %v2311 = vand.u32 %v2310, 4294901760
    %2312 = vmatpush.xpose.msra.mxu0 %v2311
    %v2313 = vand.u32 %v2252, 4294901760
    %v2314 = vsub.f32 %v2252, %v2313
    %v2315 = vand.u32 %v2314, 4294901760
    %v2316 = vsub.f32 %v2314, %v2315
    %v2317 = vand.u32 %v2316, 4294901760
    %2318 = vmatpush.xpose.msra.mxu0 %v2317
    %v2319 = vand.u32 %v2249, 4294901760
    %v2320 = vsub.f32 %v2249, %v2319
    %v2321 = vand.u32 %v2320, 4294901760
    %v2322 = vsub.f32 %v2320, %v2321
    %v2323 = vand.u32 %v2322, 4294901760
    %2324 = vmatpush.xpose.msra.mxu0 %v2323
    %v2325 = vand.u32 %v2246, 4294901760
    %2326 = vmatmul.f32.gmra.mxu0 %v2325
    %v2327 = vpop.f32.mrf.mxu0
    %v2328 = vadd.f32 %v2287, %v2327
    %2329 = vdwg.mxu0
    %2330 = vmatpush.xpose.msra.mxu0 0.0
    %2331 = vmatpush.xpose.msra.mxu0 0.0
    %2332 = vmatpush.xpose.msra.mxu0 0.0
    %2333 = vmatpush.xpose.msra.mxu0 0.0
    %2334 = vmatpush.xpose.msra.mxu0 0.0
    %2335 = vmatpush.xpose.msra.mxu0 0.0
    %2336 = vmatpush.xpose.msra.mxu0 0.0
    %2337 = vmatpush.xpose.msra.mxu0 0.0
    %2338 = vmatpush.xpose.msra.mxu0 0.0
    %2339 = vmatpush.xpose.msra.mxu0 0.0
    %2340 = vmatpush.xpose.msra.mxu0 0.0
    %2341 = vmatpush.xpose.msra.mxu0 0.0
    %v2342 = vand.u32 %v2258, 4294901760
    %v2343 = vsub.f32 %v2258, %v2342
    %2344 = vmatpush.xpose.msra.mxu0 %v2343
    %v2345 = vand.u32 %v2255, 4294901760
    %v2346 = vsub.f32 %v2255, %v2345
    %2347 = vmatpush.xpose.msra.mxu0 %v2346
    %v2348 = vand.u32 %v2252, 4294901760
    %v2349 = vsub.f32 %v2252, %v2348
    %2350 = vmatpush.xpose.msra.mxu0 %v2349
    %v2351 = vand.u32 %v2249, 4294901760
    %v2352 = vsub.f32 %v2249, %v2351
    %2353 = vmatpush.xpose.msra.mxu0 %v2352
    %v2354 = vand.u32 %v2246, 4294901760
    %v2355 = vsub.f32 %v2246, %v2354
    %2356 = vmatmul.f32.gmra.mxu0 %v2355
    %v2357 = vpop.f32.mrf.mxu0
    %v2358 = vadd.f32 %v2328, %v2357
    %2359 = vdwg.mxu0
    %2360 = vmatpush.xpose.msra.mxu0 0.0
    %2361 = vmatpush.xpose.msra.mxu0 0.0
    %2362 = vmatpush.xpose.msra.mxu0 0.0
    %2363 = vmatpush.xpose.msra.mxu0 0.0
    %2364 = vmatpush.xpose.msra.mxu0 0.0
    %2365 = vmatpush.xpose.msra.mxu0 0.0
    %2366 = vmatpush.xpose.msra.mxu0 0.0
    %2367 = vmatpush.xpose.msra.mxu0 0.0
    %2368 = vmatpush.xpose.msra.mxu0 0.0
    %2369 = vmatpush.xpose.msra.mxu0 0.0
    %2370 = vmatpush.xpose.msra.mxu0 0.0
    %2371 = vmatpush.xpose.msra.mxu0 0.0
    %v2372 = vand.u32 %v2258, 4294901760
    %2373 = vmatpush.xpose.msra.mxu0 %v2372
    %v2374 = vand.u32 %v2255, 4294901760
    %2375 = vmatpush.xpose.msra.mxu0 %v2374
    %v2376 = vand.u32 %v2252, 4294901760
    %2377 = vmatpush.xpose.msra.mxu0 %v2376
    %v2378 = vand.u32 %v2249, 4294901760
    %2379 = vmatpush.xpose.msra.mxu0 %v2378
    %v2380 = vand.u32 %v2246, 4294901760
    %v2381 = vsub.f32 %v2246, %v2380
    %v2382 = vand.u32 %v2381, 4294901760
    %2383 = vmatmul.f32.gmra.mxu0 %v2382
    %v2384 = vpop.f32.mrf.mxu0
    %v2385 = vadd.f32 %v2358, %v2384
    %2386 = vdwg.mxu0
    %2387 = vmatpush.xpose.msra.mxu0 0.0
    %2388 = vmatpush.xpose.msra.mxu0 0.0
    %2389 = vmatpush.xpose.msra.mxu0 0.0
    %2390 = vmatpush.xpose.msra.mxu0 0.0
    %2391 = vmatpush.xpose.msra.mxu0 0.0
    %2392 = vmatpush.xpose.msra.mxu0 0.0
    %2393 = vmatpush.xpose.msra.mxu0 0.0
    %2394 = vmatpush.xpose.msra.mxu0 0.0
    %2395 = vmatpush.xpose.msra.mxu0 0.0
    %2396 = vmatpush.xpose.msra.mxu0 0.0
    %2397 = vmatpush.xpose.msra.mxu0 0.0
    %2398 = vmatpush.xpose.msra.mxu0 0.0
    %v2399 = vand.u32 %v2258, 4294901760
    %v2400 = vsub.f32 %v2258, %v2399
    %v2401 = vand.u32 %v2400, 4294901760
    %2402 = vmatpush.xpose.msra.mxu0 %v2401
    %v2403 = vand.u32 %v2255, 4294901760
    %v2404 = vsub.f32 %v2255, %v2403
    %v2405 = vand.u32 %v2404, 4294901760
    %2406 = vmatpush.xpose.msra.mxu0 %v2405
    %v2407 = vand.u32 %v2252, 4294901760
    %v2408 = vsub.f32 %v2252, %v2407
    %v2409 = vand.u32 %v2408, 4294901760
    %2410 = vmatpush.xpose.msra.mxu0 %v2409
    %v2411 = vand.u32 %v2249, 4294901760
    %v2412 = vsub.f32 %v2249, %v2411
    %v2413 = vand.u32 %v2412, 4294901760
    %2414 = vmatpush.xpose.msra.mxu0 %v2413
    %v2415 = vand.u32 %v2246, 4294901760
    %2416 = vmatmul.f32.gmra.mxu0 %v2415
    %v2417 = vpop.f32.mrf.mxu0
    %v2418 = vadd.f32 %v2385, %v2417
    %2419 = vdwg.mxu0
    %2420 = vmatpush.xpose.msra.mxu0 0.0
    %2421 = vmatpush.xpose.msra.mxu0 0.0
    %2422 = vmatpush.xpose.msra.mxu0 0.0
    %2423 = vmatpush.xpose.msra.mxu0 0.0
    %2424 = vmatpush.xpose.msra.mxu0 0.0
    %2425 = vmatpush.xpose.msra.mxu0 0.0
    %2426 = vmatpush.xpose.msra.mxu0 0.0
    %2427 = vmatpush.xpose.msra.mxu0 0.0
    %2428 = vmatpush.xpose.msra.mxu0 0.0
    %2429 = vmatpush.xpose.msra.mxu0 0.0
    %2430 = vmatpush.xpose.msra.mxu0 0.0
    %2431 = vmatpush.xpose.msra.mxu0 0.0
    %v2432 = vand.u32 %v2258, 4294901760
    %2433 = vmatpush.xpose.msra.mxu0 %v2432
    %v2434 = vand.u32 %v2255, 4294901760
    %2435 = vmatpush.xpose.msra.mxu0 %v2434
    %v2436 = vand.u32 %v2252, 4294901760
    %2437 = vmatpush.xpose.msra.mxu0 %v2436
    %v2438 = vand.u32 %v2249, 4294901760
    %2439 = vmatpush.xpose.msra.mxu0 %v2438
    %v2440 = vand.u32 %v2246, 4294901760
    %2441 = vmatmul.f32.gmra.mxu0 %v2440
    %v2442 = vpop.f32.mrf.mxu0
    %v2443 = vadd.f32 %v2418, %v2442
    %2444 = vdwg.mxu0
    %v2446 = vsel %vm244, %v95, 0
    %v2449 = vsel %vm244, %v208, 0
    %v2452 = vsel %vm244, %v209, 0
    %v2455 = vsel %vm244, %v210, 0
    %v2458 = vsel %vm244, %v211, 0
    %2460 = vmatpush.xpose.msra.mxu0 0.0
    %2461 = vmatpush.xpose.msra.mxu0 0.0
    %2462 = vmatpush.xpose.msra.mxu0 0.0
    %2463 = vmatpush.xpose.msra.mxu0 0.0
    %2464 = vmatpush.xpose.msra.mxu0 0.0
    %2465 = vmatpush.xpose.msra.mxu0 0.0
    %2466 = vmatpush.xpose.msra.mxu0 0.0
    %2467 = vmatpush.xpose.msra.mxu0 0.0
    %2468 = vmatpush.xpose.msra.mxu0 0.0
    %2469 = vmatpush.xpose.msra.mxu0 0.0
    %2470 = vmatpush.xpose.msra.mxu0 0.0
    %2471 = vmatpush.xpose.msra.mxu0 0.0
    %v2472 = vand.u32 %v2458, 4294901760
    %2473 = vmatpush.xpose.msra.mxu0 %v2472
    %v2474 = vand.u32 %v2455, 4294901760
    %2475 = vmatpush.xpose.msra.mxu0 %v2474
    %v2476 = vand.u32 %v2452, 4294901760
    %2477 = vmatpush.xpose.msra.mxu0 %v2476
    %v2478 = vand.u32 %v2449, 4294901760
    %2479 = vmatpush.xpose.msra.mxu0 %v2478
    %v2480 = vand.u32 %v2446, 4294901760
    %v2481 = vsub.f32 %v2446, %v2480
    %v2482 = vand.u32 %v2481, 4294901760
    %v2483 = vsub.f32 %v2481, %v2482
    %v2484 = vand.u32 %v2483, 4294901760
    %2485 = vmatmul.f32.gmra.mxu0 %v2484
    %v2486 = vpop.f32.mrf.mxu0
    %v2487 = vadd.f32 %v239, %v2486
    %2488 = vdwg.mxu0
    %2489 = vmatpush.xpose.msra.mxu0 0.0
    %2490 = vmatpush.xpose.msra.mxu0 0.0
    %2491 = vmatpush.xpose.msra.mxu0 0.0
    %2492 = vmatpush.xpose.msra.mxu0 0.0
    %2493 = vmatpush.xpose.msra.mxu0 0.0
    %2494 = vmatpush.xpose.msra.mxu0 0.0
    %2495 = vmatpush.xpose.msra.mxu0 0.0
    %2496 = vmatpush.xpose.msra.mxu0 0.0
    %2497 = vmatpush.xpose.msra.mxu0 0.0
    %2498 = vmatpush.xpose.msra.mxu0 0.0
    %2499 = vmatpush.xpose.msra.mxu0 0.0
    %2500 = vmatpush.xpose.msra.mxu0 0.0
    %v2501 = vand.u32 %v2458, 4294901760
    %v2502 = vsub.f32 %v2458, %v2501
    %v2503 = vand.u32 %v2502, 4294901760
    %v2504 = vsub.f32 %v2502, %v2503
    %v2505 = vand.u32 %v2504, 4294901760
    %2506 = vmatpush.xpose.msra.mxu0 %v2505
    %v2507 = vand.u32 %v2455, 4294901760
    %v2508 = vsub.f32 %v2455, %v2507
    %v2509 = vand.u32 %v2508, 4294901760
    %v2510 = vsub.f32 %v2508, %v2509
    %v2511 = vand.u32 %v2510, 4294901760
    %2512 = vmatpush.xpose.msra.mxu0 %v2511
    %v2513 = vand.u32 %v2452, 4294901760
    %v2514 = vsub.f32 %v2452, %v2513
    %v2515 = vand.u32 %v2514, 4294901760
    %v2516 = vsub.f32 %v2514, %v2515
    %v2517 = vand.u32 %v2516, 4294901760
    %2518 = vmatpush.xpose.msra.mxu0 %v2517
    %v2519 = vand.u32 %v2449, 4294901760
    %v2520 = vsub.f32 %v2449, %v2519
    %v2521 = vand.u32 %v2520, 4294901760
    %v2522 = vsub.f32 %v2520, %v2521
    %v2523 = vand.u32 %v2522, 4294901760
    %2524 = vmatpush.xpose.msra.mxu0 %v2523
    %v2525 = vand.u32 %v2446, 4294901760
    %2526 = vmatmul.f32.gmra.mxu0 %v2525
    %v2527 = vpop.f32.mrf.mxu0
    %v2528 = vadd.f32 %v2487, %v2527
    %2529 = vdwg.mxu0
    %2530 = vmatpush.xpose.msra.mxu0 0.0
    %2531 = vmatpush.xpose.msra.mxu0 0.0
    %2532 = vmatpush.xpose.msra.mxu0 0.0
    %2533 = vmatpush.xpose.msra.mxu0 0.0
    %2534 = vmatpush.xpose.msra.mxu0 0.0
    %2535 = vmatpush.xpose.msra.mxu0 0.0
    %2536 = vmatpush.xpose.msra.mxu0 0.0
    %2537 = vmatpush.xpose.msra.mxu0 0.0
    %2538 = vmatpush.xpose.msra.mxu0 0.0
    %2539 = vmatpush.xpose.msra.mxu0 0.0
    %2540 = vmatpush.xpose.msra.mxu0 0.0
    %2541 = vmatpush.xpose.msra.mxu0 0.0
    %v2542 = vand.u32 %v2458, 4294901760
    %v2543 = vsub.f32 %v2458, %v2542
    %2544 = vmatpush.xpose.msra.mxu0 %v2543
    %v2545 = vand.u32 %v2455, 4294901760
    %v2546 = vsub.f32 %v2455, %v2545
    %2547 = vmatpush.xpose.msra.mxu0 %v2546
    %v2548 = vand.u32 %v2452, 4294901760
    %v2549 = vsub.f32 %v2452, %v2548
    %2550 = vmatpush.xpose.msra.mxu0 %v2549
    %v2551 = vand.u32 %v2449, 4294901760
    %v2552 = vsub.f32 %v2449, %v2551
    %2553 = vmatpush.xpose.msra.mxu0 %v2552
    %v2554 = vand.u32 %v2446, 4294901760
    %v2555 = vsub.f32 %v2446, %v2554
    %2556 = vmatmul.f32.gmra.mxu0 %v2555
    %v2557 = vpop.f32.mrf.mxu0
    %v2558 = vadd.f32 %v2528, %v2557
    %2559 = vdwg.mxu0
    %2560 = vmatpush.xpose.msra.mxu0 0.0
    %2561 = vmatpush.xpose.msra.mxu0 0.0
    %2562 = vmatpush.xpose.msra.mxu0 0.0
    %2563 = vmatpush.xpose.msra.mxu0 0.0
    %2564 = vmatpush.xpose.msra.mxu0 0.0
    %2565 = vmatpush.xpose.msra.mxu0 0.0
    %2566 = vmatpush.xpose.msra.mxu0 0.0
    %2567 = vmatpush.xpose.msra.mxu0 0.0
    %2568 = vmatpush.xpose.msra.mxu0 0.0
    %2569 = vmatpush.xpose.msra.mxu0 0.0
    %2570 = vmatpush.xpose.msra.mxu0 0.0
    %2571 = vmatpush.xpose.msra.mxu0 0.0
    %v2572 = vand.u32 %v2458, 4294901760
    %2573 = vmatpush.xpose.msra.mxu0 %v2572
    %v2574 = vand.u32 %v2455, 4294901760
    %2575 = vmatpush.xpose.msra.mxu0 %v2574
    %v2576 = vand.u32 %v2452, 4294901760
    %2577 = vmatpush.xpose.msra.mxu0 %v2576
    %v2578 = vand.u32 %v2449, 4294901760
    %2579 = vmatpush.xpose.msra.mxu0 %v2578
    %v2580 = vand.u32 %v2446, 4294901760
    %v2581 = vsub.f32 %v2446, %v2580
    %v2582 = vand.u32 %v2581, 4294901760
    %2583 = vmatmul.f32.gmra.mxu0 %v2582
    %v2584 = vpop.f32.mrf.mxu0
    %v2585 = vadd.f32 %v2558, %v2584
    %2586 = vdwg.mxu0
    %2587 = vmatpush.xpose.msra.mxu0 0.0
    %2588 = vmatpush.xpose.msra.mxu0 0.0
    %2589 = vmatpush.xpose.msra.mxu0 0.0
    %2590 = vmatpush.xpose.msra.mxu0 0.0
    %2591 = vmatpush.xpose.msra.mxu0 0.0
    %2592 = vmatpush.xpose.msra.mxu0 0.0
    %2593 = vmatpush.xpose.msra.mxu0 0.0
    %2594 = vmatpush.xpose.msra.mxu0 0.0
    %2595 = vmatpush.xpose.msra.mxu0 0.0
    %2596 = vmatpush.xpose.msra.mxu0 0.0
    %2597 = vmatpush.xpose.msra.mxu0 0.0
    %2598 = vmatpush.xpose.msra.mxu0 0.0
    %v2599 = vand.u32 %v2458, 4294901760
    %v2600 = vsub.f32 %v2458, %v2599
    %v2601 = vand.u32 %v2600, 4294901760
    %2602 = vmatpush.xpose.msra.mxu0 %v2601
    %v2603 = vand.u32 %v2455, 4294901760
    %v2604 = vsub.f32 %v2455, %v2603
    %v2605 = vand.u32 %v2604, 4294901760
    %2606 = vmatpush.xpose.msra.mxu0 %v2605
    %v2607 = vand.u32 %v2452, 4294901760
    %v2608 = vsub.f32 %v2452, %v2607
    %v2609 = vand.u32 %v2608, 4294901760
    %2610 = vmatpush.xpose.msra.mxu0 %v2609
    %v2611 = vand.u32 %v2449, 4294901760
    %v2612 = vsub.f32 %v2449, %v2611
    %v2613 = vand.u32 %v2612, 4294901760
    %2614 = vmatpush.xpose.msra.mxu0 %v2613
    %v2615 = vand.u32 %v2446, 4294901760
    %2616 = vmatmul.f32.gmra.mxu0 %v2615
    %v2617 = vpop.f32.mrf.mxu0
    %v2618 = vadd.f32 %v2585, %v2617
    %2619 = vdwg.mxu0
    %2620 = vmatpush.xpose.msra.mxu0 0.0
    %2621 = vmatpush.xpose.msra.mxu0 0.0
    %2622 = vmatpush.xpose.msra.mxu0 0.0
    %2623 = vmatpush.xpose.msra.mxu0 0.0
    %2624 = vmatpush.xpose.msra.mxu0 0.0
    %2625 = vmatpush.xpose.msra.mxu0 0.0
    %2626 = vmatpush.xpose.msra.mxu0 0.0
    %2627 = vmatpush.xpose.msra.mxu0 0.0
    %2628 = vmatpush.xpose.msra.mxu0 0.0
    %2629 = vmatpush.xpose.msra.mxu0 0.0
    %2630 = vmatpush.xpose.msra.mxu0 0.0
    %2631 = vmatpush.xpose.msra.mxu0 0.0
    %v2632 = vand.u32 %v2458, 4294901760
    %2633 = vmatpush.xpose.msra.mxu0 %v2632
    %v2634 = vand.u32 %v2455, 4294901760
    %2635 = vmatpush.xpose.msra.mxu0 %v2634
    %v2636 = vand.u32 %v2452, 4294901760
    %2637 = vmatpush.xpose.msra.mxu0 %v2636
    %v2638 = vand.u32 %v2449, 4294901760
    %2639 = vmatpush.xpose.msra.mxu0 %v2638
    %v2640 = vand.u32 %v2446, 4294901760
    %2641 = vmatmul.f32.gmra.mxu0 %v2640
    %v2642 = vpop.f32.mrf.mxu0
    %v2643 = vadd.f32 %v2618, %v2642
    %2644 = vdwg.mxu0
    %v2646 = vsel %vm244, %v96, 0
    %v2649 = vsel %vm244, %v212, 0
    %v2652 = vsel %vm244, %v213, 0
    %v2655 = vsel %vm244, %v214, 0
    %v2658 = vsel %vm244, %v215, 0
    %2660 = vmatpush.xpose.msra.mxu0 0.0
    %2661 = vmatpush.xpose.msra.mxu0 0.0
    %2662 = vmatpush.xpose.msra.mxu0 0.0
    %2663 = vmatpush.xpose.msra.mxu0 0.0
    %2664 = vmatpush.xpose.msra.mxu0 0.0
    %2665 = vmatpush.xpose.msra.mxu0 0.0
    %2666 = vmatpush.xpose.msra.mxu0 0.0
    %2667 = vmatpush.xpose.msra.mxu0 0.0
    %2668 = vmatpush.xpose.msra.mxu0 0.0
    %2669 = vmatpush.xpose.msra.mxu0 0.0
    %2670 = vmatpush.xpose.msra.mxu0 0.0
    %2671 = vmatpush.xpose.msra.mxu0 0.0
    %v2672 = vand.u32 %v2658, 4294901760
    %2673 = vmatpush.xpose.msra.mxu0 %v2672
    %v2674 = vand.u32 %v2655, 4294901760
    %2675 = vmatpush.xpose.msra.mxu0 %v2674
    %v2676 = vand.u32 %v2652, 4294901760
    %2677 = vmatpush.xpose.msra.mxu0 %v2676
    %v2678 = vand.u32 %v2649, 4294901760
    %2679 = vmatpush.xpose.msra.mxu0 %v2678
    %v2680 = vand.u32 %v2646, 4294901760
    %v2681 = vsub.f32 %v2646, %v2680
    %v2682 = vand.u32 %v2681, 4294901760
    %v2683 = vsub.f32 %v2681, %v2682
    %v2684 = vand.u32 %v2683, 4294901760
    %2685 = vmatmul.f32.gmra.mxu0 %v2684
    %v2686 = vpop.f32.mrf.mxu0
    %v2687 = vadd.f32 %v240, %v2686
    %2688 = vdwg.mxu0
    %2689 = vmatpush.xpose.msra.mxu0 0.0
    %2690 = vmatpush.xpose.msra.mxu0 0.0
    %2691 = vmatpush.xpose.msra.mxu0 0.0
    %2692 = vmatpush.xpose.msra.mxu0 0.0
    %2693 = vmatpush.xpose.msra.mxu0 0.0
    %2694 = vmatpush.xpose.msra.mxu0 0.0
    %2695 = vmatpush.xpose.msra.mxu0 0.0
    %2696 = vmatpush.xpose.msra.mxu0 0.0
    %2697 = vmatpush.xpose.msra.mxu0 0.0
    %2698 = vmatpush.xpose.msra.mxu0 0.0
    %2699 = vmatpush.xpose.msra.mxu0 0.0
    %2700 = vmatpush.xpose.msra.mxu0 0.0
    %v2701 = vand.u32 %v2658, 4294901760
    %v2702 = vsub.f32 %v2658, %v2701
    %v2703 = vand.u32 %v2702, 4294901760
    %v2704 = vsub.f32 %v2702, %v2703
    %v2705 = vand.u32 %v2704, 4294901760
    %2706 = vmatpush.xpose.msra.mxu0 %v2705
    %v2707 = vand.u32 %v2655, 4294901760
    %v2708 = vsub.f32 %v2655, %v2707
    %v2709 = vand.u32 %v2708, 4294901760
    %v2710 = vsub.f32 %v2708, %v2709
    %v2711 = vand.u32 %v2710, 4294901760
    %2712 = vmatpush.xpose.msra.mxu0 %v2711
    %v2713 = vand.u32 %v2652, 4294901760
    %v2714 = vsub.f32 %v2652, %v2713
    %v2715 = vand.u32 %v2714, 4294901760
    %v2716 = vsub.f32 %v2714, %v2715
    %v2717 = vand.u32 %v2716, 4294901760
    %2718 = vmatpush.xpose.msra.mxu0 %v2717
    %v2719 = vand.u32 %v2649, 4294901760
    %v2720 = vsub.f32 %v2649, %v2719
    %v2721 = vand.u32 %v2720, 4294901760
    %v2722 = vsub.f32 %v2720, %v2721
    %v2723 = vand.u32 %v2722, 4294901760
    %2724 = vmatpush.xpose.msra.mxu0 %v2723
    %v2725 = vand.u32 %v2646, 4294901760
    %2726 = vmatmul.f32.gmra.mxu0 %v2725
    %v2727 = vpop.f32.mrf.mxu0
    %v2728 = vadd.f32 %v2687, %v2727
    %2729 = vdwg.mxu0
    %2730 = vmatpush.xpose.msra.mxu0 0.0
    %2731 = vmatpush.xpose.msra.mxu0 0.0
    %2732 = vmatpush.xpose.msra.mxu0 0.0
    %2733 = vmatpush.xpose.msra.mxu0 0.0
    %2734 = vmatpush.xpose.msra.mxu0 0.0
    %2735 = vmatpush.xpose.msra.mxu0 0.0
    %2736 = vmatpush.xpose.msra.mxu0 0.0
    %2737 = vmatpush.xpose.msra.mxu0 0.0
    %2738 = vmatpush.xpose.msra.mxu0 0.0
    %2739 = vmatpush.xpose.msra.mxu0 0.0
    %2740 = vmatpush.xpose.msra.mxu0 0.0
    %2741 = vmatpush.xpose.msra.mxu0 0.0
    %v2742 = vand.u32 %v2658, 4294901760
    %v2743 = vsub.f32 %v2658, %v2742
    %2744 = vmatpush.xpose.msra.mxu0 %v2743
    %v2745 = vand.u32 %v2655, 4294901760
    %v2746 = vsub.f32 %v2655, %v2745
    %2747 = vmatpush.xpose.msra.mxu0 %v2746
    %v2748 = vand.u32 %v2652, 4294901760
    %v2749 = vsub.f32 %v2652, %v2748
    %2750 = vmatpush.xpose.msra.mxu0 %v2749
    %v2751 = vand.u32 %v2649, 4294901760
    %v2752 = vsub.f32 %v2649, %v2751
    %2753 = vmatpush.xpose.msra.mxu0 %v2752
    %v2754 = vand.u32 %v2646, 4294901760
    %v2755 = vsub.f32 %v2646, %v2754
    %2756 = vmatmul.f32.gmra.mxu0 %v2755
    %v2757 = vpop.f32.mrf.mxu0
    %v2758 = vadd.f32 %v2728, %v2757
    %2759 = vdwg.mxu0
    %2760 = vmatpush.xpose.msra.mxu0 0.0
    %2761 = vmatpush.xpose.msra.mxu0 0.0
    %2762 = vmatpush.xpose.msra.mxu0 0.0
    %2763 = vmatpush.xpose.msra.mxu0 0.0
    %2764 = vmatpush.xpose.msra.mxu0 0.0
    %2765 = vmatpush.xpose.msra.mxu0 0.0
    %2766 = vmatpush.xpose.msra.mxu0 0.0
    %2767 = vmatpush.xpose.msra.mxu0 0.0
    %2768 = vmatpush.xpose.msra.mxu0 0.0
    %2769 = vmatpush.xpose.msra.mxu0 0.0
    %2770 = vmatpush.xpose.msra.mxu0 0.0
    %2771 = vmatpush.xpose.msra.mxu0 0.0
    %v2772 = vand.u32 %v2658, 4294901760
    %2773 = vmatpush.xpose.msra.mxu0 %v2772
    %v2774 = vand.u32 %v2655, 4294901760
    %2775 = vmatpush.xpose.msra.mxu0 %v2774
    %v2776 = vand.u32 %v2652, 4294901760
    %2777 = vmatpush.xpose.msra.mxu0 %v2776
    %v2778 = vand.u32 %v2649, 4294901760
    %2779 = vmatpush.xpose.msra.mxu0 %v2778
    %v2780 = vand.u32 %v2646, 4294901760
    %v2781 = vsub.f32 %v2646, %v2780
    %v2782 = vand.u32 %v2781, 4294901760
    %2783 = vmatmul.f32.gmra.mxu0 %v2782
    %v2784 = vpop.f32.mrf.mxu0
    %v2785 = vadd.f32 %v2758, %v2784
    %2786 = vdwg.mxu0
    %2787 = vmatpush.xpose.msra.mxu0 0.0
    %2788 = vmatpush.xpose.msra.mxu0 0.0
    %2789 = vmatpush.xpose.msra.mxu0 0.0
    %2790 = vmatpush.xpose.msra.mxu0 0.0
    %2791 = vmatpush.xpose.msra.mxu0 0.0
    %2792 = vmatpush.xpose.msra.mxu0 0.0
    %2793 = vmatpush.xpose.msra.mxu0 0.0
    %2794 = vmatpush.xpose.msra.mxu0 0.0
    %2795 = vmatpush.xpose.msra.mxu0 0.0
    %2796 = vmatpush.xpose.msra.mxu0 0.0
    %2797 = vmatpush.xpose.msra.mxu0 0.0
    %2798 = vmatpush.xpose.msra.mxu0 0.0
    %v2799 = vand.u32 %v2658, 4294901760
    %v2800 = vsub.f32 %v2658, %v2799
    %v2801 = vand.u32 %v2800, 4294901760
    %2802 = vmatpush.xpose.msra.mxu0 %v2801
    %v2803 = vand.u32 %v2655, 4294901760
    %v2804 = vsub.f32 %v2655, %v2803
    %v2805 = vand.u32 %v2804, 4294901760
    %2806 = vmatpush.xpose.msra.mxu0 %v2805
    %v2807 = vand.u32 %v2652, 4294901760
    %v2808 = vsub.f32 %v2652, %v2807
    %v2809 = vand.u32 %v2808, 4294901760
    %2810 = vmatpush.xpose.msra.mxu0 %v2809
    %v2811 = vand.u32 %v2649, 4294901760
    %v2812 = vsub.f32 %v2649, %v2811
    %v2813 = vand.u32 %v2812, 4294901760
    %2814 = vmatpush.xpose.msra.mxu0 %v2813
    %v2815 = vand.u32 %v2646, 4294901760
    %2816 = vmatmul.f32.gmra.mxu0 %v2815
    %v2817 = vpop.f32.mrf.mxu0
    %v2818 = vadd.f32 %v2785, %v2817
    %2819 = vdwg.mxu0
    %2820 = vmatpush.xpose.msra.mxu0 0.0
    %2821 = vmatpush.xpose.msra.mxu0 0.0
    %2822 = vmatpush.xpose.msra.mxu0 0.0
    %2823 = vmatpush.xpose.msra.mxu0 0.0
    %2824 = vmatpush.xpose.msra.mxu0 0.0
    %2825 = vmatpush.xpose.msra.mxu0 0.0
    %2826 = vmatpush.xpose.msra.mxu0 0.0
    %2827 = vmatpush.xpose.msra.mxu0 0.0
    %2828 = vmatpush.xpose.msra.mxu0 0.0
    %2829 = vmatpush.xpose.msra.mxu0 0.0
    %2830 = vmatpush.xpose.msra.mxu0 0.0
    %2831 = vmatpush.xpose.msra.mxu0 0.0
    %v2832 = vand.u32 %v2658, 4294901760
    %2833 = vmatpush.xpose.msra.mxu0 %v2832
    %v2834 = vand.u32 %v2655, 4294901760
    %2835 = vmatpush.xpose.msra.mxu0 %v2834
    %v2836 = vand.u32 %v2652, 4294901760
    %2837 = vmatpush.xpose.msra.mxu0 %v2836
    %v2838 = vand.u32 %v2649, 4294901760
    %2839 = vmatpush.xpose.msra.mxu0 %v2838
    %v2840 = vand.u32 %v2646, 4294901760
    %2841 = vmatmul.f32.gmra.mxu0 %v2840
    %v2842 = vpop.f32.mrf.mxu0
    %v2843 = vadd.f32 %v2818, %v2842
    %2844 = vdwg.mxu0
    %v2846 = vsel %vm244, %v97, 0
    %v2849 = vsel %vm244, %v216, 0
    %v2852 = vsel %vm244, %v217, 0
    %v2855 = vsel %vm244, %v218, 0
    %v2858 = vsel %vm244, %v219, 0
    %2860 = vmatpush.xpose.msra.mxu0 0.0
    %2861 = vmatpush.xpose.msra.mxu0 0.0
    %2862 = vmatpush.xpose.msra.mxu0 0.0
    %2863 = vmatpush.xpose.msra.mxu0 0.0
    %2864 = vmatpush.xpose.msra.mxu0 0.0
    %2865 = vmatpush.xpose.msra.mxu0 0.0
    %2866 = vmatpush.xpose.msra.mxu0 0.0
    %2867 = vmatpush.xpose.msra.mxu0 0.0
    %2868 = vmatpush.xpose.msra.mxu0 0.0
    %2869 = vmatpush.xpose.msra.mxu0 0.0
    %2870 = vmatpush.xpose.msra.mxu0 0.0
    %2871 = vmatpush.xpose.msra.mxu0 0.0
    %v2872 = vand.u32 %v2858, 4294901760
    %2873 = vmatpush.xpose.msra.mxu0 %v2872
    %v2874 = vand.u32 %v2855, 4294901760
    %2875 = vmatpush.xpose.msra.mxu0 %v2874
    %v2876 = vand.u32 %v2852, 4294901760
    %2877 = vmatpush.xpose.msra.mxu0 %v2876
    %v2878 = vand.u32 %v2849, 4294901760
    %2879 = vmatpush.xpose.msra.mxu0 %v2878
    %v2880 = vand.u32 %v2846, 4294901760
    %v2881 = vsub.f32 %v2846, %v2880
    %v2882 = vand.u32 %v2881, 4294901760
    %v2883 = vsub.f32 %v2881, %v2882
    %v2884 = vand.u32 %v2883, 4294901760
    %2885 = vmatmul.f32.gmra.mxu0 %v2884
    %v2886 = vpop.f32.mrf.mxu0
    %v2887 = vadd.f32 %v241, %v2886
    %2888 = vdwg.mxu0
    %2889 = vmatpush.xpose.msra.mxu0 0.0
    %2890 = vmatpush.xpose.msra.mxu0 0.0
    %2891 = vmatpush.xpose.msra.mxu0 0.0
    %2892 = vmatpush.xpose.msra.mxu0 0.0
    %2893 = vmatpush.xpose.msra.mxu0 0.0
    %2894 = vmatpush.xpose.msra.mxu0 0.0
    %2895 = vmatpush.xpose.msra.mxu0 0.0
    %2896 = vmatpush.xpose.msra.mxu0 0.0
    %2897 = vmatpush.xpose.msra.mxu0 0.0
    %2898 = vmatpush.xpose.msra.mxu0 0.0
    %2899 = vmatpush.xpose.msra.mxu0 0.0
    %2900 = vmatpush.xpose.msra.mxu0 0.0
    %v2901 = vand.u32 %v2858, 4294901760
    %v2902 = vsub.f32 %v2858, %v2901
    %v2903 = vand.u32 %v2902, 4294901760
    %v2904 = vsub.f32 %v2902, %v2903
    %v2905 = vand.u32 %v2904, 4294901760
    %2906 = vmatpush.xpose.msra.mxu0 %v2905
    %v2907 = vand.u32 %v2855, 4294901760
    %v2908 = vsub.f32 %v2855, %v2907
    %v2909 = vand.u32 %v2908, 4294901760
    %v2910 = vsub.f32 %v2908, %v2909
    %v2911 = vand.u32 %v2910, 4294901760
    %2912 = vmatpush.xpose.msra.mxu0 %v2911
    %v2913 = vand.u32 %v2852, 4294901760
    %v2914 = vsub.f32 %v2852, %v2913
    %v2915 = vand.u32 %v2914, 4294901760
    %v2916 = vsub.f32 %v2914, %v2915
    %v2917 = vand.u32 %v2916, 4294901760
    %2918 = vmatpush.xpose.msra.mxu0 %v2917
    %v2919 = vand.u32 %v2849, 4294901760
    %v2920 = vsub.f32 %v2849, %v2919
    %v2921 = vand.u32 %v2920, 4294901760
    %v2922 = vsub.f32 %v2920, %v2921
    %v2923 = vand.u32 %v2922, 4294901760
    %2924 = vmatpush.xpose.msra.mxu0 %v2923
    %v2925 = vand.u32 %v2846, 4294901760
    %2926 = vmatmul.f32.gmra.mxu0 %v2925
    %v2927 = vpop.f32.mrf.mxu0
    %v2928 = vadd.f32 %v2887, %v2927
    %2929 = vdwg.mxu0
    %2930 = vmatpush.xpose.msra.mxu0 0.0
    %2931 = vmatpush.xpose.msra.mxu0 0.0
    %2932 = vmatpush.xpose.msra.mxu0 0.0
    %2933 = vmatpush.xpose.msra.mxu0 0.0
    %2934 = vmatpush.xpose.msra.mxu0 0.0
    %2935 = vmatpush.xpose.msra.mxu0 0.0
    %2936 = vmatpush.xpose.msra.mxu0 0.0
    %2937 = vmatpush.xpose.msra.mxu0 0.0
    %2938 = vmatpush.xpose.msra.mxu0 0.0
    %2939 = vmatpush.xpose.msra.mxu0 0.0
    %2940 = vmatpush.xpose.msra.mxu0 0.0
    %2941 = vmatpush.xpose.msra.mxu0 0.0
    %v2942 = vand.u32 %v2858, 4294901760
    %v2943 = vsub.f32 %v2858, %v2942
    %2944 = vmatpush.xpose.msra.mxu0 %v2943
    %v2945 = vand.u32 %v2855, 4294901760
    %v2946 = vsub.f32 %v2855, %v2945
    %2947 = vmatpush.xpose.msra.mxu0 %v2946
    %v2948 = vand.u32 %v2852, 4294901760
    %v2949 = vsub.f32 %v2852, %v2948
    %2950 = vmatpush.xpose.msra.mxu0 %v2949
    %v2951 = vand.u32 %v2849, 4294901760
    %v2952 = vsub.f32 %v2849, %v2951
    %2953 = vmatpush.xpose.msra.mxu0 %v2952
    %v2954 = vand.u32 %v2846, 4294901760
    %v2955 = vsub.f32 %v2846, %v2954
    %2956 = vmatmul.f32.gmra.mxu0 %v2955
    %v2957 = vpop.f32.mrf.mxu0
    %v2958 = vadd.f32 %v2928, %v2957
    %2959 = vdwg.mxu0
    %2960 = vmatpush.xpose.msra.mxu0 0.0
    %2961 = vmatpush.xpose.msra.mxu0 0.0
    %2962 = vmatpush.xpose.msra.mxu0 0.0
    %2963 = vmatpush.xpose.msra.mxu0 0.0
    %2964 = vmatpush.xpose.msra.mxu0 0.0
    %2965 = vmatpush.xpose.msra.mxu0 0.0
    %2966 = vmatpush.xpose.msra.mxu0 0.0
    %2967 = vmatpush.xpose.msra.mxu0 0.0
    %2968 = vmatpush.xpose.msra.mxu0 0.0
    %2969 = vmatpush.xpose.msra.mxu0 0.0
    %2970 = vmatpush.xpose.msra.mxu0 0.0
    %2971 = vmatpush.xpose.msra.mxu0 0.0
    %v2972 = vand.u32 %v2858, 4294901760
    %2973 = vmatpush.xpose.msra.mxu0 %v2972
    %v2974 = vand.u32 %v2855, 4294901760
    %2975 = vmatpush.xpose.msra.mxu0 %v2974
    %v2976 = vand.u32 %v2852, 4294901760
    %2977 = vmatpush.xpose.msra.mxu0 %v2976
    %v2978 = vand.u32 %v2849, 4294901760
    %2979 = vmatpush.xpose.msra.mxu0 %v2978
    %v2980 = vand.u32 %v2846, 4294901760
    %v2981 = vsub.f32 %v2846, %v2980
    %v2982 = vand.u32 %v2981, 4294901760
    %2983 = vmatmul.f32.gmra.mxu0 %v2982
    %v2984 = vpop.f32.mrf.mxu0
    %v2985 = vadd.f32 %v2958, %v2984
    %2986 = vdwg.mxu0
    %2987 = vmatpush.xpose.msra.mxu0 0.0
    %2988 = vmatpush.xpose.msra.mxu0 0.0
    %2989 = vmatpush.xpose.msra.mxu0 0.0
    %2990 = vmatpush.xpose.msra.mxu0 0.0
    %2991 = vmatpush.xpose.msra.mxu0 0.0
    %2992 = vmatpush.xpose.msra.mxu0 0.0
    %2993 = vmatpush.xpose.msra.mxu0 0.0
    %2994 = vmatpush.xpose.msra.mxu0 0.0
    %2995 = vmatpush.xpose.msra.mxu0 0.0
    %2996 = vmatpush.xpose.msra.mxu0 0.0
    %2997 = vmatpush.xpose.msra.mxu0 0.0
    %2998 = vmatpush.xpose.msra.mxu0 0.0
    %v2999 = vand.u32 %v2858, 4294901760
    %v3000 = vsub.f32 %v2858, %v2999
    %v3001 = vand.u32 %v3000, 4294901760
    %3002 = vmatpush.xpose.msra.mxu0 %v3001
    %v3003 = vand.u32 %v2855, 4294901760
    %v3004 = vsub.f32 %v2855, %v3003
    %v3005 = vand.u32 %v3004, 4294901760
    %3006 = vmatpush.xpose.msra.mxu0 %v3005
    %v3007 = vand.u32 %v2852, 4294901760
    %v3008 = vsub.f32 %v2852, %v3007
    %v3009 = vand.u32 %v3008, 4294901760
    %3010 = vmatpush.xpose.msra.mxu0 %v3009
    %v3011 = vand.u32 %v2849, 4294901760
    %v3012 = vsub.f32 %v2849, %v3011
    %v3013 = vand.u32 %v3012, 4294901760
    %3014 = vmatpush.xpose.msra.mxu0 %v3013
    %v3015 = vand.u32 %v2846, 4294901760
    %3016 = vmatmul.f32.gmra.mxu0 %v3015
    %v3017 = vpop.f32.mrf.mxu0
    %v3018 = vadd.f32 %v2985, %v3017
    %3019 = vdwg.mxu0
    %3020 = vmatpush.xpose.msra.mxu0 0.0
    %3021 = vmatpush.xpose.msra.mxu0 0.0
    %3022 = vmatpush.xpose.msra.mxu0 0.0
    %3023 = vmatpush.xpose.msra.mxu0 0.0
    %3024 = vmatpush.xpose.msra.mxu0 0.0
    %3025 = vmatpush.xpose.msra.mxu0 0.0
    %3026 = vmatpush.xpose.msra.mxu0 0.0
    %3027 = vmatpush.xpose.msra.mxu0 0.0
    %3028 = vmatpush.xpose.msra.mxu0 0.0
    %3029 = vmatpush.xpose.msra.mxu0 0.0
    %3030 = vmatpush.xpose.msra.mxu0 0.0
    %3031 = vmatpush.xpose.msra.mxu0 0.0
    %v3032 = vand.u32 %v2858, 4294901760
    %3033 = vmatpush.xpose.msra.mxu0 %v3032
    %v3034 = vand.u32 %v2855, 4294901760
    %3035 = vmatpush.xpose.msra.mxu0 %v3034
    %v3036 = vand.u32 %v2852, 4294901760
    %3037 = vmatpush.xpose.msra.mxu0 %v3036
    %v3038 = vand.u32 %v2849, 4294901760
    %3039 = vmatpush.xpose.msra.mxu0 %v3038
    %v3040 = vand.u32 %v2846, 4294901760
    %3041 = vmatmul.f32.gmra.mxu0 %v3040
    %v3042 = vpop.f32.mrf.mxu0
    %v3043 = vadd.f32 %v3018, %v3042
    %3044 = vdwg.mxu0
    %v3046 = vsel %vm244, %v98, 0
    %v3049 = vsel %vm244, %v220, 0
    %v3052 = vsel %vm244, %v221, 0
    %v3055 = vsel %vm244, %v222, 0
    %v3058 = vsel %vm244, %v223, 0
    %3060 = vmatpush.xpose.msra.mxu0 0.0
    %3061 = vmatpush.xpose.msra.mxu0 0.0
    %3062 = vmatpush.xpose.msra.mxu0 0.0
    %3063 = vmatpush.xpose.msra.mxu0 0.0
    %3064 = vmatpush.xpose.msra.mxu0 0.0
    %3065 = vmatpush.xpose.msra.mxu0 0.0
    %3066 = vmatpush.xpose.msra.mxu0 0.0
    %3067 = vmatpush.xpose.msra.mxu0 0.0
    %3068 = vmatpush.xpose.msra.mxu0 0.0
    %3069 = vmatpush.xpose.msra.mxu0 0.0
    %3070 = vmatpush.xpose.msra.mxu0 0.0
    %3071 = vmatpush.xpose.msra.mxu0 0.0
    %v3072 = vand.u32 %v3058, 4294901760
    %3073 = vmatpush.xpose.msra.mxu0 %v3072
    %v3074 = vand.u32 %v3055, 4294901760
    %3075 = vmatpush.xpose.msra.mxu0 %v3074
    %v3076 = vand.u32 %v3052, 4294901760
    %3077 = vmatpush.xpose.msra.mxu0 %v3076
    %v3078 = vand.u32 %v3049, 4294901760
    %3079 = vmatpush.xpose.msra.mxu0 %v3078
    %v3080 = vand.u32 %v3046, 4294901760
    %v3081 = vsub.f32 %v3046, %v3080
    %v3082 = vand.u32 %v3081, 4294901760
    %v3083 = vsub.f32 %v3081, %v3082
    %v3084 = vand.u32 %v3083, 4294901760
    %3085 = vmatmul.f32.gmra.mxu0 %v3084
    %v3086 = vpop.f32.mrf.mxu0
    %v3087 = vadd.f32 %v242, %v3086
    %3088 = vdwg.mxu0
    %3089 = vmatpush.xpose.msra.mxu0 0.0
    %3090 = vmatpush.xpose.msra.mxu0 0.0
    %3091 = vmatpush.xpose.msra.mxu0 0.0
    %3092 = vmatpush.xpose.msra.mxu0 0.0
    %3093 = vmatpush.xpose.msra.mxu0 0.0
    %3094 = vmatpush.xpose.msra.mxu0 0.0
    %3095 = vmatpush.xpose.msra.mxu0 0.0
    %3096 = vmatpush.xpose.msra.mxu0 0.0
    %3097 = vmatpush.xpose.msra.mxu0 0.0
    %3098 = vmatpush.xpose.msra.mxu0 0.0
    %3099 = vmatpush.xpose.msra.mxu0 0.0
    %3100 = vmatpush.xpose.msra.mxu0 0.0
    %v3101 = vand.u32 %v3058, 4294901760
    %v3102 = vsub.f32 %v3058, %v3101
    %v3103 = vand.u32 %v3102, 4294901760
    %v3104 = vsub.f32 %v3102, %v3103
    %v3105 = vand.u32 %v3104, 4294901760
    %3106 = vmatpush.xpose.msra.mxu0 %v3105
    %v3107 = vand.u32 %v3055, 4294901760
    %v3108 = vsub.f32 %v3055, %v3107
    %v3109 = vand.u32 %v3108, 4294901760
    %v3110 = vsub.f32 %v3108, %v3109
    %v3111 = vand.u32 %v3110, 4294901760
    %3112 = vmatpush.xpose.msra.mxu0 %v3111
    %v3113 = vand.u32 %v3052, 4294901760
    %v3114 = vsub.f32 %v3052, %v3113
    %v3115 = vand.u32 %v3114, 4294901760
    %v3116 = vsub.f32 %v3114, %v3115
    %v3117 = vand.u32 %v3116, 4294901760
    %3118 = vmatpush.xpose.msra.mxu0 %v3117
    %v3119 = vand.u32 %v3049, 4294901760
    %v3120 = vsub.f32 %v3049, %v3119
    %v3121 = vand.u32 %v3120, 4294901760
    %v3122 = vsub.f32 %v3120, %v3121
    %v3123 = vand.u32 %v3122, 4294901760
    %3124 = vmatpush.xpose.msra.mxu0 %v3123
    %v3125 = vand.u32 %v3046, 4294901760
    %3126 = vmatmul.f32.gmra.mxu0 %v3125
    %v3127 = vpop.f32.mrf.mxu0
    %v3128 = vadd.f32 %v3087, %v3127
    %3129 = vdwg.mxu0
    %3130 = vmatpush.xpose.msra.mxu0 0.0
    %3131 = vmatpush.xpose.msra.mxu0 0.0
    %3132 = vmatpush.xpose.msra.mxu0 0.0
    %3133 = vmatpush.xpose.msra.mxu0 0.0
    %3134 = vmatpush.xpose.msra.mxu0 0.0
    %3135 = vmatpush.xpose.msra.mxu0 0.0
    %3136 = vmatpush.xpose.msra.mxu0 0.0
    %3137 = vmatpush.xpose.msra.mxu0 0.0
    %3138 = vmatpush.xpose.msra.mxu0 0.0
    %3139 = vmatpush.xpose.msra.mxu0 0.0
    %3140 = vmatpush.xpose.msra.mxu0 0.0
    %3141 = vmatpush.xpose.msra.mxu0 0.0
    %v3142 = vand.u32 %v3058, 4294901760
    %v3143 = vsub.f32 %v3058, %v3142
    %3144 = vmatpush.xpose.msra.mxu0 %v3143
    %v3145 = vand.u32 %v3055, 4294901760
    %v3146 = vsub.f32 %v3055, %v3145
    %3147 = vmatpush.xpose.msra.mxu0 %v3146
    %v3148 = vand.u32 %v3052, 4294901760
    %v3149 = vsub.f32 %v3052, %v3148
    %3150 = vmatpush.xpose.msra.mxu0 %v3149
    %v3151 = vand.u32 %v3049, 4294901760
    %v3152 = vsub.f32 %v3049, %v3151
    %3153 = vmatpush.xpose.msra.mxu0 %v3152
    %v3154 = vand.u32 %v3046, 4294901760
    %v3155 = vsub.f32 %v3046, %v3154
    %3156 = vmatmul.f32.gmra.mxu0 %v3155
    %v3157 = vpop.f32.mrf.mxu0
    %v3158 = vadd.f32 %v3128, %v3157
    %3159 = vdwg.mxu0
    %3160 = vmatpush.xpose.msra.mxu0 0.0
    %3161 = vmatpush.xpose.msra.mxu0 0.0
    %3162 = vmatpush.xpose.msra.mxu0 0.0
    %3163 = vmatpush.xpose.msra.mxu0 0.0
    %3164 = vmatpush.xpose.msra.mxu0 0.0
    %3165 = vmatpush.xpose.msra.mxu0 0.0
    %3166 = vmatpush.xpose.msra.mxu0 0.0
    %3167 = vmatpush.xpose.msra.mxu0 0.0
    %3168 = vmatpush.xpose.msra.mxu0 0.0
    %3169 = vmatpush.xpose.msra.mxu0 0.0
    %3170 = vmatpush.xpose.msra.mxu0 0.0
    %3171 = vmatpush.xpose.msra.mxu0 0.0
    %v3172 = vand.u32 %v3058, 4294901760
    %3173 = vmatpush.xpose.msra.mxu0 %v3172
    %v3174 = vand.u32 %v3055, 4294901760
    %3175 = vmatpush.xpose.msra.mxu0 %v3174
    %v3176 = vand.u32 %v3052, 4294901760
    %3177 = vmatpush.xpose.msra.mxu0 %v3176
    %v3178 = vand.u32 %v3049, 4294901760
    %3179 = vmatpush.xpose.msra.mxu0 %v3178
    %v3180 = vand.u32 %v3046, 4294901760
    %v3181 = vsub.f32 %v3046, %v3180
    %v3182 = vand.u32 %v3181, 4294901760
    %3183 = vmatmul.f32.gmra.mxu0 %v3182
    %v3184 = vpop.f32.mrf.mxu0
    %v3185 = vadd.f32 %v3158, %v3184
    %3186 = vdwg.mxu0
    %3187 = vmatpush.xpose.msra.mxu0 0.0
    %3188 = vmatpush.xpose.msra.mxu0 0.0
    %3189 = vmatpush.xpose.msra.mxu0 0.0
    %3190 = vmatpush.xpose.msra.mxu0 0.0
    %3191 = vmatpush.xpose.msra.mxu0 0.0
    %3192 = vmatpush.xpose.msra.mxu0 0.0
    %3193 = vmatpush.xpose.msra.mxu0 0.0
    %3194 = vmatpush.xpose.msra.mxu0 0.0
    %3195 = vmatpush.xpose.msra.mxu0 0.0
    %3196 = vmatpush.xpose.msra.mxu0 0.0
    %3197 = vmatpush.xpose.msra.mxu0 0.0
    %3198 = vmatpush.xpose.msra.mxu0 0.0
    %v3199 = vand.u32 %v3058, 4294901760
    %v3200 = vsub.f32 %v3058, %v3199
    %v3201 = vand.u32 %v3200, 4294901760
    %3202 = vmatpush.xpose.msra.mxu0 %v3201
    %v3203 = vand.u32 %v3055, 4294901760
    %v3204 = vsub.f32 %v3055, %v3203
    %v3205 = vand.u32 %v3204, 4294901760
    %3206 = vmatpush.xpose.msra.mxu0 %v3205
    %v3207 = vand.u32 %v3052, 4294901760
    %v3208 = vsub.f32 %v3052, %v3207
    %v3209 = vand.u32 %v3208, 4294901760
    %3210 = vmatpush.xpose.msra.mxu0 %v3209
    %v3211 = vand.u32 %v3049, 4294901760
    %v3212 = vsub.f32 %v3049, %v3211
    %v3213 = vand.u32 %v3212, 4294901760
    %3214 = vmatpush.xpose.msra.mxu0 %v3213
    %v3215 = vand.u32 %v3046, 4294901760
    %3216 = vmatmul.f32.gmra.mxu0 %v3215
    %v3217 = vpop.f32.mrf.mxu0
    %v3218 = vadd.f32 %v3185, %v3217
    %3219 = vdwg.mxu0
    %3220 = vmatpush.xpose.msra.mxu0 0.0
    %3221 = vmatpush.xpose.msra.mxu0 0.0
    %3222 = vmatpush.xpose.msra.mxu0 0.0
    %3223 = vmatpush.xpose.msra.mxu0 0.0
    %3224 = vmatpush.xpose.msra.mxu0 0.0
    %3225 = vmatpush.xpose.msra.mxu0 0.0
    %3226 = vmatpush.xpose.msra.mxu0 0.0
    %3227 = vmatpush.xpose.msra.mxu0 0.0
    %3228 = vmatpush.xpose.msra.mxu0 0.0
    %3229 = vmatpush.xpose.msra.mxu0 0.0
    %3230 = vmatpush.xpose.msra.mxu0 0.0
    %3231 = vmatpush.xpose.msra.mxu0 0.0
    %v3232 = vand.u32 %v3058, 4294901760
    %3233 = vmatpush.xpose.msra.mxu0 %v3232
    %v3234 = vand.u32 %v3055, 4294901760
    %3235 = vmatpush.xpose.msra.mxu0 %v3234
    %v3236 = vand.u32 %v3052, 4294901760
    %3237 = vmatpush.xpose.msra.mxu0 %v3236
    %v3238 = vand.u32 %v3049, 4294901760
    %3239 = vmatpush.xpose.msra.mxu0 %v3238
    %v3240 = vand.u32 %v3046, 4294901760
    %3241 = vmatmul.f32.gmra.mxu0 %v3240
    %v3242 = vpop.f32.mrf.mxu0
    %v3243 = vadd.f32 %v3218, %v3242
    %3244 = vdwg.mxu0
    %v3246 = vsel %vm244, %v99, 0
    %v3249 = vsel %vm244, %v224, 0
    %v3252 = vsel %vm244, %v225, 0
    %v3255 = vsel %vm244, %v226, 0
    %v3258 = vsel %vm244, %v227, 0
    %3260 = vmatpush.xpose.msra.mxu0 0.0
    %3261 = vmatpush.xpose.msra.mxu0 0.0
    %3262 = vmatpush.xpose.msra.mxu0 0.0
    %3263 = vmatpush.xpose.msra.mxu0 0.0
    %3264 = vmatpush.xpose.msra.mxu0 0.0
    %3265 = vmatpush.xpose.msra.mxu0 0.0
    %3266 = vmatpush.xpose.msra.mxu0 0.0
    %3267 = vmatpush.xpose.msra.mxu0 0.0
    %3268 = vmatpush.xpose.msra.mxu0 0.0
    %3269 = vmatpush.xpose.msra.mxu0 0.0
    %3270 = vmatpush.xpose.msra.mxu0 0.0
    %3271 = vmatpush.xpose.msra.mxu0 0.0
    %v3272 = vand.u32 %v3258, 4294901760
    %3273 = vmatpush.xpose.msra.mxu0 %v3272
    %v3274 = vand.u32 %v3255, 4294901760
    %3275 = vmatpush.xpose.msra.mxu0 %v3274
    %v3276 = vand.u32 %v3252, 4294901760
    %3277 = vmatpush.xpose.msra.mxu0 %v3276
    %v3278 = vand.u32 %v3249, 4294901760
    %3279 = vmatpush.xpose.msra.mxu0 %v3278
    %v3280 = vand.u32 %v3246, 4294901760
    %v3281 = vsub.f32 %v3246, %v3280
    %v3282 = vand.u32 %v3281, 4294901760
    %v3283 = vsub.f32 %v3281, %v3282
    %v3284 = vand.u32 %v3283, 4294901760
    %3285 = vmatmul.f32.gmra.mxu0 %v3284
    %v3286 = vpop.f32.mrf.mxu0
    %v3287 = vadd.f32 %v243, %v3286
    %3288 = vdwg.mxu0
    %3289 = vmatpush.xpose.msra.mxu0 0.0
    %3290 = vmatpush.xpose.msra.mxu0 0.0
    %3291 = vmatpush.xpose.msra.mxu0 0.0
    %3292 = vmatpush.xpose.msra.mxu0 0.0
    %3293 = vmatpush.xpose.msra.mxu0 0.0
    %3294 = vmatpush.xpose.msra.mxu0 0.0
    %3295 = vmatpush.xpose.msra.mxu0 0.0
    %3296 = vmatpush.xpose.msra.mxu0 0.0
    %3297 = vmatpush.xpose.msra.mxu0 0.0
    %3298 = vmatpush.xpose.msra.mxu0 0.0
    %3299 = vmatpush.xpose.msra.mxu0 0.0
    %3300 = vmatpush.xpose.msra.mxu0 0.0
    %v3301 = vand.u32 %v3258, 4294901760
    %v3302 = vsub.f32 %v3258, %v3301
    %v3303 = vand.u32 %v3302, 4294901760
    %v3304 = vsub.f32 %v3302, %v3303
    %v3305 = vand.u32 %v3304, 4294901760
    %3306 = vmatpush.xpose.msra.mxu0 %v3305
    %v3307 = vand.u32 %v3255, 4294901760
    %v3308 = vsub.f32 %v3255, %v3307
    %v3309 = vand.u32 %v3308, 4294901760
    %v3310 = vsub.f32 %v3308, %v3309
    %v3311 = vand.u32 %v3310, 4294901760
    %3312 = vmatpush.xpose.msra.mxu0 %v3311
    %v3313 = vand.u32 %v3252, 4294901760
    %v3314 = vsub.f32 %v3252, %v3313
    %v3315 = vand.u32 %v3314, 4294901760
    %v3316 = vsub.f32 %v3314, %v3315
    %v3317 = vand.u32 %v3316, 4294901760
    %3318 = vmatpush.xpose.msra.mxu0 %v3317
    %v3319 = vand.u32 %v3249, 4294901760
    %v3320 = vsub.f32 %v3249, %v3319
    %v3321 = vand.u32 %v3320, 4294901760
    %v3322 = vsub.f32 %v3320, %v3321
    %v3323 = vand.u32 %v3322, 4294901760
    %3324 = vmatpush.xpose.msra.mxu0 %v3323
    %v3325 = vand.u32 %v3246, 4294901760
    %3326 = vmatmul.f32.gmra.mxu0 %v3325
    %v3327 = vpop.f32.mrf.mxu0
    %v3328 = vadd.f32 %v3287, %v3327
    %3329 = vdwg.mxu0
    %3330 = vmatpush.xpose.msra.mxu0 0.0
    %3331 = vmatpush.xpose.msra.mxu0 0.0
    %3332 = vmatpush.xpose.msra.mxu0 0.0
    %3333 = vmatpush.xpose.msra.mxu0 0.0
    %3334 = vmatpush.xpose.msra.mxu0 0.0
    %3335 = vmatpush.xpose.msra.mxu0 0.0
    %3336 = vmatpush.xpose.msra.mxu0 0.0
    %3337 = vmatpush.xpose.msra.mxu0 0.0
    %3338 = vmatpush.xpose.msra.mxu0 0.0
    %3339 = vmatpush.xpose.msra.mxu0 0.0
    %3340 = vmatpush.xpose.msra.mxu0 0.0
    %3341 = vmatpush.xpose.msra.mxu0 0.0
    %v3342 = vand.u32 %v3258, 4294901760
    %v3343 = vsub.f32 %v3258, %v3342
    %3344 = vmatpush.xpose.msra.mxu0 %v3343
    %v3345 = vand.u32 %v3255, 4294901760
    %v3346 = vsub.f32 %v3255, %v3345
    %3347 = vmatpush.xpose.msra.mxu0 %v3346
    %v3348 = vand.u32 %v3252, 4294901760
    %v3349 = vsub.f32 %v3252, %v3348
    %3350 = vmatpush.xpose.msra.mxu0 %v3349
    %v3351 = vand.u32 %v3249, 4294901760
    %v3352 = vsub.f32 %v3249, %v3351
    %3353 = vmatpush.xpose.msra.mxu0 %v3352
    %v3354 = vand.u32 %v3246, 4294901760
    %v3355 = vsub.f32 %v3246, %v3354
    %3356 = vmatmul.f32.gmra.mxu0 %v3355
    %v3357 = vpop.f32.mrf.mxu0
    %v3358 = vadd.f32 %v3328, %v3357
    %3359 = vdwg.mxu0
    %3360 = vmatpush.xpose.msra.mxu0 0.0
    %3361 = vmatpush.xpose.msra.mxu0 0.0
    %3362 = vmatpush.xpose.msra.mxu0 0.0
    %3363 = vmatpush.xpose.msra.mxu0 0.0
    %3364 = vmatpush.xpose.msra.mxu0 0.0
    %3365 = vmatpush.xpose.msra.mxu0 0.0
    %3366 = vmatpush.xpose.msra.mxu0 0.0
    %3367 = vmatpush.xpose.msra.mxu0 0.0
    %3368 = vmatpush.xpose.msra.mxu0 0.0
    %3369 = vmatpush.xpose.msra.mxu0 0.0
    %3370 = vmatpush.xpose.msra.mxu0 0.0
    %3371 = vmatpush.xpose.msra.mxu0 0.0
    %v3372 = vand.u32 %v3258, 4294901760
    %3373 = vmatpush.xpose.msra.mxu0 %v3372
    %v3374 = vand.u32 %v3255, 4294901760
    %3375 = vmatpush.xpose.msra.mxu0 %v3374
    %v3376 = vand.u32 %v3252, 4294901760
    %3377 = vmatpush.xpose.msra.mxu0 %v3376
    %v3378 = vand.u32 %v3249, 4294901760
    %3379 = vmatpush.xpose.msra.mxu0 %v3378
    %v3380 = vand.u32 %v3246, 4294901760
    %v3381 = vsub.f32 %v3246, %v3380
    %v3382 = vand.u32 %v3381, 4294901760
    %3383 = vmatmul.f32.gmra.mxu0 %v3382
    %v3384 = vpop.f32.mrf.mxu0
    %v3385 = vadd.f32 %v3358, %v3384
    %3386 = vdwg.mxu0
    %3387 = vmatpush.xpose.msra.mxu0 0.0
    %3388 = vmatpush.xpose.msra.mxu0 0.0
    %3389 = vmatpush.xpose.msra.mxu0 0.0
    %3390 = vmatpush.xpose.msra.mxu0 0.0
    %3391 = vmatpush.xpose.msra.mxu0 0.0
    %3392 = vmatpush.xpose.msra.mxu0 0.0
    %3393 = vmatpush.xpose.msra.mxu0 0.0
    %3394 = vmatpush.xpose.msra.mxu0 0.0
    %3395 = vmatpush.xpose.msra.mxu0 0.0
    %3396 = vmatpush.xpose.msra.mxu0 0.0
    %3397 = vmatpush.xpose.msra.mxu0 0.0
    %3398 = vmatpush.xpose.msra.mxu0 0.0
    %v3399 = vand.u32 %v3258, 4294901760
    %v3400 = vsub.f32 %v3258, %v3399
    %v3401 = vand.u32 %v3400, 4294901760
    %3402 = vmatpush.xpose.msra.mxu0 %v3401
    %v3403 = vand.u32 %v3255, 4294901760
    %v3404 = vsub.f32 %v3255, %v3403
    %v3405 = vand.u32 %v3404, 4294901760
    %3406 = vmatpush.xpose.msra.mxu0 %v3405
    %v3407 = vand.u32 %v3252, 4294901760
    %v3408 = vsub.f32 %v3252, %v3407
    %v3409 = vand.u32 %v3408, 4294901760
    %3410 = vmatpush.xpose.msra.mxu0 %v3409
    %v3411 = vand.u32 %v3249, 4294901760
    %v3412 = vsub.f32 %v3249, %v3411
    %v3413 = vand.u32 %v3412, 4294901760
    %3414 = vmatpush.xpose.msra.mxu0 %v3413
    %v3415 = vand.u32 %v3246, 4294901760
    %3416 = vmatmul.f32.gmra.mxu0 %v3415
    %v3417 = vpop.f32.mrf.mxu0
    %v3418 = vadd.f32 %v3385, %v3417
    %3419 = vdwg.mxu0
    %3420 = vmatpush.xpose.msra.mxu0 0.0
    %3421 = vmatpush.xpose.msra.mxu0 0.0
    %3422 = vmatpush.xpose.msra.mxu0 0.0
    %3423 = vmatpush.xpose.msra.mxu0 0.0
    %3424 = vmatpush.xpose.msra.mxu0 0.0
    %3425 = vmatpush.xpose.msra.mxu0 0.0
    %3426 = vmatpush.xpose.msra.mxu0 0.0
    %3427 = vmatpush.xpose.msra.mxu0 0.0
    %3428 = vmatpush.xpose.msra.mxu0 0.0
    %3429 = vmatpush.xpose.msra.mxu0 0.0
    %3430 = vmatpush.xpose.msra.mxu0 0.0
    %3431 = vmatpush.xpose.msra.mxu0 0.0
    %v3432 = vand.u32 %v3258, 4294901760
    %3433 = vmatpush.xpose.msra.mxu0 %v3432
    %v3434 = vand.u32 %v3255, 4294901760
    %3435 = vmatpush.xpose.msra.mxu0 %v3434
    %v3436 = vand.u32 %v3252, 4294901760
    %3437 = vmatpush.xpose.msra.mxu0 %v3436
    %v3438 = vand.u32 %v3249, 4294901760
    %3439 = vmatpush.xpose.msra.mxu0 %v3438
    %v3440 = vand.u32 %v3246, 4294901760
    %3441 = vmatmul.f32.gmra.mxu0 %v3440
    %v3442 = vpop.f32.mrf.mxu0
    %v3443 = vadd.f32 %v3418, %v3442
    %3444 = vdwg.mxu0
    %v3445 = vtanh.pop %v443
    %v3446 = vtanh.pop %v643
    %v3447 = vtanh.pop %v843
    %v3448 = vtanh.pop %v1043
    %v3449 = vtanh.pop %v1243
    %v3450 = vtanh.pop %v1443
    %v3451 = vtanh.pop %v1643
    %v3452 = vtanh.pop %v1843
    %v3453 = vtanh.pop %v2043
    %v3454 = vtanh.pop %v2243
    %v3455 = vtanh.pop %v2443
    %v3456 = vtanh.pop %v2643
    %v3457 = vtanh.pop %v2843
    %v3458 = vtanh.pop %v3043
    %v3459 = vtanh.pop %v3243
    %v3460 = vtanh.pop %v3443
    %v3462 = vsel %vm244, %v3445, 0
    %v3465 = vsel %vm244, %v100, 0
    %v3468 = vsel %vm244, %v101, 0
    %v3471 = vsel %vm244, %v102, 0
    %v3474 = vsel %vm244, %v103, 0
    %3476 = vmatpush.xpose.msra.mxu0 0.0
    %3477 = vmatpush.xpose.msra.mxu0 0.0
    %3478 = vmatpush.xpose.msra.mxu0 0.0
    %3479 = vmatpush.xpose.msra.mxu0 0.0
    %3480 = vmatpush.xpose.msra.mxu0 0.0
    %3481 = vmatpush.xpose.msra.mxu0 0.0
    %3482 = vmatpush.xpose.msra.mxu0 0.0
    %3483 = vmatpush.xpose.msra.mxu0 0.0
    %3484 = vmatpush.xpose.msra.mxu0 0.0
    %3485 = vmatpush.xpose.msra.mxu0 0.0
    %3486 = vmatpush.xpose.msra.mxu0 0.0
    %3487 = vmatpush.xpose.msra.mxu0 0.0
    %v3488 = vand.u32 %v3474, 4294901760
    %3489 = vmatpush.xpose.msra.mxu0 %v3488
    %v3490 = vand.u32 %v3471, 4294901760
    %3491 = vmatpush.xpose.msra.mxu0 %v3490
    %v3492 = vand.u32 %v3468, 4294901760
    %3493 = vmatpush.xpose.msra.mxu0 %v3492
    %v3494 = vand.u32 %v3465, 4294901760
    %3495 = vmatpush.xpose.msra.mxu0 %v3494
    %v3496 = vand.u32 %v3462, 4294901760
    %v3497 = vsub.f32 %v3462, %v3496
    %v3498 = vand.u32 %v3497, 4294901760
    %v3499 = vsub.f32 %v3497, %v3498
    %v3500 = vand.u32 %v3499, 4294901760
    %3501 = vmatmul.f32.gmra.mxu0 %v3500
    %v3502 = vpop.f32.mrf.mxu0
    %v3503 = vadd.f32 0.0, %v3502
    %3504 = vdwg.mxu0
    %3505 = vmatpush.xpose.msra.mxu0 0.0
    %3506 = vmatpush.xpose.msra.mxu0 0.0
    %3507 = vmatpush.xpose.msra.mxu0 0.0
    %3508 = vmatpush.xpose.msra.mxu0 0.0
    %3509 = vmatpush.xpose.msra.mxu0 0.0
    %3510 = vmatpush.xpose.msra.mxu0 0.0
    %3511 = vmatpush.xpose.msra.mxu0 0.0
    %3512 = vmatpush.xpose.msra.mxu0 0.0
    %3513 = vmatpush.xpose.msra.mxu0 0.0
    %3514 = vmatpush.xpose.msra.mxu0 0.0
    %3515 = vmatpush.xpose.msra.mxu0 0.0
    %3516 = vmatpush.xpose.msra.mxu0 0.0
    %v3517 = vand.u32 %v3474, 4294901760
    %v3518 = vsub.f32 %v3474, %v3517
    %v3519 = vand.u32 %v3518, 4294901760
    %v3520 = vsub.f32 %v3518, %v3519
    %v3521 = vand.u32 %v3520, 4294901760
    %3522 = vmatpush.xpose.msra.mxu0 %v3521
    %v3523 = vand.u32 %v3471, 4294901760
    %v3524 = vsub.f32 %v3471, %v3523
    %v3525 = vand.u32 %v3524, 4294901760
    %v3526 = vsub.f32 %v3524, %v3525
    %v3527 = vand.u32 %v3526, 4294901760
    %3528 = vmatpush.xpose.msra.mxu0 %v3527
    %v3529 = vand.u32 %v3468, 4294901760
    %v3530 = vsub.f32 %v3468, %v3529
    %v3531 = vand.u32 %v3530, 4294901760
    %v3532 = vsub.f32 %v3530, %v3531
    %v3533 = vand.u32 %v3532, 4294901760
    %3534 = vmatpush.xpose.msra.mxu0 %v3533
    %v3535 = vand.u32 %v3465, 4294901760
    %v3536 = vsub.f32 %v3465, %v3535
    %v3537 = vand.u32 %v3536, 4294901760
    %v3538 = vsub.f32 %v3536, %v3537
    %v3539 = vand.u32 %v3538, 4294901760
    %3540 = vmatpush.xpose.msra.mxu0 %v3539
    %v3541 = vand.u32 %v3462, 4294901760
    %3542 = vmatmul.f32.gmra.mxu0 %v3541
    %v3543 = vpop.f32.mrf.mxu0
    %v3544 = vadd.f32 %v3503, %v3543
    %3545 = vdwg.mxu0
    %3546 = vmatpush.xpose.msra.mxu0 0.0
    %3547 = vmatpush.xpose.msra.mxu0 0.0
    %3548 = vmatpush.xpose.msra.mxu0 0.0
    %3549 = vmatpush.xpose.msra.mxu0 0.0
    %3550 = vmatpush.xpose.msra.mxu0 0.0
    %3551 = vmatpush.xpose.msra.mxu0 0.0
    %3552 = vmatpush.xpose.msra.mxu0 0.0
    %3553 = vmatpush.xpose.msra.mxu0 0.0
    %3554 = vmatpush.xpose.msra.mxu0 0.0
    %3555 = vmatpush.xpose.msra.mxu0 0.0
    %3556 = vmatpush.xpose.msra.mxu0 0.0
    %3557 = vmatpush.xpose.msra.mxu0 0.0
    %v3558 = vand.u32 %v3474, 4294901760
    %v3559 = vsub.f32 %v3474, %v3558
    %3560 = vmatpush.xpose.msra.mxu0 %v3559
    %v3561 = vand.u32 %v3471, 4294901760
    %v3562 = vsub.f32 %v3471, %v3561
    %3563 = vmatpush.xpose.msra.mxu0 %v3562
    %v3564 = vand.u32 %v3468, 4294901760
    %v3565 = vsub.f32 %v3468, %v3564
    %3566 = vmatpush.xpose.msra.mxu0 %v3565
    %v3567 = vand.u32 %v3465, 4294901760
    %v3568 = vsub.f32 %v3465, %v3567
    %3569 = vmatpush.xpose.msra.mxu0 %v3568
    %v3570 = vand.u32 %v3462, 4294901760
    %v3571 = vsub.f32 %v3462, %v3570
    %3572 = vmatmul.f32.gmra.mxu0 %v3571
    %v3573 = vpop.f32.mrf.mxu0
    %v3574 = vadd.f32 %v3544, %v3573
    %3575 = vdwg.mxu0
    %3576 = vmatpush.xpose.msra.mxu0 0.0
    %3577 = vmatpush.xpose.msra.mxu0 0.0
    %3578 = vmatpush.xpose.msra.mxu0 0.0
    %3579 = vmatpush.xpose.msra.mxu0 0.0
    %3580 = vmatpush.xpose.msra.mxu0 0.0
    %3581 = vmatpush.xpose.msra.mxu0 0.0
    %3582 = vmatpush.xpose.msra.mxu0 0.0
    %3583 = vmatpush.xpose.msra.mxu0 0.0
    %3584 = vmatpush.xpose.msra.mxu0 0.0
    %3585 = vmatpush.xpose.msra.mxu0 0.0
    %3586 = vmatpush.xpose.msra.mxu0 0.0
    %3587 = vmatpush.xpose.msra.mxu0 0.0
    %v3588 = vand.u32 %v3474, 4294901760
    %3589 = vmatpush.xpose.msra.mxu0 %v3588
    %v3590 = vand.u32 %v3471, 4294901760
    %3591 = vmatpush.xpose.msra.mxu0 %v3590
    %v3592 = vand.u32 %v3468, 4294901760
    %3593 = vmatpush.xpose.msra.mxu0 %v3592
    %v3594 = vand.u32 %v3465, 4294901760
    %3595 = vmatpush.xpose.msra.mxu0 %v3594
    %v3596 = vand.u32 %v3462, 4294901760
    %v3597 = vsub.f32 %v3462, %v3596
    %v3598 = vand.u32 %v3597, 4294901760
    %3599 = vmatmul.f32.gmra.mxu0 %v3598
    %v3600 = vpop.f32.mrf.mxu0
    %v3601 = vadd.f32 %v3574, %v3600
    %3602 = vdwg.mxu0
    %3603 = vmatpush.xpose.msra.mxu0 0.0
    %3604 = vmatpush.xpose.msra.mxu0 0.0
    %3605 = vmatpush.xpose.msra.mxu0 0.0
    %3606 = vmatpush.xpose.msra.mxu0 0.0
    %3607 = vmatpush.xpose.msra.mxu0 0.0
    %3608 = vmatpush.xpose.msra.mxu0 0.0
    %3609 = vmatpush.xpose.msra.mxu0 0.0
    %3610 = vmatpush.xpose.msra.mxu0 0.0
    %3611 = vmatpush.xpose.msra.mxu0 0.0
    %3612 = vmatpush.xpose.msra.mxu0 0.0
    %3613 = vmatpush.xpose.msra.mxu0 0.0
    %3614 = vmatpush.xpose.msra.mxu0 0.0
    %v3615 = vand.u32 %v3474, 4294901760
    %v3616 = vsub.f32 %v3474, %v3615
    %v3617 = vand.u32 %v3616, 4294901760
    %3618 = vmatpush.xpose.msra.mxu0 %v3617
    %v3619 = vand.u32 %v3471, 4294901760
    %v3620 = vsub.f32 %v3471, %v3619
    %v3621 = vand.u32 %v3620, 4294901760
    %3622 = vmatpush.xpose.msra.mxu0 %v3621
    %v3623 = vand.u32 %v3468, 4294901760
    %v3624 = vsub.f32 %v3468, %v3623
    %v3625 = vand.u32 %v3624, 4294901760
    %3626 = vmatpush.xpose.msra.mxu0 %v3625
    %v3627 = vand.u32 %v3465, 4294901760
    %v3628 = vsub.f32 %v3465, %v3627
    %v3629 = vand.u32 %v3628, 4294901760
    %3630 = vmatpush.xpose.msra.mxu0 %v3629
    %v3631 = vand.u32 %v3462, 4294901760
    %3632 = vmatmul.f32.gmra.mxu0 %v3631
    %v3633 = vpop.f32.mrf.mxu0
    %v3634 = vadd.f32 %v3601, %v3633
    %3635 = vdwg.mxu0
    %3636 = vmatpush.xpose.msra.mxu0 0.0
    %3637 = vmatpush.xpose.msra.mxu0 0.0
    %3638 = vmatpush.xpose.msra.mxu0 0.0
    %3639 = vmatpush.xpose.msra.mxu0 0.0
    %3640 = vmatpush.xpose.msra.mxu0 0.0
    %3641 = vmatpush.xpose.msra.mxu0 0.0
    %3642 = vmatpush.xpose.msra.mxu0 0.0
    %3643 = vmatpush.xpose.msra.mxu0 0.0
    %3644 = vmatpush.xpose.msra.mxu0 0.0
    %3645 = vmatpush.xpose.msra.mxu0 0.0
    %3646 = vmatpush.xpose.msra.mxu0 0.0
    %3647 = vmatpush.xpose.msra.mxu0 0.0
    %v3648 = vand.u32 %v3474, 4294901760
    %3649 = vmatpush.xpose.msra.mxu0 %v3648
    %v3650 = vand.u32 %v3471, 4294901760
    %3651 = vmatpush.xpose.msra.mxu0 %v3650
    %v3652 = vand.u32 %v3468, 4294901760
    %3653 = vmatpush.xpose.msra.mxu0 %v3652
    %v3654 = vand.u32 %v3465, 4294901760
    %3655 = vmatpush.xpose.msra.mxu0 %v3654
    %v3656 = vand.u32 %v3462, 4294901760
    %3657 = vmatmul.f32.gmra.mxu0 %v3656
    %v3658 = vpop.f32.mrf.mxu0
    %v3659 = vadd.f32 %v3634, %v3658
    %3660 = vdwg.mxu0
    %v3662 = vsel %vm244, %v3446, 0
    %v3665 = vsel %vm244, %v104, 0
    %v3668 = vsel %vm244, %v105, 0
    %v3671 = vsel %vm244, %v106, 0
    %v3674 = vsel %vm244, %v107, 0
    %3676 = vmatpush.xpose.msra.mxu0 0.0
    %3677 = vmatpush.xpose.msra.mxu0 0.0
    %3678 = vmatpush.xpose.msra.mxu0 0.0
    %3679 = vmatpush.xpose.msra.mxu0 0.0
    %3680 = vmatpush.xpose.msra.mxu0 0.0
    %3681 = vmatpush.xpose.msra.mxu0 0.0
    %3682 = vmatpush.xpose.msra.mxu0 0.0
    %3683 = vmatpush.xpose.msra.mxu0 0.0
    %3684 = vmatpush.xpose.msra.mxu0 0.0
    %3685 = vmatpush.xpose.msra.mxu0 0.0
    %3686 = vmatpush.xpose.msra.mxu0 0.0
    %3687 = vmatpush.xpose.msra.mxu0 0.0
    %v3688 = vand.u32 %v3674, 4294901760
    %3689 = vmatpush.xpose.msra.mxu0 %v3688
    %v3690 = vand.u32 %v3671, 4294901760
    %3691 = vmatpush.xpose.msra.mxu0 %v3690
    %v3692 = vand.u32 %v3668, 4294901760
    %3693 = vmatpush.xpose.msra.mxu0 %v3692
    %v3694 = vand.u32 %v3665, 4294901760
    %3695 = vmatpush.xpose.msra.mxu0 %v3694
    %v3696 = vand.u32 %v3662, 4294901760
    %v3697 = vsub.f32 %v3662, %v3696
    %v3698 = vand.u32 %v3697, 4294901760
    %v3699 = vsub.f32 %v3697, %v3698
    %v3700 = vand.u32 %v3699, 4294901760
    %3701 = vmatmul.f32.gmra.mxu0 %v3700
    %v3702 = vpop.f32.mrf.mxu0
    %v3703 = vadd.f32 0.0, %v3702
    %3704 = vdwg.mxu0
    %3705 = vmatpush.xpose.msra.mxu0 0.0
    %3706 = vmatpush.xpose.msra.mxu0 0.0
    %3707 = vmatpush.xpose.msra.mxu0 0.0
    %3708 = vmatpush.xpose.msra.mxu0 0.0
    %3709 = vmatpush.xpose.msra.mxu0 0.0
    %3710 = vmatpush.xpose.msra.mxu0 0.0
    %3711 = vmatpush.xpose.msra.mxu0 0.0
    %3712 = vmatpush.xpose.msra.mxu0 0.0
    %3713 = vmatpush.xpose.msra.mxu0 0.0
    %3714 = vmatpush.xpose.msra.mxu0 0.0
    %3715 = vmatpush.xpose.msra.mxu0 0.0
    %3716 = vmatpush.xpose.msra.mxu0 0.0
    %v3717 = vand.u32 %v3674, 4294901760
    %v3718 = vsub.f32 %v3674, %v3717
    %v3719 = vand.u32 %v3718, 4294901760
    %v3720 = vsub.f32 %v3718, %v3719
    %v3721 = vand.u32 %v3720, 4294901760
    %3722 = vmatpush.xpose.msra.mxu0 %v3721
    %v3723 = vand.u32 %v3671, 4294901760
    %v3724 = vsub.f32 %v3671, %v3723
    %v3725 = vand.u32 %v3724, 4294901760
    %v3726 = vsub.f32 %v3724, %v3725
    %v3727 = vand.u32 %v3726, 4294901760
    %3728 = vmatpush.xpose.msra.mxu0 %v3727
    %v3729 = vand.u32 %v3668, 4294901760
    %v3730 = vsub.f32 %v3668, %v3729
    %v3731 = vand.u32 %v3730, 4294901760
    %v3732 = vsub.f32 %v3730, %v3731
    %v3733 = vand.u32 %v3732, 4294901760
    %3734 = vmatpush.xpose.msra.mxu0 %v3733
    %v3735 = vand.u32 %v3665, 4294901760
    %v3736 = vsub.f32 %v3665, %v3735
    %v3737 = vand.u32 %v3736, 4294901760
    %v3738 = vsub.f32 %v3736, %v3737
    %v3739 = vand.u32 %v3738, 4294901760
    %3740 = vmatpush.xpose.msra.mxu0 %v3739
    %v3741 = vand.u32 %v3662, 4294901760
    %3742 = vmatmul.f32.gmra.mxu0 %v3741
    %v3743 = vpop.f32.mrf.mxu0
    %v3744 = vadd.f32 %v3703, %v3743
    %3745 = vdwg.mxu0
    %3746 = vmatpush.xpose.msra.mxu0 0.0
    %3747 = vmatpush.xpose.msra.mxu0 0.0
    %3748 = vmatpush.xpose.msra.mxu0 0.0
    %3749 = vmatpush.xpose.msra.mxu0 0.0
    %3750 = vmatpush.xpose.msra.mxu0 0.0
    %3751 = vmatpush.xpose.msra.mxu0 0.0
    %3752 = vmatpush.xpose.msra.mxu0 0.0
    %3753 = vmatpush.xpose.msra.mxu0 0.0
    %3754 = vmatpush.xpose.msra.mxu0 0.0
    %3755 = vmatpush.xpose.msra.mxu0 0.0
    %3756 = vmatpush.xpose.msra.mxu0 0.0
    %3757 = vmatpush.xpose.msra.mxu0 0.0
    %v3758 = vand.u32 %v3674, 4294901760
    %v3759 = vsub.f32 %v3674, %v3758
    %3760 = vmatpush.xpose.msra.mxu0 %v3759
    %v3761 = vand.u32 %v3671, 4294901760
    %v3762 = vsub.f32 %v3671, %v3761
    %3763 = vmatpush.xpose.msra.mxu0 %v3762
    %v3764 = vand.u32 %v3668, 4294901760
    %v3765 = vsub.f32 %v3668, %v3764
    %3766 = vmatpush.xpose.msra.mxu0 %v3765
    %v3767 = vand.u32 %v3665, 4294901760
    %v3768 = vsub.f32 %v3665, %v3767
    %3769 = vmatpush.xpose.msra.mxu0 %v3768
    %v3770 = vand.u32 %v3662, 4294901760
    %v3771 = vsub.f32 %v3662, %v3770
    %3772 = vmatmul.f32.gmra.mxu0 %v3771
    %v3773 = vpop.f32.mrf.mxu0
    %v3774 = vadd.f32 %v3744, %v3773
    %3775 = vdwg.mxu0
    %3776 = vmatpush.xpose.msra.mxu0 0.0
    %3777 = vmatpush.xpose.msra.mxu0 0.0
    %3778 = vmatpush.xpose.msra.mxu0 0.0
    %3779 = vmatpush.xpose.msra.mxu0 0.0
    %3780 = vmatpush.xpose.msra.mxu0 0.0
    %3781 = vmatpush.xpose.msra.mxu0 0.0
    %3782 = vmatpush.xpose.msra.mxu0 0.0
    %3783 = vmatpush.xpose.msra.mxu0 0.0
    %3784 = vmatpush.xpose.msra.mxu0 0.0
    %3785 = vmatpush.xpose.msra.mxu0 0.0
    %3786 = vmatpush.xpose.msra.mxu0 0.0
    %3787 = vmatpush.xpose.msra.mxu0 0.0
    %v3788 = vand.u32 %v3674, 4294901760
    %3789 = vmatpush.xpose.msra.mxu0 %v3788
    %v3790 = vand.u32 %v3671, 4294901760
    %3791 = vmatpush.xpose.msra.mxu0 %v3790
    %v3792 = vand.u32 %v3668, 4294901760
    %3793 = vmatpush.xpose.msra.mxu0 %v3792
    %v3794 = vand.u32 %v3665, 4294901760
    %3795 = vmatpush.xpose.msra.mxu0 %v3794
    %v3796 = vand.u32 %v3662, 4294901760
    %v3797 = vsub.f32 %v3662, %v3796
    %v3798 = vand.u32 %v3797, 4294901760
    %3799 = vmatmul.f32.gmra.mxu0 %v3798
    %v3800 = vpop.f32.mrf.mxu0
    %v3801 = vadd.f32 %v3774, %v3800
    %3802 = vdwg.mxu0
    %3803 = vmatpush.xpose.msra.mxu0 0.0
    %3804 = vmatpush.xpose.msra.mxu0 0.0
    %3805 = vmatpush.xpose.msra.mxu0 0.0
    %3806 = vmatpush.xpose.msra.mxu0 0.0
    %3807 = vmatpush.xpose.msra.mxu0 0.0
    %3808 = vmatpush.xpose.msra.mxu0 0.0
    %3809 = vmatpush.xpose.msra.mxu0 0.0
    %3810 = vmatpush.xpose.msra.mxu0 0.0
    %3811 = vmatpush.xpose.msra.mxu0 0.0
    %3812 = vmatpush.xpose.msra.mxu0 0.0
    %3813 = vmatpush.xpose.msra.mxu0 0.0
    %3814 = vmatpush.xpose.msra.mxu0 0.0
    %v3815 = vand.u32 %v3674, 4294901760
    %v3816 = vsub.f32 %v3674, %v3815
    %v3817 = vand.u32 %v3816, 4294901760
    %3818 = vmatpush.xpose.msra.mxu0 %v3817
    %v3819 = vand.u32 %v3671, 4294901760
    %v3820 = vsub.f32 %v3671, %v3819
    %v3821 = vand.u32 %v3820, 4294901760
    %3822 = vmatpush.xpose.msra.mxu0 %v3821
    %v3823 = vand.u32 %v3668, 4294901760
    %v3824 = vsub.f32 %v3668, %v3823
    %v3825 = vand.u32 %v3824, 4294901760
    %3826 = vmatpush.xpose.msra.mxu0 %v3825
    %v3827 = vand.u32 %v3665, 4294901760
    %v3828 = vsub.f32 %v3665, %v3827
    %v3829 = vand.u32 %v3828, 4294901760
    %3830 = vmatpush.xpose.msra.mxu0 %v3829
    %v3831 = vand.u32 %v3662, 4294901760
    %3832 = vmatmul.f32.gmra.mxu0 %v3831
    %v3833 = vpop.f32.mrf.mxu0
    %v3834 = vadd.f32 %v3801, %v3833
    %3835 = vdwg.mxu0
    %3836 = vmatpush.xpose.msra.mxu0 0.0
    %3837 = vmatpush.xpose.msra.mxu0 0.0
    %3838 = vmatpush.xpose.msra.mxu0 0.0
    %3839 = vmatpush.xpose.msra.mxu0 0.0
    %3840 = vmatpush.xpose.msra.mxu0 0.0
    %3841 = vmatpush.xpose.msra.mxu0 0.0
    %3842 = vmatpush.xpose.msra.mxu0 0.0
    %3843 = vmatpush.xpose.msra.mxu0 0.0
    %3844 = vmatpush.xpose.msra.mxu0 0.0
    %3845 = vmatpush.xpose.msra.mxu0 0.0
    %3846 = vmatpush.xpose.msra.mxu0 0.0
    %3847 = vmatpush.xpose.msra.mxu0 0.0
    %v3848 = vand.u32 %v3674, 4294901760
    %3849 = vmatpush.xpose.msra.mxu0 %v3848
    %v3850 = vand.u32 %v3671, 4294901760
    %3851 = vmatpush.xpose.msra.mxu0 %v3850
    %v3852 = vand.u32 %v3668, 4294901760
    %3853 = vmatpush.xpose.msra.mxu0 %v3852
    %v3854 = vand.u32 %v3665, 4294901760
    %3855 = vmatpush.xpose.msra.mxu0 %v3854
    %v3856 = vand.u32 %v3662, 4294901760
    %3857 = vmatmul.f32.gmra.mxu0 %v3856
    %v3858 = vpop.f32.mrf.mxu0
    %v3859 = vadd.f32 %v3834, %v3858
    %3860 = vdwg.mxu0
    %v3862 = vsel %vm244, %v3447, 0
    %v3865 = vsel %vm244, %v108, 0
    %v3868 = vsel %vm244, %v109, 0
    %v3871 = vsel %vm244, %v110, 0
    %v3874 = vsel %vm244, %v111, 0
    %3876 = vmatpush.xpose.msra.mxu0 0.0
    %3877 = vmatpush.xpose.msra.mxu0 0.0
    %3878 = vmatpush.xpose.msra.mxu0 0.0
    %3879 = vmatpush.xpose.msra.mxu0 0.0
    %3880 = vmatpush.xpose.msra.mxu0 0.0
    %3881 = vmatpush.xpose.msra.mxu0 0.0
    %3882 = vmatpush.xpose.msra.mxu0 0.0
    %3883 = vmatpush.xpose.msra.mxu0 0.0
    %3884 = vmatpush.xpose.msra.mxu0 0.0
    %3885 = vmatpush.xpose.msra.mxu0 0.0
    %3886 = vmatpush.xpose.msra.mxu0 0.0
    %3887 = vmatpush.xpose.msra.mxu0 0.0
    %v3888 = vand.u32 %v3874, 4294901760
    %3889 = vmatpush.xpose.msra.mxu0 %v3888
    %v3890 = vand.u32 %v3871, 4294901760
    %3891 = vmatpush.xpose.msra.mxu0 %v3890
    %v3892 = vand.u32 %v3868, 4294901760
    %3893 = vmatpush.xpose.msra.mxu0 %v3892
    %v3894 = vand.u32 %v3865, 4294901760
    %3895 = vmatpush.xpose.msra.mxu0 %v3894
    %v3896 = vand.u32 %v3862, 4294901760
    %v3897 = vsub.f32 %v3862, %v3896
    %v3898 = vand.u32 %v3897, 4294901760
    %v3899 = vsub.f32 %v3897, %v3898
    %v3900 = vand.u32 %v3899, 4294901760
    %3901 = vmatmul.f32.gmra.mxu0 %v3900
    %v3902 = vpop.f32.mrf.mxu0
    %v3903 = vadd.f32 0.0, %v3902
    %3904 = vdwg.mxu0
    %3905 = vmatpush.xpose.msra.mxu0 0.0
    %3906 = vmatpush.xpose.msra.mxu0 0.0
    %3907 = vmatpush.xpose.msra.mxu0 0.0
    %3908 = vmatpush.xpose.msra.mxu0 0.0
    %3909 = vmatpush.xpose.msra.mxu0 0.0
    %3910 = vmatpush.xpose.msra.mxu0 0.0
    %3911 = vmatpush.xpose.msra.mxu0 0.0
    %3912 = vmatpush.xpose.msra.mxu0 0.0
    %3913 = vmatpush.xpose.msra.mxu0 0.0
    %3914 = vmatpush.xpose.msra.mxu0 0.0
    %3915 = vmatpush.xpose.msra.mxu0 0.0
    %3916 = vmatpush.xpose.msra.mxu0 0.0
    %v3917 = vand.u32 %v3874, 4294901760
    %v3918 = vsub.f32 %v3874, %v3917
    %v3919 = vand.u32 %v3918, 4294901760
    %v3920 = vsub.f32 %v3918, %v3919
    %v3921 = vand.u32 %v3920, 4294901760
    %3922 = vmatpush.xpose.msra.mxu0 %v3921
    %v3923 = vand.u32 %v3871, 4294901760
    %v3924 = vsub.f32 %v3871, %v3923
    %v3925 = vand.u32 %v3924, 4294901760
    %v3926 = vsub.f32 %v3924, %v3925
    %v3927 = vand.u32 %v3926, 4294901760
    %3928 = vmatpush.xpose.msra.mxu0 %v3927
    %v3929 = vand.u32 %v3868, 4294901760
    %v3930 = vsub.f32 %v3868, %v3929
    %v3931 = vand.u32 %v3930, 4294901760
    %v3932 = vsub.f32 %v3930, %v3931
    %v3933 = vand.u32 %v3932, 4294901760
    %3934 = vmatpush.xpose.msra.mxu0 %v3933
    %v3935 = vand.u32 %v3865, 4294901760
    %v3936 = vsub.f32 %v3865, %v3935
    %v3937 = vand.u32 %v3936, 4294901760
    %v3938 = vsub.f32 %v3936, %v3937
    %v3939 = vand.u32 %v3938, 4294901760
    %3940 = vmatpush.xpose.msra.mxu0 %v3939
    %v3941 = vand.u32 %v3862, 4294901760
    %3942 = vmatmul.f32.gmra.mxu0 %v3941
    %v3943 = vpop.f32.mrf.mxu0
    %v3944 = vadd.f32 %v3903, %v3943
    %3945 = vdwg.mxu0
    %3946 = vmatpush.xpose.msra.mxu0 0.0
    %3947 = vmatpush.xpose.msra.mxu0 0.0
    %3948 = vmatpush.xpose.msra.mxu0 0.0
    %3949 = vmatpush.xpose.msra.mxu0 0.0
    %3950 = vmatpush.xpose.msra.mxu0 0.0
    %3951 = vmatpush.xpose.msra.mxu0 0.0
    %3952 = vmatpush.xpose.msra.mxu0 0.0
    %3953 = vmatpush.xpose.msra.mxu0 0.0
    %3954 = vmatpush.xpose.msra.mxu0 0.0
    %3955 = vmatpush.xpose.msra.mxu0 0.0
    %3956 = vmatpush.xpose.msra.mxu0 0.0
    %3957 = vmatpush.xpose.msra.mxu0 0.0
    %v3958 = vand.u32 %v3874, 4294901760
    %v3959 = vsub.f32 %v3874, %v3958
    %3960 = vmatpush.xpose.msra.mxu0 %v3959
    %v3961 = vand.u32 %v3871, 4294901760
    %v3962 = vsub.f32 %v3871, %v3961
    %3963 = vmatpush.xpose.msra.mxu0 %v3962
    %v3964 = vand.u32 %v3868, 4294901760
    %v3965 = vsub.f32 %v3868, %v3964
    %3966 = vmatpush.xpose.msra.mxu0 %v3965
    %v3967 = vand.u32 %v3865, 4294901760
    %v3968 = vsub.f32 %v3865, %v3967
    %3969 = vmatpush.xpose.msra.mxu0 %v3968
    %v3970 = vand.u32 %v3862, 4294901760
    %v3971 = vsub.f32 %v3862, %v3970
    %3972 = vmatmul.f32.gmra.mxu0 %v3971
    %v3973 = vpop.f32.mrf.mxu0
    %v3974 = vadd.f32 %v3944, %v3973
    %3975 = vdwg.mxu0
    %3976 = vmatpush.xpose.msra.mxu0 0.0
    %3977 = vmatpush.xpose.msra.mxu0 0.0
    %3978 = vmatpush.xpose.msra.mxu0 0.0
    %3979 = vmatpush.xpose.msra.mxu0 0.0
    %3980 = vmatpush.xpose.msra.mxu0 0.0
    %3981 = vmatpush.xpose.msra.mxu0 0.0
    %3982 = vmatpush.xpose.msra.mxu0 0.0
    %3983 = vmatpush.xpose.msra.mxu0 0.0
    %3984 = vmatpush.xpose.msra.mxu0 0.0
    %3985 = vmatpush.xpose.msra.mxu0 0.0
    %3986 = vmatpush.xpose.msra.mxu0 0.0
    %3987 = vmatpush.xpose.msra.mxu0 0.0
    %v3988 = vand.u32 %v3874, 4294901760
    %3989 = vmatpush.xpose.msra.mxu0 %v3988
    %v3990 = vand.u32 %v3871, 4294901760
    %3991 = vmatpush.xpose.msra.mxu0 %v3990
    %v3992 = vand.u32 %v3868, 4294901760
    %3993 = vmatpush.xpose.msra.mxu0 %v3992
    %v3994 = vand.u32 %v3865, 4294901760
    %3995 = vmatpush.xpose.msra.mxu0 %v3994
    %v3996 = vand.u32 %v3862, 4294901760
    %v3997 = vsub.f32 %v3862, %v3996
    %v3998 = vand.u32 %v3997, 4294901760
    %3999 = vmatmul.f32.gmra.mxu0 %v3998
    %v4000 = vpop.f32.mrf.mxu0
    %v4001 = vadd.f32 %v3974, %v4000
    %4002 = vdwg.mxu0
    %4003 = vmatpush.xpose.msra.mxu0 0.0
    %4004 = vmatpush.xpose.msra.mxu0 0.0
    %4005 = vmatpush.xpose.msra.mxu0 0.0
    %4006 = vmatpush.xpose.msra.mxu0 0.0
    %4007 = vmatpush.xpose.msra.mxu0 0.0
    %4008 = vmatpush.xpose.msra.mxu0 0.0
    %4009 = vmatpush.xpose.msra.mxu0 0.0
    %4010 = vmatpush.xpose.msra.mxu0 0.0
    %4011 = vmatpush.xpose.msra.mxu0 0.0
    %4012 = vmatpush.xpose.msra.mxu0 0.0
    %4013 = vmatpush.xpose.msra.mxu0 0.0
    %4014 = vmatpush.xpose.msra.mxu0 0.0
    %v4015 = vand.u32 %v3874, 4294901760
    %v4016 = vsub.f32 %v3874, %v4015
    %v4017 = vand.u32 %v4016, 4294901760
    %4018 = vmatpush.xpose.msra.mxu0 %v4017
    %v4019 = vand.u32 %v3871, 4294901760
    %v4020 = vsub.f32 %v3871, %v4019
    %v4021 = vand.u32 %v4020, 4294901760
    %4022 = vmatpush.xpose.msra.mxu0 %v4021
    %v4023 = vand.u32 %v3868, 4294901760
    %v4024 = vsub.f32 %v3868, %v4023
    %v4025 = vand.u32 %v4024, 4294901760
    %4026 = vmatpush.xpose.msra.mxu0 %v4025
    %v4027 = vand.u32 %v3865, 4294901760
    %v4028 = vsub.f32 %v3865, %v4027
    %v4029 = vand.u32 %v4028, 4294901760
    %4030 = vmatpush.xpose.msra.mxu0 %v4029
    %v4031 = vand.u32 %v3862, 4294901760
    %4032 = vmatmul.f32.gmra.mxu0 %v4031
    %v4033 = vpop.f32.mrf.mxu0
    %v4034 = vadd.f32 %v4001, %v4033
    %4035 = vdwg.mxu0
    %4036 = vmatpush.xpose.msra.mxu0 0.0
    %4037 = vmatpush.xpose.msra.mxu0 0.0
    %4038 = vmatpush.xpose.msra.mxu0 0.0
    %4039 = vmatpush.xpose.msra.mxu0 0.0
    %4040 = vmatpush.xpose.msra.mxu0 0.0
    %4041 = vmatpush.xpose.msra.mxu0 0.0
    %4042 = vmatpush.xpose.msra.mxu0 0.0
    %4043 = vmatpush.xpose.msra.mxu0 0.0
    %4044 = vmatpush.xpose.msra.mxu0 0.0
    %4045 = vmatpush.xpose.msra.mxu0 0.0
    %4046 = vmatpush.xpose.msra.mxu0 0.0
    %4047 = vmatpush.xpose.msra.mxu0 0.0
    %v4048 = vand.u32 %v3874, 4294901760
    %4049 = vmatpush.xpose.msra.mxu0 %v4048
    %v4050 = vand.u32 %v3871, 4294901760
    %4051 = vmatpush.xpose.msra.mxu0 %v4050
    %v4052 = vand.u32 %v3868, 4294901760
    %4053 = vmatpush.xpose.msra.mxu0 %v4052
    %v4054 = vand.u32 %v3865, 4294901760
    %4055 = vmatpush.xpose.msra.mxu0 %v4054
    %v4056 = vand.u32 %v3862, 4294901760
    %4057 = vmatmul.f32.gmra.mxu0 %v4056
    %v4058 = vpop.f32.mrf.mxu0
    %v4059 = vadd.f32 %v4034, %v4058
    %4060 = vdwg.mxu0
    %v4062 = vsel %vm244, %v3448, 0
    %v4065 = vsel %vm244, %v112, 0
    %v4068 = vsel %vm244, %v113, 0
    %v4071 = vsel %vm244, %v114, 0
    %v4074 = vsel %vm244, %v115, 0
    %4076 = vmatpush.xpose.msra.mxu0 0.0
    %4077 = vmatpush.xpose.msra.mxu0 0.0
    %4078 = vmatpush.xpose.msra.mxu0 0.0
    %4079 = vmatpush.xpose.msra.mxu0 0.0
    %4080 = vmatpush.xpose.msra.mxu0 0.0
    %4081 = vmatpush.xpose.msra.mxu0 0.0
    %4082 = vmatpush.xpose.msra.mxu0 0.0
    %4083 = vmatpush.xpose.msra.mxu0 0.0
    %4084 = vmatpush.xpose.msra.mxu0 0.0
    %4085 = vmatpush.xpose.msra.mxu0 0.0
    %4086 = vmatpush.xpose.msra.mxu0 0.0
    %4087 = vmatpush.xpose.msra.mxu0 0.0
    %v4088 = vand.u32 %v4074, 4294901760
    %4089 = vmatpush.xpose.msra.mxu0 %v4088
    %v4090 = vand.u32 %v4071, 4294901760
    %4091 = vmatpush.xpose.msra.mxu0 %v4090
    %v4092 = vand.u32 %v4068, 4294901760
    %4093 = vmatpush.xpose.msra.mxu0 %v4092
    %v4094 = vand.u32 %v4065, 4294901760
    %4095 = vmatpush.xpose.msra.mxu0 %v4094
    %v4096 = vand.u32 %v4062, 4294901760
    %v4097 = vsub.f32 %v4062, %v4096
    %v4098 = vand.u32 %v4097, 4294901760
    %v4099 = vsub.f32 %v4097, %v4098
    %v4100 = vand.u32 %v4099, 4294901760
    %4101 = vmatmul.f32.gmra.mxu0 %v4100
    %v4102 = vpop.f32.mrf.mxu0
    %v4103 = vadd.f32 0.0, %v4102
    %4104 = vdwg.mxu0
    %4105 = vmatpush.xpose.msra.mxu0 0.0
    %4106 = vmatpush.xpose.msra.mxu0 0.0
    %4107 = vmatpush.xpose.msra.mxu0 0.0
    %4108 = vmatpush.xpose.msra.mxu0 0.0
    %4109 = vmatpush.xpose.msra.mxu0 0.0
    %4110 = vmatpush.xpose.msra.mxu0 0.0
    %4111 = vmatpush.xpose.msra.mxu0 0.0
    %4112 = vmatpush.xpose.msra.mxu0 0.0
    %4113 = vmatpush.xpose.msra.mxu0 0.0
    %4114 = vmatpush.xpose.msra.mxu0 0.0
    %4115 = vmatpush.xpose.msra.mxu0 0.0
    %4116 = vmatpush.xpose.msra.mxu0 0.0
    %v4117 = vand.u32 %v4074, 4294901760
    %v4118 = vsub.f32 %v4074, %v4117
    %v4119 = vand.u32 %v4118, 4294901760
    %v4120 = vsub.f32 %v4118, %v4119
    %v4121 = vand.u32 %v4120, 4294901760
    %4122 = vmatpush.xpose.msra.mxu0 %v4121
    %v4123 = vand.u32 %v4071, 4294901760
    %v4124 = vsub.f32 %v4071, %v4123
    %v4125 = vand.u32 %v4124, 4294901760
    %v4126 = vsub.f32 %v4124, %v4125
    %v4127 = vand.u32 %v4126, 4294901760
    %4128 = vmatpush.xpose.msra.mxu0 %v4127
    %v4129 = vand.u32 %v4068, 4294901760
    %v4130 = vsub.f32 %v4068, %v4129
    %v4131 = vand.u32 %v4130, 4294901760
    %v4132 = vsub.f32 %v4130, %v4131
    %v4133 = vand.u32 %v4132, 4294901760
    %4134 = vmatpush.xpose.msra.mxu0 %v4133
    %v4135 = vand.u32 %v4065, 4294901760
    %v4136 = vsub.f32 %v4065, %v4135
    %v4137 = vand.u32 %v4136, 4294901760
    %v4138 = vsub.f32 %v4136, %v4137
    %v4139 = vand.u32 %v4138, 4294901760
    %4140 = vmatpush.xpose.msra.mxu0 %v4139
    %v4141 = vand.u32 %v4062, 4294901760
    %4142 = vmatmul.f32.gmra.mxu0 %v4141
    %v4143 = vpop.f32.mrf.mxu0
    %v4144 = vadd.f32 %v4103, %v4143
    %4145 = vdwg.mxu0
    %4146 = vmatpush.xpose.msra.mxu0 0.0
    %4147 = vmatpush.xpose.msra.mxu0 0.0
    %4148 = vmatpush.xpose.msra.mxu0 0.0
    %4149 = vmatpush.xpose.msra.mxu0 0.0
    %4150 = vmatpush.xpose.msra.mxu0 0.0
    %4151 = vmatpush.xpose.msra.mxu0 0.0
    %4152 = vmatpush.xpose.msra.mxu0 0.0
    %4153 = vmatpush.xpose.msra.mxu0 0.0
    %4154 = vmatpush.xpose.msra.mxu0 0.0
    %4155 = vmatpush.xpose.msra.mxu0 0.0
    %4156 = vmatpush.xpose.msra.mxu0 0.0
    %4157 = vmatpush.xpose.msra.mxu0 0.0
    %v4158 = vand.u32 %v4074, 4294901760
    %v4159 = vsub.f32 %v4074, %v4158
    %4160 = vmatpush.xpose.msra.mxu0 %v4159
    %v4161 = vand.u32 %v4071, 4294901760
    %v4162 = vsub.f32 %v4071, %v4161
    %4163 = vmatpush.xpose.msra.mxu0 %v4162
    %v4164 = vand.u32 %v4068, 4294901760
    %v4165 = vsub.f32 %v4068, %v4164
    %4166 = vmatpush.xpose.msra.mxu0 %v4165
    %v4167 = vand.u32 %v4065, 4294901760
    %v4168 = vsub.f32 %v4065, %v4167
    %4169 = vmatpush.xpose.msra.mxu0 %v4168
    %v4170 = vand.u32 %v4062, 4294901760
    %v4171 = vsub.f32 %v4062, %v4170
    %4172 = vmatmul.f32.gmra.mxu0 %v4171
    %v4173 = vpop.f32.mrf.mxu0
    %v4174 = vadd.f32 %v4144, %v4173
    %4175 = vdwg.mxu0
    %4176 = vmatpush.xpose.msra.mxu0 0.0
    %4177 = vmatpush.xpose.msra.mxu0 0.0
    %4178 = vmatpush.xpose.msra.mxu0 0.0
    %4179 = vmatpush.xpose.msra.mxu0 0.0
    %4180 = vmatpush.xpose.msra.mxu0 0.0
    %4181 = vmatpush.xpose.msra.mxu0 0.0
    %4182 = vmatpush.xpose.msra.mxu0 0.0
    %4183 = vmatpush.xpose.msra.mxu0 0.0
    %4184 = vmatpush.xpose.msra.mxu0 0.0
    %4185 = vmatpush.xpose.msra.mxu0 0.0
    %4186 = vmatpush.xpose.msra.mxu0 0.0
    %4187 = vmatpush.xpose.msra.mxu0 0.0
    %v4188 = vand.u32 %v4074, 4294901760
    %4189 = vmatpush.xpose.msra.mxu0 %v4188
    %v4190 = vand.u32 %v4071, 4294901760
    %4191 = vmatpush.xpose.msra.mxu0 %v4190
    %v4192 = vand.u32 %v4068, 4294901760
    %4193 = vmatpush.xpose.msra.mxu0 %v4192
    %v4194 = vand.u32 %v4065, 4294901760
    %4195 = vmatpush.xpose.msra.mxu0 %v4194
    %v4196 = vand.u32 %v4062, 4294901760
    %v4197 = vsub.f32 %v4062, %v4196
    %v4198 = vand.u32 %v4197, 4294901760
    %4199 = vmatmul.f32.gmra.mxu0 %v4198
    %v4200 = vpop.f32.mrf.mxu0
    %v4201 = vadd.f32 %v4174, %v4200
    %4202 = vdwg.mxu0
    %4203 = vmatpush.xpose.msra.mxu0 0.0
    %4204 = vmatpush.xpose.msra.mxu0 0.0
    %4205 = vmatpush.xpose.msra.mxu0 0.0
    %4206 = vmatpush.xpose.msra.mxu0 0.0
    %4207 = vmatpush.xpose.msra.mxu0 0.0
    %4208 = vmatpush.xpose.msra.mxu0 0.0
    %4209 = vmatpush.xpose.msra.mxu0 0.0
    %4210 = vmatpush.xpose.msra.mxu0 0.0
    %4211 = vmatpush.xpose.msra.mxu0 0.0
    %4212 = vmatpush.xpose.msra.mxu0 0.0
    %4213 = vmatpush.xpose.msra.mxu0 0.0
    %4214 = vmatpush.xpose.msra.mxu0 0.0
    %v4215 = vand.u32 %v4074, 4294901760
    %v4216 = vsub.f32 %v4074, %v4215
    %v4217 = vand.u32 %v4216, 4294901760
    %4218 = vmatpush.xpose.msra.mxu0 %v4217
    %v4219 = vand.u32 %v4071, 4294901760
    %v4220 = vsub.f32 %v4071, %v4219
    %v4221 = vand.u32 %v4220, 4294901760
    %4222 = vmatpush.xpose.msra.mxu0 %v4221
    %v4223 = vand.u32 %v4068, 4294901760
    %v4224 = vsub.f32 %v4068, %v4223
    %v4225 = vand.u32 %v4224, 4294901760
    %4226 = vmatpush.xpose.msra.mxu0 %v4225
    %v4227 = vand.u32 %v4065, 4294901760
    %v4228 = vsub.f32 %v4065, %v4227
    %v4229 = vand.u32 %v4228, 4294901760
    %4230 = vmatpush.xpose.msra.mxu0 %v4229
    %v4231 = vand.u32 %v4062, 4294901760
    %4232 = vmatmul.f32.gmra.mxu0 %v4231
    %v4233 = vpop.f32.mrf.mxu0
    %v4234 = vadd.f32 %v4201, %v4233
    %4235 = vdwg.mxu0
    %4236 = vmatpush.xpose.msra.mxu0 0.0
    %4237 = vmatpush.xpose.msra.mxu0 0.0
    %4238 = vmatpush.xpose.msra.mxu0 0.0
    %4239 = vmatpush.xpose.msra.mxu0 0.0
    %4240 = vmatpush.xpose.msra.mxu0 0.0
    %4241 = vmatpush.xpose.msra.mxu0 0.0
    %4242 = vmatpush.xpose.msra.mxu0 0.0
    %4243 = vmatpush.xpose.msra.mxu0 0.0
    %4244 = vmatpush.xpose.msra.mxu0 0.0
    %4245 = vmatpush.xpose.msra.mxu0 0.0
    %4246 = vmatpush.xpose.msra.mxu0 0.0
    %4247 = vmatpush.xpose.msra.mxu0 0.0
    %v4248 = vand.u32 %v4074, 4294901760
    %4249 = vmatpush.xpose.msra.mxu0 %v4248
    %v4250 = vand.u32 %v4071, 4294901760
    %4251 = vmatpush.xpose.msra.mxu0 %v4250
    %v4252 = vand.u32 %v4068, 4294901760
    %4253 = vmatpush.xpose.msra.mxu0 %v4252
    %v4254 = vand.u32 %v4065, 4294901760
    %4255 = vmatpush.xpose.msra.mxu0 %v4254
    %v4256 = vand.u32 %v4062, 4294901760
    %4257 = vmatmul.f32.gmra.mxu0 %v4256
    %v4258 = vpop.f32.mrf.mxu0
    %v4259 = vadd.f32 %v4234, %v4258
    %4260 = vdwg.mxu0
    %v4262 = vsel %vm244, %v3449, 0
    %v4265 = vsel %vm244, %v116, 0
    %v4268 = vsel %vm244, %v117, 0
    %v4271 = vsel %vm244, %v118, 0
    %v4274 = vsel %vm244, %v119, 0
    %4276 = vmatpush.xpose.msra.mxu0 0.0
    %4277 = vmatpush.xpose.msra.mxu0 0.0
    %4278 = vmatpush.xpose.msra.mxu0 0.0
    %4279 = vmatpush.xpose.msra.mxu0 0.0
    %4280 = vmatpush.xpose.msra.mxu0 0.0
    %4281 = vmatpush.xpose.msra.mxu0 0.0
    %4282 = vmatpush.xpose.msra.mxu0 0.0
    %4283 = vmatpush.xpose.msra.mxu0 0.0
    %4284 = vmatpush.xpose.msra.mxu0 0.0
    %4285 = vmatpush.xpose.msra.mxu0 0.0
    %4286 = vmatpush.xpose.msra.mxu0 0.0
    %4287 = vmatpush.xpose.msra.mxu0 0.0
    %v4288 = vand.u32 %v4274, 4294901760
    %4289 = vmatpush.xpose.msra.mxu0 %v4288
    %v4290 = vand.u32 %v4271, 4294901760
    %4291 = vmatpush.xpose.msra.mxu0 %v4290
    %v4292 = vand.u32 %v4268, 4294901760
    %4293 = vmatpush.xpose.msra.mxu0 %v4292
    %v4294 = vand.u32 %v4265, 4294901760
    %4295 = vmatpush.xpose.msra.mxu0 %v4294
    %v4296 = vand.u32 %v4262, 4294901760
    %v4297 = vsub.f32 %v4262, %v4296
    %v4298 = vand.u32 %v4297, 4294901760
    %v4299 = vsub.f32 %v4297, %v4298
    %v4300 = vand.u32 %v4299, 4294901760
    %4301 = vmatmul.f32.gmra.mxu0 %v4300
    %v4302 = vpop.f32.mrf.mxu0
    %v4303 = vadd.f32 0.0, %v4302
    %4304 = vdwg.mxu0
    %4305 = vmatpush.xpose.msra.mxu0 0.0
    %4306 = vmatpush.xpose.msra.mxu0 0.0
    %4307 = vmatpush.xpose.msra.mxu0 0.0
    %4308 = vmatpush.xpose.msra.mxu0 0.0
    %4309 = vmatpush.xpose.msra.mxu0 0.0
    %4310 = vmatpush.xpose.msra.mxu0 0.0
    %4311 = vmatpush.xpose.msra.mxu0 0.0
    %4312 = vmatpush.xpose.msra.mxu0 0.0
    %4313 = vmatpush.xpose.msra.mxu0 0.0
    %4314 = vmatpush.xpose.msra.mxu0 0.0
    %4315 = vmatpush.xpose.msra.mxu0 0.0
    %4316 = vmatpush.xpose.msra.mxu0 0.0
    %v4317 = vand.u32 %v4274, 4294901760
    %v4318 = vsub.f32 %v4274, %v4317
    %v4319 = vand.u32 %v4318, 4294901760
    %v4320 = vsub.f32 %v4318, %v4319
    %v4321 = vand.u32 %v4320, 4294901760
    %4322 = vmatpush.xpose.msra.mxu0 %v4321
    %v4323 = vand.u32 %v4271, 4294901760
    %v4324 = vsub.f32 %v4271, %v4323
    %v4325 = vand.u32 %v4324, 4294901760
    %v4326 = vsub.f32 %v4324, %v4325
    %v4327 = vand.u32 %v4326, 4294901760
    %4328 = vmatpush.xpose.msra.mxu0 %v4327
    %v4329 = vand.u32 %v4268, 4294901760
    %v4330 = vsub.f32 %v4268, %v4329
    %v4331 = vand.u32 %v4330, 4294901760
    %v4332 = vsub.f32 %v4330, %v4331
    %v4333 = vand.u32 %v4332, 4294901760
    %4334 = vmatpush.xpose.msra.mxu0 %v4333
    %v4335 = vand.u32 %v4265, 4294901760
    %v4336 = vsub.f32 %v4265, %v4335
    %v4337 = vand.u32 %v4336, 4294901760
    %v4338 = vsub.f32 %v4336, %v4337
    %v4339 = vand.u32 %v4338, 4294901760
    %4340 = vmatpush.xpose.msra.mxu0 %v4339
    %v4341 = vand.u32 %v4262, 4294901760
    %4342 = vmatmul.f32.gmra.mxu0 %v4341
    %v4343 = vpop.f32.mrf.mxu0
    %v4344 = vadd.f32 %v4303, %v4343
    %4345 = vdwg.mxu0
    %4346 = vmatpush.xpose.msra.mxu0 0.0
    %4347 = vmatpush.xpose.msra.mxu0 0.0
    %4348 = vmatpush.xpose.msra.mxu0 0.0
    %4349 = vmatpush.xpose.msra.mxu0 0.0
    %4350 = vmatpush.xpose.msra.mxu0 0.0
    %4351 = vmatpush.xpose.msra.mxu0 0.0
    %4352 = vmatpush.xpose.msra.mxu0 0.0
    %4353 = vmatpush.xpose.msra.mxu0 0.0
    %4354 = vmatpush.xpose.msra.mxu0 0.0
    %4355 = vmatpush.xpose.msra.mxu0 0.0
    %4356 = vmatpush.xpose.msra.mxu0 0.0
    %4357 = vmatpush.xpose.msra.mxu0 0.0
    %v4358 = vand.u32 %v4274, 4294901760
    %v4359 = vsub.f32 %v4274, %v4358
    %4360 = vmatpush.xpose.msra.mxu0 %v4359
    %v4361 = vand.u32 %v4271, 4294901760
    %v4362 = vsub.f32 %v4271, %v4361
    %4363 = vmatpush.xpose.msra.mxu0 %v4362
    %v4364 = vand.u32 %v4268, 4294901760
    %v4365 = vsub.f32 %v4268, %v4364
    %4366 = vmatpush.xpose.msra.mxu0 %v4365
    %v4367 = vand.u32 %v4265, 4294901760
    %v4368 = vsub.f32 %v4265, %v4367
    %4369 = vmatpush.xpose.msra.mxu0 %v4368
    %v4370 = vand.u32 %v4262, 4294901760
    %v4371 = vsub.f32 %v4262, %v4370
    %4372 = vmatmul.f32.gmra.mxu0 %v4371
    %v4373 = vpop.f32.mrf.mxu0
    %v4374 = vadd.f32 %v4344, %v4373
    %4375 = vdwg.mxu0
    %4376 = vmatpush.xpose.msra.mxu0 0.0
    %4377 = vmatpush.xpose.msra.mxu0 0.0
    %4378 = vmatpush.xpose.msra.mxu0 0.0
    %4379 = vmatpush.xpose.msra.mxu0 0.0
    %4380 = vmatpush.xpose.msra.mxu0 0.0
    %4381 = vmatpush.xpose.msra.mxu0 0.0
    %4382 = vmatpush.xpose.msra.mxu0 0.0
    %4383 = vmatpush.xpose.msra.mxu0 0.0
    %4384 = vmatpush.xpose.msra.mxu0 0.0
    %4385 = vmatpush.xpose.msra.mxu0 0.0
    %4386 = vmatpush.xpose.msra.mxu0 0.0
    %4387 = vmatpush.xpose.msra.mxu0 0.0
    %v4388 = vand.u32 %v4274, 4294901760
    %4389 = vmatpush.xpose.msra.mxu0 %v4388
    %v4390 = vand.u32 %v4271, 4294901760
    %4391 = vmatpush.xpose.msra.mxu0 %v4390
    %v4392 = vand.u32 %v4268, 4294901760
    %4393 = vmatpush.xpose.msra.mxu0 %v4392
    %v4394 = vand.u32 %v4265, 4294901760
    %4395 = vmatpush.xpose.msra.mxu0 %v4394
    %v4396 = vand.u32 %v4262, 4294901760
    %v4397 = vsub.f32 %v4262, %v4396
    %v4398 = vand.u32 %v4397, 4294901760
    %4399 = vmatmul.f32.gmra.mxu0 %v4398
    %v4400 = vpop.f32.mrf.mxu0
    %v4401 = vadd.f32 %v4374, %v4400
    %4402 = vdwg.mxu0
    %4403 = vmatpush.xpose.msra.mxu0 0.0
    %4404 = vmatpush.xpose.msra.mxu0 0.0
    %4405 = vmatpush.xpose.msra.mxu0 0.0
    %4406 = vmatpush.xpose.msra.mxu0 0.0
    %4407 = vmatpush.xpose.msra.mxu0 0.0
    %4408 = vmatpush.xpose.msra.mxu0 0.0
    %4409 = vmatpush.xpose.msra.mxu0 0.0
    %4410 = vmatpush.xpose.msra.mxu0 0.0
    %4411 = vmatpush.xpose.msra.mxu0 0.0
    %4412 = vmatpush.xpose.msra.mxu0 0.0
    %4413 = vmatpush.xpose.msra.mxu0 0.0
    %4414 = vmatpush.xpose.msra.mxu0 0.0
    %v4415 = vand.u32 %v4274, 4294901760
    %v4416 = vsub.f32 %v4274, %v4415
    %v4417 = vand.u32 %v4416, 4294901760
    %4418 = vmatpush.xpose.msra.mxu0 %v4417
    %v4419 = vand.u32 %v4271, 4294901760
    %v4420 = vsub.f32 %v4271, %v4419
    %v4421 = vand.u32 %v4420, 4294901760
    %4422 = vmatpush.xpose.msra.mxu0 %v4421
    %v4423 = vand.u32 %v4268, 4294901760
    %v4424 = vsub.f32 %v4268, %v4423
    %v4425 = vand.u32 %v4424, 4294901760
    %4426 = vmatpush.xpose.msra.mxu0 %v4425
    %v4427 = vand.u32 %v4265, 4294901760
    %v4428 = vsub.f32 %v4265, %v4427
    %v4429 = vand.u32 %v4428, 4294901760
    %4430 = vmatpush.xpose.msra.mxu0 %v4429
    %v4431 = vand.u32 %v4262, 4294901760
    %4432 = vmatmul.f32.gmra.mxu0 %v4431
    %v4433 = vpop.f32.mrf.mxu0
    %v4434 = vadd.f32 %v4401, %v4433
    %4435 = vdwg.mxu0
    %4436 = vmatpush.xpose.msra.mxu0 0.0
    %4437 = vmatpush.xpose.msra.mxu0 0.0
    %4438 = vmatpush.xpose.msra.mxu0 0.0
    %4439 = vmatpush.xpose.msra.mxu0 0.0
    %4440 = vmatpush.xpose.msra.mxu0 0.0
    %4441 = vmatpush.xpose.msra.mxu0 0.0
    %4442 = vmatpush.xpose.msra.mxu0 0.0
    %4443 = vmatpush.xpose.msra.mxu0 0.0
    %4444 = vmatpush.xpose.msra.mxu0 0.0
    %4445 = vmatpush.xpose.msra.mxu0 0.0
    %4446 = vmatpush.xpose.msra.mxu0 0.0
    %4447 = vmatpush.xpose.msra.mxu0 0.0
    %v4448 = vand.u32 %v4274, 4294901760
    %4449 = vmatpush.xpose.msra.mxu0 %v4448
    %v4450 = vand.u32 %v4271, 4294901760
    %4451 = vmatpush.xpose.msra.mxu0 %v4450
    %v4452 = vand.u32 %v4268, 4294901760
    %4453 = vmatpush.xpose.msra.mxu0 %v4452
    %v4454 = vand.u32 %v4265, 4294901760
    %4455 = vmatpush.xpose.msra.mxu0 %v4454
    %v4456 = vand.u32 %v4262, 4294901760
    %4457 = vmatmul.f32.gmra.mxu0 %v4456
    %v4458 = vpop.f32.mrf.mxu0
    %v4459 = vadd.f32 %v4434, %v4458
    %4460 = vdwg.mxu0
    %v4462 = vsel %vm244, %v3450, 0
    %v4465 = vsel %vm244, %v120, 0
    %v4468 = vsel %vm244, %v121, 0
    %v4471 = vsel %vm244, %v122, 0
    %v4474 = vsel %vm244, %v123, 0
    %4476 = vmatpush.xpose.msra.mxu0 0.0
    %4477 = vmatpush.xpose.msra.mxu0 0.0
    %4478 = vmatpush.xpose.msra.mxu0 0.0
    %4479 = vmatpush.xpose.msra.mxu0 0.0
    %4480 = vmatpush.xpose.msra.mxu0 0.0
    %4481 = vmatpush.xpose.msra.mxu0 0.0
    %4482 = vmatpush.xpose.msra.mxu0 0.0
    %4483 = vmatpush.xpose.msra.mxu0 0.0
    %4484 = vmatpush.xpose.msra.mxu0 0.0
    %4485 = vmatpush.xpose.msra.mxu0 0.0
    %4486 = vmatpush.xpose.msra.mxu0 0.0
    %4487 = vmatpush.xpose.msra.mxu0 0.0
    %v4488 = vand.u32 %v4474, 4294901760
    %4489 = vmatpush.xpose.msra.mxu0 %v4488
    %v4490 = vand.u32 %v4471, 4294901760
    %4491 = vmatpush.xpose.msra.mxu0 %v4490
    %v4492 = vand.u32 %v4468, 4294901760
    %4493 = vmatpush.xpose.msra.mxu0 %v4492
    %v4494 = vand.u32 %v4465, 4294901760
    %4495 = vmatpush.xpose.msra.mxu0 %v4494
    %v4496 = vand.u32 %v4462, 4294901760
    %v4497 = vsub.f32 %v4462, %v4496
    %v4498 = vand.u32 %v4497, 4294901760
    %v4499 = vsub.f32 %v4497, %v4498
    %v4500 = vand.u32 %v4499, 4294901760
    %4501 = vmatmul.f32.gmra.mxu0 %v4500
    %v4502 = vpop.f32.mrf.mxu0
    %v4503 = vadd.f32 0.0, %v4502
    %4504 = vdwg.mxu0
    %4505 = vmatpush.xpose.msra.mxu0 0.0
    %4506 = vmatpush.xpose.msra.mxu0 0.0
    %4507 = vmatpush.xpose.msra.mxu0 0.0
    %4508 = vmatpush.xpose.msra.mxu0 0.0
    %4509 = vmatpush.xpose.msra.mxu0 0.0
    %4510 = vmatpush.xpose.msra.mxu0 0.0
    %4511 = vmatpush.xpose.msra.mxu0 0.0
    %4512 = vmatpush.xpose.msra.mxu0 0.0
    %4513 = vmatpush.xpose.msra.mxu0 0.0
    %4514 = vmatpush.xpose.msra.mxu0 0.0
    %4515 = vmatpush.xpose.msra.mxu0 0.0
    %4516 = vmatpush.xpose.msra.mxu0 0.0
    %v4517 = vand.u32 %v4474, 4294901760
    %v4518 = vsub.f32 %v4474, %v4517
    %v4519 = vand.u32 %v4518, 4294901760
    %v4520 = vsub.f32 %v4518, %v4519
    %v4521 = vand.u32 %v4520, 4294901760
    %4522 = vmatpush.xpose.msra.mxu0 %v4521
    %v4523 = vand.u32 %v4471, 4294901760
    %v4524 = vsub.f32 %v4471, %v4523
    %v4525 = vand.u32 %v4524, 4294901760
    %v4526 = vsub.f32 %v4524, %v4525
    %v4527 = vand.u32 %v4526, 4294901760
    %4528 = vmatpush.xpose.msra.mxu0 %v4527
    %v4529 = vand.u32 %v4468, 4294901760
    %v4530 = vsub.f32 %v4468, %v4529
    %v4531 = vand.u32 %v4530, 4294901760
    %v4532 = vsub.f32 %v4530, %v4531
    %v4533 = vand.u32 %v4532, 4294901760
    %4534 = vmatpush.xpose.msra.mxu0 %v4533
    %v4535 = vand.u32 %v4465, 4294901760
    %v4536 = vsub.f32 %v4465, %v4535
    %v4537 = vand.u32 %v4536, 4294901760
    %v4538 = vsub.f32 %v4536, %v4537
    %v4539 = vand.u32 %v4538, 4294901760
    %4540 = vmatpush.xpose.msra.mxu0 %v4539
    %v4541 = vand.u32 %v4462, 4294901760
    %4542 = vmatmul.f32.gmra.mxu0 %v4541
    %v4543 = vpop.f32.mrf.mxu0
    %v4544 = vadd.f32 %v4503, %v4543
    %4545 = vdwg.mxu0
    %4546 = vmatpush.xpose.msra.mxu0 0.0
    %4547 = vmatpush.xpose.msra.mxu0 0.0
    %4548 = vmatpush.xpose.msra.mxu0 0.0
    %4549 = vmatpush.xpose.msra.mxu0 0.0
    %4550 = vmatpush.xpose.msra.mxu0 0.0
    %4551 = vmatpush.xpose.msra.mxu0 0.0
    %4552 = vmatpush.xpose.msra.mxu0 0.0
    %4553 = vmatpush.xpose.msra.mxu0 0.0
    %4554 = vmatpush.xpose.msra.mxu0 0.0
    %4555 = vmatpush.xpose.msra.mxu0 0.0
    %4556 = vmatpush.xpose.msra.mxu0 0.0
    %4557 = vmatpush.xpose.msra.mxu0 0.0
    %v4558 = vand.u32 %v4474, 4294901760
    %v4559 = vsub.f32 %v4474, %v4558
    %4560 = vmatpush.xpose.msra.mxu0 %v4559
    %v4561 = vand.u32 %v4471, 4294901760
    %v4562 = vsub.f32 %v4471, %v4561
    %4563 = vmatpush.xpose.msra.mxu0 %v4562
    %v4564 = vand.u32 %v4468, 4294901760
    %v4565 = vsub.f32 %v4468, %v4564
    %4566 = vmatpush.xpose.msra.mxu0 %v4565
    %v4567 = vand.u32 %v4465, 4294901760
    %v4568 = vsub.f32 %v4465, %v4567
    %4569 = vmatpush.xpose.msra.mxu0 %v4568
    %v4570 = vand.u32 %v4462, 4294901760
    %v4571 = vsub.f32 %v4462, %v4570
    %4572 = vmatmul.f32.gmra.mxu0 %v4571
    %v4573 = vpop.f32.mrf.mxu0
    %v4574 = vadd.f32 %v4544, %v4573
    %4575 = vdwg.mxu0
    %4576 = vmatpush.xpose.msra.mxu0 0.0
    %4577 = vmatpush.xpose.msra.mxu0 0.0
    %4578 = vmatpush.xpose.msra.mxu0 0.0
    %4579 = vmatpush.xpose.msra.mxu0 0.0
    %4580 = vmatpush.xpose.msra.mxu0 0.0
    %4581 = vmatpush.xpose.msra.mxu0 0.0
    %4582 = vmatpush.xpose.msra.mxu0 0.0
    %4583 = vmatpush.xpose.msra.mxu0 0.0
    %4584 = vmatpush.xpose.msra.mxu0 0.0
    %4585 = vmatpush.xpose.msra.mxu0 0.0
    %4586 = vmatpush.xpose.msra.mxu0 0.0
    %4587 = vmatpush.xpose.msra.mxu0 0.0
    %v4588 = vand.u32 %v4474, 4294901760
    %4589 = vmatpush.xpose.msra.mxu0 %v4588
    %v4590 = vand.u32 %v4471, 4294901760
    %4591 = vmatpush.xpose.msra.mxu0 %v4590
    %v4592 = vand.u32 %v4468, 4294901760
    %4593 = vmatpush.xpose.msra.mxu0 %v4592
    %v4594 = vand.u32 %v4465, 4294901760
    %4595 = vmatpush.xpose.msra.mxu0 %v4594
    %v4596 = vand.u32 %v4462, 4294901760
    %v4597 = vsub.f32 %v4462, %v4596
    %v4598 = vand.u32 %v4597, 4294901760
    %4599 = vmatmul.f32.gmra.mxu0 %v4598
    %v4600 = vpop.f32.mrf.mxu0
    %v4601 = vadd.f32 %v4574, %v4600
    %4602 = vdwg.mxu0
    %4603 = vmatpush.xpose.msra.mxu0 0.0
    %4604 = vmatpush.xpose.msra.mxu0 0.0
    %4605 = vmatpush.xpose.msra.mxu0 0.0
    %4606 = vmatpush.xpose.msra.mxu0 0.0
    %4607 = vmatpush.xpose.msra.mxu0 0.0
    %4608 = vmatpush.xpose.msra.mxu0 0.0
    %4609 = vmatpush.xpose.msra.mxu0 0.0
    %4610 = vmatpush.xpose.msra.mxu0 0.0
    %4611 = vmatpush.xpose.msra.mxu0 0.0
    %4612 = vmatpush.xpose.msra.mxu0 0.0
    %4613 = vmatpush.xpose.msra.mxu0 0.0
    %4614 = vmatpush.xpose.msra.mxu0 0.0
    %v4615 = vand.u32 %v4474, 4294901760
    %v4616 = vsub.f32 %v4474, %v4615
    %v4617 = vand.u32 %v4616, 4294901760
    %4618 = vmatpush.xpose.msra.mxu0 %v4617
    %v4619 = vand.u32 %v4471, 4294901760
    %v4620 = vsub.f32 %v4471, %v4619
    %v4621 = vand.u32 %v4620, 4294901760
    %4622 = vmatpush.xpose.msra.mxu0 %v4621
    %v4623 = vand.u32 %v4468, 4294901760
    %v4624 = vsub.f32 %v4468, %v4623
    %v4625 = vand.u32 %v4624, 4294901760
    %4626 = vmatpush.xpose.msra.mxu0 %v4625
    %v4627 = vand.u32 %v4465, 4294901760
    %v4628 = vsub.f32 %v4465, %v4627
    %v4629 = vand.u32 %v4628, 4294901760
    %4630 = vmatpush.xpose.msra.mxu0 %v4629
    %v4631 = vand.u32 %v4462, 4294901760
    %4632 = vmatmul.f32.gmra.mxu0 %v4631
    %v4633 = vpop.f32.mrf.mxu0
    %v4634 = vadd.f32 %v4601, %v4633
    %4635 = vdwg.mxu0
    %4636 = vmatpush.xpose.msra.mxu0 0.0
    %4637 = vmatpush.xpose.msra.mxu0 0.0
    %4638 = vmatpush.xpose.msra.mxu0 0.0
    %4639 = vmatpush.xpose.msra.mxu0 0.0
    %4640 = vmatpush.xpose.msra.mxu0 0.0
    %4641 = vmatpush.xpose.msra.mxu0 0.0
    %4642 = vmatpush.xpose.msra.mxu0 0.0
    %4643 = vmatpush.xpose.msra.mxu0 0.0
    %4644 = vmatpush.xpose.msra.mxu0 0.0
    %4645 = vmatpush.xpose.msra.mxu0 0.0
    %4646 = vmatpush.xpose.msra.mxu0 0.0
    %4647 = vmatpush.xpose.msra.mxu0 0.0
    %v4648 = vand.u32 %v4474, 4294901760
    %4649 = vmatpush.xpose.msra.mxu0 %v4648
    %v4650 = vand.u32 %v4471, 4294901760
    %4651 = vmatpush.xpose.msra.mxu0 %v4650
    %v4652 = vand.u32 %v4468, 4294901760
    %4653 = vmatpush.xpose.msra.mxu0 %v4652
    %v4654 = vand.u32 %v4465, 4294901760
    %4655 = vmatpush.xpose.msra.mxu0 %v4654
    %v4656 = vand.u32 %v4462, 4294901760
    %4657 = vmatmul.f32.gmra.mxu0 %v4656
    %v4658 = vpop.f32.mrf.mxu0
    %v4659 = vadd.f32 %v4634, %v4658
    %4660 = vdwg.mxu0
    %v4662 = vsel %vm244, %v3451, 0
    %v4665 = vsel %vm244, %v124, 0
    %v4668 = vsel %vm244, %v125, 0
    %v4671 = vsel %vm244, %v126, 0
    %v4674 = vsel %vm244, %v127, 0
    %4676 = vmatpush.xpose.msra.mxu0 0.0
    %4677 = vmatpush.xpose.msra.mxu0 0.0
    %4678 = vmatpush.xpose.msra.mxu0 0.0
    %4679 = vmatpush.xpose.msra.mxu0 0.0
    %4680 = vmatpush.xpose.msra.mxu0 0.0
    %4681 = vmatpush.xpose.msra.mxu0 0.0
    %4682 = vmatpush.xpose.msra.mxu0 0.0
    %4683 = vmatpush.xpose.msra.mxu0 0.0
    %4684 = vmatpush.xpose.msra.mxu0 0.0
    %4685 = vmatpush.xpose.msra.mxu0 0.0
    %4686 = vmatpush.xpose.msra.mxu0 0.0
    %4687 = vmatpush.xpose.msra.mxu0 0.0
    %v4688 = vand.u32 %v4674, 4294901760
    %4689 = vmatpush.xpose.msra.mxu0 %v4688
    %v4690 = vand.u32 %v4671, 4294901760
    %4691 = vmatpush.xpose.msra.mxu0 %v4690
    %v4692 = vand.u32 %v4668, 4294901760
    %4693 = vmatpush.xpose.msra.mxu0 %v4692
    %v4694 = vand.u32 %v4665, 4294901760
    %4695 = vmatpush.xpose.msra.mxu0 %v4694
    %v4696 = vand.u32 %v4662, 4294901760
    %v4697 = vsub.f32 %v4662, %v4696
    %v4698 = vand.u32 %v4697, 4294901760
    %v4699 = vsub.f32 %v4697, %v4698
    %v4700 = vand.u32 %v4699, 4294901760
    %4701 = vmatmul.f32.gmra.mxu0 %v4700
    %v4702 = vpop.f32.mrf.mxu0
    %v4703 = vadd.f32 0.0, %v4702
    %4704 = vdwg.mxu0
    %4705 = vmatpush.xpose.msra.mxu0 0.0
    %4706 = vmatpush.xpose.msra.mxu0 0.0
    %4707 = vmatpush.xpose.msra.mxu0 0.0
    %4708 = vmatpush.xpose.msra.mxu0 0.0
    %4709 = vmatpush.xpose.msra.mxu0 0.0
    %4710 = vmatpush.xpose.msra.mxu0 0.0
    %4711 = vmatpush.xpose.msra.mxu0 0.0
    %4712 = vmatpush.xpose.msra.mxu0 0.0
    %4713 = vmatpush.xpose.msra.mxu0 0.0
    %4714 = vmatpush.xpose.msra.mxu0 0.0
    %4715 = vmatpush.xpose.msra.mxu0 0.0
    %4716 = vmatpush.xpose.msra.mxu0 0.0
    %v4717 = vand.u32 %v4674, 4294901760
    %v4718 = vsub.f32 %v4674, %v4717
    %v4719 = vand.u32 %v4718, 4294901760
    %v4720 = vsub.f32 %v4718, %v4719
    %v4721 = vand.u32 %v4720, 4294901760
    %4722 = vmatpush.xpose.msra.mxu0 %v4721
    %v4723 = vand.u32 %v4671, 4294901760
    %v4724 = vsub.f32 %v4671, %v4723
    %v4725 = vand.u32 %v4724, 4294901760
    %v4726 = vsub.f32 %v4724, %v4725
    %v4727 = vand.u32 %v4726, 4294901760
    %4728 = vmatpush.xpose.msra.mxu0 %v4727
    %v4729 = vand.u32 %v4668, 4294901760
    %v4730 = vsub.f32 %v4668, %v4729
    %v4731 = vand.u32 %v4730, 4294901760
    %v4732 = vsub.f32 %v4730, %v4731
    %v4733 = vand.u32 %v4732, 4294901760
    %4734 = vmatpush.xpose.msra.mxu0 %v4733
    %v4735 = vand.u32 %v4665, 4294901760
    %v4736 = vsub.f32 %v4665, %v4735
    %v4737 = vand.u32 %v4736, 4294901760
    %v4738 = vsub.f32 %v4736, %v4737
    %v4739 = vand.u32 %v4738, 4294901760
    %4740 = vmatpush.xpose.msra.mxu0 %v4739
    %v4741 = vand.u32 %v4662, 4294901760
    %4742 = vmatmul.f32.gmra.mxu0 %v4741
    %v4743 = vpop.f32.mrf.mxu0
    %v4744 = vadd.f32 %v4703, %v4743
    %4745 = vdwg.mxu0
    %4746 = vmatpush.xpose.msra.mxu0 0.0
    %4747 = vmatpush.xpose.msra.mxu0 0.0
    %4748 = vmatpush.xpose.msra.mxu0 0.0
    %4749 = vmatpush.xpose.msra.mxu0 0.0
    %4750 = vmatpush.xpose.msra.mxu0 0.0
    %4751 = vmatpush.xpose.msra.mxu0 0.0
    %4752 = vmatpush.xpose.msra.mxu0 0.0
    %4753 = vmatpush.xpose.msra.mxu0 0.0
    %4754 = vmatpush.xpose.msra.mxu0 0.0
    %4755 = vmatpush.xpose.msra.mxu0 0.0
    %4756 = vmatpush.xpose.msra.mxu0 0.0
    %4757 = vmatpush.xpose.msra.mxu0 0.0
    %v4758 = vand.u32 %v4674, 4294901760
    %v4759 = vsub.f32 %v4674, %v4758
    %4760 = vmatpush.xpose.msra.mxu0 %v4759
    %v4761 = vand.u32 %v4671, 4294901760
    %v4762 = vsub.f32 %v4671, %v4761
    %4763 = vmatpush.xpose.msra.mxu0 %v4762
    %v4764 = vand.u32 %v4668, 4294901760
    %v4765 = vsub.f32 %v4668, %v4764
    %4766 = vmatpush.xpose.msra.mxu0 %v4765
    %v4767 = vand.u32 %v4665, 4294901760
    %v4768 = vsub.f32 %v4665, %v4767
    %4769 = vmatpush.xpose.msra.mxu0 %v4768
    %v4770 = vand.u32 %v4662, 4294901760
    %v4771 = vsub.f32 %v4662, %v4770
    %4772 = vmatmul.f32.gmra.mxu0 %v4771
    %v4773 = vpop.f32.mrf.mxu0
    %v4774 = vadd.f32 %v4744, %v4773
    %4775 = vdwg.mxu0
    %4776 = vmatpush.xpose.msra.mxu0 0.0
    %4777 = vmatpush.xpose.msra.mxu0 0.0
    %4778 = vmatpush.xpose.msra.mxu0 0.0
    %4779 = vmatpush.xpose.msra.mxu0 0.0
    %4780 = vmatpush.xpose.msra.mxu0 0.0
    %4781 = vmatpush.xpose.msra.mxu0 0.0
    %4782 = vmatpush.xpose.msra.mxu0 0.0
    %4783 = vmatpush.xpose.msra.mxu0 0.0
    %4784 = vmatpush.xpose.msra.mxu0 0.0
    %4785 = vmatpush.xpose.msra.mxu0 0.0
    %4786 = vmatpush.xpose.msra.mxu0 0.0
    %4787 = vmatpush.xpose.msra.mxu0 0.0
    %v4788 = vand.u32 %v4674, 4294901760
    %4789 = vmatpush.xpose.msra.mxu0 %v4788
    %v4790 = vand.u32 %v4671, 4294901760
    %4791 = vmatpush.xpose.msra.mxu0 %v4790
    %v4792 = vand.u32 %v4668, 4294901760
    %4793 = vmatpush.xpose.msra.mxu0 %v4792
    %v4794 = vand.u32 %v4665, 4294901760
    %4795 = vmatpush.xpose.msra.mxu0 %v4794
    %v4796 = vand.u32 %v4662, 4294901760
    %v4797 = vsub.f32 %v4662, %v4796
    %v4798 = vand.u32 %v4797, 4294901760
    %4799 = vmatmul.f32.gmra.mxu0 %v4798
    %v4800 = vpop.f32.mrf.mxu0
    %v4801 = vadd.f32 %v4774, %v4800
    %4802 = vdwg.mxu0
    %4803 = vmatpush.xpose.msra.mxu0 0.0
    %4804 = vmatpush.xpose.msra.mxu0 0.0
    %4805 = vmatpush.xpose.msra.mxu0 0.0
    %4806 = vmatpush.xpose.msra.mxu0 0.0
    %4807 = vmatpush.xpose.msra.mxu0 0.0
    %4808 = vmatpush.xpose.msra.mxu0 0.0
    %4809 = vmatpush.xpose.msra.mxu0 0.0
    %4810 = vmatpush.xpose.msra.mxu0 0.0
    %4811 = vmatpush.xpose.msra.mxu0 0.0
    %4812 = vmatpush.xpose.msra.mxu0 0.0
    %4813 = vmatpush.xpose.msra.mxu0 0.0
    %4814 = vmatpush.xpose.msra.mxu0 0.0
    %v4815 = vand.u32 %v4674, 4294901760
    %v4816 = vsub.f32 %v4674, %v4815
    %v4817 = vand.u32 %v4816, 4294901760
    %4818 = vmatpush.xpose.msra.mxu0 %v4817
    %v4819 = vand.u32 %v4671, 4294901760
    %v4820 = vsub.f32 %v4671, %v4819
    %v4821 = vand.u32 %v4820, 4294901760
    %4822 = vmatpush.xpose.msra.mxu0 %v4821
    %v4823 = vand.u32 %v4668, 4294901760
    %v4824 = vsub.f32 %v4668, %v4823
    %v4825 = vand.u32 %v4824, 4294901760
    %4826 = vmatpush.xpose.msra.mxu0 %v4825
    %v4827 = vand.u32 %v4665, 4294901760
    %v4828 = vsub.f32 %v4665, %v4827
    %v4829 = vand.u32 %v4828, 4294901760
    %4830 = vmatpush.xpose.msra.mxu0 %v4829
    %v4831 = vand.u32 %v4662, 4294901760
    %4832 = vmatmul.f32.gmra.mxu0 %v4831
    %v4833 = vpop.f32.mrf.mxu0
    %v4834 = vadd.f32 %v4801, %v4833
    %4835 = vdwg.mxu0
    %4836 = vmatpush.xpose.msra.mxu0 0.0
    %4837 = vmatpush.xpose.msra.mxu0 0.0
    %4838 = vmatpush.xpose.msra.mxu0 0.0
    %4839 = vmatpush.xpose.msra.mxu0 0.0
    %4840 = vmatpush.xpose.msra.mxu0 0.0
    %4841 = vmatpush.xpose.msra.mxu0 0.0
    %4842 = vmatpush.xpose.msra.mxu0 0.0
    %4843 = vmatpush.xpose.msra.mxu0 0.0
    %4844 = vmatpush.xpose.msra.mxu0 0.0
    %4845 = vmatpush.xpose.msra.mxu0 0.0
    %4846 = vmatpush.xpose.msra.mxu0 0.0
    %4847 = vmatpush.xpose.msra.mxu0 0.0
    %v4848 = vand.u32 %v4674, 4294901760
    %4849 = vmatpush.xpose.msra.mxu0 %v4848
    %v4850 = vand.u32 %v4671, 4294901760
    %4851 = vmatpush.xpose.msra.mxu0 %v4850
    %v4852 = vand.u32 %v4668, 4294901760
    %4853 = vmatpush.xpose.msra.mxu0 %v4852
    %v4854 = vand.u32 %v4665, 4294901760
    %4855 = vmatpush.xpose.msra.mxu0 %v4854
    %v4856 = vand.u32 %v4662, 4294901760
    %4857 = vmatmul.f32.gmra.mxu0 %v4856
    %v4858 = vpop.f32.mrf.mxu0
    %v4859 = vadd.f32 %v4834, %v4858
    %4860 = vdwg.mxu0
    %v4862 = vsel %vm244, %v3452, 0
    %v4865 = vsel %vm244, %v128, 0
    %v4868 = vsel %vm244, %v129, 0
    %v4871 = vsel %vm244, %v130, 0
    %v4874 = vsel %vm244, %v131, 0
    %4876 = vmatpush.xpose.msra.mxu0 0.0
    %4877 = vmatpush.xpose.msra.mxu0 0.0
    %4878 = vmatpush.xpose.msra.mxu0 0.0
    %4879 = vmatpush.xpose.msra.mxu0 0.0
    %4880 = vmatpush.xpose.msra.mxu0 0.0
    %4881 = vmatpush.xpose.msra.mxu0 0.0
    %4882 = vmatpush.xpose.msra.mxu0 0.0
    %4883 = vmatpush.xpose.msra.mxu0 0.0
    %4884 = vmatpush.xpose.msra.mxu0 0.0
    %4885 = vmatpush.xpose.msra.mxu0 0.0
    %4886 = vmatpush.xpose.msra.mxu0 0.0
    %4887 = vmatpush.xpose.msra.mxu0 0.0
    %v4888 = vand.u32 %v4874, 4294901760
    %4889 = vmatpush.xpose.msra.mxu0 %v4888
    %v4890 = vand.u32 %v4871, 4294901760
    %4891 = vmatpush.xpose.msra.mxu0 %v4890
    %v4892 = vand.u32 %v4868, 4294901760
    %4893 = vmatpush.xpose.msra.mxu0 %v4892
    %v4894 = vand.u32 %v4865, 4294901760
    %4895 = vmatpush.xpose.msra.mxu0 %v4894
    %v4896 = vand.u32 %v4862, 4294901760
    %v4897 = vsub.f32 %v4862, %v4896
    %v4898 = vand.u32 %v4897, 4294901760
    %v4899 = vsub.f32 %v4897, %v4898
    %v4900 = vand.u32 %v4899, 4294901760
    %4901 = vmatmul.f32.gmra.mxu0 %v4900
    %v4902 = vpop.f32.mrf.mxu0
    %v4903 = vadd.f32 0.0, %v4902
    %4904 = vdwg.mxu0
    %4905 = vmatpush.xpose.msra.mxu0 0.0
    %4906 = vmatpush.xpose.msra.mxu0 0.0
    %4907 = vmatpush.xpose.msra.mxu0 0.0
    %4908 = vmatpush.xpose.msra.mxu0 0.0
    %4909 = vmatpush.xpose.msra.mxu0 0.0
    %4910 = vmatpush.xpose.msra.mxu0 0.0
    %4911 = vmatpush.xpose.msra.mxu0 0.0
    %4912 = vmatpush.xpose.msra.mxu0 0.0
    %4913 = vmatpush.xpose.msra.mxu0 0.0
    %4914 = vmatpush.xpose.msra.mxu0 0.0
    %4915 = vmatpush.xpose.msra.mxu0 0.0
    %4916 = vmatpush.xpose.msra.mxu0 0.0
    %v4917 = vand.u32 %v4874, 4294901760
    %v4918 = vsub.f32 %v4874, %v4917
    %v4919 = vand.u32 %v4918, 4294901760
    %v4920 = vsub.f32 %v4918, %v4919
    %v4921 = vand.u32 %v4920, 4294901760
    %4922 = vmatpush.xpose.msra.mxu0 %v4921
    %v4923 = vand.u32 %v4871, 4294901760
    %v4924 = vsub.f32 %v4871, %v4923
    %v4925 = vand.u32 %v4924, 4294901760
    %v4926 = vsub.f32 %v4924, %v4925
    %v4927 = vand.u32 %v4926, 4294901760
    %4928 = vmatpush.xpose.msra.mxu0 %v4927
    %v4929 = vand.u32 %v4868, 4294901760
    %v4930 = vsub.f32 %v4868, %v4929
    %v4931 = vand.u32 %v4930, 4294901760
    %v4932 = vsub.f32 %v4930, %v4931
    %v4933 = vand.u32 %v4932, 4294901760
    %4934 = vmatpush.xpose.msra.mxu0 %v4933
    %v4935 = vand.u32 %v4865, 4294901760
    %v4936 = vsub.f32 %v4865, %v4935
    %v4937 = vand.u32 %v4936, 4294901760
    %v4938 = vsub.f32 %v4936, %v4937
    %v4939 = vand.u32 %v4938, 4294901760
    %4940 = vmatpush.xpose.msra.mxu0 %v4939
    %v4941 = vand.u32 %v4862, 4294901760
    %4942 = vmatmul.f32.gmra.mxu0 %v4941
    %v4943 = vpop.f32.mrf.mxu0
    %v4944 = vadd.f32 %v4903, %v4943
    %4945 = vdwg.mxu0
    %4946 = vmatpush.xpose.msra.mxu0 0.0
    %4947 = vmatpush.xpose.msra.mxu0 0.0
    %4948 = vmatpush.xpose.msra.mxu0 0.0
    %4949 = vmatpush.xpose.msra.mxu0 0.0
    %4950 = vmatpush.xpose.msra.mxu0 0.0
    %4951 = vmatpush.xpose.msra.mxu0 0.0
    %4952 = vmatpush.xpose.msra.mxu0 0.0
    %4953 = vmatpush.xpose.msra.mxu0 0.0
    %4954 = vmatpush.xpose.msra.mxu0 0.0
    %4955 = vmatpush.xpose.msra.mxu0 0.0
    %4956 = vmatpush.xpose.msra.mxu0 0.0
    %4957 = vmatpush.xpose.msra.mxu0 0.0
    %v4958 = vand.u32 %v4874, 4294901760
    %v4959 = vsub.f32 %v4874, %v4958
    %4960 = vmatpush.xpose.msra.mxu0 %v4959
    %v4961 = vand.u32 %v4871, 4294901760
    %v4962 = vsub.f32 %v4871, %v4961
    %4963 = vmatpush.xpose.msra.mxu0 %v4962
    %v4964 = vand.u32 %v4868, 4294901760
    %v4965 = vsub.f32 %v4868, %v4964
    %4966 = vmatpush.xpose.msra.mxu0 %v4965
    %v4967 = vand.u32 %v4865, 4294901760
    %v4968 = vsub.f32 %v4865, %v4967
    %4969 = vmatpush.xpose.msra.mxu0 %v4968
    %v4970 = vand.u32 %v4862, 4294901760
    %v4971 = vsub.f32 %v4862, %v4970
    %4972 = vmatmul.f32.gmra.mxu0 %v4971
    %v4973 = vpop.f32.mrf.mxu0
    %v4974 = vadd.f32 %v4944, %v4973
    %4975 = vdwg.mxu0
    %4976 = vmatpush.xpose.msra.mxu0 0.0
    %4977 = vmatpush.xpose.msra.mxu0 0.0
    %4978 = vmatpush.xpose.msra.mxu0 0.0
    %4979 = vmatpush.xpose.msra.mxu0 0.0
    %4980 = vmatpush.xpose.msra.mxu0 0.0
    %4981 = vmatpush.xpose.msra.mxu0 0.0
    %4982 = vmatpush.xpose.msra.mxu0 0.0
    %4983 = vmatpush.xpose.msra.mxu0 0.0
    %4984 = vmatpush.xpose.msra.mxu0 0.0
    %4985 = vmatpush.xpose.msra.mxu0 0.0
    %4986 = vmatpush.xpose.msra.mxu0 0.0
    %4987 = vmatpush.xpose.msra.mxu0 0.0
    %v4988 = vand.u32 %v4874, 4294901760
    %4989 = vmatpush.xpose.msra.mxu0 %v4988
    %v4990 = vand.u32 %v4871, 4294901760
    %4991 = vmatpush.xpose.msra.mxu0 %v4990
    %v4992 = vand.u32 %v4868, 4294901760
    %4993 = vmatpush.xpose.msra.mxu0 %v4992
    %v4994 = vand.u32 %v4865, 4294901760
    %4995 = vmatpush.xpose.msra.mxu0 %v4994
    %v4996 = vand.u32 %v4862, 4294901760
    %v4997 = vsub.f32 %v4862, %v4996
    %v4998 = vand.u32 %v4997, 4294901760
    %4999 = vmatmul.f32.gmra.mxu0 %v4998
    %v5000 = vpop.f32.mrf.mxu0
    %v5001 = vadd.f32 %v4974, %v5000
    %5002 = vdwg.mxu0
    %5003 = vmatpush.xpose.msra.mxu0 0.0
    %5004 = vmatpush.xpose.msra.mxu0 0.0
    %5005 = vmatpush.xpose.msra.mxu0 0.0
    %5006 = vmatpush.xpose.msra.mxu0 0.0
    %5007 = vmatpush.xpose.msra.mxu0 0.0
    %5008 = vmatpush.xpose.msra.mxu0 0.0
    %5009 = vmatpush.xpose.msra.mxu0 0.0
    %5010 = vmatpush.xpose.msra.mxu0 0.0
    %5011 = vmatpush.xpose.msra.mxu0 0.0
    %5012 = vmatpush.xpose.msra.mxu0 0.0
    %5013 = vmatpush.xpose.msra.mxu0 0.0
    %5014 = vmatpush.xpose.msra.mxu0 0.0
    %v5015 = vand.u32 %v4874, 4294901760
    %v5016 = vsub.f32 %v4874, %v5015
    %v5017 = vand.u32 %v5016, 4294901760
    %5018 = vmatpush.xpose.msra.mxu0 %v5017
    %v5019 = vand.u32 %v4871, 4294901760
    %v5020 = vsub.f32 %v4871, %v5019
    %v5021 = vand.u32 %v5020, 4294901760
    %5022 = vmatpush.xpose.msra.mxu0 %v5021
    %v5023 = vand.u32 %v4868, 4294901760
    %v5024 = vsub.f32 %v4868, %v5023
    %v5025 = vand.u32 %v5024, 4294901760
    %5026 = vmatpush.xpose.msra.mxu0 %v5025
    %v5027 = vand.u32 %v4865, 4294901760
    %v5028 = vsub.f32 %v4865, %v5027
    %v5029 = vand.u32 %v5028, 4294901760
    %5030 = vmatpush.xpose.msra.mxu0 %v5029
    %v5031 = vand.u32 %v4862, 4294901760
    %5032 = vmatmul.f32.gmra.mxu0 %v5031
    %v5033 = vpop.f32.mrf.mxu0
    %v5034 = vadd.f32 %v5001, %v5033
    %5035 = vdwg.mxu0
    %5036 = vmatpush.xpose.msra.mxu0 0.0
    %5037 = vmatpush.xpose.msra.mxu0 0.0
    %5038 = vmatpush.xpose.msra.mxu0 0.0
    %5039 = vmatpush.xpose.msra.mxu0 0.0
    %5040 = vmatpush.xpose.msra.mxu0 0.0
    %5041 = vmatpush.xpose.msra.mxu0 0.0
    %5042 = vmatpush.xpose.msra.mxu0 0.0
    %5043 = vmatpush.xpose.msra.mxu0 0.0
    %5044 = vmatpush.xpose.msra.mxu0 0.0
    %5045 = vmatpush.xpose.msra.mxu0 0.0
    %5046 = vmatpush.xpose.msra.mxu0 0.0
    %5047 = vmatpush.xpose.msra.mxu0 0.0
    %v5048 = vand.u32 %v4874, 4294901760
    %5049 = vmatpush.xpose.msra.mxu0 %v5048
    %v5050 = vand.u32 %v4871, 4294901760
    %5051 = vmatpush.xpose.msra.mxu0 %v5050
    %v5052 = vand.u32 %v4868, 4294901760
    %5053 = vmatpush.xpose.msra.mxu0 %v5052
    %v5054 = vand.u32 %v4865, 4294901760
    %5055 = vmatpush.xpose.msra.mxu0 %v5054
    %v5056 = vand.u32 %v4862, 4294901760
    %5057 = vmatmul.f32.gmra.mxu0 %v5056
    %v5058 = vpop.f32.mrf.mxu0
    %v5059 = vadd.f32 %v5034, %v5058
    %5060 = vdwg.mxu0
    %v5062 = vsel %vm244, %v3453, 0
    %v5065 = vsel %vm244, %v132, 0
    %v5068 = vsel %vm244, %v133, 0
    %v5071 = vsel %vm244, %v134, 0
    %v5074 = vsel %vm244, %v135, 0
    %5076 = vmatpush.xpose.msra.mxu0 0.0
    %5077 = vmatpush.xpose.msra.mxu0 0.0
    %5078 = vmatpush.xpose.msra.mxu0 0.0
    %5079 = vmatpush.xpose.msra.mxu0 0.0
    %5080 = vmatpush.xpose.msra.mxu0 0.0
    %5081 = vmatpush.xpose.msra.mxu0 0.0
    %5082 = vmatpush.xpose.msra.mxu0 0.0
    %5083 = vmatpush.xpose.msra.mxu0 0.0
    %5084 = vmatpush.xpose.msra.mxu0 0.0
    %5085 = vmatpush.xpose.msra.mxu0 0.0
    %5086 = vmatpush.xpose.msra.mxu0 0.0
    %5087 = vmatpush.xpose.msra.mxu0 0.0
    %v5088 = vand.u32 %v5074, 4294901760
    %5089 = vmatpush.xpose.msra.mxu0 %v5088
    %v5090 = vand.u32 %v5071, 4294901760
    %5091 = vmatpush.xpose.msra.mxu0 %v5090
    %v5092 = vand.u32 %v5068, 4294901760
    %5093 = vmatpush.xpose.msra.mxu0 %v5092
    %v5094 = vand.u32 %v5065, 4294901760
    %5095 = vmatpush.xpose.msra.mxu0 %v5094
    %v5096 = vand.u32 %v5062, 4294901760
    %v5097 = vsub.f32 %v5062, %v5096
    %v5098 = vand.u32 %v5097, 4294901760
    %v5099 = vsub.f32 %v5097, %v5098
    %v5100 = vand.u32 %v5099, 4294901760
    %5101 = vmatmul.f32.gmra.mxu0 %v5100
    %v5102 = vpop.f32.mrf.mxu0
    %v5103 = vadd.f32 0.0, %v5102
    %5104 = vdwg.mxu0
    %5105 = vmatpush.xpose.msra.mxu0 0.0
    %5106 = vmatpush.xpose.msra.mxu0 0.0
    %5107 = vmatpush.xpose.msra.mxu0 0.0
    %5108 = vmatpush.xpose.msra.mxu0 0.0
    %5109 = vmatpush.xpose.msra.mxu0 0.0
    %5110 = vmatpush.xpose.msra.mxu0 0.0
    %5111 = vmatpush.xpose.msra.mxu0 0.0
    %5112 = vmatpush.xpose.msra.mxu0 0.0
    %5113 = vmatpush.xpose.msra.mxu0 0.0
    %5114 = vmatpush.xpose.msra.mxu0 0.0
    %5115 = vmatpush.xpose.msra.mxu0 0.0
    %5116 = vmatpush.xpose.msra.mxu0 0.0
    %v5117 = vand.u32 %v5074, 4294901760
    %v5118 = vsub.f32 %v5074, %v5117
    %v5119 = vand.u32 %v5118, 4294901760
    %v5120 = vsub.f32 %v5118, %v5119
    %v5121 = vand.u32 %v5120, 4294901760
    %5122 = vmatpush.xpose.msra.mxu0 %v5121
    %v5123 = vand.u32 %v5071, 4294901760
    %v5124 = vsub.f32 %v5071, %v5123
    %v5125 = vand.u32 %v5124, 4294901760
    %v5126 = vsub.f32 %v5124, %v5125
    %v5127 = vand.u32 %v5126, 4294901760
    %5128 = vmatpush.xpose.msra.mxu0 %v5127
    %v5129 = vand.u32 %v5068, 4294901760
    %v5130 = vsub.f32 %v5068, %v5129
    %v5131 = vand.u32 %v5130, 4294901760
    %v5132 = vsub.f32 %v5130, %v5131
    %v5133 = vand.u32 %v5132, 4294901760
    %5134 = vmatpush.xpose.msra.mxu0 %v5133
    %v5135 = vand.u32 %v5065, 4294901760
    %v5136 = vsub.f32 %v5065, %v5135
    %v5137 = vand.u32 %v5136, 4294901760
    %v5138 = vsub.f32 %v5136, %v5137
    %v5139 = vand.u32 %v5138, 4294901760
    %5140 = vmatpush.xpose.msra.mxu0 %v5139
    %v5141 = vand.u32 %v5062, 4294901760
    %5142 = vmatmul.f32.gmra.mxu0 %v5141
    %v5143 = vpop.f32.mrf.mxu0
    %v5144 = vadd.f32 %v5103, %v5143
    %5145 = vdwg.mxu0
    %5146 = vmatpush.xpose.msra.mxu0 0.0
    %5147 = vmatpush.xpose.msra.mxu0 0.0
    %5148 = vmatpush.xpose.msra.mxu0 0.0
    %5149 = vmatpush.xpose.msra.mxu0 0.0
    %5150 = vmatpush.xpose.msra.mxu0 0.0
    %5151 = vmatpush.xpose.msra.mxu0 0.0
    %5152 = vmatpush.xpose.msra.mxu0 0.0
    %5153 = vmatpush.xpose.msra.mxu0 0.0
    %5154 = vmatpush.xpose.msra.mxu0 0.0
    %5155 = vmatpush.xpose.msra.mxu0 0.0
    %5156 = vmatpush.xpose.msra.mxu0 0.0
    %5157 = vmatpush.xpose.msra.mxu0 0.0
    %v5158 = vand.u32 %v5074, 4294901760
    %v5159 = vsub.f32 %v5074, %v5158
    %5160 = vmatpush.xpose.msra.mxu0 %v5159
    %v5161 = vand.u32 %v5071, 4294901760
    %v5162 = vsub.f32 %v5071, %v5161
    %5163 = vmatpush.xpose.msra.mxu0 %v5162
    %v5164 = vand.u32 %v5068, 4294901760
    %v5165 = vsub.f32 %v5068, %v5164
    %5166 = vmatpush.xpose.msra.mxu0 %v5165
    %v5167 = vand.u32 %v5065, 4294901760
    %v5168 = vsub.f32 %v5065, %v5167
    %5169 = vmatpush.xpose.msra.mxu0 %v5168
    %v5170 = vand.u32 %v5062, 4294901760
    %v5171 = vsub.f32 %v5062, %v5170
    %5172 = vmatmul.f32.gmra.mxu0 %v5171
    %v5173 = vpop.f32.mrf.mxu0
    %v5174 = vadd.f32 %v5144, %v5173
    %5175 = vdwg.mxu0
    %5176 = vmatpush.xpose.msra.mxu0 0.0
    %5177 = vmatpush.xpose.msra.mxu0 0.0
    %5178 = vmatpush.xpose.msra.mxu0 0.0
    %5179 = vmatpush.xpose.msra.mxu0 0.0
    %5180 = vmatpush.xpose.msra.mxu0 0.0
    %5181 = vmatpush.xpose.msra.mxu0 0.0
    %5182 = vmatpush.xpose.msra.mxu0 0.0
    %5183 = vmatpush.xpose.msra.mxu0 0.0
    %5184 = vmatpush.xpose.msra.mxu0 0.0
    %5185 = vmatpush.xpose.msra.mxu0 0.0
    %5186 = vmatpush.xpose.msra.mxu0 0.0
    %5187 = vmatpush.xpose.msra.mxu0 0.0
    %v5188 = vand.u32 %v5074, 4294901760
    %5189 = vmatpush.xpose.msra.mxu0 %v5188
    %v5190 = vand.u32 %v5071, 4294901760
    %5191 = vmatpush.xpose.msra.mxu0 %v5190
    %v5192 = vand.u32 %v5068, 4294901760
    %5193 = vmatpush.xpose.msra.mxu0 %v5192
    %v5194 = vand.u32 %v5065, 4294901760
    %5195 = vmatpush.xpose.msra.mxu0 %v5194
    %v5196 = vand.u32 %v5062, 4294901760
    %v5197 = vsub.f32 %v5062, %v5196
    %v5198 = vand.u32 %v5197, 4294901760
    %5199 = vmatmul.f32.gmra.mxu0 %v5198
    %v5200 = vpop.f32.mrf.mxu0
    %v5201 = vadd.f32 %v5174, %v5200
    %5202 = vdwg.mxu0
    %5203 = vmatpush.xpose.msra.mxu0 0.0
    %5204 = vmatpush.xpose.msra.mxu0 0.0
    %5205 = vmatpush.xpose.msra.mxu0 0.0
    %5206 = vmatpush.xpose.msra.mxu0 0.0
    %5207 = vmatpush.xpose.msra.mxu0 0.0
    %5208 = vmatpush.xpose.msra.mxu0 0.0
    %5209 = vmatpush.xpose.msra.mxu0 0.0
    %5210 = vmatpush.xpose.msra.mxu0 0.0
    %5211 = vmatpush.xpose.msra.mxu0 0.0
    %5212 = vmatpush.xpose.msra.mxu0 0.0
    %5213 = vmatpush.xpose.msra.mxu0 0.0
    %5214 = vmatpush.xpose.msra.mxu0 0.0
    %v5215 = vand.u32 %v5074, 4294901760
    %v5216 = vsub.f32 %v5074, %v5215
    %v5217 = vand.u32 %v5216, 4294901760
    %5218 = vmatpush.xpose.msra.mxu0 %v5217
    %v5219 = vand.u32 %v5071, 4294901760
    %v5220 = vsub.f32 %v5071, %v5219
    %v5221 = vand.u32 %v5220, 4294901760
    %5222 = vmatpush.xpose.msra.mxu0 %v5221
    %v5223 = vand.u32 %v5068, 4294901760
    %v5224 = vsub.f32 %v5068, %v5223
    %v5225 = vand.u32 %v5224, 4294901760
    %5226 = vmatpush.xpose.msra.mxu0 %v5225
    %v5227 = vand.u32 %v5065, 4294901760
    %v5228 = vsub.f32 %v5065, %v5227
    %v5229 = vand.u32 %v5228, 4294901760
    %5230 = vmatpush.xpose.msra.mxu0 %v5229
    %v5231 = vand.u32 %v5062, 4294901760
    %5232 = vmatmul.f32.gmra.mxu0 %v5231
    %v5233 = vpop.f32.mrf.mxu0
    %v5234 = vadd.f32 %v5201, %v5233
    %5235 = vdwg.mxu0
    %5236 = vmatpush.xpose.msra.mxu0 0.0
    %5237 = vmatpush.xpose.msra.mxu0 0.0
    %5238 = vmatpush.xpose.msra.mxu0 0.0
    %5239 = vmatpush.xpose.msra.mxu0 0.0
    %5240 = vmatpush.xpose.msra.mxu0 0.0
    %5241 = vmatpush.xpose.msra.mxu0 0.0
    %5242 = vmatpush.xpose.msra.mxu0 0.0
    %5243 = vmatpush.xpose.msra.mxu0 0.0
    %5244 = vmatpush.xpose.msra.mxu0 0.0
    %5245 = vmatpush.xpose.msra.mxu0 0.0
    %5246 = vmatpush.xpose.msra.mxu0 0.0
    %5247 = vmatpush.xpose.msra.mxu0 0.0
    %v5248 = vand.u32 %v5074, 4294901760
    %5249 = vmatpush.xpose.msra.mxu0 %v5248
    %v5250 = vand.u32 %v5071, 4294901760
    %5251 = vmatpush.xpose.msra.mxu0 %v5250
    %v5252 = vand.u32 %v5068, 4294901760
    %5253 = vmatpush.xpose.msra.mxu0 %v5252
    %v5254 = vand.u32 %v5065, 4294901760
    %5255 = vmatpush.xpose.msra.mxu0 %v5254
    %v5256 = vand.u32 %v5062, 4294901760
    %5257 = vmatmul.f32.gmra.mxu0 %v5256
    %v5258 = vpop.f32.mrf.mxu0
    %v5259 = vadd.f32 %v5234, %v5258
    %5260 = vdwg.mxu0
    %v5262 = vsel %vm244, %v3454, 0
    %v5265 = vsel %vm244, %v136, 0
    %v5268 = vsel %vm244, %v137, 0
    %v5271 = vsel %vm244, %v138, 0
    %v5274 = vsel %vm244, %v139, 0
    %5276 = vmatpush.xpose.msra.mxu0 0.0
    %5277 = vmatpush.xpose.msra.mxu0 0.0
    %5278 = vmatpush.xpose.msra.mxu0 0.0
    %5279 = vmatpush.xpose.msra.mxu0 0.0
    %5280 = vmatpush.xpose.msra.mxu0 0.0
    %5281 = vmatpush.xpose.msra.mxu0 0.0
    %5282 = vmatpush.xpose.msra.mxu0 0.0
    %5283 = vmatpush.xpose.msra.mxu0 0.0
    %5284 = vmatpush.xpose.msra.mxu0 0.0
    %5285 = vmatpush.xpose.msra.mxu0 0.0
    %5286 = vmatpush.xpose.msra.mxu0 0.0
    %5287 = vmatpush.xpose.msra.mxu0 0.0
    %v5288 = vand.u32 %v5274, 4294901760
    %5289 = vmatpush.xpose.msra.mxu0 %v5288
    %v5290 = vand.u32 %v5271, 4294901760
    %5291 = vmatpush.xpose.msra.mxu0 %v5290
    %v5292 = vand.u32 %v5268, 4294901760
    %5293 = vmatpush.xpose.msra.mxu0 %v5292
    %v5294 = vand.u32 %v5265, 4294901760
    %5295 = vmatpush.xpose.msra.mxu0 %v5294
    %v5296 = vand.u32 %v5262, 4294901760
    %v5297 = vsub.f32 %v5262, %v5296
    %v5298 = vand.u32 %v5297, 4294901760
    %v5299 = vsub.f32 %v5297, %v5298
    %v5300 = vand.u32 %v5299, 4294901760
    %5301 = vmatmul.f32.gmra.mxu0 %v5300
    %v5302 = vpop.f32.mrf.mxu0
    %v5303 = vadd.f32 0.0, %v5302
    %5304 = vdwg.mxu0
    %5305 = vmatpush.xpose.msra.mxu0 0.0
    %5306 = vmatpush.xpose.msra.mxu0 0.0
    %5307 = vmatpush.xpose.msra.mxu0 0.0
    %5308 = vmatpush.xpose.msra.mxu0 0.0
    %5309 = vmatpush.xpose.msra.mxu0 0.0
    %5310 = vmatpush.xpose.msra.mxu0 0.0
    %5311 = vmatpush.xpose.msra.mxu0 0.0
    %5312 = vmatpush.xpose.msra.mxu0 0.0
    %5313 = vmatpush.xpose.msra.mxu0 0.0
    %5314 = vmatpush.xpose.msra.mxu0 0.0
    %5315 = vmatpush.xpose.msra.mxu0 0.0
    %5316 = vmatpush.xpose.msra.mxu0 0.0
    %v5317 = vand.u32 %v5274, 4294901760
    %v5318 = vsub.f32 %v5274, %v5317
    %v5319 = vand.u32 %v5318, 4294901760
    %v5320 = vsub.f32 %v5318, %v5319
    %v5321 = vand.u32 %v5320, 4294901760
    %5322 = vmatpush.xpose.msra.mxu0 %v5321
    %v5323 = vand.u32 %v5271, 4294901760
    %v5324 = vsub.f32 %v5271, %v5323
    %v5325 = vand.u32 %v5324, 4294901760
    %v5326 = vsub.f32 %v5324, %v5325
    %v5327 = vand.u32 %v5326, 4294901760
    %5328 = vmatpush.xpose.msra.mxu0 %v5327
    %v5329 = vand.u32 %v5268, 4294901760
    %v5330 = vsub.f32 %v5268, %v5329
    %v5331 = vand.u32 %v5330, 4294901760
    %v5332 = vsub.f32 %v5330, %v5331
    %v5333 = vand.u32 %v5332, 4294901760
    %5334 = vmatpush.xpose.msra.mxu0 %v5333
    %v5335 = vand.u32 %v5265, 4294901760
    %v5336 = vsub.f32 %v5265, %v5335
    %v5337 = vand.u32 %v5336, 4294901760
    %v5338 = vsub.f32 %v5336, %v5337
    %v5339 = vand.u32 %v5338, 4294901760
    %5340 = vmatpush.xpose.msra.mxu0 %v5339
    %v5341 = vand.u32 %v5262, 4294901760
    %5342 = vmatmul.f32.gmra.mxu0 %v5341
    %v5343 = vpop.f32.mrf.mxu0
    %v5344 = vadd.f32 %v5303, %v5343
    %5345 = vdwg.mxu0
    %5346 = vmatpush.xpose.msra.mxu0 0.0
    %5347 = vmatpush.xpose.msra.mxu0 0.0
    %5348 = vmatpush.xpose.msra.mxu0 0.0
    %5349 = vmatpush.xpose.msra.mxu0 0.0
    %5350 = vmatpush.xpose.msra.mxu0 0.0
    %5351 = vmatpush.xpose.msra.mxu0 0.0
    %5352 = vmatpush.xpose.msra.mxu0 0.0
    %5353 = vmatpush.xpose.msra.mxu0 0.0
    %5354 = vmatpush.xpose.msra.mxu0 0.0
    %5355 = vmatpush.xpose.msra.mxu0 0.0
    %5356 = vmatpush.xpose.msra.mxu0 0.0
    %5357 = vmatpush.xpose.msra.mxu0 0.0
    %v5358 = vand.u32 %v5274, 4294901760
    %v5359 = vsub.f32 %v5274, %v5358
    %5360 = vmatpush.xpose.msra.mxu0 %v5359
    %v5361 = vand.u32 %v5271, 4294901760
    %v5362 = vsub.f32 %v5271, %v5361
    %5363 = vmatpush.xpose.msra.mxu0 %v5362
    %v5364 = vand.u32 %v5268, 4294901760
    %v5365 = vsub.f32 %v5268, %v5364
    %5366 = vmatpush.xpose.msra.mxu0 %v5365
    %v5367 = vand.u32 %v5265, 4294901760
    %v5368 = vsub.f32 %v5265, %v5367
    %5369 = vmatpush.xpose.msra.mxu0 %v5368
    %v5370 = vand.u32 %v5262, 4294901760
    %v5371 = vsub.f32 %v5262, %v5370
    %5372 = vmatmul.f32.gmra.mxu0 %v5371
    %v5373 = vpop.f32.mrf.mxu0
    %v5374 = vadd.f32 %v5344, %v5373
    %5375 = vdwg.mxu0
    %5376 = vmatpush.xpose.msra.mxu0 0.0
    %5377 = vmatpush.xpose.msra.mxu0 0.0
    %5378 = vmatpush.xpose.msra.mxu0 0.0
    %5379 = vmatpush.xpose.msra.mxu0 0.0
    %5380 = vmatpush.xpose.msra.mxu0 0.0
    %5381 = vmatpush.xpose.msra.mxu0 0.0
    %5382 = vmatpush.xpose.msra.mxu0 0.0
    %5383 = vmatpush.xpose.msra.mxu0 0.0
    %5384 = vmatpush.xpose.msra.mxu0 0.0
    %5385 = vmatpush.xpose.msra.mxu0 0.0
    %5386 = vmatpush.xpose.msra.mxu0 0.0
    %5387 = vmatpush.xpose.msra.mxu0 0.0
    %v5388 = vand.u32 %v5274, 4294901760
    %5389 = vmatpush.xpose.msra.mxu0 %v5388
    %v5390 = vand.u32 %v5271, 4294901760
    %5391 = vmatpush.xpose.msra.mxu0 %v5390
    %v5392 = vand.u32 %v5268, 4294901760
    %5393 = vmatpush.xpose.msra.mxu0 %v5392
    %v5394 = vand.u32 %v5265, 4294901760
    %5395 = vmatpush.xpose.msra.mxu0 %v5394
    %v5396 = vand.u32 %v5262, 4294901760
    %v5397 = vsub.f32 %v5262, %v5396
    %v5398 = vand.u32 %v5397, 4294901760
    %5399 = vmatmul.f32.gmra.mxu0 %v5398
    %v5400 = vpop.f32.mrf.mxu0
    %v5401 = vadd.f32 %v5374, %v5400
    %5402 = vdwg.mxu0
    %5403 = vmatpush.xpose.msra.mxu0 0.0
    %5404 = vmatpush.xpose.msra.mxu0 0.0
    %5405 = vmatpush.xpose.msra.mxu0 0.0
    %5406 = vmatpush.xpose.msra.mxu0 0.0
    %5407 = vmatpush.xpose.msra.mxu0 0.0
    %5408 = vmatpush.xpose.msra.mxu0 0.0
    %5409 = vmatpush.xpose.msra.mxu0 0.0
    %5410 = vmatpush.xpose.msra.mxu0 0.0
    %5411 = vmatpush.xpose.msra.mxu0 0.0
    %5412 = vmatpush.xpose.msra.mxu0 0.0
    %5413 = vmatpush.xpose.msra.mxu0 0.0
    %5414 = vmatpush.xpose.msra.mxu0 0.0
    %v5415 = vand.u32 %v5274, 4294901760
    %v5416 = vsub.f32 %v5274, %v5415
    %v5417 = vand.u32 %v5416, 4294901760
    %5418 = vmatpush.xpose.msra.mxu0 %v5417
    %v5419 = vand.u32 %v5271, 4294901760
    %v5420 = vsub.f32 %v5271, %v5419
    %v5421 = vand.u32 %v5420, 4294901760
    %5422 = vmatpush.xpose.msra.mxu0 %v5421
    %v5423 = vand.u32 %v5268, 4294901760
    %v5424 = vsub.f32 %v5268, %v5423
    %v5425 = vand.u32 %v5424, 4294901760
    %5426 = vmatpush.xpose.msra.mxu0 %v5425
    %v5427 = vand.u32 %v5265, 4294901760
    %v5428 = vsub.f32 %v5265, %v5427
    %v5429 = vand.u32 %v5428, 4294901760
    %5430 = vmatpush.xpose.msra.mxu0 %v5429
    %v5431 = vand.u32 %v5262, 4294901760
    %5432 = vmatmul.f32.gmra.mxu0 %v5431
    %v5433 = vpop.f32.mrf.mxu0
    %v5434 = vadd.f32 %v5401, %v5433
    %5435 = vdwg.mxu0
    %5436 = vmatpush.xpose.msra.mxu0 0.0
    %5437 = vmatpush.xpose.msra.mxu0 0.0
    %5438 = vmatpush.xpose.msra.mxu0 0.0
    %5439 = vmatpush.xpose.msra.mxu0 0.0
    %5440 = vmatpush.xpose.msra.mxu0 0.0
    %5441 = vmatpush.xpose.msra.mxu0 0.0
    %5442 = vmatpush.xpose.msra.mxu0 0.0
    %5443 = vmatpush.xpose.msra.mxu0 0.0
    %5444 = vmatpush.xpose.msra.mxu0 0.0
    %5445 = vmatpush.xpose.msra.mxu0 0.0
    %5446 = vmatpush.xpose.msra.mxu0 0.0
    %5447 = vmatpush.xpose.msra.mxu0 0.0
    %v5448 = vand.u32 %v5274, 4294901760
    %5449 = vmatpush.xpose.msra.mxu0 %v5448
    %v5450 = vand.u32 %v5271, 4294901760
    %5451 = vmatpush.xpose.msra.mxu0 %v5450
    %v5452 = vand.u32 %v5268, 4294901760
    %5453 = vmatpush.xpose.msra.mxu0 %v5452
    %v5454 = vand.u32 %v5265, 4294901760
    %5455 = vmatpush.xpose.msra.mxu0 %v5454
    %v5456 = vand.u32 %v5262, 4294901760
    %5457 = vmatmul.f32.gmra.mxu0 %v5456
    %v5458 = vpop.f32.mrf.mxu0
    %v5459 = vadd.f32 %v5434, %v5458
    %5460 = vdwg.mxu0
    %v5462 = vsel %vm244, %v3455, 0
    %v5465 = vsel %vm244, %v140, 0
    %v5468 = vsel %vm244, %v141, 0
    %v5471 = vsel %vm244, %v142, 0
    %v5474 = vsel %vm244, %v143, 0
    %5476 = vmatpush.xpose.msra.mxu0 0.0
    %5477 = vmatpush.xpose.msra.mxu0 0.0
    %5478 = vmatpush.xpose.msra.mxu0 0.0
    %5479 = vmatpush.xpose.msra.mxu0 0.0
    %5480 = vmatpush.xpose.msra.mxu0 0.0
    %5481 = vmatpush.xpose.msra.mxu0 0.0
    %5482 = vmatpush.xpose.msra.mxu0 0.0
    %5483 = vmatpush.xpose.msra.mxu0 0.0
    %5484 = vmatpush.xpose.msra.mxu0 0.0
    %5485 = vmatpush.xpose.msra.mxu0 0.0
    %5486 = vmatpush.xpose.msra.mxu0 0.0
    %5487 = vmatpush.xpose.msra.mxu0 0.0
    %v5488 = vand.u32 %v5474, 4294901760
    %5489 = vmatpush.xpose.msra.mxu0 %v5488
    %v5490 = vand.u32 %v5471, 4294901760
    %5491 = vmatpush.xpose.msra.mxu0 %v5490
    %v5492 = vand.u32 %v5468, 4294901760
    %5493 = vmatpush.xpose.msra.mxu0 %v5492
    %v5494 = vand.u32 %v5465, 4294901760
    %5495 = vmatpush.xpose.msra.mxu0 %v5494
    %v5496 = vand.u32 %v5462, 4294901760
    %v5497 = vsub.f32 %v5462, %v5496
    %v5498 = vand.u32 %v5497, 4294901760
    %v5499 = vsub.f32 %v5497, %v5498
    %v5500 = vand.u32 %v5499, 4294901760
    %5501 = vmatmul.f32.gmra.mxu0 %v5500
    %v5502 = vpop.f32.mrf.mxu0
    %v5503 = vadd.f32 0.0, %v5502
    %5504 = vdwg.mxu0
    %5505 = vmatpush.xpose.msra.mxu0 0.0
    %5506 = vmatpush.xpose.msra.mxu0 0.0
    %5507 = vmatpush.xpose.msra.mxu0 0.0
    %5508 = vmatpush.xpose.msra.mxu0 0.0
    %5509 = vmatpush.xpose.msra.mxu0 0.0
    %5510 = vmatpush.xpose.msra.mxu0 0.0
    %5511 = vmatpush.xpose.msra.mxu0 0.0
    %5512 = vmatpush.xpose.msra.mxu0 0.0
    %5513 = vmatpush.xpose.msra.mxu0 0.0
    %5514 = vmatpush.xpose.msra.mxu0 0.0
    %5515 = vmatpush.xpose.msra.mxu0 0.0
    %5516 = vmatpush.xpose.msra.mxu0 0.0
    %v5517 = vand.u32 %v5474, 4294901760
    %v5518 = vsub.f32 %v5474, %v5517
    %v5519 = vand.u32 %v5518, 4294901760
    %v5520 = vsub.f32 %v5518, %v5519
    %v5521 = vand.u32 %v5520, 4294901760
    %5522 = vmatpush.xpose.msra.mxu0 %v5521
    %v5523 = vand.u32 %v5471, 4294901760
    %v5524 = vsub.f32 %v5471, %v5523
    %v5525 = vand.u32 %v5524, 4294901760
    %v5526 = vsub.f32 %v5524, %v5525
    %v5527 = vand.u32 %v5526, 4294901760
    %5528 = vmatpush.xpose.msra.mxu0 %v5527
    %v5529 = vand.u32 %v5468, 4294901760
    %v5530 = vsub.f32 %v5468, %v5529
    %v5531 = vand.u32 %v5530, 4294901760
    %v5532 = vsub.f32 %v5530, %v5531
    %v5533 = vand.u32 %v5532, 4294901760
    %5534 = vmatpush.xpose.msra.mxu0 %v5533
    %v5535 = vand.u32 %v5465, 4294901760
    %v5536 = vsub.f32 %v5465, %v5535
    %v5537 = vand.u32 %v5536, 4294901760
    %v5538 = vsub.f32 %v5536, %v5537
    %v5539 = vand.u32 %v5538, 4294901760
    %5540 = vmatpush.xpose.msra.mxu0 %v5539
    %v5541 = vand.u32 %v5462, 4294901760
    %5542 = vmatmul.f32.gmra.mxu0 %v5541
    %v5543 = vpop.f32.mrf.mxu0
    %v5544 = vadd.f32 %v5503, %v5543
    %5545 = vdwg.mxu0
    %5546 = vmatpush.xpose.msra.mxu0 0.0
    %5547 = vmatpush.xpose.msra.mxu0 0.0
    %5548 = vmatpush.xpose.msra.mxu0 0.0
    %5549 = vmatpush.xpose.msra.mxu0 0.0
    %5550 = vmatpush.xpose.msra.mxu0 0.0
    %5551 = vmatpush.xpose.msra.mxu0 0.0
    %5552 = vmatpush.xpose.msra.mxu0 0.0
    %5553 = vmatpush.xpose.msra.mxu0 0.0
    %5554 = vmatpush.xpose.msra.mxu0 0.0
    %5555 = vmatpush.xpose.msra.mxu0 0.0
    %5556 = vmatpush.xpose.msra.mxu0 0.0
    %5557 = vmatpush.xpose.msra.mxu0 0.0
    %v5558 = vand.u32 %v5474, 4294901760
    %v5559 = vsub.f32 %v5474, %v5558
    %5560 = vmatpush.xpose.msra.mxu0 %v5559
    %v5561 = vand.u32 %v5471, 4294901760
    %v5562 = vsub.f32 %v5471, %v5561
    %5563 = vmatpush.xpose.msra.mxu0 %v5562
    %v5564 = vand.u32 %v5468, 4294901760
    %v5565 = vsub.f32 %v5468, %v5564
    %5566 = vmatpush.xpose.msra.mxu0 %v5565
    %v5567 = vand.u32 %v5465, 4294901760
    %v5568 = vsub.f32 %v5465, %v5567
    %5569 = vmatpush.xpose.msra.mxu0 %v5568
    %v5570 = vand.u32 %v5462, 4294901760
    %v5571 = vsub.f32 %v5462, %v5570
    %5572 = vmatmul.f32.gmra.mxu0 %v5571
    %v5573 = vpop.f32.mrf.mxu0
    %v5574 = vadd.f32 %v5544, %v5573
    %5575 = vdwg.mxu0
    %5576 = vmatpush.xpose.msra.mxu0 0.0
    %5577 = vmatpush.xpose.msra.mxu0 0.0
    %5578 = vmatpush.xpose.msra.mxu0 0.0
    %5579 = vmatpush.xpose.msra.mxu0 0.0
    %5580 = vmatpush.xpose.msra.mxu0 0.0
    %5581 = vmatpush.xpose.msra.mxu0 0.0
    %5582 = vmatpush.xpose.msra.mxu0 0.0
    %5583 = vmatpush.xpose.msra.mxu0 0.0
    %5584 = vmatpush.xpose.msra.mxu0 0.0
    %5585 = vmatpush.xpose.msra.mxu0 0.0
    %5586 = vmatpush.xpose.msra.mxu0 0.0
    %5587 = vmatpush.xpose.msra.mxu0 0.0
    %v5588 = vand.u32 %v5474, 4294901760
    %5589 = vmatpush.xpose.msra.mxu0 %v5588
    %v5590 = vand.u32 %v5471, 4294901760
    %5591 = vmatpush.xpose.msra.mxu0 %v5590
    %v5592 = vand.u32 %v5468, 4294901760
    %5593 = vmatpush.xpose.msra.mxu0 %v5592
    %v5594 = vand.u32 %v5465, 4294901760
    %5595 = vmatpush.xpose.msra.mxu0 %v5594
    %v5596 = vand.u32 %v5462, 4294901760
    %v5597 = vsub.f32 %v5462, %v5596
    %v5598 = vand.u32 %v5597, 4294901760
    %5599 = vmatmul.f32.gmra.mxu0 %v5598
    %v5600 = vpop.f32.mrf.mxu0
    %v5601 = vadd.f32 %v5574, %v5600
    %5602 = vdwg.mxu0
    %5603 = vmatpush.xpose.msra.mxu0 0.0
    %5604 = vmatpush.xpose.msra.mxu0 0.0
    %5605 = vmatpush.xpose.msra.mxu0 0.0
    %5606 = vmatpush.xpose.msra.mxu0 0.0
    %5607 = vmatpush.xpose.msra.mxu0 0.0
    %5608 = vmatpush.xpose.msra.mxu0 0.0
    %5609 = vmatpush.xpose.msra.mxu0 0.0
    %5610 = vmatpush.xpose.msra.mxu0 0.0
    %5611 = vmatpush.xpose.msra.mxu0 0.0
    %5612 = vmatpush.xpose.msra.mxu0 0.0
    %5613 = vmatpush.xpose.msra.mxu0 0.0
    %5614 = vmatpush.xpose.msra.mxu0 0.0
    %v5615 = vand.u32 %v5474, 4294901760
    %v5616 = vsub.f32 %v5474, %v5615
    %v5617 = vand.u32 %v5616, 4294901760
    %5618 = vmatpush.xpose.msra.mxu0 %v5617
    %v5619 = vand.u32 %v5471, 4294901760
    %v5620 = vsub.f32 %v5471, %v5619
    %v5621 = vand.u32 %v5620, 4294901760
    %5622 = vmatpush.xpose.msra.mxu0 %v5621
    %v5623 = vand.u32 %v5468, 4294901760
    %v5624 = vsub.f32 %v5468, %v5623
    %v5625 = vand.u32 %v5624, 4294901760
    %5626 = vmatpush.xpose.msra.mxu0 %v5625
    %v5627 = vand.u32 %v5465, 4294901760
    %v5628 = vsub.f32 %v5465, %v5627
    %v5629 = vand.u32 %v5628, 4294901760
    %5630 = vmatpush.xpose.msra.mxu0 %v5629
    %v5631 = vand.u32 %v5462, 4294901760
    %5632 = vmatmul.f32.gmra.mxu0 %v5631
    %v5633 = vpop.f32.mrf.mxu0
    %v5634 = vadd.f32 %v5601, %v5633
    %5635 = vdwg.mxu0
    %5636 = vmatpush.xpose.msra.mxu0 0.0
    %5637 = vmatpush.xpose.msra.mxu0 0.0
    %5638 = vmatpush.xpose.msra.mxu0 0.0
    %5639 = vmatpush.xpose.msra.mxu0 0.0
    %5640 = vmatpush.xpose.msra.mxu0 0.0
    %5641 = vmatpush.xpose.msra.mxu0 0.0
    %5642 = vmatpush.xpose.msra.mxu0 0.0
    %5643 = vmatpush.xpose.msra.mxu0 0.0
    %5644 = vmatpush.xpose.msra.mxu0 0.0
    %5645 = vmatpush.xpose.msra.mxu0 0.0
    %5646 = vmatpush.xpose.msra.mxu0 0.0
    %5647 = vmatpush.xpose.msra.mxu0 0.0
    %v5648 = vand.u32 %v5474, 4294901760
    %5649 = vmatpush.xpose.msra.mxu0 %v5648
    %v5650 = vand.u32 %v5471, 4294901760
    %5651 = vmatpush.xpose.msra.mxu0 %v5650
    %v5652 = vand.u32 %v5468, 4294901760
    %5653 = vmatpush.xpose.msra.mxu0 %v5652
    %v5654 = vand.u32 %v5465, 4294901760
    %5655 = vmatpush.xpose.msra.mxu0 %v5654
    %v5656 = vand.u32 %v5462, 4294901760
    %5657 = vmatmul.f32.gmra.mxu0 %v5656
    %v5658 = vpop.f32.mrf.mxu0
    %v5659 = vadd.f32 %v5634, %v5658
    %5660 = vdwg.mxu0
    %v5662 = vsel %vm244, %v3456, 0
    %v5665 = vsel %vm244, %v144, 0
    %v5668 = vsel %vm244, %v145, 0
    %v5671 = vsel %vm244, %v146, 0
    %v5674 = vsel %vm244, %v147, 0
    %5676 = vmatpush.xpose.msra.mxu0 0.0
    %5677 = vmatpush.xpose.msra.mxu0 0.0
    %5678 = vmatpush.xpose.msra.mxu0 0.0
    %5679 = vmatpush.xpose.msra.mxu0 0.0
    %5680 = vmatpush.xpose.msra.mxu0 0.0
    %5681 = vmatpush.xpose.msra.mxu0 0.0
    %5682 = vmatpush.xpose.msra.mxu0 0.0
    %5683 = vmatpush.xpose.msra.mxu0 0.0
    %5684 = vmatpush.xpose.msra.mxu0 0.0
    %5685 = vmatpush.xpose.msra.mxu0 0.0
    %5686 = vmatpush.xpose.msra.mxu0 0.0
    %5687 = vmatpush.xpose.msra.mxu0 0.0
    %v5688 = vand.u32 %v5674, 4294901760
    %5689 = vmatpush.xpose.msra.mxu0 %v5688
    %v5690 = vand.u32 %v5671, 4294901760
    %5691 = vmatpush.xpose.msra.mxu0 %v5690
    %v5692 = vand.u32 %v5668, 4294901760
    %5693 = vmatpush.xpose.msra.mxu0 %v5692
    %v5694 = vand.u32 %v5665, 4294901760
    %5695 = vmatpush.xpose.msra.mxu0 %v5694
    %v5696 = vand.u32 %v5662, 4294901760
    %v5697 = vsub.f32 %v5662, %v5696
    %v5698 = vand.u32 %v5697, 4294901760
    %v5699 = vsub.f32 %v5697, %v5698
    %v5700 = vand.u32 %v5699, 4294901760
    %5701 = vmatmul.f32.gmra.mxu0 %v5700
    %v5702 = vpop.f32.mrf.mxu0
    %v5703 = vadd.f32 0.0, %v5702
    %5704 = vdwg.mxu0
    %5705 = vmatpush.xpose.msra.mxu0 0.0
    %5706 = vmatpush.xpose.msra.mxu0 0.0
    %5707 = vmatpush.xpose.msra.mxu0 0.0
    %5708 = vmatpush.xpose.msra.mxu0 0.0
    %5709 = vmatpush.xpose.msra.mxu0 0.0
    %5710 = vmatpush.xpose.msra.mxu0 0.0
    %5711 = vmatpush.xpose.msra.mxu0 0.0
    %5712 = vmatpush.xpose.msra.mxu0 0.0
    %5713 = vmatpush.xpose.msra.mxu0 0.0
    %5714 = vmatpush.xpose.msra.mxu0 0.0
    %5715 = vmatpush.xpose.msra.mxu0 0.0
    %5716 = vmatpush.xpose.msra.mxu0 0.0
    %v5717 = vand.u32 %v5674, 4294901760
    %v5718 = vsub.f32 %v5674, %v5717
    %v5719 = vand.u32 %v5718, 4294901760
    %v5720 = vsub.f32 %v5718, %v5719
    %v5721 = vand.u32 %v5720, 4294901760
    %5722 = vmatpush.xpose.msra.mxu0 %v5721
    %v5723 = vand.u32 %v5671, 4294901760
    %v5724 = vsub.f32 %v5671, %v5723
    %v5725 = vand.u32 %v5724, 4294901760
    %v5726 = vsub.f32 %v5724, %v5725
    %v5727 = vand.u32 %v5726, 4294901760
    %5728 = vmatpush.xpose.msra.mxu0 %v5727
    %v5729 = vand.u32 %v5668, 4294901760
    %v5730 = vsub.f32 %v5668, %v5729
    %v5731 = vand.u32 %v5730, 4294901760
    %v5732 = vsub.f32 %v5730, %v5731
    %v5733 = vand.u32 %v5732, 4294901760
    %5734 = vmatpush.xpose.msra.mxu0 %v5733
    %v5735 = vand.u32 %v5665, 4294901760
    %v5736 = vsub.f32 %v5665, %v5735
    %v5737 = vand.u32 %v5736, 4294901760
    %v5738 = vsub.f32 %v5736, %v5737
    %v5739 = vand.u32 %v5738, 4294901760
    %5740 = vmatpush.xpose.msra.mxu0 %v5739
    %v5741 = vand.u32 %v5662, 4294901760
    %5742 = vmatmul.f32.gmra.mxu0 %v5741
    %v5743 = vpop.f32.mrf.mxu0
    %v5744 = vadd.f32 %v5703, %v5743
    %5745 = vdwg.mxu0
    %5746 = vmatpush.xpose.msra.mxu0 0.0
    %5747 = vmatpush.xpose.msra.mxu0 0.0
    %5748 = vmatpush.xpose.msra.mxu0 0.0
    %5749 = vmatpush.xpose.msra.mxu0 0.0
    %5750 = vmatpush.xpose.msra.mxu0 0.0
    %5751 = vmatpush.xpose.msra.mxu0 0.0
    %5752 = vmatpush.xpose.msra.mxu0 0.0
    %5753 = vmatpush.xpose.msra.mxu0 0.0
    %5754 = vmatpush.xpose.msra.mxu0 0.0
    %5755 = vmatpush.xpose.msra.mxu0 0.0
    %5756 = vmatpush.xpose.msra.mxu0 0.0
    %5757 = vmatpush.xpose.msra.mxu0 0.0
    %v5758 = vand.u32 %v5674, 4294901760
    %v5759 = vsub.f32 %v5674, %v5758
    %5760 = vmatpush.xpose.msra.mxu0 %v5759
    %v5761 = vand.u32 %v5671, 4294901760
    %v5762 = vsub.f32 %v5671, %v5761
    %5763 = vmatpush.xpose.msra.mxu0 %v5762
    %v5764 = vand.u32 %v5668, 4294901760
    %v5765 = vsub.f32 %v5668, %v5764
    %5766 = vmatpush.xpose.msra.mxu0 %v5765
    %v5767 = vand.u32 %v5665, 4294901760
    %v5768 = vsub.f32 %v5665, %v5767
    %5769 = vmatpush.xpose.msra.mxu0 %v5768
    %v5770 = vand.u32 %v5662, 4294901760
    %v5771 = vsub.f32 %v5662, %v5770
    %5772 = vmatmul.f32.gmra.mxu0 %v5771
    %v5773 = vpop.f32.mrf.mxu0
    %v5774 = vadd.f32 %v5744, %v5773
    %5775 = vdwg.mxu0
    %5776 = vmatpush.xpose.msra.mxu0 0.0
    %5777 = vmatpush.xpose.msra.mxu0 0.0
    %5778 = vmatpush.xpose.msra.mxu0 0.0
    %5779 = vmatpush.xpose.msra.mxu0 0.0
    %5780 = vmatpush.xpose.msra.mxu0 0.0
    %5781 = vmatpush.xpose.msra.mxu0 0.0
    %5782 = vmatpush.xpose.msra.mxu0 0.0
    %5783 = vmatpush.xpose.msra.mxu0 0.0
    %5784 = vmatpush.xpose.msra.mxu0 0.0
    %5785 = vmatpush.xpose.msra.mxu0 0.0
    %5786 = vmatpush.xpose.msra.mxu0 0.0
    %5787 = vmatpush.xpose.msra.mxu0 0.0
    %v5788 = vand.u32 %v5674, 4294901760
    %5789 = vmatpush.xpose.msra.mxu0 %v5788
    %v5790 = vand.u32 %v5671, 4294901760
    %5791 = vmatpush.xpose.msra.mxu0 %v5790
    %v5792 = vand.u32 %v5668, 4294901760
    %5793 = vmatpush.xpose.msra.mxu0 %v5792
    %v5794 = vand.u32 %v5665, 4294901760
    %5795 = vmatpush.xpose.msra.mxu0 %v5794
    %v5796 = vand.u32 %v5662, 4294901760
    %v5797 = vsub.f32 %v5662, %v5796
    %v5798 = vand.u32 %v5797, 4294901760
    %5799 = vmatmul.f32.gmra.mxu0 %v5798
    %v5800 = vpop.f32.mrf.mxu0
    %v5801 = vadd.f32 %v5774, %v5800
    %5802 = vdwg.mxu0
    %5803 = vmatpush.xpose.msra.mxu0 0.0
    %5804 = vmatpush.xpose.msra.mxu0 0.0
    %5805 = vmatpush.xpose.msra.mxu0 0.0
    %5806 = vmatpush.xpose.msra.mxu0 0.0
    %5807 = vmatpush.xpose.msra.mxu0 0.0
    %5808 = vmatpush.xpose.msra.mxu0 0.0
    %5809 = vmatpush.xpose.msra.mxu0 0.0
    %5810 = vmatpush.xpose.msra.mxu0 0.0
    %5811 = vmatpush.xpose.msra.mxu0 0.0
    %5812 = vmatpush.xpose.msra.mxu0 0.0
    %5813 = vmatpush.xpose.msra.mxu0 0.0
    %5814 = vmatpush.xpose.msra.mxu0 0.0
    %v5815 = vand.u32 %v5674, 4294901760
    %v5816 = vsub.f32 %v5674, %v5815
    %v5817 = vand.u32 %v5816, 4294901760
    %5818 = vmatpush.xpose.msra.mxu0 %v5817
    %v5819 = vand.u32 %v5671, 4294901760
    %v5820 = vsub.f32 %v5671, %v5819
    %v5821 = vand.u32 %v5820, 4294901760
    %5822 = vmatpush.xpose.msra.mxu0 %v5821
    %v5823 = vand.u32 %v5668, 4294901760
    %v5824 = vsub.f32 %v5668, %v5823
    %v5825 = vand.u32 %v5824, 4294901760
    %5826 = vmatpush.xpose.msra.mxu0 %v5825
    %v5827 = vand.u32 %v5665, 4294901760
    %v5828 = vsub.f32 %v5665, %v5827
    %v5829 = vand.u32 %v5828, 4294901760
    %5830 = vmatpush.xpose.msra.mxu0 %v5829
    %v5831 = vand.u32 %v5662, 4294901760
    %5832 = vmatmul.f32.gmra.mxu0 %v5831
    %v5833 = vpop.f32.mrf.mxu0
    %v5834 = vadd.f32 %v5801, %v5833
    %5835 = vdwg.mxu0
    %5836 = vmatpush.xpose.msra.mxu0 0.0
    %5837 = vmatpush.xpose.msra.mxu0 0.0
    %5838 = vmatpush.xpose.msra.mxu0 0.0
    %5839 = vmatpush.xpose.msra.mxu0 0.0
    %5840 = vmatpush.xpose.msra.mxu0 0.0
    %5841 = vmatpush.xpose.msra.mxu0 0.0
    %5842 = vmatpush.xpose.msra.mxu0 0.0
    %5843 = vmatpush.xpose.msra.mxu0 0.0
    %5844 = vmatpush.xpose.msra.mxu0 0.0
    %5845 = vmatpush.xpose.msra.mxu0 0.0
    %5846 = vmatpush.xpose.msra.mxu0 0.0
    %5847 = vmatpush.xpose.msra.mxu0 0.0
    %v5848 = vand.u32 %v5674, 4294901760
    %5849 = vmatpush.xpose.msra.mxu0 %v5848
    %v5850 = vand.u32 %v5671, 4294901760
    %5851 = vmatpush.xpose.msra.mxu0 %v5850
    %v5852 = vand.u32 %v5668, 4294901760
    %5853 = vmatpush.xpose.msra.mxu0 %v5852
    %v5854 = vand.u32 %v5665, 4294901760
    %5855 = vmatpush.xpose.msra.mxu0 %v5854
    %v5856 = vand.u32 %v5662, 4294901760
    %5857 = vmatmul.f32.gmra.mxu0 %v5856
    %v5858 = vpop.f32.mrf.mxu0
    %v5859 = vadd.f32 %v5834, %v5858
    %5860 = vdwg.mxu0
    %v5862 = vsel %vm244, %v3457, 0
    %v5865 = vsel %vm244, %v148, 0
    %v5868 = vsel %vm244, %v149, 0
    %v5871 = vsel %vm244, %v150, 0
    %v5874 = vsel %vm244, %v151, 0
    %5876 = vmatpush.xpose.msra.mxu0 0.0
    %5877 = vmatpush.xpose.msra.mxu0 0.0
    %5878 = vmatpush.xpose.msra.mxu0 0.0
    %5879 = vmatpush.xpose.msra.mxu0 0.0
    %5880 = vmatpush.xpose.msra.mxu0 0.0
    %5881 = vmatpush.xpose.msra.mxu0 0.0
    %5882 = vmatpush.xpose.msra.mxu0 0.0
    %5883 = vmatpush.xpose.msra.mxu0 0.0
    %5884 = vmatpush.xpose.msra.mxu0 0.0
    %5885 = vmatpush.xpose.msra.mxu0 0.0
    %5886 = vmatpush.xpose.msra.mxu0 0.0
    %5887 = vmatpush.xpose.msra.mxu0 0.0
    %v5888 = vand.u32 %v5874, 4294901760
    %5889 = vmatpush.xpose.msra.mxu0 %v5888
    %v5890 = vand.u32 %v5871, 4294901760
    %5891 = vmatpush.xpose.msra.mxu0 %v5890
    %v5892 = vand.u32 %v5868, 4294901760
    %5893 = vmatpush.xpose.msra.mxu0 %v5892
    %v5894 = vand.u32 %v5865, 4294901760
    %5895 = vmatpush.xpose.msra.mxu0 %v5894
    %v5896 = vand.u32 %v5862, 4294901760
    %v5897 = vsub.f32 %v5862, %v5896
    %v5898 = vand.u32 %v5897, 4294901760
    %v5899 = vsub.f32 %v5897, %v5898
    %v5900 = vand.u32 %v5899, 4294901760
    %5901 = vmatmul.f32.gmra.mxu0 %v5900
    %v5902 = vpop.f32.mrf.mxu0
    %v5903 = vadd.f32 0.0, %v5902
    %5904 = vdwg.mxu0
    %5905 = vmatpush.xpose.msra.mxu0 0.0
    %5906 = vmatpush.xpose.msra.mxu0 0.0
    %5907 = vmatpush.xpose.msra.mxu0 0.0
    %5908 = vmatpush.xpose.msra.mxu0 0.0
    %5909 = vmatpush.xpose.msra.mxu0 0.0
    %5910 = vmatpush.xpose.msra.mxu0 0.0
    %5911 = vmatpush.xpose.msra.mxu0 0.0
    %5912 = vmatpush.xpose.msra.mxu0 0.0
    %5913 = vmatpush.xpose.msra.mxu0 0.0
    %5914 = vmatpush.xpose.msra.mxu0 0.0
    %5915 = vmatpush.xpose.msra.mxu0 0.0
    %5916 = vmatpush.xpose.msra.mxu0 0.0
    %v5917 = vand.u32 %v5874, 4294901760
    %v5918 = vsub.f32 %v5874, %v5917
    %v5919 = vand.u32 %v5918, 4294901760
    %v5920 = vsub.f32 %v5918, %v5919
    %v5921 = vand.u32 %v5920, 4294901760
    %5922 = vmatpush.xpose.msra.mxu0 %v5921
    %v5923 = vand.u32 %v5871, 4294901760
    %v5924 = vsub.f32 %v5871, %v5923
    %v5925 = vand.u32 %v5924, 4294901760
    %v5926 = vsub.f32 %v5924, %v5925
    %v5927 = vand.u32 %v5926, 4294901760
    %5928 = vmatpush.xpose.msra.mxu0 %v5927
    %v5929 = vand.u32 %v5868, 4294901760
    %v5930 = vsub.f32 %v5868, %v5929
    %v5931 = vand.u32 %v5930, 4294901760
    %v5932 = vsub.f32 %v5930, %v5931
    %v5933 = vand.u32 %v5932, 4294901760
    %5934 = vmatpush.xpose.msra.mxu0 %v5933
    %v5935 = vand.u32 %v5865, 4294901760
    %v5936 = vsub.f32 %v5865, %v5935
    %v5937 = vand.u32 %v5936, 4294901760
    %v5938 = vsub.f32 %v5936, %v5937
    %v5939 = vand.u32 %v5938, 4294901760
    %5940 = vmatpush.xpose.msra.mxu0 %v5939
    %v5941 = vand.u32 %v5862, 4294901760
    %5942 = vmatmul.f32.gmra.mxu0 %v5941
    %v5943 = vpop.f32.mrf.mxu0
    %v5944 = vadd.f32 %v5903, %v5943
    %5945 = vdwg.mxu0
    %5946 = vmatpush.xpose.msra.mxu0 0.0
    %5947 = vmatpush.xpose.msra.mxu0 0.0
    %5948 = vmatpush.xpose.msra.mxu0 0.0
    %5949 = vmatpush.xpose.msra.mxu0 0.0
    %5950 = vmatpush.xpose.msra.mxu0 0.0
    %5951 = vmatpush.xpose.msra.mxu0 0.0
    %5952 = vmatpush.xpose.msra.mxu0 0.0
    %5953 = vmatpush.xpose.msra.mxu0 0.0
    %5954 = vmatpush.xpose.msra.mxu0 0.0
    %5955 = vmatpush.xpose.msra.mxu0 0.0
    %5956 = vmatpush.xpose.msra.mxu0 0.0
    %5957 = vmatpush.xpose.msra.mxu0 0.0
    %v5958 = vand.u32 %v5874, 4294901760
    %v5959 = vsub.f32 %v5874, %v5958
    %5960 = vmatpush.xpose.msra.mxu0 %v5959
    %v5961 = vand.u32 %v5871, 4294901760
    %v5962 = vsub.f32 %v5871, %v5961
    %5963 = vmatpush.xpose.msra.mxu0 %v5962
    %v5964 = vand.u32 %v5868, 4294901760
    %v5965 = vsub.f32 %v5868, %v5964
    %5966 = vmatpush.xpose.msra.mxu0 %v5965
    %v5967 = vand.u32 %v5865, 4294901760
    %v5968 = vsub.f32 %v5865, %v5967
    %5969 = vmatpush.xpose.msra.mxu0 %v5968
    %v5970 = vand.u32 %v5862, 4294901760
    %v5971 = vsub.f32 %v5862, %v5970
    %5972 = vmatmul.f32.gmra.mxu0 %v5971
    %v5973 = vpop.f32.mrf.mxu0
    %v5974 = vadd.f32 %v5944, %v5973
    %5975 = vdwg.mxu0
    %5976 = vmatpush.xpose.msra.mxu0 0.0
    %5977 = vmatpush.xpose.msra.mxu0 0.0
    %5978 = vmatpush.xpose.msra.mxu0 0.0
    %5979 = vmatpush.xpose.msra.mxu0 0.0
    %5980 = vmatpush.xpose.msra.mxu0 0.0
    %5981 = vmatpush.xpose.msra.mxu0 0.0
    %5982 = vmatpush.xpose.msra.mxu0 0.0
    %5983 = vmatpush.xpose.msra.mxu0 0.0
    %5984 = vmatpush.xpose.msra.mxu0 0.0
    %5985 = vmatpush.xpose.msra.mxu0 0.0
    %5986 = vmatpush.xpose.msra.mxu0 0.0
    %5987 = vmatpush.xpose.msra.mxu0 0.0
    %v5988 = vand.u32 %v5874, 4294901760
    %5989 = vmatpush.xpose.msra.mxu0 %v5988
    %v5990 = vand.u32 %v5871, 4294901760
    %5991 = vmatpush.xpose.msra.mxu0 %v5990
    %v5992 = vand.u32 %v5868, 4294901760
    %5993 = vmatpush.xpose.msra.mxu0 %v5992
    %v5994 = vand.u32 %v5865, 4294901760
    %5995 = vmatpush.xpose.msra.mxu0 %v5994
    %v5996 = vand.u32 %v5862, 4294901760
    %v5997 = vsub.f32 %v5862, %v5996
    %v5998 = vand.u32 %v5997, 4294901760
    %5999 = vmatmul.f32.gmra.mxu0 %v5998
    %v6000 = vpop.f32.mrf.mxu0
    %v6001 = vadd.f32 %v5974, %v6000
    %6002 = vdwg.mxu0
    %6003 = vmatpush.xpose.msra.mxu0 0.0
    %6004 = vmatpush.xpose.msra.mxu0 0.0
    %6005 = vmatpush.xpose.msra.mxu0 0.0
    %6006 = vmatpush.xpose.msra.mxu0 0.0
    %6007 = vmatpush.xpose.msra.mxu0 0.0
    %6008 = vmatpush.xpose.msra.mxu0 0.0
    %6009 = vmatpush.xpose.msra.mxu0 0.0
    %6010 = vmatpush.xpose.msra.mxu0 0.0
    %6011 = vmatpush.xpose.msra.mxu0 0.0
    %6012 = vmatpush.xpose.msra.mxu0 0.0
    %6013 = vmatpush.xpose.msra.mxu0 0.0
    %6014 = vmatpush.xpose.msra.mxu0 0.0
    %v6015 = vand.u32 %v5874, 4294901760
    %v6016 = vsub.f32 %v5874, %v6015
    %v6017 = vand.u32 %v6016, 4294901760
    %6018 = vmatpush.xpose.msra.mxu0 %v6017
    %v6019 = vand.u32 %v5871, 4294901760
    %v6020 = vsub.f32 %v5871, %v6019
    %v6021 = vand.u32 %v6020, 4294901760
    %6022 = vmatpush.xpose.msra.mxu0 %v6021
    %v6023 = vand.u32 %v5868, 4294901760
    %v6024 = vsub.f32 %v5868, %v6023
    %v6025 = vand.u32 %v6024, 4294901760
    %6026 = vmatpush.xpose.msra.mxu0 %v6025
    %v6027 = vand.u32 %v5865, 4294901760
    %v6028 = vsub.f32 %v5865, %v6027
    %v6029 = vand.u32 %v6028, 4294901760
    %6030 = vmatpush.xpose.msra.mxu0 %v6029
    %v6031 = vand.u32 %v5862, 4294901760
    %6032 = vmatmul.f32.gmra.mxu0 %v6031
    %v6033 = vpop.f32.mrf.mxu0
    %v6034 = vadd.f32 %v6001, %v6033
    %6035 = vdwg.mxu0
    %6036 = vmatpush.xpose.msra.mxu0 0.0
    %6037 = vmatpush.xpose.msra.mxu0 0.0
    %6038 = vmatpush.xpose.msra.mxu0 0.0
    %6039 = vmatpush.xpose.msra.mxu0 0.0
    %6040 = vmatpush.xpose.msra.mxu0 0.0
    %6041 = vmatpush.xpose.msra.mxu0 0.0
    %6042 = vmatpush.xpose.msra.mxu0 0.0
    %6043 = vmatpush.xpose.msra.mxu0 0.0
    %6044 = vmatpush.xpose.msra.mxu0 0.0
    %6045 = vmatpush.xpose.msra.mxu0 0.0
    %6046 = vmatpush.xpose.msra.mxu0 0.0
    %6047 = vmatpush.xpose.msra.mxu0 0.0
    %v6048 = vand.u32 %v5874, 4294901760
    %6049 = vmatpush.xpose.msra.mxu0 %v6048
    %v6050 = vand.u32 %v5871, 4294901760
    %6051 = vmatpush.xpose.msra.mxu0 %v6050
    %v6052 = vand.u32 %v5868, 4294901760
    %6053 = vmatpush.xpose.msra.mxu0 %v6052
    %v6054 = vand.u32 %v5865, 4294901760
    %6055 = vmatpush.xpose.msra.mxu0 %v6054
    %v6056 = vand.u32 %v5862, 4294901760
    %6057 = vmatmul.f32.gmra.mxu0 %v6056
    %v6058 = vpop.f32.mrf.mxu0
    %v6059 = vadd.f32 %v6034, %v6058
    %6060 = vdwg.mxu0
    %v6062 = vsel %vm244, %v3458, 0
    %v6065 = vsel %vm244, %v152, 0
    %v6068 = vsel %vm244, %v153, 0
    %v6071 = vsel %vm244, %v154, 0
    %v6074 = vsel %vm244, %v155, 0
    %6076 = vmatpush.xpose.msra.mxu0 0.0
    %6077 = vmatpush.xpose.msra.mxu0 0.0
    %6078 = vmatpush.xpose.msra.mxu0 0.0
    %6079 = vmatpush.xpose.msra.mxu0 0.0
    %6080 = vmatpush.xpose.msra.mxu0 0.0
    %6081 = vmatpush.xpose.msra.mxu0 0.0
    %6082 = vmatpush.xpose.msra.mxu0 0.0
    %6083 = vmatpush.xpose.msra.mxu0 0.0
    %6084 = vmatpush.xpose.msra.mxu0 0.0
    %6085 = vmatpush.xpose.msra.mxu0 0.0
    %6086 = vmatpush.xpose.msra.mxu0 0.0
    %6087 = vmatpush.xpose.msra.mxu0 0.0
    %v6088 = vand.u32 %v6074, 4294901760
    %6089 = vmatpush.xpose.msra.mxu0 %v6088
    %v6090 = vand.u32 %v6071, 4294901760
    %6091 = vmatpush.xpose.msra.mxu0 %v6090
    %v6092 = vand.u32 %v6068, 4294901760
    %6093 = vmatpush.xpose.msra.mxu0 %v6092
    %v6094 = vand.u32 %v6065, 4294901760
    %6095 = vmatpush.xpose.msra.mxu0 %v6094
    %v6096 = vand.u32 %v6062, 4294901760
    %v6097 = vsub.f32 %v6062, %v6096
    %v6098 = vand.u32 %v6097, 4294901760
    %v6099 = vsub.f32 %v6097, %v6098
    %v6100 = vand.u32 %v6099, 4294901760
    %6101 = vmatmul.f32.gmra.mxu0 %v6100
    %v6102 = vpop.f32.mrf.mxu0
    %v6103 = vadd.f32 0.0, %v6102
    %6104 = vdwg.mxu0
    %6105 = vmatpush.xpose.msra.mxu0 0.0
    %6106 = vmatpush.xpose.msra.mxu0 0.0
    %6107 = vmatpush.xpose.msra.mxu0 0.0
    %6108 = vmatpush.xpose.msra.mxu0 0.0
    %6109 = vmatpush.xpose.msra.mxu0 0.0
    %6110 = vmatpush.xpose.msra.mxu0 0.0
    %6111 = vmatpush.xpose.msra.mxu0 0.0
    %6112 = vmatpush.xpose.msra.mxu0 0.0
    %6113 = vmatpush.xpose.msra.mxu0 0.0
    %6114 = vmatpush.xpose.msra.mxu0 0.0
    %6115 = vmatpush.xpose.msra.mxu0 0.0
    %6116 = vmatpush.xpose.msra.mxu0 0.0
    %v6117 = vand.u32 %v6074, 4294901760
    %v6118 = vsub.f32 %v6074, %v6117
    %v6119 = vand.u32 %v6118, 4294901760
    %v6120 = vsub.f32 %v6118, %v6119
    %v6121 = vand.u32 %v6120, 4294901760
    %6122 = vmatpush.xpose.msra.mxu0 %v6121
    %v6123 = vand.u32 %v6071, 4294901760
    %v6124 = vsub.f32 %v6071, %v6123
    %v6125 = vand.u32 %v6124, 4294901760
    %v6126 = vsub.f32 %v6124, %v6125
    %v6127 = vand.u32 %v6126, 4294901760
    %6128 = vmatpush.xpose.msra.mxu0 %v6127
    %v6129 = vand.u32 %v6068, 4294901760
    %v6130 = vsub.f32 %v6068, %v6129
    %v6131 = vand.u32 %v6130, 4294901760
    %v6132 = vsub.f32 %v6130, %v6131
    %v6133 = vand.u32 %v6132, 4294901760
    %6134 = vmatpush.xpose.msra.mxu0 %v6133
    %v6135 = vand.u32 %v6065, 4294901760
    %v6136 = vsub.f32 %v6065, %v6135
    %v6137 = vand.u32 %v6136, 4294901760
    %v6138 = vsub.f32 %v6136, %v6137
    %v6139 = vand.u32 %v6138, 4294901760
    %6140 = vmatpush.xpose.msra.mxu0 %v6139
    %v6141 = vand.u32 %v6062, 4294901760
    %6142 = vmatmul.f32.gmra.mxu0 %v6141
    %v6143 = vpop.f32.mrf.mxu0
    %v6144 = vadd.f32 %v6103, %v6143
    %6145 = vdwg.mxu0
    %6146 = vmatpush.xpose.msra.mxu0 0.0
    %6147 = vmatpush.xpose.msra.mxu0 0.0
    %6148 = vmatpush.xpose.msra.mxu0 0.0
    %6149 = vmatpush.xpose.msra.mxu0 0.0
    %6150 = vmatpush.xpose.msra.mxu0 0.0
    %6151 = vmatpush.xpose.msra.mxu0 0.0
    %6152 = vmatpush.xpose.msra.mxu0 0.0
    %6153 = vmatpush.xpose.msra.mxu0 0.0
    %6154 = vmatpush.xpose.msra.mxu0 0.0
    %6155 = vmatpush.xpose.msra.mxu0 0.0
    %6156 = vmatpush.xpose.msra.mxu0 0.0
    %6157 = vmatpush.xpose.msra.mxu0 0.0
    %v6158 = vand.u32 %v6074, 4294901760
    %v6159 = vsub.f32 %v6074, %v6158
    %6160 = vmatpush.xpose.msra.mxu0 %v6159
    %v6161 = vand.u32 %v6071, 4294901760
    %v6162 = vsub.f32 %v6071, %v6161
    %6163 = vmatpush.xpose.msra.mxu0 %v6162
    %v6164 = vand.u32 %v6068, 4294901760
    %v6165 = vsub.f32 %v6068, %v6164
    %6166 = vmatpush.xpose.msra.mxu0 %v6165
    %v6167 = vand.u32 %v6065, 4294901760
    %v6168 = vsub.f32 %v6065, %v6167
    %6169 = vmatpush.xpose.msra.mxu0 %v6168
    %v6170 = vand.u32 %v6062, 4294901760
    %v6171 = vsub.f32 %v6062, %v6170
    %6172 = vmatmul.f32.gmra.mxu0 %v6171
    %v6173 = vpop.f32.mrf.mxu0
    %v6174 = vadd.f32 %v6144, %v6173
    %6175 = vdwg.mxu0
    %6176 = vmatpush.xpose.msra.mxu0 0.0
    %6177 = vmatpush.xpose.msra.mxu0 0.0
    %6178 = vmatpush.xpose.msra.mxu0 0.0
    %6179 = vmatpush.xpose.msra.mxu0 0.0
    %6180 = vmatpush.xpose.msra.mxu0 0.0
    %6181 = vmatpush.xpose.msra.mxu0 0.0
    %6182 = vmatpush.xpose.msra.mxu0 0.0
    %6183 = vmatpush.xpose.msra.mxu0 0.0
    %6184 = vmatpush.xpose.msra.mxu0 0.0
    %6185 = vmatpush.xpose.msra.mxu0 0.0
    %6186 = vmatpush.xpose.msra.mxu0 0.0
    %6187 = vmatpush.xpose.msra.mxu0 0.0
    %v6188 = vand.u32 %v6074, 4294901760
    %6189 = vmatpush.xpose.msra.mxu0 %v6188
    %v6190 = vand.u32 %v6071, 4294901760
    %6191 = vmatpush.xpose.msra.mxu0 %v6190
    %v6192 = vand.u32 %v6068, 4294901760
    %6193 = vmatpush.xpose.msra.mxu0 %v6192
    %v6194 = vand.u32 %v6065, 4294901760
    %6195 = vmatpush.xpose.msra.mxu0 %v6194
    %v6196 = vand.u32 %v6062, 4294901760
    %v6197 = vsub.f32 %v6062, %v6196
    %v6198 = vand.u32 %v6197, 4294901760
    %6199 = vmatmul.f32.gmra.mxu0 %v6198
    %v6200 = vpop.f32.mrf.mxu0
    %v6201 = vadd.f32 %v6174, %v6200
    %6202 = vdwg.mxu0
    %6203 = vmatpush.xpose.msra.mxu0 0.0
    %6204 = vmatpush.xpose.msra.mxu0 0.0
    %6205 = vmatpush.xpose.msra.mxu0 0.0
    %6206 = vmatpush.xpose.msra.mxu0 0.0
    %6207 = vmatpush.xpose.msra.mxu0 0.0
    %6208 = vmatpush.xpose.msra.mxu0 0.0
    %6209 = vmatpush.xpose.msra.mxu0 0.0
    %6210 = vmatpush.xpose.msra.mxu0 0.0
    %6211 = vmatpush.xpose.msra.mxu0 0.0
    %6212 = vmatpush.xpose.msra.mxu0 0.0
    %6213 = vmatpush.xpose.msra.mxu0 0.0
    %6214 = vmatpush.xpose.msra.mxu0 0.0
    %v6215 = vand.u32 %v6074, 4294901760
    %v6216 = vsub.f32 %v6074, %v6215
    %v6217 = vand.u32 %v6216, 4294901760
    %6218 = vmatpush.xpose.msra.mxu0 %v6217
    %v6219 = vand.u32 %v6071, 4294901760
    %v6220 = vsub.f32 %v6071, %v6219
    %v6221 = vand.u32 %v6220, 4294901760
    %6222 = vmatpush.xpose.msra.mxu0 %v6221
    %v6223 = vand.u32 %v6068, 4294901760
    %v6224 = vsub.f32 %v6068, %v6223
    %v6225 = vand.u32 %v6224, 4294901760
    %6226 = vmatpush.xpose.msra.mxu0 %v6225
    %v6227 = vand.u32 %v6065, 4294901760
    %v6228 = vsub.f32 %v6065, %v6227
    %v6229 = vand.u32 %v6228, 4294901760
    %6230 = vmatpush.xpose.msra.mxu0 %v6229
    %v6231 = vand.u32 %v6062, 4294901760
    %6232 = vmatmul.f32.gmra.mxu0 %v6231
    %v6233 = vpop.f32.mrf.mxu0
    %v6234 = vadd.f32 %v6201, %v6233
    %6235 = vdwg.mxu0
    %6236 = vmatpush.xpose.msra.mxu0 0.0
    %6237 = vmatpush.xpose.msra.mxu0 0.0
    %6238 = vmatpush.xpose.msra.mxu0 0.0
    %6239 = vmatpush.xpose.msra.mxu0 0.0
    %6240 = vmatpush.xpose.msra.mxu0 0.0
    %6241 = vmatpush.xpose.msra.mxu0 0.0
    %6242 = vmatpush.xpose.msra.mxu0 0.0
    %6243 = vmatpush.xpose.msra.mxu0 0.0
    %6244 = vmatpush.xpose.msra.mxu0 0.0
    %6245 = vmatpush.xpose.msra.mxu0 0.0
    %6246 = vmatpush.xpose.msra.mxu0 0.0
    %6247 = vmatpush.xpose.msra.mxu0 0.0
    %v6248 = vand.u32 %v6074, 4294901760
    %6249 = vmatpush.xpose.msra.mxu0 %v6248
    %v6250 = vand.u32 %v6071, 4294901760
    %6251 = vmatpush.xpose.msra.mxu0 %v6250
    %v6252 = vand.u32 %v6068, 4294901760
    %6253 = vmatpush.xpose.msra.mxu0 %v6252
    %v6254 = vand.u32 %v6065, 4294901760
    %6255 = vmatpush.xpose.msra.mxu0 %v6254
    %v6256 = vand.u32 %v6062, 4294901760
    %6257 = vmatmul.f32.gmra.mxu0 %v6256
    %v6258 = vpop.f32.mrf.mxu0
    %v6259 = vadd.f32 %v6234, %v6258
    %6260 = vdwg.mxu0
    %v6262 = vsel %vm244, %v3459, 0
    %v6265 = vsel %vm244, %v156, 0
    %v6268 = vsel %vm244, %v157, 0
    %v6271 = vsel %vm244, %v158, 0
    %v6274 = vsel %vm244, %v159, 0
    %6276 = vmatpush.xpose.msra.mxu0 0.0
    %6277 = vmatpush.xpose.msra.mxu0 0.0
    %6278 = vmatpush.xpose.msra.mxu0 0.0
    %6279 = vmatpush.xpose.msra.mxu0 0.0
    %6280 = vmatpush.xpose.msra.mxu0 0.0
    %6281 = vmatpush.xpose.msra.mxu0 0.0
    %6282 = vmatpush.xpose.msra.mxu0 0.0
    %6283 = vmatpush.xpose.msra.mxu0 0.0
    %6284 = vmatpush.xpose.msra.mxu0 0.0
    %6285 = vmatpush.xpose.msra.mxu0 0.0
    %6286 = vmatpush.xpose.msra.mxu0 0.0
    %6287 = vmatpush.xpose.msra.mxu0 0.0
    %v6288 = vand.u32 %v6274, 4294901760
    %6289 = vmatpush.xpose.msra.mxu0 %v6288
    %v6290 = vand.u32 %v6271, 4294901760
    %6291 = vmatpush.xpose.msra.mxu0 %v6290
    %v6292 = vand.u32 %v6268, 4294901760
    %6293 = vmatpush.xpose.msra.mxu0 %v6292
    %v6294 = vand.u32 %v6265, 4294901760
    %6295 = vmatpush.xpose.msra.mxu0 %v6294
    %v6296 = vand.u32 %v6262, 4294901760
    %v6297 = vsub.f32 %v6262, %v6296
    %v6298 = vand.u32 %v6297, 4294901760
    %v6299 = vsub.f32 %v6297, %v6298
    %v6300 = vand.u32 %v6299, 4294901760
    %6301 = vmatmul.f32.gmra.mxu0 %v6300
    %v6302 = vpop.f32.mrf.mxu0
    %v6303 = vadd.f32 0.0, %v6302
    %6304 = vdwg.mxu0
    %6305 = vmatpush.xpose.msra.mxu0 0.0
    %6306 = vmatpush.xpose.msra.mxu0 0.0
    %6307 = vmatpush.xpose.msra.mxu0 0.0
    %6308 = vmatpush.xpose.msra.mxu0 0.0
    %6309 = vmatpush.xpose.msra.mxu0 0.0
    %6310 = vmatpush.xpose.msra.mxu0 0.0
    %6311 = vmatpush.xpose.msra.mxu0 0.0
    %6312 = vmatpush.xpose.msra.mxu0 0.0
    %6313 = vmatpush.xpose.msra.mxu0 0.0
    %6314 = vmatpush.xpose.msra.mxu0 0.0
    %6315 = vmatpush.xpose.msra.mxu0 0.0
    %6316 = vmatpush.xpose.msra.mxu0 0.0
    %v6317 = vand.u32 %v6274, 4294901760
    %v6318 = vsub.f32 %v6274, %v6317
    %v6319 = vand.u32 %v6318, 4294901760
    %v6320 = vsub.f32 %v6318, %v6319
    %v6321 = vand.u32 %v6320, 4294901760
    %6322 = vmatpush.xpose.msra.mxu0 %v6321
    %v6323 = vand.u32 %v6271, 4294901760
    %v6324 = vsub.f32 %v6271, %v6323
    %v6325 = vand.u32 %v6324, 4294901760
    %v6326 = vsub.f32 %v6324, %v6325
    %v6327 = vand.u32 %v6326, 4294901760
    %6328 = vmatpush.xpose.msra.mxu0 %v6327
    %v6329 = vand.u32 %v6268, 4294901760
    %v6330 = vsub.f32 %v6268, %v6329
    %v6331 = vand.u32 %v6330, 4294901760
    %v6332 = vsub.f32 %v6330, %v6331
    %v6333 = vand.u32 %v6332, 4294901760
    %6334 = vmatpush.xpose.msra.mxu0 %v6333
    %v6335 = vand.u32 %v6265, 4294901760
    %v6336 = vsub.f32 %v6265, %v6335
    %v6337 = vand.u32 %v6336, 4294901760
    %v6338 = vsub.f32 %v6336, %v6337
    %v6339 = vand.u32 %v6338, 4294901760
    %6340 = vmatpush.xpose.msra.mxu0 %v6339
    %v6341 = vand.u32 %v6262, 4294901760
    %6342 = vmatmul.f32.gmra.mxu0 %v6341
    %v6343 = vpop.f32.mrf.mxu0
    %v6344 = vadd.f32 %v6303, %v6343
    %6345 = vdwg.mxu0
    %6346 = vmatpush.xpose.msra.mxu0 0.0
    %6347 = vmatpush.xpose.msra.mxu0 0.0
    %6348 = vmatpush.xpose.msra.mxu0 0.0
    %6349 = vmatpush.xpose.msra.mxu0 0.0
    %6350 = vmatpush.xpose.msra.mxu0 0.0
    %6351 = vmatpush.xpose.msra.mxu0 0.0
    %6352 = vmatpush.xpose.msra.mxu0 0.0
    %6353 = vmatpush.xpose.msra.mxu0 0.0
    %6354 = vmatpush.xpose.msra.mxu0 0.0
    %6355 = vmatpush.xpose.msra.mxu0 0.0
    %6356 = vmatpush.xpose.msra.mxu0 0.0
    %6357 = vmatpush.xpose.msra.mxu0 0.0
    %v6358 = vand.u32 %v6274, 4294901760
    %v6359 = vsub.f32 %v6274, %v6358
    %6360 = vmatpush.xpose.msra.mxu0 %v6359
    %v6361 = vand.u32 %v6271, 4294901760
    %v6362 = vsub.f32 %v6271, %v6361
    %6363 = vmatpush.xpose.msra.mxu0 %v6362
    %v6364 = vand.u32 %v6268, 4294901760
    %v6365 = vsub.f32 %v6268, %v6364
    %6366 = vmatpush.xpose.msra.mxu0 %v6365
    %v6367 = vand.u32 %v6265, 4294901760
    %v6368 = vsub.f32 %v6265, %v6367
    %6369 = vmatpush.xpose.msra.mxu0 %v6368
    %v6370 = vand.u32 %v6262, 4294901760
    %v6371 = vsub.f32 %v6262, %v6370
    %6372 = vmatmul.f32.gmra.mxu0 %v6371
    %v6373 = vpop.f32.mrf.mxu0
    %v6374 = vadd.f32 %v6344, %v6373
    %6375 = vdwg.mxu0
    %6376 = vmatpush.xpose.msra.mxu0 0.0
    %6377 = vmatpush.xpose.msra.mxu0 0.0
    %6378 = vmatpush.xpose.msra.mxu0 0.0
    %6379 = vmatpush.xpose.msra.mxu0 0.0
    %6380 = vmatpush.xpose.msra.mxu0 0.0
    %6381 = vmatpush.xpose.msra.mxu0 0.0
    %6382 = vmatpush.xpose.msra.mxu0 0.0
    %6383 = vmatpush.xpose.msra.mxu0 0.0
    %6384 = vmatpush.xpose.msra.mxu0 0.0
    %6385 = vmatpush.xpose.msra.mxu0 0.0
    %6386 = vmatpush.xpose.msra.mxu0 0.0
    %6387 = vmatpush.xpose.msra.mxu0 0.0
    %v6388 = vand.u32 %v6274, 4294901760
    %6389 = vmatpush.xpose.msra.mxu0 %v6388
    %v6390 = vand.u32 %v6271, 4294901760
    %6391 = vmatpush.xpose.msra.mxu0 %v6390
    %v6392 = vand.u32 %v6268, 4294901760
    %6393 = vmatpush.xpose.msra.mxu0 %v6392
    %v6394 = vand.u32 %v6265, 4294901760
    %6395 = vmatpush.xpose.msra.mxu0 %v6394
    %v6396 = vand.u32 %v6262, 4294901760
    %v6397 = vsub.f32 %v6262, %v6396
    %v6398 = vand.u32 %v6397, 4294901760
    %6399 = vmatmul.f32.gmra.mxu0 %v6398
    %v6400 = vpop.f32.mrf.mxu0
    %v6401 = vadd.f32 %v6374, %v6400
    %6402 = vdwg.mxu0
    %6403 = vmatpush.xpose.msra.mxu0 0.0
    %6404 = vmatpush.xpose.msra.mxu0 0.0
    %6405 = vmatpush.xpose.msra.mxu0 0.0
    %6406 = vmatpush.xpose.msra.mxu0 0.0
    %6407 = vmatpush.xpose.msra.mxu0 0.0
    %6408 = vmatpush.xpose.msra.mxu0 0.0
    %6409 = vmatpush.xpose.msra.mxu0 0.0
    %6410 = vmatpush.xpose.msra.mxu0 0.0
    %6411 = vmatpush.xpose.msra.mxu0 0.0
    %6412 = vmatpush.xpose.msra.mxu0 0.0
    %6413 = vmatpush.xpose.msra.mxu0 0.0
    %6414 = vmatpush.xpose.msra.mxu0 0.0
    %v6415 = vand.u32 %v6274, 4294901760
    %v6416 = vsub.f32 %v6274, %v6415
    %v6417 = vand.u32 %v6416, 4294901760
    %6418 = vmatpush.xpose.msra.mxu0 %v6417
    %v6419 = vand.u32 %v6271, 4294901760
    %v6420 = vsub.f32 %v6271, %v6419
    %v6421 = vand.u32 %v6420, 4294901760
    %6422 = vmatpush.xpose.msra.mxu0 %v6421
    %v6423 = vand.u32 %v6268, 4294901760
    %v6424 = vsub.f32 %v6268, %v6423
    %v6425 = vand.u32 %v6424, 4294901760
    %6426 = vmatpush.xpose.msra.mxu0 %v6425
    %v6427 = vand.u32 %v6265, 4294901760
    %v6428 = vsub.f32 %v6265, %v6427
    %v6429 = vand.u32 %v6428, 4294901760
    %6430 = vmatpush.xpose.msra.mxu0 %v6429
    %v6431 = vand.u32 %v6262, 4294901760
    %6432 = vmatmul.f32.gmra.mxu0 %v6431
    %v6433 = vpop.f32.mrf.mxu0
    %v6434 = vadd.f32 %v6401, %v6433
    %6435 = vdwg.mxu0
    %6436 = vmatpush.xpose.msra.mxu0 0.0
    %6437 = vmatpush.xpose.msra.mxu0 0.0
    %6438 = vmatpush.xpose.msra.mxu0 0.0
    %6439 = vmatpush.xpose.msra.mxu0 0.0
    %6440 = vmatpush.xpose.msra.mxu0 0.0
    %6441 = vmatpush.xpose.msra.mxu0 0.0
    %6442 = vmatpush.xpose.msra.mxu0 0.0
    %6443 = vmatpush.xpose.msra.mxu0 0.0
    %6444 = vmatpush.xpose.msra.mxu0 0.0
    %6445 = vmatpush.xpose.msra.mxu0 0.0
    %6446 = vmatpush.xpose.msra.mxu0 0.0
    %6447 = vmatpush.xpose.msra.mxu0 0.0
    %v6448 = vand.u32 %v6274, 4294901760
    %6449 = vmatpush.xpose.msra.mxu0 %v6448
    %v6450 = vand.u32 %v6271, 4294901760
    %6451 = vmatpush.xpose.msra.mxu0 %v6450
    %v6452 = vand.u32 %v6268, 4294901760
    %6453 = vmatpush.xpose.msra.mxu0 %v6452
    %v6454 = vand.u32 %v6265, 4294901760
    %6455 = vmatpush.xpose.msra.mxu0 %v6454
    %v6456 = vand.u32 %v6262, 4294901760
    %6457 = vmatmul.f32.gmra.mxu0 %v6456
    %v6458 = vpop.f32.mrf.mxu0
    %v6459 = vadd.f32 %v6434, %v6458
    %6460 = vdwg.mxu0
    %v6462 = vsel %vm244, %v3460, 0
    %v6465 = vsel %vm244, %v160, 0
    %v6468 = vsel %vm244, %v161, 0
    %v6471 = vsel %vm244, %v162, 0
    %v6474 = vsel %vm244, %v163, 0
    %6476 = vmatpush.xpose.msra.mxu0 0.0
    %6477 = vmatpush.xpose.msra.mxu0 0.0
    %6478 = vmatpush.xpose.msra.mxu0 0.0
    %6479 = vmatpush.xpose.msra.mxu0 0.0
    %6480 = vmatpush.xpose.msra.mxu0 0.0
    %6481 = vmatpush.xpose.msra.mxu0 0.0
    %6482 = vmatpush.xpose.msra.mxu0 0.0
    %6483 = vmatpush.xpose.msra.mxu0 0.0
    %6484 = vmatpush.xpose.msra.mxu0 0.0
    %6485 = vmatpush.xpose.msra.mxu0 0.0
    %6486 = vmatpush.xpose.msra.mxu0 0.0
    %6487 = vmatpush.xpose.msra.mxu0 0.0
    %v6488 = vand.u32 %v6474, 4294901760
    %6489 = vmatpush.xpose.msra.mxu0 %v6488
    %v6490 = vand.u32 %v6471, 4294901760
    %6491 = vmatpush.xpose.msra.mxu0 %v6490
    %v6492 = vand.u32 %v6468, 4294901760
    %6493 = vmatpush.xpose.msra.mxu0 %v6492
    %v6494 = vand.u32 %v6465, 4294901760
    %6495 = vmatpush.xpose.msra.mxu0 %v6494
    %v6496 = vand.u32 %v6462, 4294901760
    %v6497 = vsub.f32 %v6462, %v6496
    %v6498 = vand.u32 %v6497, 4294901760
    %v6499 = vsub.f32 %v6497, %v6498
    %v6500 = vand.u32 %v6499, 4294901760
    %6501 = vmatmul.f32.gmra.mxu0 %v6500
    %v6502 = vpop.f32.mrf.mxu0
    %v6503 = vadd.f32 0.0, %v6502
    %6504 = vdwg.mxu0
    %6505 = vmatpush.xpose.msra.mxu0 0.0
    %6506 = vmatpush.xpose.msra.mxu0 0.0
    %6507 = vmatpush.xpose.msra.mxu0 0.0
    %6508 = vmatpush.xpose.msra.mxu0 0.0
    %6509 = vmatpush.xpose.msra.mxu0 0.0
    %6510 = vmatpush.xpose.msra.mxu0 0.0
    %6511 = vmatpush.xpose.msra.mxu0 0.0
    %6512 = vmatpush.xpose.msra.mxu0 0.0
    %6513 = vmatpush.xpose.msra.mxu0 0.0
    %6514 = vmatpush.xpose.msra.mxu0 0.0
    %6515 = vmatpush.xpose.msra.mxu0 0.0
    %6516 = vmatpush.xpose.msra.mxu0 0.0
    %v6517 = vand.u32 %v6474, 4294901760
    %v6518 = vsub.f32 %v6474, %v6517
    %v6519 = vand.u32 %v6518, 4294901760
    %v6520 = vsub.f32 %v6518, %v6519
    %v6521 = vand.u32 %v6520, 4294901760
    %6522 = vmatpush.xpose.msra.mxu0 %v6521
    %v6523 = vand.u32 %v6471, 4294901760
    %v6524 = vsub.f32 %v6471, %v6523
    %v6525 = vand.u32 %v6524, 4294901760
    %v6526 = vsub.f32 %v6524, %v6525
    %v6527 = vand.u32 %v6526, 4294901760
    %6528 = vmatpush.xpose.msra.mxu0 %v6527
    %v6529 = vand.u32 %v6468, 4294901760
    %v6530 = vsub.f32 %v6468, %v6529
    %v6531 = vand.u32 %v6530, 4294901760
    %v6532 = vsub.f32 %v6530, %v6531
    %v6533 = vand.u32 %v6532, 4294901760
    %6534 = vmatpush.xpose.msra.mxu0 %v6533
    %v6535 = vand.u32 %v6465, 4294901760
    %v6536 = vsub.f32 %v6465, %v6535
    %v6537 = vand.u32 %v6536, 4294901760
    %v6538 = vsub.f32 %v6536, %v6537
    %v6539 = vand.u32 %v6538, 4294901760
    %6540 = vmatpush.xpose.msra.mxu0 %v6539
    %v6541 = vand.u32 %v6462, 4294901760
    %6542 = vmatmul.f32.gmra.mxu0 %v6541
    %v6543 = vpop.f32.mrf.mxu0
    %v6544 = vadd.f32 %v6503, %v6543
    %6545 = vdwg.mxu0
    %6546 = vmatpush.xpose.msra.mxu0 0.0
    %6547 = vmatpush.xpose.msra.mxu0 0.0
    %6548 = vmatpush.xpose.msra.mxu0 0.0
    %6549 = vmatpush.xpose.msra.mxu0 0.0
    %6550 = vmatpush.xpose.msra.mxu0 0.0
    %6551 = vmatpush.xpose.msra.mxu0 0.0
    %6552 = vmatpush.xpose.msra.mxu0 0.0
    %6553 = vmatpush.xpose.msra.mxu0 0.0
    %6554 = vmatpush.xpose.msra.mxu0 0.0
    %6555 = vmatpush.xpose.msra.mxu0 0.0
    %6556 = vmatpush.xpose.msra.mxu0 0.0
    %6557 = vmatpush.xpose.msra.mxu0 0.0
    %v6558 = vand.u32 %v6474, 4294901760
    %v6559 = vsub.f32 %v6474, %v6558
    %6560 = vmatpush.xpose.msra.mxu0 %v6559
    %v6561 = vand.u32 %v6471, 4294901760
    %v6562 = vsub.f32 %v6471, %v6561
    %6563 = vmatpush.xpose.msra.mxu0 %v6562
    %v6564 = vand.u32 %v6468, 4294901760
    %v6565 = vsub.f32 %v6468, %v6564
    %6566 = vmatpush.xpose.msra.mxu0 %v6565
    %v6567 = vand.u32 %v6465, 4294901760
    %v6568 = vsub.f32 %v6465, %v6567
    %6569 = vmatpush.xpose.msra.mxu0 %v6568
    %v6570 = vand.u32 %v6462, 4294901760
    %v6571 = vsub.f32 %v6462, %v6570
    %6572 = vmatmul.f32.gmra.mxu0 %v6571
    %v6573 = vpop.f32.mrf.mxu0
    %v6574 = vadd.f32 %v6544, %v6573
    %6575 = vdwg.mxu0
    %6576 = vmatpush.xpose.msra.mxu0 0.0
    %6577 = vmatpush.xpose.msra.mxu0 0.0
    %6578 = vmatpush.xpose.msra.mxu0 0.0
    %6579 = vmatpush.xpose.msra.mxu0 0.0
    %6580 = vmatpush.xpose.msra.mxu0 0.0
    %6581 = vmatpush.xpose.msra.mxu0 0.0
    %6582 = vmatpush.xpose.msra.mxu0 0.0
    %6583 = vmatpush.xpose.msra.mxu0 0.0
    %6584 = vmatpush.xpose.msra.mxu0 0.0
    %6585 = vmatpush.xpose.msra.mxu0 0.0
    %6586 = vmatpush.xpose.msra.mxu0 0.0
    %6587 = vmatpush.xpose.msra.mxu0 0.0
    %v6588 = vand.u32 %v6474, 4294901760
    %6589 = vmatpush.xpose.msra.mxu0 %v6588
    %v6590 = vand.u32 %v6471, 4294901760
    %6591 = vmatpush.xpose.msra.mxu0 %v6590
    %v6592 = vand.u32 %v6468, 4294901760
    %6593 = vmatpush.xpose.msra.mxu0 %v6592
    %v6594 = vand.u32 %v6465, 4294901760
    %6595 = vmatpush.xpose.msra.mxu0 %v6594
    %v6596 = vand.u32 %v6462, 4294901760
    %v6597 = vsub.f32 %v6462, %v6596
    %v6598 = vand.u32 %v6597, 4294901760
    %6599 = vmatmul.f32.gmra.mxu0 %v6598
    %v6600 = vpop.f32.mrf.mxu0
    %v6601 = vadd.f32 %v6574, %v6600
    %6602 = vdwg.mxu0
    %6603 = vmatpush.xpose.msra.mxu0 0.0
    %6604 = vmatpush.xpose.msra.mxu0 0.0
    %6605 = vmatpush.xpose.msra.mxu0 0.0
    %6606 = vmatpush.xpose.msra.mxu0 0.0
    %6607 = vmatpush.xpose.msra.mxu0 0.0
    %6608 = vmatpush.xpose.msra.mxu0 0.0
    %6609 = vmatpush.xpose.msra.mxu0 0.0
    %6610 = vmatpush.xpose.msra.mxu0 0.0
    %6611 = vmatpush.xpose.msra.mxu0 0.0
    %6612 = vmatpush.xpose.msra.mxu0 0.0
    %6613 = vmatpush.xpose.msra.mxu0 0.0
    %6614 = vmatpush.xpose.msra.mxu0 0.0
    %v6615 = vand.u32 %v6474, 4294901760
    %v6616 = vsub.f32 %v6474, %v6615
    %v6617 = vand.u32 %v6616, 4294901760
    %6618 = vmatpush.xpose.msra.mxu0 %v6617
    %v6619 = vand.u32 %v6471, 4294901760
    %v6620 = vsub.f32 %v6471, %v6619
    %v6621 = vand.u32 %v6620, 4294901760
    %6622 = vmatpush.xpose.msra.mxu0 %v6621
    %v6623 = vand.u32 %v6468, 4294901760
    %v6624 = vsub.f32 %v6468, %v6623
    %v6625 = vand.u32 %v6624, 4294901760
    %6626 = vmatpush.xpose.msra.mxu0 %v6625
    %v6627 = vand.u32 %v6465, 4294901760
    %v6628 = vsub.f32 %v6465, %v6627
    %v6629 = vand.u32 %v6628, 4294901760
    %6630 = vmatpush.xpose.msra.mxu0 %v6629
    %v6631 = vand.u32 %v6462, 4294901760
    %6632 = vmatmul.f32.gmra.mxu0 %v6631
    %v6633 = vpop.f32.mrf.mxu0
    %v6634 = vadd.f32 %v6601, %v6633
    %6635 = vdwg.mxu0
    %6636 = vmatpush.xpose.msra.mxu0 0.0
    %6637 = vmatpush.xpose.msra.mxu0 0.0
    %6638 = vmatpush.xpose.msra.mxu0 0.0
    %6639 = vmatpush.xpose.msra.mxu0 0.0
    %6640 = vmatpush.xpose.msra.mxu0 0.0
    %6641 = vmatpush.xpose.msra.mxu0 0.0
    %6642 = vmatpush.xpose.msra.mxu0 0.0
    %6643 = vmatpush.xpose.msra.mxu0 0.0
    %6644 = vmatpush.xpose.msra.mxu0 0.0
    %6645 = vmatpush.xpose.msra.mxu0 0.0
    %6646 = vmatpush.xpose.msra.mxu0 0.0
    %6647 = vmatpush.xpose.msra.mxu0 0.0
    %v6648 = vand.u32 %v6474, 4294901760
    %6649 = vmatpush.xpose.msra.mxu0 %v6648
    %v6650 = vand.u32 %v6471, 4294901760
    %6651 = vmatpush.xpose.msra.mxu0 %v6650
    %v6652 = vand.u32 %v6468, 4294901760
    %6653 = vmatpush.xpose.msra.mxu0 %v6652
    %v6654 = vand.u32 %v6465, 4294901760
    %6655 = vmatpush.xpose.msra.mxu0 %v6654
    %v6656 = vand.u32 %v6462, 4294901760
    %6657 = vmatmul.f32.gmra.mxu0 %v6656
    %v6658 = vpop.f32.mrf.mxu0
    %v6659 = vadd.f32 %v6634, %v6658
    %6660 = vdwg.mxu0
    %v6661 = vadd.f32 %v84, %v3659
    %v6662 = vadd.f32 %v85, %v3859
    %v6663 = vadd.f32 %v86, %v4059
    %v6664 = vadd.f32 %v87, %v4259
    %v6665 = vadd.f32 %v88, %v4459
    %v6666 = vadd.f32 %v89, %v4659
    %v6667 = vadd.f32 %v90, %v4859
    %v6668 = vadd.f32 %v91, %v5059
    %v6669 = vadd.f32 %v92, %v5259
    %v6670 = vadd.f32 %v93, %v5459
    %v6671 = vadd.f32 %v94, %v5659
    %v6672 = vadd.f32 %v95, %v5859
    %v6673 = vadd.f32 %v96, %v6059
    %v6674 = vadd.f32 %v97, %v6259
    %v6675 = vadd.f32 %v98, %v6459
    %v6676 = vadd.f32 %v99, %v6659
    %vm6677 = vcmask 253952
    %6678 = vst.msk [vmem:[#allocation10] sm:$0x1] %vm6677, %v6661
    %6679 = vst.msk [vmem:[#allocation10 + $0x1] sm:$0x1] %vm6677, %v6662
    %6680 = vst.msk [vmem:[#allocation10 + $0x2] sm:$0x1] %vm6677, %v6663
    %6681 = vst.msk [vmem:[#allocation10 + $0x3] sm:$0x1] %vm6677, %v6664
    %6682 = vst.msk [vmem:[#allocation10 + $0x4] sm:$0x1] %vm6677, %v6665
    %6683 = vst.msk [vmem:[#allocation10 + $0x5] sm:$0x1] %vm6677, %v6666
    %6684 = vst.msk [vmem:[#allocation10 + $0x6] sm:$0x1] %vm6677, %v6667
    %6685 = vst.msk [vmem:[#allocation10 + $0x7] sm:$0x1] %vm6677, %v6668
    %6686 = vst.msk [vmem:[#allocation10 + $0x8] sm:$0x1] %vm6677, %v6669
    %6687 = vst.msk [vmem:[#allocation10 + $0x9] sm:$0x1] %vm6677, %v6670
    %6688 = vst.msk [vmem:[#allocation10 + $0xa] sm:$0x1] %vm6677, %v6671
    %6689 = vst.msk [vmem:[#allocation10 + $0xb] sm:$0x1] %vm6677, %v6672
    %6690 = vst.msk [vmem:[#allocation10 + $0xc] sm:$0x1] %vm6677, %v6673
    %6691 = vst.msk [vmem:[#allocation10 + $0xd] sm:$0x1] %vm6677, %v6674
    %6692 = vst.msk [vmem:[#allocation10 + $0xe] sm:$0x1] %vm6677, %v6675
    %6693 = vst.msk [vmem:[#allocation10 + $0xf] sm:$0x1] %vm6677, %v6676
    %v6694 = vlaneseq
    %v6695 = vshrl.u32 %v6694, 7
    %v6696 = vadd.s32 %v6695, 8
    %v6697 = vadd.s32 %v6695, 16
    %v6698 = vadd.s32 %v6695, 24
    %v6699 = vlaneseq
    %v6700 = vand.u32 %v6699, 127
    %vm6701 = vcmp.eq.s32.totalorder %v6695, %v6700
    %vm6702 = vcmp.eq.s32.totalorder %v6696, %v6700
    %vm6703 = vcmp.eq.s32.totalorder %v6697, %v6700
    %vm6704 = vcmp.eq.s32.totalorder %v6698, %v6700
    %v6705 = vsel %vm6701, 1, 0
    %v6706 = vsel %vm6702, 1, 0
    %v6707 = vsel %vm6703, 1, 0
    %v6708 = vsel %vm6704, 1, 0
    %v6709 = vcvt.s32.f32 %v6705
    %v6710 = vcvt.s32.f32 %v6706
    %v6711 = vcvt.s32.f32 %v6707
    %v6712 = vcvt.s32.f32 %v6708
    %v6713 = vmul.f32 %v100, %v164
    %v6714 = vmul.f32 %v101, %v165
    %v6715 = vmul.f32 %v102, %v166
    %v6716 = vmul.f32 %v103, %v167
    %v6717 = vmul.f32 %v104, %v168
    %v6718 = vmul.f32 %v105, %v169
    %v6719 = vmul.f32 %v106, %v170
    %v6720 = vmul.f32 %v107, %v171
    %v6721 = vmul.f32 %v108, %v172
    %v6722 = vmul.f32 %v109, %v173
    %v6723 = vmul.f32 %v110, %v174
    %v6724 = vmul.f32 %v111, %v175
    %v6725 = vmul.f32 %v112, %v176
    %v6726 = vmul.f32 %v113, %v177
    %v6727 = vmul.f32 %v114, %v178
    %v6728 = vmul.f32 %v115, %v179
    %v6729 = vmul.f32 %v116, %v180
    %v6730 = vmul.f32 %v117, %v181
    %v6731 = vmul.f32 %v118, %v182
    %v6732 = vmul.f32 %v119, %v183
    %v6733 = vmul.f32 %v120, %v184
    %v6734 = vmul.f32 %v121, %v185
    %v6735 = vmul.f32 %v122, %v186
    %v6736 = vmul.f32 %v123, %v187
    %v6737 = vmul.f32 %v124, %v188
    %v6738 = vmul.f32 %v125, %v189
    %v6739 = vmul.f32 %v126, %v190
    %v6740 = vmul.f32 %v127, %v191
    %v6741 = vmul.f32 %v128, %v192
    %v6742 = vmul.f32 %v129, %v193
    %v6743 = vmul.f32 %v130, %v194
    %v6744 = vmul.f32 %v131, %v195
    %v6745 = vmul.f32 %v132, %v196
    %v6746 = vmul.f32 %v133, %v197
    %v6747 = vmul.f32 %v134, %v198
    %v6748 = vmul.f32 %v135, %v199
    %v6749 = vmul.f32 %v136, %v200
    %v6750 = vmul.f32 %v137, %v201
    %v6751 = vmul.f32 %v138, %v202
    %v6752 = vmul.f32 %v139, %v203
    %v6753 = vmul.f32 %v140, %v204
    %v6754 = vmul.f32 %v141, %v205
    %v6755 = vmul.f32 %v142, %v206
    %v6756 = vmul.f32 %v143, %v207
    %v6757 = vmul.f32 %v144, %v208
    %v6758 = vmul.f32 %v145, %v209
    %v6759 = vmul.f32 %v146, %v210
    %v6760 = vmul.f32 %v147, %v211
    %v6761 = vmul.f32 %v148, %v212
    %v6762 = vmul.f32 %v149, %v213
    %v6763 = vmul.f32 %v150, %v214
    %v6764 = vmul.f32 %v151, %v215
    %v6765 = vmul.f32 %v152, %v216
    %v6766 = vmul.f32 %v153, %v217
    %v6767 = vmul.f32 %v154, %v218
    %v6768 = vmul.f32 %v155, %v219
    %v6769 = vmul.f32 %v156, %v220
    %v6770 = vmul.f32 %v157, %v221
    %v6771 = vmul.f32 %v158, %v222
    %v6772 = vmul.f32 %v159, %v223
    %v6773 = vmul.f32 %v160, %v224
    %v6774 = vmul.f32 %v161, %v225
    %v6775 = vmul.f32 %v162, %v226
    %v6776 = vmul.f32 %v163, %v227
    %v6777 = vmul.f32 %v6713, %v6709
    %v6778 = vmul.f32 %v6714, %v6710
    %v6779 = vmul.f32 %v6715, %v6711
    %v6780 = vmul.f32 %v6716, %v6712
    %v6781 = vmul.f32 %v6717, %v6709
    %v6782 = vmul.f32 %v6718, %v6710
    %v6783 = vmul.f32 %v6719, %v6711
    %v6784 = vmul.f32 %v6720, %v6712
    %v6785 = vmul.f32 %v6721, %v6709
    %v6786 = vmul.f32 %v6722, %v6710
    %v6787 = vmul.f32 %v6723, %v6711
    %v6788 = vmul.f32 %v6724, %v6712
    %v6789 = vmul.f32 %v6725, %v6709
    %v6790 = vmul.f32 %v6726, %v6710
    %v6791 = vmul.f32 %v6727, %v6711
    %v6792 = vmul.f32 %v6728, %v6712
    %v6793 = vmul.f32 %v6729, %v6709
    %v6794 = vmul.f32 %v6730, %v6710
    %v6795 = vmul.f32 %v6731, %v6711
    %v6796 = vmul.f32 %v6732, %v6712
    %v6797 = vmul.f32 %v6733, %v6709
    %v6798 = vmul.f32 %v6734, %v6710
    %v6799 = vmul.f32 %v6735, %v6711
    %v6800 = vmul.f32 %v6736, %v6712
    %v6801 = vmul.f32 %v6737, %v6709
    %v6802 = vmul.f32 %v6738, %v6710
    %v6803 = vmul.f32 %v6739, %v6711
    %v6804 = vmul.f32 %v6740, %v6712
    %v6805 = vmul.f32 %v6741, %v6709
    %v6806 = vmul.f32 %v6742, %v6710
    %v6807 = vmul.f32 %v6743, %v6711
    %v6808 = vmul.f32 %v6744, %v6712
    %v6809 = vmul.f32 %v6745, %v6709
    %v6810 = vmul.f32 %v6746, %v6710
    %v6811 = vmul.f32 %v6747, %v6711
    %v6812 = vmul.f32 %v6748, %v6712
    %v6813 = vmul.f32 %v6749, %v6709
    %v6814 = vmul.f32 %v6750, %v6710
    %v6815 = vmul.f32 %v6751, %v6711
    %v6816 = vmul.f32 %v6752, %v6712
    %v6817 = vmul.f32 %v6753, %v6709
    %v6818 = vmul.f32 %v6754, %v6710
    %v6819 = vmul.f32 %v6755, %v6711
    %v6820 = vmul.f32 %v6756, %v6712
    %v6821 = vmul.f32 %v6757, %v6709
    %v6822 = vmul.f32 %v6758, %v6710
    %v6823 = vmul.f32 %v6759, %v6711
    %v6824 = vmul.f32 %v6760, %v6712
    %v6825 = vmul.f32 %v6761, %v6709
    %v6826 = vmul.f32 %v6762, %v6710
    %v6827 = vmul.f32 %v6763, %v6711
    %v6828 = vmul.f32 %v6764, %v6712
    %v6829 = vmul.f32 %v6765, %v6709
    %v6830 = vmul.f32 %v6766, %v6710
    %v6831 = vmul.f32 %v6767, %v6711
    %v6832 = vmul.f32 %v6768, %v6712
    %v6833 = vmul.f32 %v6769, %v6709
    %v6834 = vmul.f32 %v6770, %v6710
    %v6835 = vmul.f32 %v6771, %v6711
    %v6836 = vmul.f32 %v6772, %v6712
    %v6837 = vmul.f32 %v6773, %v6709
    %v6838 = vmul.f32 %v6774, %v6710
    %v6839 = vmul.f32 %v6775, %v6711
    %v6840 = vmul.f32 %v6776, %v6712
    %v6841 = vsel %vm244, %v6777, 0.0
    %v6842 = vsel %vm244, %v6778, 0.0
    %v6843 = vadd.f32 %v6841, %v6842
    %v6844 = vsel %vm244, %v6779, 0.0
    %v6845 = vadd.f32 %v6843, %v6844
    %v6846 = vsel %vm244, %v6780, 0.0
    %v6847 = vadd.f32 %v6845, %v6846
    %v6848 = vrot.slane %v6847, 4
    %v6849 = vadd.f32 %v6847, %v6848
    %v6850 = vrot.slane %v6849, 2
    %v6851 = vadd.f32 %v6849, %v6850
    %v6852 = vrot.slane %v6851, 1
    %v6853 = vadd.f32 %v6851, %v6852
    %v6854 = vsel %vm244, %v6781, 0.0
    %v6855 = vsel %vm244, %v6782, 0.0
    %v6856 = vadd.f32 %v6854, %v6855
    %v6857 = vsel %vm244, %v6783, 0.0
    %v6858 = vadd.f32 %v6856, %v6857
    %v6859 = vsel %vm244, %v6784, 0.0
    %v6860 = vadd.f32 %v6858, %v6859
    %v6861 = vrot.slane %v6860, 4
    %v6862 = vadd.f32 %v6860, %v6861
    %v6863 = vrot.slane %v6862, 2
    %v6864 = vadd.f32 %v6862, %v6863
    %v6865 = vrot.slane %v6864, 1
    %v6866 = vadd.f32 %v6864, %v6865
    %v6867 = vsel %vm244, %v6785, 0.0
    %v6868 = vsel %vm244, %v6786, 0.0
    %v6869 = vadd.f32 %v6867, %v6868
    %v6870 = vsel %vm244, %v6787, 0.0
    %v6871 = vadd.f32 %v6869, %v6870
    %v6872 = vsel %vm244, %v6788, 0.0
    %v6873 = vadd.f32 %v6871, %v6872
    %v6874 = vrot.slane %v6873, 4
    %v6875 = vadd.f32 %v6873, %v6874
    %v6876 = vrot.slane %v6875, 2
    %v6877 = vadd.f32 %v6875, %v6876
    %v6878 = vrot.slane %v6877, 1
    %v6879 = vadd.f32 %v6877, %v6878
    %v6880 = vsel %vm244, %v6789, 0.0
    %v6881 = vsel %vm244, %v6790, 0.0
    %v6882 = vadd.f32 %v6880, %v6881
    %v6883 = vsel %vm244, %v6791, 0.0
    %v6884 = vadd.f32 %v6882, %v6883
    %v6885 = vsel %vm244, %v6792, 0.0
    %v6886 = vadd.f32 %v6884, %v6885
    %v6887 = vrot.slane %v6886, 4
    %v6888 = vadd.f32 %v6886, %v6887
    %v6889 = vrot.slane %v6888, 2
    %v6890 = vadd.f32 %v6888, %v6889
    %v6891 = vrot.slane %v6890, 1
    %v6892 = vadd.f32 %v6890, %v6891
    %v6893 = vsel %vm244, %v6793, 0.0
    %v6894 = vsel %vm244, %v6794, 0.0
    %v6895 = vadd.f32 %v6893, %v6894
    %v6896 = vsel %vm244, %v6795, 0.0
    %v6897 = vadd.f32 %v6895, %v6896
    %v6898 = vsel %vm244, %v6796, 0.0
    %v6899 = vadd.f32 %v6897, %v6898
    %v6900 = vrot.slane %v6899, 4
    %v6901 = vadd.f32 %v6899, %v6900
    %v6902 = vrot.slane %v6901, 2
    %v6903 = vadd.f32 %v6901, %v6902
    %v6904 = vrot.slane %v6903, 1
    %v6905 = vadd.f32 %v6903, %v6904
    %v6906 = vsel %vm244, %v6797, 0.0
    %v6907 = vsel %vm244, %v6798, 0.0
    %v6908 = vadd.f32 %v6906, %v6907
    %v6909 = vsel %vm244, %v6799, 0.0
    %v6910 = vadd.f32 %v6908, %v6909
    %v6911 = vsel %vm244, %v6800, 0.0
    %v6912 = vadd.f32 %v6910, %v6911
    %v6913 = vrot.slane %v6912, 4
    %v6914 = vadd.f32 %v6912, %v6913
    %v6915 = vrot.slane %v6914, 2
    %v6916 = vadd.f32 %v6914, %v6915
    %v6917 = vrot.slane %v6916, 1
    %v6918 = vadd.f32 %v6916, %v6917
    %v6919 = vsel %vm244, %v6801, 0.0
    %v6920 = vsel %vm244, %v6802, 0.0
    %v6921 = vadd.f32 %v6919, %v6920
    %v6922 = vsel %vm244, %v6803, 0.0
    %v6923 = vadd.f32 %v6921, %v6922
    %v6924 = vsel %vm244, %v6804, 0.0
    %v6925 = vadd.f32 %v6923, %v6924
    %v6926 = vrot.slane %v6925, 4
    %v6927 = vadd.f32 %v6925, %v6926
    %v6928 = vrot.slane %v6927, 2
    %v6929 = vadd.f32 %v6927, %v6928
    %v6930 = vrot.slane %v6929, 1
    %v6931 = vadd.f32 %v6929, %v6930
    %v6932 = vsel %vm244, %v6805, 0.0
    %v6933 = vsel %vm244, %v6806, 0.0
    %v6934 = vadd.f32 %v6932, %v6933
    %v6935 = vsel %vm244, %v6807, 0.0
    %v6936 = vadd.f32 %v6934, %v6935
    %v6937 = vsel %vm244, %v6808, 0.0
    %v6938 = vadd.f32 %v6936, %v6937
    %v6939 = vrot.slane %v6938, 4
    %v6940 = vadd.f32 %v6938, %v6939
    %v6941 = vrot.slane %v6940, 2
    %v6942 = vadd.f32 %v6940, %v6941
    %v6943 = vrot.slane %v6942, 1
    %v6944 = vadd.f32 %v6942, %v6943
    %v6945 = vsel %vm244, %v6809, 0.0
    %v6946 = vsel %vm244, %v6810, 0.0
    %v6947 = vadd.f32 %v6945, %v6946
    %v6948 = vsel %vm244, %v6811, 0.0
    %v6949 = vadd.f32 %v6947, %v6948
    %v6950 = vsel %vm244, %v6812, 0.0
    %v6951 = vadd.f32 %v6949, %v6950
    %v6952 = vrot.slane %v6951, 4
    %v6953 = vadd.f32 %v6951, %v6952
    %v6954 = vrot.slane %v6953, 2
    %v6955 = vadd.f32 %v6953, %v6954
    %v6956 = vrot.slane %v6955, 1
    %v6957 = vadd.f32 %v6955, %v6956
    %v6958 = vsel %vm244, %v6813, 0.0
    %v6959 = vsel %vm244, %v6814, 0.0
    %v6960 = vadd.f32 %v6958, %v6959
    %v6961 = vsel %vm244, %v6815, 0.0
    %v6962 = vadd.f32 %v6960, %v6961
    %v6963 = vsel %vm244, %v6816, 0.0
    %v6964 = vadd.f32 %v6962, %v6963
    %v6965 = vrot.slane %v6964, 4
    %v6966 = vadd.f32 %v6964, %v6965
    %v6967 = vrot.slane %v6966, 2
    %v6968 = vadd.f32 %v6966, %v6967
    %v6969 = vrot.slane %v6968, 1
    %v6970 = vadd.f32 %v6968, %v6969
    %v6971 = vsel %vm244, %v6817, 0.0
    %v6972 = vsel %vm244, %v6818, 0.0
    %v6973 = vadd.f32 %v6971, %v6972
    %v6974 = vsel %vm244, %v6819, 0.0
    %v6975 = vadd.f32 %v6973, %v6974
    %v6976 = vsel %vm244, %v6820, 0.0
    %v6977 = vadd.f32 %v6975, %v6976
    %v6978 = vrot.slane %v6977, 4
    %v6979 = vadd.f32 %v6977, %v6978
    %v6980 = vrot.slane %v6979, 2
    %v6981 = vadd.f32 %v6979, %v6980
    %v6982 = vrot.slane %v6981, 1
    %v6983 = vadd.f32 %v6981, %v6982
    %v6984 = vsel %vm244, %v6821, 0.0
    %v6985 = vsel %vm244, %v6822, 0.0
    %v6986 = vadd.f32 %v6984, %v6985
    %v6987 = vsel %vm244, %v6823, 0.0
    %v6988 = vadd.f32 %v6986, %v6987
    %v6989 = vsel %vm244, %v6824, 0.0
    %v6990 = vadd.f32 %v6988, %v6989
    %v6991 = vrot.slane %v6990, 4
    %v6992 = vadd.f32 %v6990, %v6991
    %v6993 = vrot.slane %v6992, 2
    %v6994 = vadd.f32 %v6992, %v6993
    %v6995 = vrot.slane %v6994, 1
    %v6996 = vadd.f32 %v6994, %v6995
    %v6997 = vsel %vm244, %v6825, 0.0
    %v6998 = vsel %vm244, %v6826, 0.0
    %v6999 = vadd.f32 %v6997, %v6998
    %v7000 = vsel %vm244, %v6827, 0.0
    %v7001 = vadd.f32 %v6999, %v7000
    %v7002 = vsel %vm244, %v6828, 0.0
    %v7003 = vadd.f32 %v7001, %v7002
    %v7004 = vrot.slane %v7003, 4
    %v7005 = vadd.f32 %v7003, %v7004
    %v7006 = vrot.slane %v7005, 2
    %v7007 = vadd.f32 %v7005, %v7006
    %v7008 = vrot.slane %v7007, 1
    %v7009 = vadd.f32 %v7007, %v7008
    %v7010 = vsel %vm244, %v6829, 0.0
    %v7011 = vsel %vm244, %v6830, 0.0
    %v7012 = vadd.f32 %v7010, %v7011
    %v7013 = vsel %vm244, %v6831, 0.0
    %v7014 = vadd.f32 %v7012, %v7013
    %v7015 = vsel %vm244, %v6832, 0.0
    %v7016 = vadd.f32 %v7014, %v7015
    %v7017 = vrot.slane %v7016, 4
    %v7018 = vadd.f32 %v7016, %v7017
    %v7019 = vrot.slane %v7018, 2
    %v7020 = vadd.f32 %v7018, %v7019
    %v7021 = vrot.slane %v7020, 1
    %v7022 = vadd.f32 %v7020, %v7021
    %v7023 = vsel %vm244, %v6833, 0.0
    %v7024 = vsel %vm244, %v6834, 0.0
    %v7025 = vadd.f32 %v7023, %v7024
    %v7026 = vsel %vm244, %v6835, 0.0
    %v7027 = vadd.f32 %v7025, %v7026
    %v7028 = vsel %vm244, %v6836, 0.0
    %v7029 = vadd.f32 %v7027, %v7028
    %v7030 = vrot.slane %v7029, 4
    %v7031 = vadd.f32 %v7029, %v7030
    %v7032 = vrot.slane %v7031, 2
    %v7033 = vadd.f32 %v7031, %v7032
    %v7034 = vrot.slane %v7033, 1
    %v7035 = vadd.f32 %v7033, %v7034
    %v7036 = vsel %vm244, %v6837, 0.0
    %v7037 = vsel %vm244, %v6838, 0.0
    %v7038 = vadd.f32 %v7036, %v7037
    %v7039 = vsel %vm244, %v6839, 0.0
    %v7040 = vadd.f32 %v7038, %v7039
    %v7041 = vsel %vm244, %v6840, 0.0
    %v7042 = vadd.f32 %v7040, %v7041
    %v7043 = vrot.slane %v7042, 4
    %v7044 = vadd.f32 %v7042, %v7043
    %v7045 = vrot.slane %v7044, 2
    %v7046 = vadd.f32 %v7044, %v7045
    %v7047 = vrot.slane %v7046, 1
    %v7048 = vadd.f32 %v7046, %v7047
    %v7049 = vmul.f32 %v3445, %v3445
    %v7050 = vmul.f32 %v3446, %v3446
    %v7051 = vmul.f32 %v3447, %v3447
    %v7052 = vmul.f32 %v3448, %v3448
    %v7053 = vmul.f32 %v3449, %v3449
    %v7054 = vmul.f32 %v3450, %v3450
    %v7055 = vmul.f32 %v3451, %v3451
    %v7056 = vmul.f32 %v3452, %v3452
    %v7057 = vmul.f32 %v3453, %v3453
    %v7058 = vmul.f32 %v3454, %v3454
    %v7059 = vmul.f32 %v3455, %v3455
    %v7060 = vmul.f32 %v3456, %v3456
    %v7061 = vmul.f32 %v3457, %v3457
    %v7062 = vmul.f32 %v3458, %v3458
    %v7063 = vmul.f32 %v3459, %v3459
    %v7064 = vmul.f32 %v3460, %v3460
    %v7065 = vsub.f32 1.0, %v7049
    %v7066 = vsub.f32 1.0, %v7050
    %v7067 = vsub.f32 1.0, %v7051
    %v7068 = vsub.f32 1.0, %v7052
    %v7069 = vsub.f32 1.0, %v7053
    %v7070 = vsub.f32 1.0, %v7054
    %v7071 = vsub.f32 1.0, %v7055
    %v7072 = vsub.f32 1.0, %v7056
    %v7073 = vsub.f32 1.0, %v7057
    %v7074 = vsub.f32 1.0, %v7058
    %v7075 = vsub.f32 1.0, %v7059
    %v7076 = vsub.f32 1.0, %v7060
    %v7077 = vsub.f32 1.0, %v7061
    %v7078 = vsub.f32 1.0, %v7062
    %v7079 = vsub.f32 1.0, %v7063
    %v7080 = vsub.f32 1.0, %v7064
    %v7081 = vmul.f32 %v7065, %v6853
    %v7082 = vmul.f32 %v7066, %v6866
    %v7083 = vmul.f32 %v7067, %v6879
    %v7084 = vmul.f32 %v7068, %v6892
    %v7085 = vmul.f32 %v7069, %v6905
    %v7086 = vmul.f32 %v7070, %v6918
    %v7087 = vmul.f32 %v7071, %v6931
    %v7088 = vmul.f32 %v7072, %v6944
    %v7089 = vmul.f32 %v7073, %v6957
    %v7090 = vmul.f32 %v7074, %v6970
    %v7091 = vmul.f32 %v7075, %v6983
    %v7092 = vmul.f32 %v7076, %v6996
    %v7093 = vmul.f32 %v7077, %v7009
    %v7094 = vmul.f32 %v7078, %v7022
    %v7095 = vmul.f32 %v7079, %v7035
    %v7096 = vmul.f32 %v7080, %v7048
    %v7097 = vadd.f32 %v7081, 1.0
    %v7098 = vadd.f32 %v7082, 1.0
    %v7099 = vadd.f32 %v7083, 1.0
    %v7100 = vadd.f32 %v7084, 1.0
    %v7101 = vadd.f32 %v7085, 1.0
    %v7102 = vadd.f32 %v7086, 1.0
    %v7103 = vadd.f32 %v7087, 1.0
    %v7104 = vadd.f32 %v7088, 1.0
    %v7105 = vadd.f32 %v7089, 1.0
    %v7106 = vadd.f32 %v7090, 1.0
    %v7107 = vadd.f32 %v7091, 1.0
    %v7108 = vadd.f32 %v7092, 1.0
    %v7109 = vadd.f32 %v7093, 1.0
    %v7110 = vadd.f32 %v7094, 1.0
    %v7111 = vadd.f32 %v7095, 1.0
    %v7112 = vadd.f32 %v7096, 1.0
    %v7113 = vand.u32 2147483647, %v7097
    %v7114 = vand.u32 2147483647, %v7098
    %v7115 = vand.u32 2147483647, %v7099
    %v7116 = vand.u32 2147483647, %v7100
    %v7117 = vand.u32 2147483647, %v7101
    %v7118 = vand.u32 2147483647, %v7102
    %v7119 = vand.u32 2147483647, %v7103
    %v7120 = vand.u32 2147483647, %v7104
    %v7121 = vand.u32 2147483647, %v7105
    %v7122 = vand.u32 2147483647, %v7106
    %v7123 = vand.u32 2147483647, %v7107
    %v7124 = vand.u32 2147483647, %v7108
    %v7125 = vand.u32 2147483647, %v7109
    %v7126 = vand.u32 2147483647, %v7110
    %v7127 = vand.u32 2147483647, %v7111
    %v7128 = vand.u32 2147483647, %v7112
    %v7129 = vlog2.pop %v7113
    %v7130 = vmul.f32 %v7129, 0.6931472
    %v7131 = vlog2.pop %v7114
    %v7132 = vmul.f32 %v7131, 0.6931472
    %v7133 = vlog2.pop %v7115
    %v7134 = vmul.f32 %v7133, 0.6931472
    %v7135 = vlog2.pop %v7116
    %v7136 = vmul.f32 %v7135, 0.6931472
    %v7137 = vlog2.pop %v7117
    %v7138 = vmul.f32 %v7137, 0.6931472
    %v7139 = vlog2.pop %v7118
    %v7140 = vmul.f32 %v7139, 0.6931472
    %v7141 = vlog2.pop %v7119
    %v7142 = vmul.f32 %v7141, 0.6931472
    %v7143 = vlog2.pop %v7120
    %v7144 = vmul.f32 %v7143, 0.6931472
    %v7145 = vlog2.pop %v7121
    %v7146 = vmul.f32 %v7145, 0.6931472
    %v7147 = vlog2.pop %v7122
    %v7148 = vmul.f32 %v7147, 0.6931472
    %v7149 = vlog2.pop %v7123
    %v7150 = vmul.f32 %v7149, 0.6931472
    %v7151 = vlog2.pop %v7124
    %v7152 = vmul.f32 %v7151, 0.6931472
    %v7153 = vlog2.pop %v7125
    %v7154 = vmul.f32 %v7153, 0.6931472
    %v7155 = vlog2.pop %v7126
    %v7156 = vmul.f32 %v7155, 0.6931472
    %v7157 = vlog2.pop %v7127
    %v7158 = vmul.f32 %v7157, 0.6931472
    %v7159 = vlog2.pop %v7128
    %v7160 = vmul.f32 %v7159, 0.6931472
    %7161 = vst.msk [vmem:[#allocation11] sm:$0x1] %vm6677, %v7130
    %7162 = vst.msk [vmem:[#allocation11 + $0x1] sm:$0x1] %vm6677, %v7132
    %7163 = vst.msk [vmem:[#allocation11 + $0x2] sm:$0x1] %vm6677, %v7134
    %7164 = vst.msk [vmem:[#allocation11 + $0x3] sm:$0x1] %vm6677, %v7136
    %7165 = vst.msk [vmem:[#allocation11 + $0x4] sm:$0x1] %vm6677, %v7138
    %7166 = vst.msk [vmem:[#allocation11 + $0x5] sm:$0x1] %vm6677, %v7140
    %7167 = vst.msk [vmem:[#allocation11 + $0x6] sm:$0x1] %vm6677, %v7142
    %7168 = vst.msk [vmem:[#allocation11 + $0x7] sm:$0x1] %vm6677, %v7144
    %7169 = vst.msk [vmem:[#allocation11 + $0x8] sm:$0x1] %vm6677, %v7146
    %7170 = vst.msk [vmem:[#allocation11 + $0x9] sm:$0x1] %vm6677, %v7148
    %7171 = vst.msk [vmem:[#allocation11 + $0xa] sm:$0x1] %vm6677, %v7150
    %7172 = vst.msk [vmem:[#allocation11 + $0xb] sm:$0x1] %vm6677, %v7152
    %7173 = vst.msk [vmem:[#allocation11 + $0xc] sm:$0x1] %vm6677, %v7154
    %7174 = vst.msk [vmem:[#allocation11 + $0xd] sm:$0x1] %vm6677, %v7156
    %7175 = vst.msk [vmem:[#allocation11 + $0xe] sm:$0x1] %vm6677, %v7158
    %7176 = vst.msk [vmem:[#allocation11 + $0xf] sm:$0x1] %vm6677, %v7160
    // Predicated region
    $region34: #{tpu_custom_call.1} parent=1 // pred_check
      _
    $region35: #{tpu_custom_call.1} parent=1 // pred_check_branch
      %7178 = sbr.rel (0) target = $region37
    $region36: #{tpu_custom_call.1} parent=1 // pred_region
      %7180 = vsyncadd [#allocation4], 0
      %s7181 = sshll.u32 [#allocation10], 4
      %s7182 = int_to_ptr.vmem [resolvable:$true] %s7181
      %s7183 = sshll.u32 %s4, 4
      %s7184 = int_to_ptr.hbm [resolvable:$true] %s7183
      %7189 = dma.vmem_to_hbm [thread:$0]  %s7182, 256, %s7184, [#allocation4], 16, 16, 1
    $region37: #{tpu_custom_call.1} parent=1 // pred_fallthru
      _
    // Predicated region
    $region38: #{tpu_custom_call.1} parent=1 // pred_check
      _
    $region39: #{tpu_custom_call.1} parent=1 // pred_check_branch
      %7191 = sbr.rel (0) target = $region41
    $region40: #{tpu_custom_call.1} parent=1 // pred_region
      %7193 = vsyncadd [#allocation12], 0
      %s7194 = sshll.u32 [#allocation11], 4
      %s7195 = int_to_ptr.vmem [resolvable:$true] %s7194
      %s7196 = sshll.u32 %s5, 4
      %s7197 = int_to_ptr.hbm [resolvable:$true] %s7196
      %7202 = dma.vmem_to_hbm [thread:$0]  %s7195, 256, %s7197, [#allocation12], 16, 16, 1
    $region41: #{tpu_custom_call.1} parent=1 // pred_fallthru
      _
    // Predicated region
    $region42: #{tpu_custom_call.1} parent=1 // pred_check
      _
    $region43: #{tpu_custom_call.1} parent=1 // pred_check_branch
      %7204 = sbr.rel (0) target = $region45
    $region44: #{tpu_custom_call.1} parent=1 // pred_region
      %7206 = dma.done [#allocation4], 256
    $region45: #{tpu_custom_call.1} parent=1 // pred_fallthru
      _
    // Predicated region
    $region46: #{tpu_custom_call.1} parent=1 // pred_check
      _
    $region47: #{tpu_custom_call.1} parent=1 // pred_check_branch
      %7208 = sbr.rel (0) target = $region49
    $region48: #{tpu_custom_call.1} parent=1 // pred_region
      %7210 = dma.done [#allocation12], 256
    $region49: #{tpu_custom_call.1} parent=1 // pred_fallthru
      _
    %7211 = vsyncpa [#allocation3], 1
    %7212 = vsyncpa [#allocation6], 1
    %7213 = vsyncpa [#allocation9], 1
    %7214 = vsyncpa [#allocation4], 1
    %7215 = vsyncpa [#allocation12], 1

</llo_original>
